<compile_context>
chip_gen: v5e
topology: v5e:2x2
jax: 0.10.0
libtpu: 0.0.40
codegen_flags: <defaults>
</compile_context>

<pallas_src>
import collections
import functools

import numpy as np
import jax
import jax.numpy as jnp
from jax.experimental import pallas as pl
from jax.experimental.pallas import tpu as pltpu


TransMOTConfig = collections.namedtuple(
    "TransMOTConfig", ["input_size", "d_model", "nhead", "dff", "n_enc", "n_dec"])


# ----------------------------- in-kernel helpers (traced inline) ------------------------------

def _ln(v, g, b, eps=1e-5):
    # LayerNorm over the last dim (biased variance, like torch.nn.LayerNorm).
    mu = jnp.mean(v, axis=-1, keepdims=True)
    c = v - mu
    var = jnp.mean(c * c, axis=-1, keepdims=True)
    return c * jax.lax.rsqrt(var + eps) * g + b


def _ffn(x, w1, b1, w2, b2):
    h = jnp.dot(x, w1, preferred_element_type=jnp.float32) + b1
    h = jnp.maximum(h, 0.0)
    return jnp.dot(h, w2, preferred_element_type=jnp.float32) + b2


def _attn(xq, xkv, bias, wq, bq, wk, bk, wv, bv, wo, bo, nhead, scale):
    # xq: (Lq, D), xkv: (Lk, D), bias: (Lq, Lk) or (1, Lk) additive logits bias.
    q = (jnp.dot(xq, wq, preferred_element_type=jnp.float32) + bq) * scale
    k = jnp.dot(xkv, wk, preferred_element_type=jnp.float32) + bk
    v = jnp.dot(xkv, wv, preferred_element_type=jnp.float32) + bv
    D = q.shape[-1]
    dh = D // nhead
    ctx = []
    for h in range(nhead):                               # static unroll over heads
        sl = slice(h * dh, (h + 1) * dh)
        s = jax.lax.dot_general(q[:, sl], k[:, sl], (((1,), (1,)), ((), ())),
                                preferred_element_type=jnp.float32) + bias
        s = s - jnp.max(s, axis=-1, keepdims=True)
        p = jnp.exp(s)
        p = p * pl.reciprocal(jnp.sum(p, axis=-1, keepdims=True), approx=True)
        ctx.append(jnp.dot(p, v[:, sl], preferred_element_type=jnp.float32))
    ctx = jnp.concatenate(ctx, axis=-1)                  # (Lq, D): single K=D output projection
    return jnp.dot(ctx, wo, preferred_element_type=jnp.float32) + bo


# ----------------------------- Pallas kernels ------------------------------

def _enc_stack_kernel(x_ref, ab_ref, kb_ref,
                      wq_ref, bq_ref, wk_ref, bk_ref, wv_ref, bv_ref, wo_ref, bo_ref,
                      g1_ref, be1_ref, w1_ref, fb1_ref, w2_ref, fb2_ref, g2_ref, be2_ref,
                      o_ref, *, nhead, scale):
    # grid = (batch, n_layers); activation stays resident in the revisited output block.
    layer = pl.program_id(1)

    @pl.when(layer == 0)
    def _():
        o_ref[0] = x_ref[0]

    x = o_ref[0]                                         # (L, D)
    bias = ab_ref[0] + kb_ref[0]                         # (L, L) shared + (1, L) key padding
    sa = _attn(x, x, bias, wq_ref[0], bq_ref[0], wk_ref[0], bk_ref[0],
               wv_ref[0], bv_ref[0], wo_ref[0], bo_ref[0], nhead, scale)
    y = _ln(x + sa, g1_ref[0], be1_ref[0])
    ff = _ffn(y, w1_ref[0], fb1_ref[0], w2_ref[0], fb2_ref[0])
    o_ref[0] = _ln(y + ff, g2_ref[0], be2_ref[0])


def _sa_ln_kernel(x_ref, ab_ref, wq_ref, bq_ref, wk_ref, bk_ref, wv_ref, bv_ref,
                  wo_ref, bo_ref, g_ref, be_ref, o_ref, *, nhead, scale):
    x = x_ref[0]
    sa = _attn(x, x, ab_ref[0], wq_ref[...], bq_ref[...], wk_ref[...], bk_ref[...],
               wv_ref[...], bv_ref[...], wo_ref[...], bo_ref[...], nhead, scale)
    o_ref[0] = _ln(x + sa, g_ref[...], be_ref[...])


def _ca_ffn_kernel(x_ref, m_ref, kb_ref,
                   wq_ref, bq_ref, wk_ref, bk_ref, wv_ref, bv_ref, wo_ref, bo_ref,
                   g2_ref, be2_ref, w1_ref, fb1_ref, w2_ref, fb2_ref, g3_ref, be3_ref,
                   o_ref, *, nhead, scale):
    x = x_ref[0]                                         # (Lq, D) queries
    mem = m_ref[0]                                       # (T, D) keys/values for this memory slot
    ca = _attn(x, mem, kb_ref[0], wq_ref[...], bq_ref[...], wk_ref[...], bk_ref[...],
               wv_ref[...], bv_ref[...], wo_ref[...], bo_ref[...], nhead, scale)
    y = _ln(x + ca, g2_ref[...], be2_ref[...])
    ff = _ffn(y, w1_ref[...], fb1_ref[...], w2_ref[...], fb2_ref[...])
    o_ref[0] = _ln(y + ff, g3_ref[...], be3_ref[...])


def _dec_first_sa_kernel(x_ref, wv_ref, bv_ref, wo_ref, bo_ref, g_ref, be_ref, o_ref):
    # Self-attention with a single key/query per batch element: softmax == 1,
    # so attn(x) = out_proj(V(x)); any attn_mask / key_padding is a softmax no-op.
    x = x_ref[...]
    v = jnp.dot(x, wv_ref[...], preferred_element_type=jnp.float32) + bv_ref[...]
    sa = jnp.dot(v, wo_ref[...], preferred_element_type=jnp.float32) + bo_ref[...]
    o_ref[...] = _ln(x + sa, g_ref[...], be_ref[...])


def _embed_kernel(x_ref, w_ref, b_ref, m_ref, o_ref):
    # relu(x @ W + b) * presence_mask
    y = jnp.dot(x_ref[...], w_ref[...], preferred_element_type=jnp.float32) + b_ref[...]
    o_ref[...] = jnp.maximum(y, 0.0) * m_ref[...]


def _proj_kernel(x_ref, w_ref, o_ref):
    o_ref[...] = jnp.dot(x_ref[...], w_ref[...], preferred_element_type=jnp.float32)


# ----------------------------- kernel wrappers ------------------------------

def _full_spec(shape):
    return pl.BlockSpec(shape, lambda *_: (0,) * len(shape))


def embed_relu_mask(x, w, b, m):
    M, K = x.shape
    Nout = w.shape[1]
    return pl.pallas_call(
        _embed_kernel,
        out_shape=jax.ShapeDtypeStruct((M, Nout), jnp.float32),
        grid=(1,),
        in_specs=[_full_spec((M, K)), _full_spec((K, Nout)),
                  _full_spec((1, Nout)), _full_spec((M, 1))],
        out_specs=_full_spec((M, Nout)),
    )(x, w, b, m)


def proj_nobias(x, w):
    M, K = x.shape
    Nout = w.shape[1]
    return pl.pallas_call(
        _proj_kernel,
        out_shape=jax.ShapeDtypeStruct((M, Nout), jnp.float32),
        grid=(1,),
        in_specs=[_full_spec((M, K)), _full_spec((K, Nout))],
        out_specs=_full_spec((M, Nout)),
    )(x, w)


def encoder_stack(x, attn_bias, key_bias, sp, nhead):
    # x: (B, L, D); attn_bias: (1, L, L) shared across batch; key_bias: (B, 1, L);
    # sp: per-layer parameters stacked along a leading n_layers axis.
    B, L, D = x.shape
    nl = sp['wq'].shape[0]
    Dff = sp['w1'].shape[2]
    scale = 1.0 / float(D // nhead) ** 0.5
    dd = pl.BlockSpec((1, D, D), lambda b, l: (l, 0, 0))
    d1 = pl.BlockSpec((1, 1, D), lambda b, l: (l, 0, 0))
    return pl.pallas_call(
        functools.partial(_enc_stack_kernel, nhead=nhead, scale=scale),
        out_shape=jax.ShapeDtypeStruct((B, L, D), jnp.float32),
        grid=(B, nl),
        in_specs=[
            pl.BlockSpec((1, L, D), lambda b, l: (b, 0, 0)),     # x (read only at layer 0)
            pl.BlockSpec((1, L, L), lambda b, l: (0, 0, 0)),     # shared attention bias
            pl.BlockSpec((1, 1, L), lambda b, l: (b, 0, 0)),     # per-batch key-padding bias row
            dd, d1, dd, d1, dd, d1, dd, d1,                      # wq bq wk bk wv bv wo bo
            d1, d1,                                              # ln1 gamma / beta
            pl.BlockSpec((1, D, Dff), lambda b, l: (l, 0, 0)),   # ffn w1
            pl.BlockSpec((1, 1, Dff), lambda b, l: (l, 0, 0)),   # ffn b1
            pl.BlockSpec((1, Dff, D), lambda b, l: (l, 0, 0)),   # ffn w2
            d1,                                                  # ffn b2
            d1, d1,                                              # ln2 gamma / beta
        ],
        out_specs=pl.BlockSpec((1, L, D), lambda b, l: (b, 0, 0)),
        compiler_params=pltpu.CompilerParams(
            dimension_semantics=("parallel", "arbitrary")),
    )(x, attn_bias, key_bias,
      sp['wq'], sp['bq'], sp['wk'], sp['bk'], sp['wv'], sp['bv'], sp['wo'], sp['bo'],
      sp['g1'], sp['be1'], sp['w1'], sp['fb1'], sp['w2'], sp['fb2'], sp['g2'], sp['be2'])


def dec_self_attn_ln(x, attn_bias, ap, lnp, nhead):
    # x: (B, L, D) batch-major; attn_bias: (1, L, L) shared additive bias.
    B, L, D = x.shape
    scale = 1.0 / float(D // nhead) ** 0.5
    dd = pl.BlockSpec((D, D), lambda b: (0, 0))
    d1 = pl.BlockSpec((1, D), lambda b: (0, 0))
    return pl.pallas_call(
        functools.partial(_sa_ln_kernel, nhead=nhead, scale=scale),
        out_shape=jax.ShapeDtypeStruct((B, L, D), jnp.float32),
        grid=(B,),
        in_specs=[pl.BlockSpec((1, L, D), lambda b: (b, 0, 0)),
                  pl.BlockSpec((1, L, L), lambda b: (0, 0, 0)),
                  dd, d1, dd, d1, dd, d1, dd, d1, d1, d1],
        out_specs=pl.BlockSpec((1, L, D), lambda b: (b, 0, 0)),
        compiler_params=pltpu.CompilerParams(dimension_semantics=("parallel",)),
    )(x, attn_bias, ap['wq'], ap['bq'], ap['wk'], ap['bk'], ap['wv'], ap['bv'],
      ap['wo'], ap['bo'], lnp['g'], lnp['b'])


def dec_cross_attn_ffn(x, memory, key_bias, ap, ln2, fp, ln3, nhead):
    # x: (1, Lq, D) (replicated across the memory batch via a constant index_map -> realizes the
    # first-layer `repeat` without materializing it) or (Bm, Lq, D).
    # memory: (Bm, T, D) batch-major; key_bias: (Bm, 1, T).
    Bm, T, D = memory.shape
    Lq = x.shape[1]
    Dff = fp['w1'].shape[1]
    scale = 1.0 / float(D // nhead) ** 0.5
    if x.shape[0] == 1:
        x_map = lambda b: (0, 0, 0)
    else:
        x_map = lambda b: (b, 0, 0)
    dd = pl.BlockSpec((D, D), lambda b: (0, 0))
    d1 = pl.BlockSpec((1, D), lambda b: (0, 0))
    return pl.pallas_call(
        functools.partial(_ca_ffn_kernel, nhead=nhead, scale=scale),
        out_shape=jax.ShapeDtypeStruct((Bm, Lq, D), jnp.float32),
        grid=(Bm,),
        in_specs=[pl.BlockSpec((1, Lq, D), x_map),
                  pl.BlockSpec((1, T, D), lambda b: (b, 0, 0)),
                  pl.BlockSpec((1, 1, T), lambda b: (b, 0, 0)),
                  dd, d1, dd, d1, dd, d1, dd, d1,
                  d1, d1,
                  pl.BlockSpec((D, Dff), lambda b: (0, 0)),
                  pl.BlockSpec((1, Dff), lambda b: (0, 0)),
                  pl.BlockSpec((Dff, D), lambda b: (0, 0)),
                  d1,
                  d1, d1],
        out_specs=pl.BlockSpec((1, Lq, D), lambda b: (b, 0, 0)),
        compiler_params=pltpu.CompilerParams(dimension_semantics=("parallel",)),
    )(x, memory, key_bias,
      ap['wq'], ap['bq'], ap['wk'], ap['bk'], ap['wv'], ap['bv'], ap['wo'], ap['bo'],
      ln2['g'], ln2['b'], fp['w1'], fp['b1'], fp['w2'], fp['b2'], ln3['g'], ln3['b'])


def dec_first_self_attn_ln(x2d, ap, lnp):
    M, D = x2d.shape
    return pl.pallas_call(
        _dec_first_sa_kernel,
        out_shape=jax.ShapeDtypeStruct((M, D), jnp.float32),
        grid=(1,),
        in_specs=[_full_spec((M, D)), _full_spec((D, D)), _full_spec((1, D)),
                  _full_spec((D, D)), _full_spec((1, D)),
                  _full_spec((1, D)), _full_spec((1, D))],
        out_specs=_full_spec((M, D)),
    )(x2d, ap['wv'], ap['bv'], ap['wo'], ap['bo'], lnp['g'], lnp['b'])


# ----------------------------- model (glue + kernels) ------------------------------

def reformulate_feature(feature, input_size):
    bbox = feature[:, :, -4:]
    result_size = input_size - 4
    if result_size == 0:
        return bbox
    img = feature[:, :, :-4]
    Tn, Nn, M = img.shape
    img = img.reshape(Tn, Nn, M // result_size, result_size).mean(axis=2)
    return jnp.concatenate([bbox, img], axis=2)


def transmot_forward(params, enc_feature, enc_edge_weight, enc_mask,
                     dec_feature, dec_edge_weight, dec_mask, *, cfg, keep_idx):
    d_model, nhead, input_size = cfg.d_model, cfg.nhead, cfg.input_size

    # ---- encoder embedding: relu(Linear(reformulate(x))) * mask ----
    ef = reformulate_feature(enc_feature, input_size)
    T_, N_, F_ = ef.shape
    ef = embed_relu_mask(ef.reshape(T_ * N_, F_), params['emb_w'], params['emb_b'],
                         enc_mask.reshape(T_ * N_, 1)).reshape(T_, N_, d_model)

    # ---- spatial encoder: batch = frames T, seq = objects N (all layers in one pallas_call) ----
    sp_bias = enc_edge_weight[None].astype(jnp.float32)                  # (1, N, N), shared
    sp_kbias = jnp.zeros((T_, 1, N_), jnp.float32)                       # no key padding
    x = encoder_stack(ef, sp_bias, sp_kbias, params['spatial'], nhead)   # (T, N, D)

    # ---- drop objects absent in every frame (static indices from the host-side input mask) ----
    keep = jnp.asarray(keep_idx, jnp.int32)
    x = jnp.transpose(x, (1, 0, 2))[keep]                                # (N', T, D)
    new_enc_mask = ~(enc_mask.astype(jnp.bool_).T[keep])                 # (N', T), True = padded

    # ---- temporal encoder: batch = objects N', seq = frames T ----
    t_bias = jnp.zeros((1, T_, T_), jnp.float32)
    t_kbias = jnp.where(new_enc_mask[:, None, :], -1e9, 0.0).astype(jnp.float32)  # (N', 1, T)
    x = encoder_stack(x, t_bias, t_kbias, params['temporal'], nhead)     # (N', T, D)

    # ---- memory (kept batch-major): pad a leading all-ones object token ----
    memory = jnp.pad(x, ((1, 0), (0, 0), (0, 0)), constant_values=1.0)   # (N'+1, T, D)
    mem_mask = jnp.pad(new_enc_mask, ((1, 0), (0, 0)), constant_values=False)     # (N'+1, T)
    mem_kbias = jnp.where(mem_mask[:, None, :], -1e9, 0.0).astype(jnp.float32)    # (N'+1, 1, T)
    Bm = memory.shape[0]

    # ---- decoder embedding ----
    df = reformulate_feature(dec_feature, input_size)
    Td_, Nd_, Fd_ = df.shape
    df = embed_relu_mask(df.reshape(Td_ * Nd_, Fd_), params['emb_w'], params['emb_b'],
                         dec_mask.reshape(Td_ * Nd_, 1))                 # (Nd, D)

    # ---- decoder layer 0: trivial self-attn (seq len 1) + LN1, then repeat via constant
    #      BlockSpec, cross-attn + LN2 + FFN + LN3 ----
    p0 = params['decoder'][0]
    # TODO(synk): w_X / tgt_key_padding_mask are shape-incompatible with the seq-len-1 first-layer
    # self-attention in the reference; with a single key the softmax is 1 regardless, so omitted.
    x1 = dec_first_self_attn_ln(df, p0['sa'], p0['ln1'])                 # (Nd, D)
    out = dec_cross_attn_ffn(x1[None], memory, mem_kbias, p0['ca'],
                             p0['ln2'], p0['ffn'], p0['ln3'], nhead)     # (Bm, Nd, D)

    # ---- decoder layers >= 1 ----
    dec_sa_bias = dec_edge_weight[None].astype(jnp.float32)              # (1, Bm, Bm)
    for p in params['decoder'][1:]:
        # TODO(synk): tgt_key_padding_mask (dec_mask) has an incompatible shape for these layers
        # in the reference; only the additive edge-weight attn_mask is applied.
        xb = jnp.transpose(out, (1, 0, 2))                               # (Nd, Bm, D), batch = Nd
        y = dec_self_attn_ln(xb, dec_sa_bias, p['sa'], p['ln1'], nhead)  # (Nd, Bm, D)
        yb = jnp.transpose(y, (1, 0, 2))                                 # (Bm, Nd, D), batch = Bm
        out = dec_cross_attn_ffn(yb, memory, mem_kbias, p['ca'],
                                 p['ln2'], p['ffn'], p['ln3'], nhead)    # (Bm, Nd, D)

    # ---- final projection (d_model -> 1, no bias) and squeeze -> (Nd, N'+1) ----
    scores = proj_nobias(out.reshape(Bm * Nd_, d_model), params['proj_w'])
    return jnp.transpose(scores.reshape(Bm, Nd_))


# ----------------------------- deterministic parameter init ------------------------------

def _mha_params(key, d):
    ks = jax.random.split(key, 8)
    s = 0.05
    return dict(
        wq=jax.random.normal(ks[0], (d, d)) * s, bq=jax.random.normal(ks[1], (1, d)) * s,
        wk=jax.random.normal(ks[2], (d, d)) * s, bk=jax.random.normal(ks[3], (1, d)) * s,
        wv=jax.random.normal(ks[4], (d, d)) * s, bv=jax.random.normal(ks[5], (1, d)) * s,
        wo=jax.random.normal(ks[6], (d, d)) * s, bo=jax.random.normal(ks[7], (1, d)) * s)


def _ln_params(d):
    return dict(g=jnp.ones((1, d), jnp.float32), b=jnp.zeros((1, d), jnp.float32))


def _ffn_params(key, d, dff):
    k1, k2, k3, k4 = jax.random.split(key, 4)
    s = 0.05
    return dict(w1=jax.random.normal(k1, (d, dff)) * s, b1=jax.random.normal(k2, (1, dff)) * s,
                w2=jax.random.normal(k3, (dff, d)) * s, b2=jax.random.normal(k4, (1, d)) * s)


def _stack_encoder_layers(layers):
    st = lambda get: jnp.stack([get(p) for p in layers], axis=0)
    return dict(
        wq=st(lambda p: p['attn']['wq']), bq=st(lambda p: p['attn']['bq']),
        wk=st(lambda p: p['attn']['wk']), bk=st(lambda p: p['attn']['bk']),
        wv=st(lambda p: p['attn']['wv']), bv=st(lambda p: p['attn']['bv']),
        wo=st(lambda p: p['attn']['wo']), bo=st(lambda p: p['attn']['bo']),
        g1=st(lambda p: p['ln1']['g']), be1=st(lambda p: p['ln1']['b']),
        w1=st(lambda p: p['ffn']['w1']), fb1=st(lambda p: p['ffn']['b1']),
        w2=st(lambda p: p['ffn']['w2']), fb2=st(lambda p: p['ffn']['b2']),
        g2=st(lambda p: p['ln2']['g']), be2=st(lambda p: p['ln2']['b']))


def init_params(key, cfg):
    d, dff = cfg.d_model, cfg.dff
    keys = jax.random.split(key, 6)

    def enc_layer(k):
        k1, k2 = jax.random.split(k)
        return dict(attn=_mha_params(k1, d), ffn=_ffn_params(k2, d, dff),
                    ln1=_ln_params(d), ln2=_ln_params(d))

    def dec_layer(k):
        k1, k2, k3 = jax.random.split(k, 3)
        return dict(sa=_mha_params(k1, d), ca=_mha_params(k2, d), ffn=_ffn_params(k3, d, dff),
                    ln1=_ln_params(d), ln2=_ln_params(d), ln3=_ln_params(d))

    params = dict(
        emb_w=jax.random.normal(keys[0], (cfg.input_size, d)) * 0.05,
        emb_b=jax.random.normal(keys[1], (1, d)) * 0.05,
        spatial=_stack_encoder_layers([enc_layer(k) for k in jax.random.split(keys[2], cfg.n_enc)]),
        temporal=_stack_encoder_layers([enc_layer(k) for k in jax.random.split(keys[3], cfg.n_enc)]),
        decoder=[dec_layer(k) for k in jax.random.split(keys[4], cfg.n_dec)],
        proj_w=jax.random.normal(keys[5], (d, 1)) * 0.05,
    )
    return jax.tree_util.tree_map(lambda a: jnp.asarray(a, jnp.float32), params)


# ----------------------------- demo ------------------------------

if __name__ == "__main__":
    cfg = TransMOTConfig(input_size=12, d_model=32, nhead=4, dff=64, n_enc=2, n_dec=2)
    T, N, Nd = 4, 8, 6
    F_raw = 4 + (cfg.input_size - 4) * 2           # reformulate averages 2 feature chunks

    key = jax.random.PRNGKey(0)
    kp, k1, k2, k3, k4 = jax.random.split(key, 5)
    params = init_params(kp, cfg)

    enc_feature = jax.random.normal(k1, (T, N, F_raw), jnp.float32)
    dec_feature = jax.random.normal(k2, (1, Nd, F_raw), jnp.float32)
    enc_edge_weight = 0.1 * jax.random.normal(k3, (N, N), jnp.float32)
    dec_edge_weight = 0.1 * jax.random.normal(k4, (N + 1, N + 1), jnp.float32)

    enc_mask = jnp.ones((T, N), jnp.float32)
    enc_mask = enc_mask.at[0, 3].set(0.0).at[2, 5].set(0.0)   # every object present somewhere
    dec_mask = jnp.ones((1, Nd), jnp.float32).at[0, Nd - 1].set(0.0)

    # Static object-compaction indices, computed on the host from the INPUT mask
    # (no mid-forward device->host sync; the whole forward is jittable).
    m_np = np.asarray(enc_mask).astype(bool).T                 # (N, T)
    keep_idx = tuple(int(i) for i in np.nonzero(m_np.sum(axis=1) != 0)[0])

    fwd = jax.jit(functools.partial(transmot_forward, cfg=cfg, keep_idx=keep_idx))
    out = jax.block_until_ready(fwd(params, enc_feature, enc_edge_weight, enc_mask,
                                    dec_feature, dec_edge_weight, dec_mask))
    assert out.shape == (Nd, N + 1), out.shape
    assert bool(jnp.all(jnp.isfinite(out)))
    print("KERNEL_OK")
</pallas_src>

<mosaic_0001>
module attributes {stable_mosaic.version = 11 : i64} {
  func.func @_embed_kernel(%arg0: i32, %arg1: memref<32x12xf32, #tpu.memory_space<vmem>>, %arg2: memref<12x32xf32, #tpu.memory_space<vmem>>, %arg3: memref<1x32xf32, #tpu.memory_space<vmem>>, %arg4: memref<32x1xf32, #tpu.memory_space<vmem>>, %arg5: memref<32x32xf32, #tpu.memory_space<vmem>>) attributes {dimension_semantics = [#tpu.dimension_semantics<arbitrary>], iteration_bounds = array<i64: 1>, scalar_prefetch = 0 : i64, scratch_operands = 0 : i64, tpu.core_type = #tpu.core_type<tc>, window_params = [{pipeline_mode = #tpu.pipeline_mode<synchronous>, transform_indices = @transform_0, window_bounds = array<i64: 32, 12>}, {pipeline_mode = #tpu.pipeline_mode<synchronous>, transform_indices = @transform_1, window_bounds = array<i64: 12, 32>}, {pipeline_mode = #tpu.pipeline_mode<synchronous>, transform_indices = @transform_2, window_bounds = array<i64: 1, 32>}, {pipeline_mode = #tpu.pipeline_mode<synchronous>, transform_indices = @transform_3, window_bounds = array<i64: 32, 1>}, {pipeline_mode = #tpu.pipeline_mode<synchronous>, transform_indices = @transform_4, window_bounds = array<i64: 32, 32>}]} {
    %c0 = arith.constant 0 : index
    %c0_0 = arith.constant 0 : index
    %0 = vector.load %arg1[%c0, %c0_0] : memref<32x12xf32, #tpu.memory_space<vmem>>, vector<32x12xf32>
    %c0_1 = arith.constant 0 : index
    %c0_2 = arith.constant 0 : index
    %1 = vector.load %arg2[%c0_1, %c0_2] : memref<12x32xf32, #tpu.memory_space<vmem>>, vector<12x32xf32>
    %cst = arith.constant dense<0.000000e+00> : vector<32x32xf32>
    %2 = tpu.matmul %0, %1, %cst {dimension_numbers = #tpu.dot_dimension_numbers<[1], [0], [0], [1], [0, 0, 1, 1], [], []>} : vector<32x12xf32>, vector<12x32xf32>, vector<32x32xf32> -> vector<32x32xf32>
    %c0_3 = arith.constant 0 : index
    %c0_4 = arith.constant 0 : index
    %3 = vector.load %arg3[%c0_3, %c0_4] : memref<1x32xf32, #tpu.memory_space<vmem>>, vector<1x32xf32>
    %4 = vector.broadcast %3 : vector<1x32xf32> to vector<32x32xf32>
    %5 = arith.addf %2, %4 : vector<32x32xf32>
    %cst_5 = arith.constant 0.000000e+00 : f32
    %6 = vector.broadcast %cst_5 : f32 to vector<32x32xf32>
    %7 = arith.maximumf %5, %6 : vector<32x32xf32>
    %c0_6 = arith.constant 0 : index
    %c0_7 = arith.constant 0 : index
    %8 = vector.load %arg4[%c0_6, %c0_7] : memref<32x1xf32, #tpu.memory_space<vmem>>, vector<32x1xf32>
    %9 = vector.broadcast %8 : vector<32x1xf32> to vector<32x32xf32>
    %10 = arith.mulf %7, %9 : vector<32x32xf32>
    %c0_8 = arith.constant 0 : index
    %c0_9 = arith.constant 0 : index
    %11 = vector.load %arg5[%c0_8, %c0_9] : memref<32x32xf32, #tpu.memory_space<vmem>>, vector<32x32xf32>
    tpu.vector_store %arg5[%c0_8, %c0_9], %10 {strides = array<i32>} : memref<32x32xf32, #tpu.memory_space<vmem>>, vector<32x32xf32>,
    return
  }
  func.func @transform_0(%arg0: i32) -> (i32, i32) {
    %c0_i32 = arith.constant 0 : i32
    %c0_i32_0 = arith.constant 0 : i32
    %c0_i32_1 = arith.constant 0 : i32
    return %c0_i32, %c0_i32_0 : i32, i32
  }
  func.func @transform_1(%arg0: i32) -> (i32, i32) {
    %c0_i32 = arith.constant 0 : i32
    %c0_i32_0 = arith.constant 0 : i32
    %c0_i32_1 = arith.constant 0 : i32
    return %c0_i32, %c0_i32_0 : i32, i32
  }
  func.func @transform_2(%arg0: i32) -> (i32, i32) {
    %c0_i32 = arith.constant 0 : i32
    %c0_i32_0 = arith.constant 0 : i32
    %c0_i32_1 = arith.constant 0 : i32
    return %c0_i32, %c0_i32_0 : i32, i32
  }
  func.func @transform_3(%arg0: i32) -> (i32, i32) {
    %c0_i32 = arith.constant 0 : i32
    %c0_i32_0 = arith.constant 0 : i32
    %c0_i32_1 = arith.constant 0 : i32
    return %c0_i32, %c0_i32_0 : i32, i32
  }
  func.func @transform_4(%arg0: i32) -> (i32, i32) {
    %c0_i32 = arith.constant 0 : i32
    %c0_i32_0 = arith.constant 0 : i32
    %c0_i32_1 = arith.constant 0 : i32
    return %c0_i32, %c0_i32_0 : i32, i32
  }
}

module attributes {stable_mosaic.version = 11 : i64} {
  func.func @_enc_stack_kernel(%arg0: i32, %arg1: i32, %arg2: memref<1x8x32xf32, #tpu.memory_space<vmem>>, %arg3: memref<1x8x8xf32, #tpu.memory_space<vmem>>, %arg4: memref<1x1x8xf32, #tpu.memory_space<vmem>>, %arg5: memref<1x32x32xf32, #tpu.memory_space<vmem>>, %arg6: memref<1x1x32xf32, #tpu.memory_space<vmem>>, %arg7: memref<1x32x32xf32, #tpu.memory_space<vmem>>, %arg8: memref<1x1x32xf32, #tpu.memory_space<vmem>>, %arg9: memref<1x32x32xf32, #tpu.memory_space<vmem>>, %arg10: memref<1x1x32xf32, #tpu.memory_space<vmem>>, %arg11: memref<1x32x32xf32, #tpu.memory_space<vmem>>, %arg12: memref<1x1x32xf32, #tpu.memory_space<vmem>>, %arg13: memref<1x1x32xf32, #tpu.memory_space<vmem>>, %arg14: memref<1x1x32xf32, #tpu.memory_space<vmem>>, %arg15: memref<1x32x64xf32, #tpu.memory_space<vmem>>, %arg16: memref<1x1x64xf32, #tpu.memory_space<vmem>>, %arg17: memref<1x64x32xf32, #tpu.memory_space<vmem>>, %arg18: memref<1x1x32xf32, #tpu.memory_space<vmem>>, %arg19: memref<1x1x32xf32, #tpu.memory_space<vmem>>, %arg20: memref<1x1x32xf32, #tpu.memory_space<vmem>>, %arg21: memref<1x8x32xf32, #tpu.memory_space<vmem>>) attributes {dimension_semantics = [#tpu.dimension_semantics<parallel>, #tpu.dimension_semantics<arbitrary>], iteration_bounds = array<i64: 4, 2>, scalar_prefetch = 0 : i64, scratch_operands = 0 : i64, tpu.core_type = #tpu.core_type<tc>, window_params = [{transform_indices = @transform_0, window_bounds = array<i64: 1, 8, 32>}, {pipeline_mode = #tpu.pipeline_mode<synchronous>, transform_indices = @transform_1, window_bounds = array<i64: 1, 8, 8>}, {transform_indices = @transform_2, window_bounds = array<i64: 1, 1, 8>}, {transform_indices = @transform_3, window_bounds = array<i64: 1, 32, 32>}, {transform_indices = @transform_4, window_bounds = array<i64: 1, 1, 32>}, {transform_indices = @transform_5, window_bounds = array<i64: 1, 32, 32>}, {transform_indices = @transform_6, window_bounds = array<i64: 1, 1, 32>}, {transform_indices = @transform_7, window_bounds = array<i64: 1, 32, 32>}, {transform_indices = @transform_8, window_bounds = array<i64: 1, 1, 32>}, {transform_indices = @transform_9, window_bounds = array<i64: 1, 32, 32>}, {transform_indices = @transform_10, window_bounds = array<i64: 1, 1, 32>}, {transform_indices = @transform_11, window_bounds = array<i64: 1, 1, 32>}, {transform_indices = @transform_12, window_bounds = array<i64: 1, 1, 32>}, {transform_indices = @transform_13, window_bounds = array<i64: 1, 32, 64>}, {transform_indices = @transform_14, window_bounds = array<i64: 1, 1, 64>}, {transform_indices = @transform_15, window_bounds = array<i64: 1, 64, 32>}, {transform_indices = @transform_16, window_bounds = array<i64: 1, 1, 32>}, {transform_indices = @transform_17, window_bounds = array<i64: 1, 1, 32>}, {transform_indices = @transform_18, window_bounds = array<i64: 1, 1, 32>}, {transform_indices = @transform_19, window_bounds = array<i64: 1, 8, 32>}]} {
    %c0_i32 = arith.constant 0 : i32
    %0 = arith.cmpi eq, %arg1, %c0_i32 : i32
    %1 = arith.extui %0 : i1 to i32
    %c0_i32_0 = arith.constant 0 : i32
    %2 = arith.cmpi ne, %1, %c0_i32_0 : i32
    scf.if %2 {
      %c0_93 = arith.constant 0 : index
      %c0_94 = arith.constant 0 : index
      %c0_95 = arith.constant 0 : index
      %175 = vector.load %arg2[%c0_93, %c0_94, %c0_95] : memref<1x8x32xf32, #tpu.memory_space<vmem>>, vector<1x8x32xf32>
      %176 = vector.shape_cast %175 : vector<1x8x32xf32> to vector<8x32xf32>
      %c0_96 = arith.constant 0 : index
      %c0_97 = arith.constant 0 : index
      %c0_98 = arith.constant 0 : index
      %177 = vector.load %arg21[%c0_96, %c0_97, %c0_98] : memref<1x8x32xf32, #tpu.memory_space<vmem>>, vector<1x8x32xf32>
      %178 = vector.shape_cast %177 : vector<1x8x32xf32> to vector<8x32xf32>
      %179 = vector.shape_cast %176 : vector<8x32xf32> to vector<1x8x32xf32>
      tpu.vector_store %arg21[%c0_96, %c0_97, %c0_98], %179 {strides = array<i32>} : memref<1x8x32xf32, #tpu.memory_space<vmem>>, vector<1x8x32xf32>,
    } else {
    }
    %c0 = arith.constant 0 : index
    %c0_1 = arith.constant 0 : index
    %c0_2 = arith.constant 0 : index
    %3 = vector.load %arg21[%c0, %c0_1, %c0_2] : memref<1x8x32xf32, #tpu.memory_space<vmem>>, vector<1x8x32xf32>
    %4 = vector.shape_cast %3 : vector<1x8x32xf32> to vector<8x32xf32>
    %c0_3 = arith.constant 0 : index
    %c0_4 = arith.constant 0 : index
    %c0_5 = arith.constant 0 : index
    %5 = vector.load %arg3[%c0_3, %c0_4, %c0_5] : memref<1x8x8xf32, #tpu.memory_space<vmem>>, vector<1x8x8xf32>
    %6 = vector.shape_cast %5 : vector<1x8x8xf32> to vector<8x8xf32>
    %c0_6 = arith.constant 0 : index
    %c0_7 = arith.constant 0 : index
    %c0_8 = arith.constant 0 : index
    %7 = vector.load %arg4[%c0_6, %c0_7, %c0_8] : memref<1x1x8xf32, #tpu.memory_space<vmem>>, vector<1x1x8xf32>
    %8 = vector.shape_cast %7 : vector<1x1x8xf32> to vector<1x8xf32>
    %9 = vector.broadcast %8 : vector<1x8xf32> to vector<8x8xf32>
    %10 = arith.addf %6, %9 : vector<8x8xf32>
    %c0_9 = arith.constant 0 : index
    %c0_10 = arith.constant 0 : index
    %c0_11 = arith.constant 0 : index
    %11 = vector.load %arg5[%c0_9, %c0_10, %c0_11] : memref<1x32x32xf32, #tpu.memory_space<vmem>>, vector<1x32x32xf32>
    %12 = vector.shape_cast %11 : vector<1x32x32xf32> to vector<32x32xf32>
    %c0_12 = arith.constant 0 : index
    %c0_13 = arith.constant 0 : index
    %c0_14 = arith.constant 0 : index
    %13 = vector.load %arg6[%c0_12, %c0_13, %c0_14] : memref<1x1x32xf32, #tpu.memory_space<vmem>>, vector<1x1x32xf32>
    %14 = vector.shape_cast %13 : vector<1x1x32xf32> to vector<1x32xf32>
    %c0_15 = arith.constant 0 : index
    %c0_16 = arith.constant 0 : index
    %c0_17 = arith.constant 0 : index
    %15 = vector.load %arg7[%c0_15, %c0_16, %c0_17] : memref<1x32x32xf32, #tpu.memory_space<vmem>>, vector<1x32x32xf32>
    %16 = vector.shape_cast %15 : vector<1x32x32xf32> to vector<32x32xf32>
    %c0_18 = arith.constant 0 : index
    %c0_19 = arith.constant 0 : index
    %c0_20 = arith.constant 0 : index
    %17 = vector.load %arg8[%c0_18, %c0_19, %c0_20] : memref<1x1x32xf32, #tpu.memory_space<vmem>>, vector<1x1x32xf32>
    %18 = vector.shape_cast %17 : vector<1x1x32xf32> to vector<1x32xf32>
    %c0_21 = arith.constant 0 : index
    %c0_22 = arith.constant 0 : index
    %c0_23 = arith.constant 0 : index
    %19 = vector.load %arg9[%c0_21, %c0_22, %c0_23] : memref<1x32x32xf32, #tpu.memory_space<vmem>>, vector<1x32x32xf32>
    %20 = vector.shape_cast %19 : vector<1x32x32xf32> to vector<32x32xf32>
    %c0_24 = arith.constant 0 : index
    %c0_25 = arith.constant 0 : index
    %c0_26 = arith.constant 0 : index
    %21 = vector.load %arg10[%c0_24, %c0_25, %c0_26] : memref<1x1x32xf32, #tpu.memory_space<vmem>>, vector<1x1x32xf32>
    %22 = vector.shape_cast %21 : vector<1x1x32xf32> to vector<1x32xf32>
    %c0_27 = arith.constant 0 : index
    %c0_28 = arith.constant 0 : index
    %c0_29 = arith.constant 0 : index
    %23 = vector.load %arg11[%c0_27, %c0_28, %c0_29] : memref<1x32x32xf32, #tpu.memory_space<vmem>>, vector<1x32x32xf32>
    %24 = vector.shape_cast %23 : vector<1x32x32xf32> to vector<32x32xf32>
    %c0_30 = arith.constant 0 : index
    %c0_31 = arith.constant 0 : index
    %c0_32 = arith.constant 0 : index
    %25 = vector.load %arg12[%c0_30, %c0_31, %c0_32] : memref<1x1x32xf32, #tpu.memory_space<vmem>>, vector<1x1x32xf32>
    %26 = vector.shape_cast %25 : vector<1x1x32xf32> to vector<1x32xf32>
    %cst = arith.constant dense<0.000000e+00> : vector<8x32xf32>
    %27 = tpu.matmul %4, %12, %cst {dimension_numbers = #tpu.dot_dimension_numbers<[1], [0], [0], [1], [0, 0, 1, 1], [], []>} : vector<8x32xf32>, vector<32x32xf32>, vector<8x32xf32> -> vector<8x32xf32>
    %28 = vector.broadcast %14 : vector<1x32xf32> to vector<8x32xf32>
    %29 = arith.addf %27, %28 : vector<8x32xf32>
    %cst_33 = arith.constant 0.353553385 : f32
    %30 = vector.broadcast %cst_33 : f32 to vector<8x32xf32>
    %31 = arith.mulf %29, %30 : vector<8x32xf32>
    %cst_34 = arith.constant dense<0.000000e+00> : vector<8x32xf32>
    %32 = tpu.matmul %4, %16, %cst_34 {dimension_numbers = #tpu.dot_dimension_numbers<[1], [0], [0], [1], [0, 0, 1, 1], [], []>} : vector<8x32xf32>, vector<32x32xf32>, vector<8x32xf32> -> vector<8x32xf32>
    %33 = vector.broadcast %18 : vector<1x32xf32> to vector<8x32xf32>
    %34 = arith.addf %32, %33 : vector<8x32xf32>
    %cst_35 = arith.constant dense<0.000000e+00> : vector<8x32xf32>
    %35 = tpu.matmul %4, %20, %cst_35 {dimension_numbers = #tpu.dot_dimension_numbers<[1], [0], [0], [1], [0, 0, 1, 1], [], []>} : vector<8x32xf32>, vector<32x32xf32>, vector<8x32xf32> -> vector<8x32xf32>
    %36 = vector.broadcast %22 : vector<1x32xf32> to vector<8x32xf32>
    %37 = arith.addf %35, %36 : vector<8x32xf32>
    %38 = vector.extract_strided_slice %31 {offsets = [0, 0], sizes = [8, 8], strides = [1, 1]} : vector<8x32xf32> to vector<8x8xf32>
    %39 = vector.extract_strided_slice %34 {offsets = [0, 0], sizes = [8, 8], strides = [1, 1]} : vector<8x32xf32> to vector<8x8xf32>
    %cst_36 = arith.constant dense<0.000000e+00> : vector<8x8xf32>
    %40 = tpu.matmul %38, %39, %cst_36 {dimension_numbers = #tpu.dot_dimension_numbers<[1], [1], [0], [0], [0, 0, 1, 0], [], []>} : vector<8x8xf32>, vector<8x8xf32>, vector<8x8xf32> -> vector<8x8xf32>
    %41 = arith.addf %40, %10 : vector<8x8xf32>
    %cst_37 = arith.constant dense<0xFF800000> : vector<8xf32>
    %42 = vector.multi_reduction <maximumf>, %41, %cst_37 [1] : vector<8x8xf32> to vector<8xf32>
    %43 = vector.shape_cast %42 : vector<8xf32> to vector<8x1xf32>
    %44 = vector.broadcast %43 : vector<8x1xf32> to vector<8x8xf32>
    %45 = arith.subf %41, %44 : vector<8x8xf32>
    %46 = math.exp %45 : vector<8x8xf32>
    %cst_38 = arith.constant dense<0.000000e+00> : vector<8xf32>
    %47 = vector.multi_reduction <add>, %46, %cst_38 [1] : vector<8x8xf32> to vector<8xf32>
    %48 = vector.shape_cast %47 : vector<8xf32> to vector<8x1xf32>
    %49 = tpu.reciprocal %48 {approx = true} : vector<8x1xf32> -> vector<8x1xf32>
    %50 = vector.broadcast %49 : vector<8x1xf32> to vector<8x8xf32>
    %51 = arith.mulf %46, %50 : vector<8x8xf32>
    %52 = vector.extract_strided_slice %37 {offsets = [0, 0], sizes = [8, 8], strides = [1, 1]} : vector<8x32xf32> to vector<8x8xf32>
    %cst_39 = arith.constant dense<0.000000e+00> : vector<8x8xf32>
    %53 = tpu.matmul %51, %52, %cst_39 {dimension_numbers = #tpu.dot_dimension_numbers<[1], [0], [0], [1], [0, 0, 1, 1], [], []>} : vector<8x8xf32>, vector<8x8xf32>, vector<8x8xf32> -> vector<8x8xf32>
    %54 = vector.extract_strided_slice %31 {offsets = [0, 8], sizes = [8, 8], strides = [1, 1]} : vector<8x32xf32> to vector<8x8xf32>
    %55 = vector.extract_strided_slice %34 {offsets = [0, 8], sizes = [8, 8], strides = [1, 1]} : vector<8x32xf32> to vector<8x8xf32>
    %cst_40 = arith.constant dense<0.000000e+00> : vector<8x8xf32>
    %56 = tpu.matmul %54, %55, %cst_40 {dimension_numbers = #tpu.dot_dimension_numbers<[1], [1], [0], [0], [0, 0, 1, 0], [], []>} : vector<8x8xf32>, vector<8x8xf32>, vector<8x8xf32> -> vector<8x8xf32>
    %57 = arith.addf %56, %10 : vector<8x8xf32>
    %cst_41 = arith.constant dense<0xFF800000> : vector<8xf32>
    %58 = vector.multi_reduction <maximumf>, %57, %cst_41 [1] : vector<8x8xf32> to vector<8xf32>
    %59 = vector.shape_cast %58 : vector<8xf32> to vector<8x1xf32>
    %60 = vector.broadcast %59 : vector<8x1xf32> to vector<8x8xf32>
    %61 = arith.subf %57, %60 : vector<8x8xf32>
    %62 = math.exp %61 : vector<8x8xf32>
    %cst_42 = arith.constant dense<0.000000e+00> : vector<8xf32>
    %63 = vector.multi_reduction <add>, %62, %cst_42 [1] : vector<8x8xf32> to vector<8xf32>
    %64 = vector.shape_cast %63 : vector<8xf32> to vector<8x1xf32>
    %65 = tpu.reciprocal %64 {approx = true} : vector<8x1xf32> -> vector<8x1xf32>
    %66 = vector.broadcast %65 : vector<8x1xf32> to vector<8x8xf32>
    %67 = arith.mulf %62, %66 : vector<8x8xf32>
    %68 = vector.extract_strided_slice %37 {offsets = [0, 8], sizes = [8, 8], strides = [1, 1]} : vector<8x32xf32> to vector<8x8xf32>
    %cst_43 = arith.constant dense<0.000000e+00> : vector<8x8xf32>
    %69 = tpu.matmul %67, %68, %cst_43 {dimension_numbers = #tpu.dot_dimension_numbers<[1], [0], [0], [1], [0, 0, 1, 1], [], []>} : vector<8x8xf32>, vector<8x8xf32>, vector<8x8xf32> -> vector<8x8xf32>
    %70 = vector.extract_strided_slice %31 {offsets = [0, 16], sizes = [8, 8], strides = [1, 1]} : vector<8x32xf32> to vector<8x8xf32>
    %71 = vector.extract_strided_slice %34 {offsets = [0, 16], sizes = [8, 8], strides = [1, 1]} : vector<8x32xf32> to vector<8x8xf32>
    %cst_44 = arith.constant dense<0.000000e+00> : vector<8x8xf32>
    %72 = tpu.matmul %70, %71, %cst_44 {dimension_numbers = #tpu.dot_dimension_numbers<[1], [1], [0], [0], [0, 0, 1, 0], [], []>} : vector<8x8xf32>, vector<8x8xf32>, vector<8x8xf32> -> vector<8x8xf32>
    %73 = arith.addf %72, %10 : vector<8x8xf32>
    %cst_45 = arith.constant dense<0xFF800000> : vector<8xf32>
    %74 = vector.multi_reduction <maximumf>, %73, %cst_45 [1] : vector<8x8xf32> to vector<8xf32>
    %75 = vector.shape_cast %74 : vector<8xf32> to vector<8x1xf32>
    %76 = vector.broadcast %75 : vector<8x1xf32> to vector<8x8xf32>
    %77 = arith.subf %73, %76 : vector<8x8xf32>
    %78 = math.exp %77 : vector<8x8xf32>
    %cst_46 = arith.constant dense<0.000000e+00> : vector<8xf32>
    %79 = vector.multi_reduction <add>, %78, %cst_46 [1] : vector<8x8xf32> to vector<8xf32>
    %80 = vector.shape_cast %79 : vector<8xf32> to vector<8x1xf32>
    %81 = tpu.reciprocal %80 {approx = true} : vector<8x1xf32> -> vector<8x1xf32>
    %82 = vector.broadcast %81 : vector<8x1xf32> to vector<8x8xf32>
    %83 = arith.mulf %78, %82 : vector<8x8xf32>
    %84 = vector.extract_strided_slice %37 {offsets = [0, 16], sizes = [8, 8], strides = [1, 1]} : vector<8x32xf32> to vector<8x8xf32>
    %cst_47 = arith.constant dense<0.000000e+00> : vector<8x8xf32>
    %85 = tpu.matmul %83, %84, %cst_47 {dimension_numbers = #tpu.dot_dimension_numbers<[1], [0], [0], [1], [0, 0, 1, 1], [], []>} : vector<8x8xf32>, vector<8x8xf32>, vector<8x8xf32> -> vector<8x8xf32>
    %86 = vector.extract_strided_slice %31 {offsets = [0, 24], sizes = [8, 8], strides = [1, 1]} : vector<8x32xf32> to vector<8x8xf32>
    %87 = vector.extract_strided_slice %34 {offsets = [0, 24], sizes = [8, 8], strides = [1, 1]} : vector<8x32xf32> to vector<8x8xf32>
    %cst_48 = arith.constant dense<0.000000e+00> : vector<8x8xf32>
    %88 = tpu.matmul %86, %87, %cst_48 {dimension_numbers = #tpu.dot_dimension_numbers<[1], [1], [0], [0], [0, 0, 1, 0], [], []>} : vector<8x8xf32>, vector<8x8xf32>, vector<8x8xf32> -> vector<8x8xf32>
    %89 = arith.addf %88, %10 : vector<8x8xf32>
    %cst_49 = arith.constant dense<0xFF800000> : vector<8xf32>
    %90 = vector.multi_reduction <maximumf>, %89, %cst_49 [1] : vector<8x8xf32> to vector<8xf32>
    %91 = vector.shape_cast %90 : vector<8xf32> to vector<8x1xf32>
    %92 = vector.broadcast %91 : vector<8x1xf32> to vector<8x8xf32>
    %93 = arith.subf %89, %92 : vector<8x8xf32>
    %94 = math.exp %93 : vector<8x8xf32>
    %cst_50 = arith.constant dense<0.000000e+00> : vector<8xf32>
    %95 = vector.multi_reduction <add>, %94, %cst_50 [1] : vector<8x8xf32> to vector<8xf32>
    %96 = vector.shape_cast %95 : vector<8xf32> to vector<8x1xf32>
    %97 = tpu.reciprocal %96 {approx = true} : vector<8x1xf32> -> vector<8x1xf32>
    %98 = vector.broadcast %97 : vector<8x1xf32> to vector<8x8xf32>
    %99 = arith.mulf %94, %98 : vector<8x8xf32>
    %100 = vector.extract_strided_slice %37 {offsets = [0, 24], sizes = [8, 8], strides = [1, 1]} : vector<8x32xf32> to vector<8x8xf32>
    %cst_51 = arith.constant dense<0.000000e+00> : vector<8x8xf32>
    %101 = tpu.matmul %99, %100, %cst_51 {dimension_numbers = #tpu.dot_dimension_numbers<[1], [0], [0], [1], [0, 0, 1, 1], [], []>} : vector<8x8xf32>, vector<8x8xf32>, vector<8x8xf32> -> vector<8x8xf32>
    %102 = tpu.concatenate %53, %69, %85, %101 in 1 : vector<8x8xf32>, vector<8x8xf32>, vector<8x8xf32>, vector<8x8xf32> -> vector<8x32xf32>
    %cst_52 = arith.constant dense<0.000000e+00> : vector<8x32xf32>
    %103 = tpu.matmul %102, %24, %cst_52 {dimension_numbers = #tpu.dot_dimension_numbers<[1], [0], [0], [1], [0, 0, 1, 1], [], []>} : vector<8x32xf32>, vector<32x32xf32>, vector<8x32xf32> -> vector<8x32xf32>
    %104 = vector.broadcast %26 : vector<1x32xf32> to vector<8x32xf32>
    %105 = arith.addf %103, %104 : vector<8x32xf32>
    %106 = arith.addf %4, %105 : vector<8x32xf32>
    %c0_53 = arith.constant 0 : index
    %c0_54 = arith.constant 0 : index
    %c0_55 = arith.constant 0 : index
    %107 = vector.load %arg13[%c0_53, %c0_54, %c0_55] : memref<1x1x32xf32, #tpu.memory_space<vmem>>, vector<1x1x32xf32>
    %108 = vector.shape_cast %107 : vector<1x1x32xf32> to vector<1x32xf32>
    %c0_56 = arith.constant 0 : index
    %c0_57 = arith.constant 0 : index
    %c0_58 = arith.constant 0 : index
    %109 = vector.load %arg14[%c0_56, %c0_57, %c0_58] : memref<1x1x32xf32, #tpu.memory_space<vmem>>, vector<1x1x32xf32>
    %110 = vector.shape_cast %109 : vector<1x1x32xf32> to vector<1x32xf32>
    %cst_59 = arith.constant dense<0.000000e+00> : vector<8xf32>
    %111 = vector.multi_reduction <add>, %106, %cst_59 [1] : vector<8x32xf32> to vector<8xf32>
    %112 = vector.shape_cast %111 : vector<8xf32> to vector<8x1xf32>
    %cst_60 = arith.constant 3.200000e+01 : f32
    %113 = vector.broadcast %cst_60 : f32 to vector<8x1xf32>
    %114 = arith.divf %112, %113 : vector<8x1xf32>
    %115 = vector.broadcast %114 : vector<8x1xf32> to vector<8x32xf32>
    %116 = arith.subf %106, %115 : vector<8x32xf32>
    %117 = arith.mulf %116, %116 : vector<8x32xf32>
    %cst_61 = arith.constant dense<0.000000e+00> : vector<8xf32>
    %118 = vector.multi_reduction <add>, %117, %cst_61 [1] : vector<8x32xf32> to vector<8xf32>
    %119 = vector.shape_cast %118 : vector<8xf32> to vector<8x1xf32>
    %cst_62 = arith.constant 3.200000e+01 : f32
    %120 = vector.broadcast %cst_62 : f32 to vector<8x1xf32>
    %121 = arith.divf %119, %120 : vector<8x1xf32>
    %cst_63 = arith.constant 9.99999974E-6 : f32
    %122 = vector.broadcast %cst_63 : f32 to vector<8x1xf32>
    %123 = arith.addf %121, %122 : vector<8x1xf32>
    %124 = math.rsqrt %123 : vector<8x1xf32>
    %125 = vector.broadcast %124 : vector<8x1xf32> to vector<8x32xf32>
    %126 = arith.mulf %116, %125 : vector<8x32xf32>
    %127 = vector.broadcast %108 : vector<1x32xf32> to vector<8x32xf32>
    %128 = arith.mulf %126, %127 : vector<8x32xf32>
    %129 = vector.broadcast %110 : vector<1x32xf32> to vector<8x32xf32>
    %130 = arith.addf %128, %129 : vector<8x32xf32>
    %c0_64 = arith.constant 0 : index
    %c0_65 = arith.constant 0 : index
    %c0_66 = arith.constant 0 : index
    %131 = vector.load %arg15[%c0_64, %c0_65, %c0_66] : memref<1x32x64xf32, #tpu.memory_space<vmem>>, vector<1x32x64xf32>
    %132 = vector.shape_cast %131 : vector<1x32x64xf32> to vector<32x64xf32>
    %c0_67 = arith.constant 0 : index
    %c0_68 = arith.constant 0 : index
    %c0_69 = arith.constant 0 : index
    %133 = vector.load %arg16[%c0_67, %c0_68, %c0_69] : memref<1x1x64xf32, #tpu.memory_space<vmem>>, vector<1x1x64xf32>
    %134 = vector.shape_cast %133 : vector<1x1x64xf32> to vector<1x64xf32>
    %c0_70 = arith.constant 0 : index
    %c0_71 = arith.constant 0 : index
    %c0_72 = arith.constant 0 : index
    %135 = vector.load %arg17[%c0_70, %c0_71, %c0_72] : memref<1x64x32xf32, #tpu.memory_space<vmem>>, vector<1x64x32xf32>
    %136 = vector.shape_cast %135 : vector<1x64x32xf32> to vector<64x32xf32>
    %c0_73 = arith.constant 0 : index
    %c0_74 = arith.constant 0 : index
    %c0_75 = arith.constant 0 : index
    %137 = vector.load %arg18[%c0_73, %c0_74, %c0_75] : memref<1x1x32xf32, #tpu.memory_space<vmem>>, vector<1x1x32xf32>
    %138 = vector.shape_cast %137 : vector<1x1x32xf32> to vector<1x32xf32>
    %cst_76 = arith.constant dense<0.000000e+00> : vector<8x64xf32>
    %139 = tpu.matmul %130, %132, %cst_76 {dimension_numbers = #tpu.dot_dimension_numbers<[1], [0], [0], [1], [0, 0, 1, 1], [], []>} : vector<8x32xf32>, vector<32x64xf32>, vector<8x64xf32> -> vector<8x64xf32>
    %140 = vector.broadcast %134 : vector<1x64xf32> to vector<8x64xf32>
    %141 = arith.addf %139, %140 : vector<8x64xf32>
    %cst_77 = arith.constant 0.000000e+00 : f32
    %142 = vector.broadcast %cst_77 : f32 to vector<8x64xf32>
    %143 = arith.maximumf %141, %142 : vector<8x64xf32>
    %cst_78 = arith.constant dense<0.000000e+00> : vector<8x32xf32>
    %144 = tpu.matmul %143, %136, %cst_78 {dimension_numbers = #tpu.dot_dimension_numbers<[1], [0], [0], [1], [0, 0, 1, 1], [], []>} : vector<8x64xf32>, vector<64x32xf32>, vector<8x32xf32> -> vector<8x32xf32>
    %145 = vector.broadcast %138 : vector<1x32xf32> to vector<8x32xf32>
    %146 = arith.addf %144, %145 : vector<8x32xf32>
    %147 = arith.addf %130, %146 : vector<8x32xf32>
    %c0_79 = arith.constant 0 : index
    %c0_80 = arith.constant 0 : index
    %c0_81 = arith.constant 0 : index
    %148 = vector.load %arg19[%c0_79, %c0_80, %c0_81] : memref<1x1x32xf32, #tpu.memory_space<vmem>>, vector<1x1x32xf32>
    %149 = vector.shape_cast %148 : vector<1x1x32xf32> to vector<1x32xf32>
    %c0_82 = arith.constant 0 : index
    %c0_83 = arith.constant 0 : index
    %c0_84 = arith.constant 0 : index
    %150 = vector.load %arg20[%c0_82, %c0_83, %c0_84] : memref<1x1x32xf32, #tpu.memory_space<vmem>>, vector<1x1x32xf32>
    %151 = vector.shape_cast %150 : vector<1x1x32xf32> to vector<1x32xf32>
    %cst_85 = arith.constant dense<0.000000e+00> : vector<8xf32>
    %152 = vector.multi_reduction <add>, %147, %cst_85 [1] : vector<8x32xf32> to vector<8xf32>
    %153 = vector.shape_cast %152 : vector<8xf32> to vector<8x1xf32>
    %cst_86 = arith.constant 3.200000e+01 : f32
    %154 = vector.broadcast %cst_86 : f32 to vector<8x1xf32>
    %155 = arith.divf %153, %154 : vector<8x1xf32>
    %156 = vector.broadcast %155 : vector<8x1xf32> to vector<8x32xf32>
    %157 = arith.subf %147, %156 : vector<8x32xf32>
    %158 = arith.mulf %157, %157 : vector<8x32xf32>
    %cst_87 = arith.constant dense<0.000000e+00> : vector<8xf32>
    %159 = vector.multi_reduction <add>, %158, %cst_87 [1] : vector<8x32xf32> to vector<8xf32>
    %160 = vector.shape_cast %159 : vector<8xf32> to vector<8x1xf32>
    %cst_88 = arith.constant 3.200000e+01 : f32
    %161 = vector.broadcast %cst_88 : f32 to vector<8x1xf32>
    %162 = arith.divf %160, %161 : vector<8x1xf32>
    %cst_89 = arith.constant 9.99999974E-6 : f32
    %163 = vector.broadcast %cst_89 : f32 to vector<8x1xf32>
    %164 = arith.addf %162, %163 : vector<8x1xf32>
    %165 = math.rsqrt %164 : vector<8x1xf32>
    %166 = vector.broadcast %165 : vector<8x1xf32> to vector<8x32xf32>
    %167 = arith.mulf %157, %166 : vector<8x32xf32>
    %168 = vector.broadcast %149 : vector<1x32xf32> to vector<8x32xf32>
    %169 = arith.mulf %167, %168 : vector<8x32xf32>
    %170 = vector.broadcast %151 : vector<1x32xf32> to vector<8x32xf32>
    %171 = arith.addf %169, %170 : vector<8x32xf32>
    %c0_90 = arith.constant 0 : index
    %c0_91 = arith.constant 0 : index
    %c0_92 = arith.constant 0 : index
    %172 = vector.load %arg21[%c0_90, %c0_91, %c0_92] : memref<1x8x32xf32, #tpu.memory_space<vmem>>, vector<1x8x32xf32>
    %173 = vector.shape_cast %172 : vector<1x8x32xf32> to vector<8x32xf32>
    %174 = vector.shape_cast %171 : vector<8x32xf32> to vector<1x8x32xf32>
    tpu.vector_store %arg21[%c0_90, %c0_91, %c0_92], %174 {strides = array<i32>} : memref<1x8x32xf32, #tpu.memory_space<vmem>>, vector<1x8x32xf32>,
    return
  }
  func.func @transform_0(%arg0: i32, %arg1: i32) -> (i32, i32, i32) {
    %c0_i32 = arith.constant 0 : i32
    %c0_i32_0 = arith.constant 0 : i32
    %c0_i32_1 = arith.constant 0 : i32
    return %arg0, %c0_i32, %c0_i32_0 : i32, i32, i32
  }
  func.func @transform_1(%arg0: i32, %arg1: i32) -> (i32, i32, i32) {
    %c0_i32 = arith.constant 0 : i32
    %c0_i32_0 = arith.constant 0 : i32
    %c0_i32_1 = arith.constant 0 : i32
    %c0_i32_2 = arith.constant 0 : i32
    return %c0_i32, %c0_i32_0, %c0_i32_1 : i32, i32, i32
  }
  func.func @transform_2(%arg0: i32, %arg1: i32) -> (i32, i32, i32) {
    %c0_i32 = arith.constant 0 : i32
    %c0_i32_0 = arith.constant 0 : i32
    %c0_i32_1 = arith.constant 0 : i32
    return %arg0, %c0_i32, %c0_i32_0 : i32, i32, i32
  }
  func.func @transform_3(%arg0: i32, %arg1: i32) -> (i32, i32, i32) {
    %c0_i32 = arith.constant 0 : i32
    %c0_i32_0 = arith.constant 0 : i32
    %c0_i32_1 = arith.constant 0 : i32
    return %arg1, %c0_i32, %c0_i32_0 : i32, i32, i32
  }
  func.func @transform_4(%arg0: i32, %arg1: i32) -> (i32, i32, i32) {
    %c0_i32 = arith.constant 0 : i32
    %c0_i32_0 = arith.constant 0 : i32
    %c0_i32_1 = arith.constant 0 : i32
    return %arg1, %c0_i32, %c0_i32_0 : i32, i32, i32
  }
  func.func @transform_5(%arg0: i32, %arg1: i32) -> (i32, i32, i32) {
    %c0_i32 = arith.constant 0 : i32
    %c0_i32_0 = arith.constant 0 : i32
    %c0_i32_1 = arith.constant 0 : i32
    return %arg1, %c0_i32, %c0_i32_0 : i32, i32, i32
  }
  func.func @transform_6(%arg0: i32, %arg1: i32) -> (i32, i32, i32) {
    %c0_i32 = arith.constant 0 : i32
    %c0_i32_0 = arith.constant 0 : i32
    %c0_i32_1 = arith.constant 0 : i32
    return %arg1, %c0_i32, %c0_i32_0 : i32, i32, i32
  }
  func.func @transform_7(%arg0: i32, %arg1: i32) -> (i32, i32, i32) {
    %c0_i32 = arith.constant 0 : i32
    %c0_i32_0 = arith.constant 0 : i32
    %c0_i32_1 = arith.constant 0 : i32
    return %arg1, %c0_i32, %c0_i32_0 : i32, i32, i32
  }
  func.func @transform_8(%arg0: i32, %arg1: i32) -> (i32, i32, i32) {
    %c0_i32 = arith.constant 0 : i32
    %c0_i32_0 = arith.constant 0 : i32
    %c0_i32_1 = arith.constant 0 : i32
    return %arg1, %c0_i32, %c0_i32_0 : i32, i32, i32
  }
  func.func @transform_9(%arg0: i32, %arg1: i32) -> (i32, i32, i32) {
    %c0_i32 = arith.constant 0 : i32
    %c0_i32_0 = arith.constant 0 : i32
    %c0_i32_1 = arith.constant 0 : i32
    return %arg1, %c0_i32, %c0_i32_0 : i32, i32, i32
  }
  func.func @transform_10(%arg0: i32, %arg1: i32) -> (i32, i32, i32) {
    %c0_i32 = arith.constant 0 : i32
    %c0_i32_0 = arith.constant 0 : i32
    %c0_i32_1 = arith.constant 0 : i32
    return %arg1, %c0_i32, %c0_i32_0 : i32, i32, i32
  }
  func.func @transform_11(%arg0: i32, %arg1: i32) -> (i32, i32, i32) {
    %c0_i32 = arith.constant 0 : i32
    %c0_i32_0 = arith.constant 0 : i32
    %c0_i32_1 = arith.constant 0 : i32
    return %arg1, %c0_i32, %c0_i32_0 : i32, i32, i32
  }
  func.func @transform_12(%arg0: i32, %arg1: i32) -> (i32, i32, i32) {
    %c0_i32 = arith.constant 0 : i32
    %c0_i32_0 = arith.constant 0 : i32
    %c0_i32_1 = arith.constant 0 : i32
    return %arg1, %c0_i32, %c0_i32_0 : i32, i32, i32
  }
  func.func @transform_13(%arg0: i32, %arg1: i32) -> (i32, i32, i32) {
    %c0_i32 = arith.constant 0 : i32
    %c0_i32_0 = arith.constant 0 : i32
    %c0_i32_1 = arith.constant 0 : i32
    return %arg1, %c0_i32, %c0_i32_0 : i32, i32, i32
  }
  func.func @transform_14(%arg0: i32, %arg1: i32) -> (i32, i32, i32) {
    %c0_i32 = arith.constant 0 : i32
    %c0_i32_0 = arith.constant 0 : i32
    %c0_i32_1 = arith.constant 0 : i32
    return %arg1, %c0_i32, %c0_i32_0 : i32, i32, i32
  }
  func.func @transform_15(%arg0: i32, %arg1: i32) -> (i32, i32, i32) {
    %c0_i32 = arith.constant 0 : i32
    %c0_i32_0 = arith.constant 0 : i32
    %c0_i32_1 = arith.constant 0 : i32
    return %arg1, %c0_i32, %c0_i32_0 : i32, i32, i32
  }
  func.func @transform_16(%arg0: i32, %arg1: i32) -> (i32, i32, i32) {
    %c0_i32 = arith.constant 0 : i32
    %c0_i32_0 = arith.constant 0 : i32
    %c0_i32_1 = arith.constant 0 : i32
    return %arg1, %c0_i32, %c0_i32_0 : i32, i32, i32
  }
  func.func @transform_17(%arg0: i32, %arg1: i32) -> (i32, i32, i32) {
    %c0_i32 = arith.constant 0 : i32
    %c0_i32_0 = arith.constant 0 : i32
    %c0_i32_1 = arith.constant 0 : i32
    return %arg1, %c0_i32, %c0_i32_0 : i32, i32, i32
  }
  func.func @transform_18(%arg0: i32, %arg1: i32) -> (i32, i32, i32) {
    %c0_i32 = arith.constant 0 : i32
    %c0_i32_0 = arith.constant 0 : i32
    %c0_i32_1 = arith.constant 0 : i32
    return %arg1, %c0_i32, %c0_i32_0 : i32, i32, i32
  }
  func.func @transform_19(%arg0: i32, %arg1: i32) -> (i32, i32, i32) {
    %c0_i32 = arith.constant 0 : i32
    %c0_i32_0 = arith.constant 0 : i32
    %c0_i32_1 = arith.constant 0 : i32
    return %arg0, %c0_i32, %c0_i32_0 : i32, i32, i32
  }
}

module attributes {stable_mosaic.version = 11 : i64} {
  func.func @_enc_stack_kernel(%arg0: i32, %arg1: i32, %arg2: memref<1x4x32xf32, #tpu.memory_space<vmem>>, %arg3: memref<1x4x4xf32, #tpu.memory_space<vmem>>, %arg4: memref<1x1x4xf32, #tpu.memory_space<vmem>>, %arg5: memref<1x32x32xf32, #tpu.memory_space<vmem>>, %arg6: memref<1x1x32xf32, #tpu.memory_space<vmem>>, %arg7: memref<1x32x32xf32, #tpu.memory_space<vmem>>, %arg8: memref<1x1x32xf32, #tpu.memory_space<vmem>>, %arg9: memref<1x32x32xf32, #tpu.memory_space<vmem>>, %arg10: memref<1x1x32xf32, #tpu.memory_space<vmem>>, %arg11: memref<1x32x32xf32, #tpu.memory_space<vmem>>, %arg12: memref<1x1x32xf32, #tpu.memory_space<vmem>>, %arg13: memref<1x1x32xf32, #tpu.memory_space<vmem>>, %arg14: memref<1x1x32xf32, #tpu.memory_space<vmem>>, %arg15: memref<1x32x64xf32, #tpu.memory_space<vmem>>, %arg16: memref<1x1x64xf32, #tpu.memory_space<vmem>>, %arg17: memref<1x64x32xf32, #tpu.memory_space<vmem>>, %arg18: memref<1x1x32xf32, #tpu.memory_space<vmem>>, %arg19: memref<1x1x32xf32, #tpu.memory_space<vmem>>, %arg20: memref<1x1x32xf32, #tpu.memory_space<vmem>>, %arg21: memref<1x4x32xf32, #tpu.memory_space<vmem>>) attributes {dimension_semantics = [#tpu.dimension_semantics<parallel>, #tpu.dimension_semantics<arbitrary>], iteration_bounds = array<i64: 8, 2>, scalar_prefetch = 0 : i64, scratch_operands = 0 : i64, tpu.core_type = #tpu.core_type<tc>, window_params = [{transform_indices = @transform_0, window_bounds = array<i64: 1, 4, 32>}, {pipeline_mode = #tpu.pipeline_mode<synchronous>, transform_indices = @transform_1, window_bounds = array<i64: 1, 4, 4>}, {transform_indices = @transform_2, window_bounds = array<i64: 1, 1, 4>}, {transform_indices = @transform_3, window_bounds = array<i64: 1, 32, 32>}, {transform_indices = @transform_4, window_bounds = array<i64: 1, 1, 32>}, {transform_indices = @transform_5, window_bounds = array<i64: 1, 32, 32>}, {transform_indices = @transform_6, window_bounds = array<i64: 1, 1, 32>}, {transform_indices = @transform_7, window_bounds = array<i64: 1, 32, 32>}, {transform_indices = @transform_8, window_bounds = array<i64: 1, 1, 32>}, {transform_indices = @transform_9, window_bounds = array<i64: 1, 32, 32>}, {transform_indices = @transform_10, window_bounds = array<i64: 1, 1, 32>}, {transform_indices = @transform_11, window_bounds = array<i64: 1, 1, 32>}, {transform_indices = @transform_12, window_bounds = array<i64: 1, 1, 32>}, {transform_indices = @transform_13, window_bounds = array<i64: 1, 32, 64>}, {transform_indices = @transform_14, window_bounds = array<i64: 1, 1, 64>}, {transform_indices = @transform_15, window_bounds = array<i64: 1, 64, 32>}, {transform_indices = @transform_16, window_bounds = array<i64: 1, 1, 32>}, {transform_indices = @transform_17, window_bounds = array<i64: 1, 1, 32>}, {transform_indices = @transform_18, window_bounds = array<i64: 1, 1, 32>}, {transform_indices = @transform_19, window_bounds = array<i64: 1, 4, 32>}]} {
    %c0_i32 = arith.constant 0 : i32
    %0 = arith.cmpi eq, %arg1, %c0_i32 : i32
    %1 = arith.extui %0 : i1 to i32
    %c0_i32_0 = arith.constant 0 : i32
    %2 = arith.cmpi ne, %1, %c0_i32_0 : i32
    scf.if %2 {
      %c0_93 = arith.constant 0 : index
      %c0_94 = arith.constant 0 : index
      %c0_95 = arith.constant 0 : index
      %175 = vector.load %arg2[%c0_93, %c0_94, %c0_95] : memref<1x4x32xf32, #tpu.memory_space<vmem>>, vector<1x4x32xf32>
      %176 = vector.shape_cast %175 : vector<1x4x32xf32> to vector<4x32xf32>
      %c0_96 = arith.constant 0 : index
      %c0_97 = arith.constant 0 : index
      %c0_98 = arith.constant 0 : index
      %177 = vector.load %arg21[%c0_96, %c0_97, %c0_98] : memref<1x4x32xf32, #tpu.memory_space<vmem>>, vector<1x4x32xf32>
      %178 = vector.shape_cast %177 : vector<1x4x32xf32> to vector<4x32xf32>
      %179 = vector.shape_cast %176 : vector<4x32xf32> to vector<1x4x32xf32>
      tpu.vector_store %arg21[%c0_96, %c0_97, %c0_98], %179 {strides = array<i32>} : memref<1x4x32xf32, #tpu.memory_space<vmem>>, vector<1x4x32xf32>,
    } else {
    }
    %c0 = arith.constant 0 : index
    %c0_1 = arith.constant 0 : index
    %c0_2 = arith.constant 0 : index
    %3 = vector.load %arg21[%c0, %c0_1, %c0_2] : memref<1x4x32xf32, #tpu.memory_space<vmem>>, vector<1x4x32xf32>
    %4 = vector.shape_cast %3 : vector<1x4x32xf32> to vector<4x32xf32>
    %c0_3 = arith.constant 0 : index
    %c0_4 = arith.constant 0 : index
    %c0_5 = arith.constant 0 : index
    %5 = vector.load %arg3[%c0_3, %c0_4, %c0_5] : memref<1x4x4xf32, #tpu.memory_space<vmem>>, vector<1x4x4xf32>
    %6 = vector.shape_cast %5 : vector<1x4x4xf32> to vector<4x4xf32>
    %c0_6 = arith.constant 0 : index
    %c0_7 = arith.constant 0 : index
    %c0_8 = arith.constant 0 : index
    %7 = vector.load %arg4[%c0_6, %c0_7, %c0_8] : memref<1x1x4xf32, #tpu.memory_space<vmem>>, vector<1x1x4xf32>
    %8 = vector.shape_cast %7 : vector<1x1x4xf32> to vector<1x4xf32>
    %9 = vector.broadcast %8 : vector<1x4xf32> to vector<4x4xf32>
    %10 = arith.addf %6, %9 : vector<4x4xf32>
    %c0_9 = arith.constant 0 : index
    %c0_10 = arith.constant 0 : index
    %c0_11 = arith.constant 0 : index
    %11 = vector.load %arg5[%c0_9, %c0_10, %c0_11] : memref<1x32x32xf32, #tpu.memory_space<vmem>>, vector<1x32x32xf32>
    %12 = vector.shape_cast %11 : vector<1x32x32xf32> to vector<32x32xf32>
    %c0_12 = arith.constant 0 : index
    %c0_13 = arith.constant 0 : index
    %c0_14 = arith.constant 0 : index
    %13 = vector.load %arg6[%c0_12, %c0_13, %c0_14] : memref<1x1x32xf32, #tpu.memory_space<vmem>>, vector<1x1x32xf32>
    %14 = vector.shape_cast %13 : vector<1x1x32xf32> to vector<1x32xf32>
    %c0_15 = arith.constant 0 : index
    %c0_16 = arith.constant 0 : index
    %c0_17 = arith.constant 0 : index
    %15 = vector.load %arg7[%c0_15, %c0_16, %c0_17] : memref<1x32x32xf32, #tpu.memory_space<vmem>>, vector<1x32x32xf32>
    %16 = vector.shape_cast %15 : vector<1x32x32xf32> to vector<32x32xf32>
    %c0_18 = arith.constant 0 : index
    %c0_19 = arith.constant 0 : index
    %c0_20 = arith.constant 0 : index
    %17 = vector.load %arg8[%c0_18, %c0_19, %c0_20] : memref<1x1x32xf32, #tpu.memory_space<vmem>>, vector<1x1x32xf32>
    %18 = vector.shape_cast %17 : vector<1x1x32xf32> to vector<1x32xf32>
    %c0_21 = arith.constant 0 : index
    %c0_22 = arith.constant 0 : index
    %c0_23 = arith.constant 0 : index
    %19 = vector.load %arg9[%c0_21, %c0_22, %c0_23] : memref<1x32x32xf32, #tpu.memory_space<vmem>>, vector<1x32x32xf32>
    %20 = vector.shape_cast %19 : vector<1x32x32xf32> to vector<32x32xf32>
    %c0_24 = arith.constant 0 : index
    %c0_25 = arith.constant 0 : index
    %c0_26 = arith.constant 0 : index
    %21 = vector.load %arg10[%c0_24, %c0_25, %c0_26] : memref<1x1x32xf32, #tpu.memory_space<vmem>>, vector<1x1x32xf32>
    %22 = vector.shape_cast %21 : vector<1x1x32xf32> to vector<1x32xf32>
    %c0_27 = arith.constant 0 : index
    %c0_28 = arith.constant 0 : index
    %c0_29 = arith.constant 0 : index
    %23 = vector.load %arg11[%c0_27, %c0_28, %c0_29] : memref<1x32x32xf32, #tpu.memory_space<vmem>>, vector<1x32x32xf32>
    %24 = vector.shape_cast %23 : vector<1x32x32xf32> to vector<32x32xf32>
    %c0_30 = arith.constant 0 : index
    %c0_31 = arith.constant 0 : index
    %c0_32 = arith.constant 0 : index
    %25 = vector.load %arg12[%c0_30, %c0_31, %c0_32] : memref<1x1x32xf32, #tpu.memory_space<vmem>>, vector<1x1x32xf32>
    %26 = vector.shape_cast %25 : vector<1x1x32xf32> to vector<1x32xf32>
    %cst = arith.constant dense<0.000000e+00> : vector<4x32xf32>
    %27 = tpu.matmul %4, %12, %cst {dimension_numbers = #tpu.dot_dimension_numbers<[1], [0], [0], [1], [0, 0, 1, 1], [], []>} : vector<4x32xf32>, vector<32x32xf32>, vector<4x32xf32> -> vector<4x32xf32>
    %28 = vector.broadcast %14 : vector<1x32xf32> to vector<4x32xf32>
    %29 = arith.addf %27, %28 : vector<4x32xf32>
    %cst_33 = arith.constant 0.353553385 : f32
    %30 = vector.broadcast %cst_33 : f32 to vector<4x32xf32>
    %31 = arith.mulf %29, %30 : vector<4x32xf32>
    %cst_34 = arith.constant dense<0.000000e+00> : vector<4x32xf32>
    %32 = tpu.matmul %4, %16, %cst_34 {dimension_numbers = #tpu.dot_dimension_numbers<[1], [0], [0], [1], [0, 0, 1, 1], [], []>} : vector<4x32xf32>, vector<32x32xf32>, vector<4x32xf32> -> vector<4x32xf32>
    %33 = vector.broadcast %18 : vector<1x32xf32> to vector<4x32xf32>
    %34 = arith.addf %32, %33 : vector<4x32xf32>
    %cst_35 = arith.constant dense<0.000000e+00> : vector<4x32xf32>
    %35 = tpu.matmul %4, %20, %cst_35 {dimension_numbers = #tpu.dot_dimension_numbers<[1], [0], [0], [1], [0, 0, 1, 1], [], []>} : vector<4x32xf32>, vector<32x32xf32>, vector<4x32xf32> -> vector<4x32xf32>
    %36 = vector.broadcast %22 : vector<1x32xf32> to vector<4x32xf32>
    %37 = arith.addf %35, %36 : vector<4x32xf32>
    %38 = vector.extract_strided_slice %31 {offsets = [0, 0], sizes = [4, 8], strides = [1, 1]} : vector<4x32xf32> to vector<4x8xf32>
    %39 = vector.extract_strided_slice %34 {offsets = [0, 0], sizes = [4, 8], strides = [1, 1]} : vector<4x32xf32> to vector<4x8xf32>
    %cst_36 = arith.constant dense<0.000000e+00> : vector<4x4xf32>
    %40 = tpu.matmul %38, %39, %cst_36 {dimension_numbers = #tpu.dot_dimension_numbers<[1], [1], [0], [0], [0, 0, 1, 0], [], []>} : vector<4x8xf32>, vector<4x8xf32>, vector<4x4xf32> -> vector<4x4xf32>
    %41 = arith.addf %40, %10 : vector<4x4xf32>
    %cst_37 = arith.constant dense<0xFF800000> : vector<4xf32>
    %42 = vector.multi_reduction <maximumf>, %41, %cst_37 [1] : vector<4x4xf32> to vector<4xf32>
    %43 = vector.shape_cast %42 : vector<4xf32> to vector<4x1xf32>
    %44 = vector.broadcast %43 : vector<4x1xf32> to vector<4x4xf32>
    %45 = arith.subf %41, %44 : vector<4x4xf32>
    %46 = math.exp %45 : vector<4x4xf32>
    %cst_38 = arith.constant dense<0.000000e+00> : vector<4xf32>
    %47 = vector.multi_reduction <add>, %46, %cst_38 [1] : vector<4x4xf32> to vector<4xf32>
    %48 = vector.shape_cast %47 : vector<4xf32> to vector<4x1xf32>
    %49 = tpu.reciprocal %48 {approx = true} : vector<4x1xf32> -> vector<4x1xf32>
    %50 = vector.broadcast %49 : vector<4x1xf32> to vector<4x4xf32>
    %51 = arith.mulf %46, %50 : vector<4x4xf32>
    %52 = vector.extract_strided_slice %37 {offsets = [0, 0], sizes = [4, 8], strides = [1, 1]} : vector<4x32xf32> to vector<4x8xf32>
    %cst_39 = arith.constant dense<0.000000e+00> : vector<4x8xf32>
    %53 = tpu.matmul %51, %52, %cst_39 {dimension_numbers = #tpu.dot_dimension_numbers<[1], [0], [0], [1], [0, 0, 1, 1], [], []>} : vector<4x4xf32>, vector<4x8xf32>, vector<4x8xf32> -> vector<4x8xf32>
    %54 = vector.extract_strided_slice %31 {offsets = [0, 8], sizes = [4, 8], strides = [1, 1]} : vector<4x32xf32> to vector<4x8xf32>
    %55 = vector.extract_strided_slice %34 {offsets = [0, 8], sizes = [4, 8], strides = [1, 1]} : vector<4x32xf32> to vector<4x8xf32>
    %cst_40 = arith.constant dense<0.000000e+00> : vector<4x4xf32>
    %56 = tpu.matmul %54, %55, %cst_40 {dimension_numbers = #tpu.dot_dimension_numbers<[1], [1], [0], [0], [0, 0, 1, 0], [], []>} : vector<4x8xf32>, vector<4x8xf32>, vector<4x4xf32> -> vector<4x4xf32>
    %57 = arith.addf %56, %10 : vector<4x4xf32>
    %cst_41 = arith.constant dense<0xFF800000> : vector<4xf32>
    %58 = vector.multi_reduction <maximumf>, %57, %cst_41 [1] : vector<4x4xf32> to vector<4xf32>
    %59 = vector.shape_cast %58 : vector<4xf32> to vector<4x1xf32>
    %60 = vector.broadcast %59 : vector<4x1xf32> to vector<4x4xf32>
    %61 = arith.subf %57, %60 : vector<4x4xf32>
    %62 = math.exp %61 : vector<4x4xf32>
    %cst_42 = arith.constant dense<0.000000e+00> : vector<4xf32>
    %63 = vector.multi_reduction <add>, %62, %cst_42 [1] : vector<4x4xf32> to vector<4xf32>
    %64 = vector.shape_cast %63 : vector<4xf32> to vector<4x1xf32>
    %65 = tpu.reciprocal %64 {approx = true} : vector<4x1xf32> -> vector<4x1xf32>
    %66 = vector.broadcast %65 : vector<4x1xf32> to vector<4x4xf32>
    %67 = arith.mulf %62, %66 : vector<4x4xf32>
    %68 = vector.extract_strided_slice %37 {offsets = [0, 8], sizes = [4, 8], strides = [1, 1]} : vector<4x32xf32> to vector<4x8xf32>
    %cst_43 = arith.constant dense<0.000000e+00> : vector<4x8xf32>
    %69 = tpu.matmul %67, %68, %cst_43 {dimension_numbers = #tpu.dot_dimension_numbers<[1], [0], [0], [1], [0, 0, 1, 1], [], []>} : vector<4x4xf32>, vector<4x8xf32>, vector<4x8xf32> -> vector<4x8xf32>
    %70 = vector.extract_strided_slice %31 {offsets = [0, 16], sizes = [4, 8], strides = [1, 1]} : vector<4x32xf32> to vector<4x8xf32>
    %71 = vector.extract_strided_slice %34 {offsets = [0, 16], sizes = [4, 8], strides = [1, 1]} : vector<4x32xf32> to vector<4x8xf32>
    %cst_44 = arith.constant dense<0.000000e+00> : vector<4x4xf32>
    %72 = tpu.matmul %70, %71, %cst_44 {dimension_numbers = #tpu.dot_dimension_numbers<[1], [1], [0], [0], [0, 0, 1, 0], [], []>} : vector<4x8xf32>, vector<4x8xf32>, vector<4x4xf32> -> vector<4x4xf32>
    %73 = arith.addf %72, %10 : vector<4x4xf32>
    %cst_45 = arith.constant dense<0xFF800000> : vector<4xf32>
    %74 = vector.multi_reduction <maximumf>, %73, %cst_45 [1] : vector<4x4xf32> to vector<4xf32>
    %75 = vector.shape_cast %74 : vector<4xf32> to vector<4x1xf32>
    %76 = vector.broadcast %75 : vector<4x1xf32> to vector<4x4xf32>
    %77 = arith.subf %73, %76 : vector<4x4xf32>
    %78 = math.exp %77 : vector<4x4xf32>
    %cst_46 = arith.constant dense<0.000000e+00> : vector<4xf32>
    %79 = vector.multi_reduction <add>, %78, %cst_46 [1] : vector<4x4xf32> to vector<4xf32>
    %80 = vector.shape_cast %79 : vector<4xf32> to vector<4x1xf32>
    %81 = tpu.reciprocal %80 {approx = true} : vector<4x1xf32> -> vector<4x1xf32>
    %82 = vector.broadcast %81 : vector<4x1xf32> to vector<4x4xf32>
    %83 = arith.mulf %78, %82 : vector<4x4xf32>
    %84 = vector.extract_strided_slice %37 {offsets = [0, 16], sizes = [4, 8], strides = [1, 1]} : vector<4x32xf32> to vector<4x8xf32>
    %cst_47 = arith.constant dense<0.000000e+00> : vector<4x8xf32>
    %85 = tpu.matmul %83, %84, %cst_47 {dimension_numbers = #tpu.dot_dimension_numbers<[1], [0], [0], [1], [0, 0, 1, 1], [], []>} : vector<4x4xf32>, vector<4x8xf32>, vector<4x8xf32> -> vector<4x8xf32>
    %86 = vector.extract_strided_slice %31 {offsets = [0, 24], sizes = [4, 8], strides = [1, 1]} : vector<4x32xf32> to vector<4x8xf32>
    %87 = vector.extract_strided_slice %34 {offsets = [0, 24], sizes = [4, 8], strides = [1, 1]} : vector<4x32xf32> to vector<4x8xf32>
    %cst_48 = arith.constant dense<0.000000e+00> : vector<4x4xf32>
    %88 = tpu.matmul %86, %87, %cst_48 {dimension_numbers = #tpu.dot_dimension_numbers<[1], [1], [0], [0], [0, 0, 1, 0], [], []>} : vector<4x8xf32>, vector<4x8xf32>, vector<4x4xf32> -> vector<4x4xf32>
    %89 = arith.addf %88, %10 : vector<4x4xf32>
    %cst_49 = arith.constant dense<0xFF800000> : vector<4xf32>
    %90 = vector.multi_reduction <maximumf>, %89, %cst_49 [1] : vector<4x4xf32> to vector<4xf32>
    %91 = vector.shape_cast %90 : vector<4xf32> to vector<4x1xf32>
    %92 = vector.broadcast %91 : vector<4x1xf32> to vector<4x4xf32>
    %93 = arith.subf %89, %92 : vector<4x4xf32>
    %94 = math.exp %93 : vector<4x4xf32>
    %cst_50 = arith.constant dense<0.000000e+00> : vector<4xf32>
    %95 = vector.multi_reduction <add>, %94, %cst_50 [1] : vector<4x4xf32> to vector<4xf32>
    %96 = vector.shape_cast %95 : vector<4xf32> to vector<4x1xf32>
    %97 = tpu.reciprocal %96 {approx = true} : vector<4x1xf32> -> vector<4x1xf32>
    %98 = vector.broadcast %97 : vector<4x1xf32> to vector<4x4xf32>
    %99 = arith.mulf %94, %98 : vector<4x4xf32>
    %100 = vector.extract_strided_slice %37 {offsets = [0, 24], sizes = [4, 8], strides = [1, 1]} : vector<4x32xf32> to vector<4x8xf32>
    %cst_51 = arith.constant dense<0.000000e+00> : vector<4x8xf32>
    %101 = tpu.matmul %99, %100, %cst_51 {dimension_numbers = #tpu.dot_dimension_numbers<[1], [0], [0], [1], [0, 0, 1, 1], [], []>} : vector<4x4xf32>, vector<4x8xf32>, vector<4x8xf32> -> vector<4x8xf32>
    %102 = tpu.concatenate %53, %69, %85, %101 in 1 : vector<4x8xf32>, vector<4x8xf32>, vector<4x8xf32>, vector<4x8xf32> -> vector<4x32xf32>
    %cst_52 = arith.constant dense<0.000000e+00> : vector<4x32xf32>
    %103 = tpu.matmul %102, %24, %cst_52 {dimension_numbers = #tpu.dot_dimension_numbers<[1], [0], [0], [1], [0, 0, 1, 1], [], []>} : vector<4x32xf32>, vector<32x32xf32>, vector<4x32xf32> -> vector<4x32xf32>
    %104 = vector.broadcast %26 : vector<1x32xf32> to vector<4x32xf32>
    %105 = arith.addf %103, %104 : vector<4x32xf32>
    %106 = arith.addf %4, %105 : vector<4x32xf32>
    %c0_53 = arith.constant 0 : index
    %c0_54 = arith.constant 0 : index
    %c0_55 = arith.constant 0 : index
    %107 = vector.load %arg13[%c0_53, %c0_54, %c0_55] : memref<1x1x32xf32, #tpu.memory_space<vmem>>, vector<1x1x32xf32>
    %108 = vector.shape_cast %107 : vector<1x1x32xf32> to vector<1x32xf32>
    %c0_56 = arith.constant 0 : index
    %c0_57 = arith.constant 0 : index
    %c0_58 = arith.constant 0 : index
    %109 = vector.load %arg14[%c0_56, %c0_57, %c0_58] : memref<1x1x32xf32, #tpu.memory_space<vmem>>, vector<1x1x32xf32>
    %110 = vector.shape_cast %109 : vector<1x1x32xf32> to vector<1x32xf32>
    %cst_59 = arith.constant dense<0.000000e+00> : vector<4xf32>
    %111 = vector.multi_reduction <add>, %106, %cst_59 [1] : vector<4x32xf32> to vector<4xf32>
    %112 = vector.shape_cast %111 : vector<4xf32> to vector<4x1xf32>
    %cst_60 = arith.constant 3.200000e+01 : f32
    %113 = vector.broadcast %cst_60 : f32 to vector<4x1xf32>
    %114 = arith.divf %112, %113 : vector<4x1xf32>
    %115 = vector.broadcast %114 : vector<4x1xf32> to vector<4x32xf32>
    %116 = arith.subf %106, %115 : vector<4x32xf32>
    %117 = arith.mulf %116, %116 : vector<4x32xf32>
    %cst_61 = arith.constant dense<0.000000e+00> : vector<4xf32>
    %118 = vector.multi_reduction <add>, %117, %cst_61 [1] : vector<4x32xf32> to vector<4xf32>
    %119 = vector.shape_cast %118 : vector<4xf32> to vector<4x1xf32>
    %cst_62 = arith.constant 3.200000e+01 : f32
    %120 = vector.broadcast %cst_62 : f32 to vector<4x1xf32>
    %121 = arith.divf %119, %120 : vector<4x1xf32>
    %cst_63 = arith.constant 9.99999974E-6 : f32
    %122 = vector.broadcast %cst_63 : f32 to vector<4x1xf32>
    %123 = arith.addf %121, %122 : vector<4x1xf32>
    %124 = math.rsqrt %123 : vector<4x1xf32>
    %125 = vector.broadcast %124 : vector<4x1xf32> to vector<4x32xf32>
    %126 = arith.mulf %116, %125 : vector<4x32xf32>
    %127 = vector.broadcast %108 : vector<1x32xf32> to vector<4x32xf32>
    %128 = arith.mulf %126, %127 : vector<4x32xf32>
    %129 = vector.broadcast %110 : vector<1x32xf32> to vector<4x32xf32>
    %130 = arith.addf %128, %129 : vector<4x32xf32>
    %c0_64 = arith.constant 0 : index
    %c0_65 = arith.constant 0 : index
    %c0_66 = arith.constant 0 : index
    %131 = vector.load %arg15[%c0_64, %c0_65, %c0_66] : memref<1x32x64xf32, #tpu.memory_space<vmem>>, vector<1x32x64xf32>
    %132 = vector.shape_cast %131 : vector<1x32x64xf32> to vector<32x64xf32>
    %c0_67 = arith.constant 0 : index
    %c0_68 = arith.constant 0 : index
    %c0_69 = arith.constant 0 : index
    %133 = vector.load %arg16[%c0_67, %c0_68, %c0_69] : memref<1x1x64xf32, #tpu.memory_space<vmem>>, vector<1x1x64xf32>
    %134 = vector.shape_cast %133 : vector<1x1x64xf32> to vector<1x64xf32>
    %c0_70 = arith.constant 0 : index
    %c0_71 = arith.constant 0 : index
    %c0_72 = arith.constant 0 : index
    %135 = vector.load %arg17[%c0_70, %c0_71, %c0_72] : memref<1x64x32xf32, #tpu.memory_space<vmem>>, vector<1x64x32xf32>
    %136 = vector.shape_cast %135 : vector<1x64x32xf32> to vector<64x32xf32>
    %c0_73 = arith.constant 0 : index
    %c0_74 = arith.constant 0 : index
    %c0_75 = arith.constant 0 : index
    %137 = vector.load %arg18[%c0_73, %c0_74, %c0_75] : memref<1x1x32xf32, #tpu.memory_space<vmem>>, vector<1x1x32xf32>
    %138 = vector.shape_cast %137 : vector<1x1x32xf32> to vector<1x32xf32>
    %cst_76 = arith.constant dense<0.000000e+00> : vector<4x64xf32>
    %139 = tpu.matmul %130, %132, %cst_76 {dimension_numbers = #tpu.dot_dimension_numbers<[1], [0], [0], [1], [0, 0, 1, 1], [], []>} : vector<4x32xf32>, vector<32x64xf32>, vector<4x64xf32> -> vector<4x64xf32>
    %140 = vector.broadcast %134 : vector<1x64xf32> to vector<4x64xf32>
    %141 = arith.addf %139, %140 : vector<4x64xf32>
    %cst_77 = arith.constant 0.000000e+00 : f32
    %142 = vector.broadcast %cst_77 : f32 to vector<4x64xf32>
    %143 = arith.maximumf %141, %142 : vector<4x64xf32>
    %cst_78 = arith.constant dense<0.000000e+00> : vector<4x32xf32>
    %144 = tpu.matmul %143, %136, %cst_78 {dimension_numbers = #tpu.dot_dimension_numbers<[1], [0], [0], [1], [0, 0, 1, 1], [], []>} : vector<4x64xf32>, vector<64x32xf32>, vector<4x32xf32> -> vector<4x32xf32>
    %145 = vector.broadcast %138 : vector<1x32xf32> to vector<4x32xf32>
    %146 = arith.addf %144, %145 : vector<4x32xf32>
    %147 = arith.addf %130, %146 : vector<4x32xf32>
    %c0_79 = arith.constant 0 : index
    %c0_80 = arith.constant 0 : index
    %c0_81 = arith.constant 0 : index
    %148 = vector.load %arg19[%c0_79, %c0_80, %c0_81] : memref<1x1x32xf32, #tpu.memory_space<vmem>>, vector<1x1x32xf32>
    %149 = vector.shape_cast %148 : vector<1x1x32xf32> to vector<1x32xf32>
    %c0_82 = arith.constant 0 : index
    %c0_83 = arith.constant 0 : index
    %c0_84 = arith.constant 0 : index
    %150 = vector.load %arg20[%c0_82, %c0_83, %c0_84] : memref<1x1x32xf32, #tpu.memory_space<vmem>>, vector<1x1x32xf32>
    %151 = vector.shape_cast %150 : vector<1x1x32xf32> to vector<1x32xf32>
    %cst_85 = arith.constant dense<0.000000e+00> : vector<4xf32>
    %152 = vector.multi_reduction <add>, %147, %cst_85 [1] : vector<4x32xf32> to vector<4xf32>
    %153 = vector.shape_cast %152 : vector<4xf32> to vector<4x1xf32>
    %cst_86 = arith.constant 3.200000e+01 : f32
    %154 = vector.broadcast %cst_86 : f32 to vector<4x1xf32>
    %155 = arith.divf %153, %154 : vector<4x1xf32>
    %156 = vector.broadcast %155 : vector<4x1xf32> to vector<4x32xf32>
    %157 = arith.subf %147, %156 : vector<4x32xf32>
    %158 = arith.mulf %157, %157 : vector<4x32xf32>
    %cst_87 = arith.constant dense<0.000000e+00> : vector<4xf32>
    %159 = vector.multi_reduction <add>, %158, %cst_87 [1] : vector<4x32xf32> to vector<4xf32>
    %160 = vector.shape_cast %159 : vector<4xf32> to vector<4x1xf32>
    %cst_88 = arith.constant 3.200000e+01 : f32
    %161 = vector.broadcast %cst_88 : f32 to vector<4x1xf32>
    %162 = arith.divf %160, %161 : vector<4x1xf32>
    %cst_89 = arith.constant 9.99999974E-6 : f32
    %163 = vector.broadcast %cst_89 : f32 to vector<4x1xf32>
    %164 = arith.addf %162, %163 : vector<4x1xf32>
    %165 = math.rsqrt %164 : vector<4x1xf32>
    %166 = vector.broadcast %165 : vector<4x1xf32> to vector<4x32xf32>
    %167 = arith.mulf %157, %166 : vector<4x32xf32>
    %168 = vector.broadcast %149 : vector<1x32xf32> to vector<4x32xf32>
    %169 = arith.mulf %167, %168 : vector<4x32xf32>
    %170 = vector.broadcast %151 : vector<1x32xf32> to vector<4x32xf32>
    %171 = arith.addf %169, %170 : vector<4x32xf32>
    %c0_90 = arith.constant 0 : index
    %c0_91 = arith.constant 0 : index
    %c0_92 = arith.constant 0 : index
    %172 = vector.load %arg21[%c0_90, %c0_91, %c0_92] : memref<1x4x32xf32, #tpu.memory_space<vmem>>, vector<1x4x32xf32>
    %173 = vector.shape_cast %172 : vector<1x4x32xf32> to vector<4x32xf32>
    %174 = vector.shape_cast %171 : vector<4x32xf32> to vector<1x4x32xf32>
    tpu.vector_store %arg21[%c0_90, %c0_91, %c0_92], %174 {strides = array<i32>} : memref<1x4x32xf32, #tpu.memory_space<vmem>>, vector<1x4x32xf32>,
    return
  }
  func.func @transform_0(%arg0: i32, %arg1: i32) -> (i32, i32, i32) {
    %c0_i32 = arith.constant 0 : i32
    %c0_i32_0 = arith.constant 0 : i32
    %c0_i32_1 = arith.constant 0 : i32
    return %arg0, %c0_i32, %c0_i32_0 : i32, i32, i32
  }
  func.func @transform_1(%arg0: i32, %arg1: i32) -> (i32, i32, i32) {
    %c0_i32 = arith.constant 0 : i32
    %c0_i32_0 = arith.constant 0 : i32
    %c0_i32_1 = arith.constant 0 : i32
    %c0_i32_2 = arith.constant 0 : i32
    return %c0_i32, %c0_i32_0, %c0_i32_1 : i32, i32, i32
  }
  func.func @transform_2(%arg0: i32, %arg1: i32) -> (i32, i32, i32) {
    %c0_i32 = arith.constant 0 : i32
    %c0_i32_0 = arith.constant 0 : i32
    %c0_i32_1 = arith.constant 0 : i32
    return %arg0, %c0_i32, %c0_i32_0 : i32, i32, i32
  }
  func.func @transform_3(%arg0: i32, %arg1: i32) -> (i32, i32, i32) {
    %c0_i32 = arith.constant 0 : i32
    %c0_i32_0 = arith.constant 0 : i32
    %c0_i32_1 = arith.constant 0 : i32
    return %arg1, %c0_i32, %c0_i32_0 : i32, i32, i32
  }
  func.func @transform_4(%arg0: i32, %arg1: i32) -> (i32, i32, i32) {
    %c0_i32 = arith.constant 0 : i32
    %c0_i32_0 = arith.constant 0 : i32
    %c0_i32_1 = arith.constant 0 : i32
    return %arg1, %c0_i32, %c0_i32_0 : i32, i32, i32
  }
  func.func @transform_5(%arg0: i32, %arg1: i32) -> (i32, i32, i32) {
    %c0_i32 = arith.constant 0 : i32
    %c0_i32_0 = arith.constant 0 : i32
    %c0_i32_1 = arith.constant 0 : i32
    return %arg1, %c0_i32, %c0_i32_0 : i32, i32, i32
  }
  func.func @transform_6(%arg0: i32, %arg1: i32) -> (i32, i32, i32) {
    %c0_i32 = arith.constant 0 : i32
    %c0_i32_0 = arith.constant 0 : i32
    %c0_i32_1 = arith.constant 0 : i32
    return %arg1, %c0_i32, %c0_i32_0 : i32, i32, i32
  }
  func.func @transform_7(%arg0: i32, %arg1: i32) -> (i32, i32, i32) {
    %c0_i32 = arith.constant 0 : i32
    %c0_i32_0 = arith.constant 0 : i32
    %c0_i32_1 = arith.constant 0 : i32
    return %arg1, %c0_i32, %c0_i32_0 : i32, i32, i32
  }
  func.func @transform_8(%arg0: i32, %arg1: i32) -> (i32, i32, i32) {
    %c0_i32 = arith.constant 0 : i32
    %c0_i32_0 = arith.constant 0 : i32
    %c0_i32_1 = arith.constant 0 : i32
    return %arg1, %c0_i32, %c0_i32_0 : i32, i32, i32
  }
  func.func @transform_9(%arg0: i32, %arg1: i32) -> (i32, i32, i32) {
    %c0_i32 = arith.constant 0 : i32
    %c0_i32_0 = arith.constant 0 : i32
    %c0_i32_1 = arith.constant 0 : i32
    return %arg1, %c0_i32, %c0_i32_0 : i32, i32, i32
  }
  func.func @transform_10(%arg0: i32, %arg1: i32) -> (i32, i32, i32) {
    %c0_i32 = arith.constant 0 : i32
    %c0_i32_0 = arith.constant 0 : i32
    %c0_i32_1 = arith.constant 0 : i32
    return %arg1, %c0_i32, %c0_i32_0 : i32, i32, i32
  }
  func.func @transform_11(%arg0: i32, %arg1: i32) -> (i32, i32, i32) {
    %c0_i32 = arith.constant 0 : i32
    %c0_i32_0 = arith.constant 0 : i32
    %c0_i32_1 = arith.constant 0 : i32
    return %arg1, %c0_i32, %c0_i32_0 : i32, i32, i32
  }
  func.func @transform_12(%arg0: i32, %arg1: i32) -> (i32, i32, i32) {
    %c0_i32 = arith.constant 0 : i32
    %c0_i32_0 = arith.constant 0 : i32
    %c0_i32_1 = arith.constant 0 : i32
    return %arg1, %c0_i32, %c0_i32_0 : i32, i32, i32
  }
  func.func @transform_13(%arg0: i32, %arg1: i32) -> (i32, i32, i32) {
    %c0_i32 = arith.constant 0 : i32
    %c0_i32_0 = arith.constant 0 : i32
    %c0_i32_1 = arith.constant 0 : i32
    return %arg1, %c0_i32, %c0_i32_0 : i32, i32, i32
  }
  func.func @transform_14(%arg0: i32, %arg1: i32) -> (i32, i32, i32) {
    %c0_i32 = arith.constant 0 : i32
    %c0_i32_0 = arith.constant 0 : i32
    %c0_i32_1 = arith.constant 0 : i32
    return %arg1, %c0_i32, %c0_i32_0 : i32, i32, i32
  }
  func.func @transform_15(%arg0: i32, %arg1: i32) -> (i32, i32, i32) {
    %c0_i32 = arith.constant 0 : i32
    %c0_i32_0 = arith.constant 0 : i32
    %c0_i32_1 = arith.constant 0 : i32
    return %arg1, %c0_i32, %c0_i32_0 : i32, i32, i32
  }
  func.func @transform_16(%arg0: i32, %arg1: i32) -> (i32, i32, i32) {
    %c0_i32 = arith.constant 0 : i32
    %c0_i32_0 = arith.constant 0 : i32
    %c0_i32_1 = arith.constant 0 : i32
    return %arg1, %c0_i32, %c0_i32_0 : i32, i32, i32
  }
  func.func @transform_17(%arg0: i32, %arg1: i32) -> (i32, i32, i32) {
    %c0_i32 = arith.constant 0 : i32
    %c0_i32_0 = arith.constant 0 : i32
    %c0_i32_1 = arith.constant 0 : i32
    return %arg1, %c0_i32, %c0_i32_0 : i32, i32, i32
  }
  func.func @transform_18(%arg0: i32, %arg1: i32) -> (i32, i32, i32) {
    %c0_i32 = arith.constant 0 : i32
    %c0_i32_0 = arith.constant 0 : i32
    %c0_i32_1 = arith.constant 0 : i32
    return %arg1, %c0_i32, %c0_i32_0 : i32, i32, i32
  }
  func.func @transform_19(%arg0: i32, %arg1: i32) -> (i32, i32, i32) {
    %c0_i32 = arith.constant 0 : i32
    %c0_i32_0 = arith.constant 0 : i32
    %c0_i32_1 = arith.constant 0 : i32
    return %arg0, %c0_i32, %c0_i32_0 : i32, i32, i32
  }
}

module attributes {stable_mosaic.version = 11 : i64} {
  func.func @_dec_first_sa_kernel(%arg0: i32, %arg1: memref<6x32xf32, #tpu.memory_space<vmem>>, %arg2: memref<32x32xf32, #tpu.memory_space<vmem>>, %arg3: memref<1x32xf32, #tpu.memory_space<vmem>>, %arg4: memref<32x32xf32, #tpu.memory_space<vmem>>, %arg5: memref<1x32xf32, #tpu.memory_space<vmem>>, %arg6: memref<1x32xf32, #tpu.memory_space<vmem>>, %arg7: memref<1x32xf32, #tpu.memory_space<vmem>>, %arg8: memref<6x32xf32, #tpu.memory_space<vmem>>) attributes {dimension_semantics = [#tpu.dimension_semantics<arbitrary>], iteration_bounds = array<i64: 1>, scalar_prefetch = 0 : i64, scratch_operands = 0 : i64, tpu.core_type = #tpu.core_type<tc>, window_params = [{pipeline_mode = #tpu.pipeline_mode<synchronous>, transform_indices = @transform_0, window_bounds = array<i64: 6, 32>}, {pipeline_mode = #tpu.pipeline_mode<synchronous>, transform_indices = @transform_1, window_bounds = array<i64: 32, 32>}, {pipeline_mode = #tpu.pipeline_mode<synchronous>, transform_indices = @transform_2, window_bounds = array<i64: 1, 32>}, {pipeline_mode = #tpu.pipeline_mode<synchronous>, transform_indices = @transform_3, window_bounds = array<i64: 32, 32>}, {pipeline_mode = #tpu.pipeline_mode<synchronous>, transform_indices = @transform_4, window_bounds = array<i64: 1, 32>}, {pipeline_mode = #tpu.pipeline_mode<synchronous>, transform_indices = @transform_5, window_bounds = array<i64: 1, 32>}, {pipeline_mode = #tpu.pipeline_mode<synchronous>, transform_indices = @transform_6, window_bounds = array<i64: 1, 32>}, {pipeline_mode = #tpu.pipeline_mode<synchronous>, transform_indices = @transform_7, window_bounds = array<i64: 6, 32>}]} {
    %c0 = arith.constant 0 : index
    %c0_0 = arith.constant 0 : index
    %0 = vector.load %arg1[%c0, %c0_0] : memref<6x32xf32, #tpu.memory_space<vmem>>, vector<6x32xf32>
    %c0_1 = arith.constant 0 : index
    %c0_2 = arith.constant 0 : index
    %1 = vector.load %arg2[%c0_1, %c0_2] : memref<32x32xf32, #tpu.memory_space<vmem>>, vector<32x32xf32>
    %cst = arith.constant dense<0.000000e+00> : vector<6x32xf32>
    %2 = tpu.matmul %0, %1, %cst {dimension_numbers = #tpu.dot_dimension_numbers<[1], [0], [0], [1], [0, 0, 1, 1], [], []>} : vector<6x32xf32>, vector<32x32xf32>, vector<6x32xf32> -> vector<6x32xf32>
    %c0_3 = arith.constant 0 : index
    %c0_4 = arith.constant 0 : index
    %3 = vector.load %arg3[%c0_3, %c0_4] : memref<1x32xf32, #tpu.memory_space<vmem>>, vector<1x32xf32>
    %4 = vector.broadcast %3 : vector<1x32xf32> to vector<6x32xf32>
    %5 = arith.addf %2, %4 : vector<6x32xf32>
    %c0_5 = arith.constant 0 : index
    %c0_6 = arith.constant 0 : index
    %6 = vector.load %arg4[%c0_5, %c0_6] : memref<32x32xf32, #tpu.memory_space<vmem>>, vector<32x32xf32>
    %cst_7 = arith.constant dense<0.000000e+00> : vector<6x32xf32>
    %7 = tpu.matmul %5, %6, %cst_7 {dimension_numbers = #tpu.dot_dimension_numbers<[1], [0], [0], [1], [0, 0, 1, 1], [], []>} : vector<6x32xf32>, vector<32x32xf32>, vector<6x32xf32> -> vector<6x32xf32>
    %c0_8 = arith.constant 0 : index
    %c0_9 = arith.constant 0 : index
    %8 = vector.load %arg5[%c0_8, %c0_9] : memref<1x32xf32, #tpu.memory_space<vmem>>, vector<1x32xf32>
    %9 = vector.broadcast %8 : vector<1x32xf32> to vector<6x32xf32>
    %10 = arith.addf %7, %9 : vector<6x32xf32>
    %11 = arith.addf %0, %10 : vector<6x32xf32>
    %c0_10 = arith.constant 0 : index
    %c0_11 = arith.constant 0 : index
    %12 = vector.load %arg6[%c0_10, %c0_11] : memref<1x32xf32, #tpu.memory_space<vmem>>, vector<1x32xf32>
    %c0_12 = arith.constant 0 : index
    %c0_13 = arith.constant 0 : index
    %13 = vector.load %arg7[%c0_12, %c0_13] : memref<1x32xf32, #tpu.memory_space<vmem>>, vector<1x32xf32>
    %cst_14 = arith.constant dense<0.000000e+00> : vector<6xf32>
    %14 = vector.multi_reduction <add>, %11, %cst_14 [1] : vector<6x32xf32> to vector<6xf32>
    %15 = vector.shape_cast %14 : vector<6xf32> to vector<6x1xf32>
    %cst_15 = arith.constant 3.200000e+01 : f32
    %16 = vector.broadcast %cst_15 : f32 to vector<6x1xf32>
    %17 = arith.divf %15, %16 : vector<6x1xf32>
    %18 = vector.broadcast %17 : vector<6x1xf32> to vector<6x32xf32>
    %19 = arith.subf %11, %18 : vector<6x32xf32>
    %20 = arith.mulf %19, %19 : vector<6x32xf32>
    %cst_16 = arith.constant dense<0.000000e+00> : vector<6xf32>
    %21 = vector.multi_reduction <add>, %20, %cst_16 [1] : vector<6x32xf32> to vector<6xf32>
    %22 = vector.shape_cast %21 : vector<6xf32> to vector<6x1xf32>
    %cst_17 = arith.constant 3.200000e+01 : f32
    %23 = vector.broadcast %cst_17 : f32 to vector<6x1xf32>
    %24 = arith.divf %22, %23 : vector<6x1xf32>
    %cst_18 = arith.constant 9.99999974E-6 : f32
    %25 = vector.broadcast %cst_18 : f32 to vector<6x1xf32>
    %26 = arith.addf %24, %25 : vector<6x1xf32>
    %27 = math.rsqrt %26 : vector<6x1xf32>
    %28 = vector.broadcast %27 : vector<6x1xf32> to vector<6x32xf32>
    %29 = arith.mulf %19, %28 : vector<6x32xf32>
    %30 = vector.broadcast %12 : vector<1x32xf32> to vector<6x32xf32>
    %31 = arith.mulf %29, %30 : vector<6x32xf32>
    %32 = vector.broadcast %13 : vector<1x32xf32> to vector<6x32xf32>
    %33 = arith.addf %31, %32 : vector<6x32xf32>
    %c0_19 = arith.constant 0 : index
    %c0_20 = arith.constant 0 : index
    %34 = vector.load %arg8[%c0_19, %c0_20] : memref<6x32xf32, #tpu.memory_space<vmem>>, vector<6x32xf32>
    tpu.vector_store %arg8[%c0_19, %c0_20], %33 {strides = array<i32>} : memref<6x32xf32, #tpu.memory_space<vmem>>, vector<6x32xf32>,
    return
  }
  func.func @transform_0(%arg0: i32) -> (i32, i32) {
    %c0_i32 = arith.constant 0 : i32
    %c0_i32_0 = arith.constant 0 : i32
    %c0_i32_1 = arith.constant 0 : i32
    return %c0_i32, %c0_i32_0 : i32, i32
  }
  func.func @transform_1(%arg0: i32) -> (i32, i32) {
    %c0_i32 = arith.constant 0 : i32
    %c0_i32_0 = arith.constant 0 : i32
    %c0_i32_1 = arith.constant 0 : i32
    return %c0_i32, %c0_i32_0 : i32, i32
  }
  func.func @transform_2(%arg0: i32) -> (i32, i32) {
    %c0_i32 = arith.constant 0 : i32
    %c0_i32_0 = arith.constant 0 : i32
    %c0_i32_1 = arith.constant 0 : i32
    return %c0_i32, %c0_i32_0 : i32, i32
  }
  func.func @transform_3(%arg0: i32) -> (i32, i32) {
    %c0_i32 = arith.constant 0 : i32
    %c0_i32_0 = arith.constant 0 : i32
    %c0_i32_1 = arith.constant 0 : i32
    return %c0_i32, %c0_i32_0 : i32, i32
  }
  func.func @transform_4(%arg0: i32) -> (i32, i32) {
    %c0_i32 = arith.constant 0 : i32
    %c0_i32_0 = arith.constant 0 : i32
    %c0_i32_1 = arith.constant 0 : i32
    return %c0_i32, %c0_i32_0 : i32, i32
  }
  func.func @transform_5(%arg0: i32) -> (i32, i32) {
    %c0_i32 = arith.constant 0 : i32
    %c0_i32_0 = arith.constant 0 : i32
    %c0_i32_1 = arith.constant 0 : i32
    return %c0_i32, %c0_i32_0 : i32, i32
  }
  func.func @transform_6(%arg0: i32) -> (i32, i32) {
    %c0_i32 = arith.constant 0 : i32
    %c0_i32_0 = arith.constant 0 : i32
    %c0_i32_1 = arith.constant 0 : i32
    return %c0_i32, %c0_i32_0 : i32, i32
  }
  func.func @transform_7(%arg0: i32) -> (i32, i32) {
    %c0_i32 = arith.constant 0 : i32
    %c0_i32_0 = arith.constant 0 : i32
    %c0_i32_1 = arith.constant 0 : i32
    return %c0_i32, %c0_i32_0 : i32, i32
  }
}

module attributes {stable_mosaic.version = 11 : i64} {
  func.func @_embed_kernel(%arg0: i32, %arg1: memref<6x12xf32, #tpu.memory_space<vmem>>, %arg2: memref<12x32xf32, #tpu.memory_space<vmem>>, %arg3: memref<1x32xf32, #tpu.memory_space<vmem>>, %arg4: memref<6x1xf32, #tpu.memory_space<vmem>>, %arg5: memref<6x32xf32, #tpu.memory_space<vmem>>) attributes {dimension_semantics = [#tpu.dimension_semantics<arbitrary>], iteration_bounds = array<i64: 1>, scalar_prefetch = 0 : i64, scratch_operands = 0 : i64, tpu.core_type = #tpu.core_type<tc>, window_params = [{pipeline_mode = #tpu.pipeline_mode<synchronous>, transform_indices = @transform_0, window_bounds = array<i64: 6, 12>}, {pipeline_mode = #tpu.pipeline_mode<synchronous>, transform_indices = @transform_1, window_bounds = array<i64: 12, 32>}, {pipeline_mode = #tpu.pipeline_mode<synchronous>, transform_indices = @transform_2, window_bounds = array<i64: 1, 32>}, {pipeline_mode = #tpu.pipeline_mode<synchronous>, transform_indices = @transform_3, window_bounds = array<i64: 6, 1>}, {pipeline_mode = #tpu.pipeline_mode<synchronous>, transform_indices = @transform_4, window_bounds = array<i64: 6, 32>}]} {
    %c0 = arith.constant 0 : index
    %c0_0 = arith.constant 0 : index
    %0 = vector.load %arg1[%c0, %c0_0] : memref<6x12xf32, #tpu.memory_space<vmem>>, vector<6x12xf32>
    %c0_1 = arith.constant 0 : index
    %c0_2 = arith.constant 0 : index
    %1 = vector.load %arg2[%c0_1, %c0_2] : memref<12x32xf32, #tpu.memory_space<vmem>>, vector<12x32xf32>
    %cst = arith.constant dense<0.000000e+00> : vector<6x32xf32>
    %2 = tpu.matmul %0, %1, %cst {dimension_numbers = #tpu.dot_dimension_numbers<[1], [0], [0], [1], [0, 0, 1, 1], [], []>} : vector<6x12xf32>, vector<12x32xf32>, vector<6x32xf32> -> vector<6x32xf32>
    %c0_3 = arith.constant 0 : index
    %c0_4 = arith.constant 0 : index
    %3 = vector.load %arg3[%c0_3, %c0_4] : memref<1x32xf32, #tpu.memory_space<vmem>>, vector<1x32xf32>
    %4 = vector.broadcast %3 : vector<1x32xf32> to vector<6x32xf32>
    %5 = arith.addf %2, %4 : vector<6x32xf32>
    %cst_5 = arith.constant 0.000000e+00 : f32
    %6 = vector.broadcast %cst_5 : f32 to vector<6x32xf32>
    %7 = arith.maximumf %5, %6 : vector<6x32xf32>
    %c0_6 = arith.constant 0 : index
    %c0_7 = arith.constant 0 : index
    %8 = vector.load %arg4[%c0_6, %c0_7] : memref<6x1xf32, #tpu.memory_space<vmem>>, vector<6x1xf32>
    %9 = vector.broadcast %8 : vector<6x1xf32> to vector<6x32xf32>
    %10 = arith.mulf %7, %9 : vector<6x32xf32>
    %c0_8 = arith.constant 0 : index
    %c0_9 = arith.constant 0 : index
    %11 = vector.load %arg5[%c0_8, %c0_9] : memref<6x32xf32, #tpu.memory_space<vmem>>, vector<6x32xf32>
    tpu.vector_store %arg5[%c0_8, %c0_9], %10 {strides = array<i32>} : memref<6x32xf32, #tpu.memory_space<vmem>>, vector<6x32xf32>,
    return
  }
  func.func @transform_0(%arg0: i32) -> (i32, i32) {
    %c0_i32 = arith.constant 0 : i32
    %c0_i32_0 = arith.constant 0 : i32
    %c0_i32_1 = arith.constant 0 : i32
    return %c0_i32, %c0_i32_0 : i32, i32
  }
  func.func @transform_1(%arg0: i32) -> (i32, i32) {
    %c0_i32 = arith.constant 0 : i32
    %c0_i32_0 = arith.constant 0 : i32
    %c0_i32_1 = arith.constant 0 : i32
    return %c0_i32, %c0_i32_0 : i32, i32
  }
  func.func @transform_2(%arg0: i32) -> (i32, i32) {
    %c0_i32 = arith.constant 0 : i32
    %c0_i32_0 = arith.constant 0 : i32
    %c0_i32_1 = arith.constant 0 : i32
    return %c0_i32, %c0_i32_0 : i32, i32
  }
  func.func @transform_3(%arg0: i32) -> (i32, i32) {
    %c0_i32 = arith.constant 0 : i32
    %c0_i32_0 = arith.constant 0 : i32
    %c0_i32_1 = arith.constant 0 : i32
    return %c0_i32, %c0_i32_0 : i32, i32
  }
  func.func @transform_4(%arg0: i32) -> (i32, i32) {
    %c0_i32 = arith.constant 0 : i32
    %c0_i32_0 = arith.constant 0 : i32
    %c0_i32_1 = arith.constant 0 : i32
    return %c0_i32, %c0_i32_0 : i32, i32
  }
}

module attributes {stable_mosaic.version = 11 : i64} {
  func.func @_sa_ln_kernel(%arg0: i32, %arg1: memref<1x9x32xf32, #tpu.memory_space<vmem>>, %arg2: memref<1x9x9xf32, #tpu.memory_space<vmem>>, %arg3: memref<32x32xf32, #tpu.memory_space<vmem>>, %arg4: memref<1x32xf32, #tpu.memory_space<vmem>>, %arg5: memref<32x32xf32, #tpu.memory_space<vmem>>, %arg6: memref<1x32xf32, #tpu.memory_space<vmem>>, %arg7: memref<32x32xf32, #tpu.memory_space<vmem>>, %arg8: memref<1x32xf32, #tpu.memory_space<vmem>>, %arg9: memref<32x32xf32, #tpu.memory_space<vmem>>, %arg10: memref<1x32xf32, #tpu.memory_space<vmem>>, %arg11: memref<1x32xf32, #tpu.memory_space<vmem>>, %arg12: memref<1x32xf32, #tpu.memory_space<vmem>>, %arg13: memref<1x9x32xf32, #tpu.memory_space<vmem>>) attributes {dimension_semantics = [#tpu.dimension_semantics<parallel>], iteration_bounds = array<i64: 6>, scalar_prefetch = 0 : i64, scratch_operands = 0 : i64, tpu.core_type = #tpu.core_type<tc>, window_params = [{transform_indices = @transform_0, window_bounds = array<i64: 1, 9, 32>}, {pipeline_mode = #tpu.pipeline_mode<synchronous>, transform_indices = @transform_1, window_bounds = array<i64: 1, 9, 9>}, {pipeline_mode = #tpu.pipeline_mode<synchronous>, transform_indices = @transform_2, window_bounds = array<i64: 32, 32>}, {pipeline_mode = #tpu.pipeline_mode<synchronous>, transform_indices = @transform_3, window_bounds = array<i64: 1, 32>}, {pipeline_mode = #tpu.pipeline_mode<synchronous>, transform_indices = @transform_4, window_bounds = array<i64: 32, 32>}, {pipeline_mode = #tpu.pipeline_mode<synchronous>, transform_indices = @transform_5, window_bounds = array<i64: 1, 32>}, {pipeline_mode = #tpu.pipeline_mode<synchronous>, transform_indices = @transform_6, window_bounds = array<i64: 32, 32>}, {pipeline_mode = #tpu.pipeline_mode<synchronous>, transform_indices = @transform_7, window_bounds = array<i64: 1, 32>}, {pipeline_mode = #tpu.pipeline_mode<synchronous>, transform_indices = @transform_8, window_bounds = array<i64: 32, 32>}, {pipeline_mode = #tpu.pipeline_mode<synchronous>, transform_indices = @transform_9, window_bounds = array<i64: 1, 32>}, {pipeline_mode = #tpu.pipeline_mode<synchronous>, transform_indices = @transform_10, window_bounds = array<i64: 1, 32>}, {pipeline_mode = #tpu.pipeline_mode<synchronous>, transform_indices = @transform_11, window_bounds = array<i64: 1, 32>}, {transform_indices = @transform_12, window_bounds = array<i64: 1, 9, 32>}]} {
    %c0 = arith.constant 0 : index
    %c0_0 = arith.constant 0 : index
    %c0_1 = arith.constant 0 : index
    %0 = vector.load %arg1[%c0, %c0_0, %c0_1] : memref<1x9x32xf32, #tpu.memory_space<vmem>>, vector<1x9x32xf32>
    %1 = vector.shape_cast %0 : vector<1x9x32xf32> to vector<9x32xf32>
    %c0_2 = arith.constant 0 : index
    %c0_3 = arith.constant 0 : index
    %c0_4 = arith.constant 0 : index
    %2 = vector.load %arg2[%c0_2, %c0_3, %c0_4] : memref<1x9x9xf32, #tpu.memory_space<vmem>>, vector<1x9x9xf32>
    %3 = vector.shape_cast %2 : vector<1x9x9xf32> to vector<9x9xf32>
    %c0_5 = arith.constant 0 : index
    %c0_6 = arith.constant 0 : index
    %4 = vector.load %arg3[%c0_5, %c0_6] : memref<32x32xf32, #tpu.memory_space<vmem>>, vector<32x32xf32>
    %c0_7 = arith.constant 0 : index
    %c0_8 = arith.constant 0 : index
    %5 = vector.load %arg4[%c0_7, %c0_8] : memref<1x32xf32, #tpu.memory_space<vmem>>, vector<1x32xf32>
    %c0_9 = arith.constant 0 : index
    %c0_10 = arith.constant 0 : index
    %6 = vector.load %arg5[%c0_9, %c0_10] : memref<32x32xf32, #tpu.memory_space<vmem>>, vector<32x32xf32>
    %c0_11 = arith.constant 0 : index
    %c0_12 = arith.constant 0 : index
    %7 = vector.load %arg6[%c0_11, %c0_12] : memref<1x32xf32, #tpu.memory_space<vmem>>, vector<1x32xf32>
    %c0_13 = arith.constant 0 : index
    %c0_14 = arith.constant 0 : index
    %8 = vector.load %arg7[%c0_13, %c0_14] : memref<32x32xf32, #tpu.memory_space<vmem>>, vector<32x32xf32>
    %c0_15 = arith.constant 0 : index
    %c0_16 = arith.constant 0 : index
    %9 = vector.load %arg8[%c0_15, %c0_16] : memref<1x32xf32, #tpu.memory_space<vmem>>, vector<1x32xf32>
    %c0_17 = arith.constant 0 : index
    %c0_18 = arith.constant 0 : index
    %10 = vector.load %arg9[%c0_17, %c0_18] : memref<32x32xf32, #tpu.memory_space<vmem>>, vector<32x32xf32>
    %c0_19 = arith.constant 0 : index
    %c0_20 = arith.constant 0 : index
    %11 = vector.load %arg10[%c0_19, %c0_20] : memref<1x32xf32, #tpu.memory_space<vmem>>, vector<1x32xf32>
    %cst = arith.constant dense<0.000000e+00> : vector<9x32xf32>
    %12 = tpu.matmul %1, %4, %cst {dimension_numbers = #tpu.dot_dimension_numbers<[1], [0], [0], [1], [0, 0, 1, 1], [], []>} : vector<9x32xf32>, vector<32x32xf32>, vector<9x32xf32> -> vector<9x32xf32>
    %13 = vector.broadcast %5 : vector<1x32xf32> to vector<9x32xf32>
    %14 = arith.addf %12, %13 : vector<9x32xf32>
    %cst_21 = arith.constant 0.353553385 : f32
    %15 = vector.broadcast %cst_21 : f32 to vector<9x32xf32>
    %16 = arith.mulf %14, %15 : vector<9x32xf32>
    %cst_22 = arith.constant dense<0.000000e+00> : vector<9x32xf32>
    %17 = tpu.matmul %1, %6, %cst_22 {dimension_numbers = #tpu.dot_dimension_numbers<[1], [0], [0], [1], [0, 0, 1, 1], [], []>} : vector<9x32xf32>, vector<32x32xf32>, vector<9x32xf32> -> vector<9x32xf32>
    %18 = vector.broadcast %7 : vector<1x32xf32> to vector<9x32xf32>
    %19 = arith.addf %17, %18 : vector<9x32xf32>
    %cst_23 = arith.constant dense<0.000000e+00> : vector<9x32xf32>
    %20 = tpu.matmul %1, %8, %cst_23 {dimension_numbers = #tpu.dot_dimension_numbers<[1], [0], [0], [1], [0, 0, 1, 1], [], []>} : vector<9x32xf32>, vector<32x32xf32>, vector<9x32xf32> -> vector<9x32xf32>
    %21 = vector.broadcast %9 : vector<1x32xf32> to vector<9x32xf32>
    %22 = arith.addf %20, %21 : vector<9x32xf32>
    %23 = vector.extract_strided_slice %16 {offsets = [0, 0], sizes = [9, 8], strides = [1, 1]} : vector<9x32xf32> to vector<9x8xf32>
    %24 = vector.extract_strided_slice %19 {offsets = [0, 0], sizes = [9, 8], strides = [1, 1]} : vector<9x32xf32> to vector<9x8xf32>
    %cst_24 = arith.constant dense<0.000000e+00> : vector<9x9xf32>
    %25 = tpu.matmul %23, %24, %cst_24 {dimension_numbers = #tpu.dot_dimension_numbers<[1], [1], [0], [0], [0, 0, 1, 0], [], []>} : vector<9x8xf32>, vector<9x8xf32>, vector<9x9xf32> -> vector<9x9xf32>
    %26 = arith.addf %25, %3 : vector<9x9xf32>
    %cst_25 = arith.constant dense<0xFF800000> : vector<9xf32>
    %27 = vector.multi_reduction <maximumf>, %26, %cst_25 [1] : vector<9x9xf32> to vector<9xf32>
    %28 = vector.shape_cast %27 : vector<9xf32> to vector<9x1xf32>
    %29 = vector.broadcast %28 : vector<9x1xf32> to vector<9x9xf32>
    %30 = arith.subf %26, %29 : vector<9x9xf32>
    %31 = math.exp %30 : vector<9x9xf32>
    %cst_26 = arith.constant dense<0.000000e+00> : vector<9xf32>
    %32 = vector.multi_reduction <add>, %31, %cst_26 [1] : vector<9x9xf32> to vector<9xf32>
    %33 = vector.shape_cast %32 : vector<9xf32> to vector<9x1xf32>
    %34 = tpu.reciprocal %33 {approx = true} : vector<9x1xf32> -> vector<9x1xf32>
    %35 = vector.broadcast %34 : vector<9x1xf32> to vector<9x9xf32>
    %36 = arith.mulf %31, %35 : vector<9x9xf32>
    %37 = vector.extract_strided_slice %22 {offsets = [0, 0], sizes = [9, 8], strides = [1, 1]} : vector<9x32xf32> to vector<9x8xf32>
    %cst_27 = arith.constant dense<0.000000e+00> : vector<9x8xf32>
    %38 = tpu.matmul %36, %37, %cst_27 {dimension_numbers = #tpu.dot_dimension_numbers<[1], [0], [0], [1], [0, 0, 1, 1], [], []>} : vector<9x9xf32>, vector<9x8xf32>, vector<9x8xf32> -> vector<9x8xf32>
    %39 = vector.extract_strided_slice %16 {offsets = [0, 8], sizes = [9, 8], strides = [1, 1]} : vector<9x32xf32> to vector<9x8xf32>
    %40 = vector.extract_strided_slice %19 {offsets = [0, 8], sizes = [9, 8], strides = [1, 1]} : vector<9x32xf32> to vector<9x8xf32>
    %cst_28 = arith.constant dense<0.000000e+00> : vector<9x9xf32>
    %41 = tpu.matmul %39, %40, %cst_28 {dimension_numbers = #tpu.dot_dimension_numbers<[1], [1], [0], [0], [0, 0, 1, 0], [], []>} : vector<9x8xf32>, vector<9x8xf32>, vector<9x9xf32> -> vector<9x9xf32>
    %42 = arith.addf %41, %3 : vector<9x9xf32>
    %cst_29 = arith.constant dense<0xFF800000> : vector<9xf32>
    %43 = vector.multi_reduction <maximumf>, %42, %cst_29 [1] : vector<9x9xf32> to vector<9xf32>
    %44 = vector.shape_cast %43 : vector<9xf32> to vector<9x1xf32>
    %45 = vector.broadcast %44 : vector<9x1xf32> to vector<9x9xf32>
    %46 = arith.subf %42, %45 : vector<9x9xf32>
    %47 = math.exp %46 : vector<9x9xf32>
    %cst_30 = arith.constant dense<0.000000e+00> : vector<9xf32>
    %48 = vector.multi_reduction <add>, %47, %cst_30 [1] : vector<9x9xf32> to vector<9xf32>
    %49 = vector.shape_cast %48 : vector<9xf32> to vector<9x1xf32>
    %50 = tpu.reciprocal %49 {approx = true} : vector<9x1xf32> -> vector<9x1xf32>
    %51 = vector.broadcast %50 : vector<9x1xf32> to vector<9x9xf32>
    %52 = arith.mulf %47, %51 : vector<9x9xf32>
    %53 = vector.extract_strided_slice %22 {offsets = [0, 8], sizes = [9, 8], strides = [1, 1]} : vector<9x32xf32> to vector<9x8xf32>
    %cst_31 = arith.constant dense<0.000000e+00> : vector<9x8xf32>
    %54 = tpu.matmul %52, %53, %cst_31 {dimension_numbers = #tpu.dot_dimension_numbers<[1], [0], [0], [1], [0, 0, 1, 1], [], []>} : vector<9x9xf32>, vector<9x8xf32>, vector<9x8xf32> -> vector<9x8xf32>
    %55 = vector.extract_strided_slice %16 {offsets = [0, 16], sizes = [9, 8], strides = [1, 1]} : vector<9x32xf32> to vector<9x8xf32>
    %56 = vector.extract_strided_slice %19 {offsets = [0, 16], sizes = [9, 8], strides = [1, 1]} : vector<9x32xf32> to vector<9x8xf32>
    %cst_32 = arith.constant dense<0.000000e+00> : vector<9x9xf32>
    %57 = tpu.matmul %55, %56, %cst_32 {dimension_numbers = #tpu.dot_dimension_numbers<[1], [1], [0], [0], [0, 0, 1, 0], [], []>} : vector<9x8xf32>, vector<9x8xf32>, vector<9x9xf32> -> vector<9x9xf32>
    %58 = arith.addf %57, %3 : vector<9x9xf32>
    %cst_33 = arith.constant dense<0xFF800000> : vector<9xf32>
    %59 = vector.multi_reduction <maximumf>, %58, %cst_33 [1] : vector<9x9xf32> to vector<9xf32>
    %60 = vector.shape_cast %59 : vector<9xf32> to vector<9x1xf32>
    %61 = vector.broadcast %60 : vector<9x1xf32> to vector<9x9xf32>
    %62 = arith.subf %58, %61 : vector<9x9xf32>
    %63 = math.exp %62 : vector<9x9xf32>
    %cst_34 = arith.constant dense<0.000000e+00> : vector<9xf32>
    %64 = vector.multi_reduction <add>, %63, %cst_34 [1] : vector<9x9xf32> to vector<9xf32>
    %65 = vector.shape_cast %64 : vector<9xf32> to vector<9x1xf32>
    %66 = tpu.reciprocal %65 {approx = true} : vector<9x1xf32> -> vector<9x1xf32>
    %67 = vector.broadcast %66 : vector<9x1xf32> to vector<9x9xf32>
    %68 = arith.mulf %63, %67 : vector<9x9xf32>
    %69 = vector.extract_strided_slice %22 {offsets = [0, 16], sizes = [9, 8], strides = [1, 1]} : vector<9x32xf32> to vector<9x8xf32>
    %cst_35 = arith.constant dense<0.000000e+00> : vector<9x8xf32>
    %70 = tpu.matmul %68, %69, %cst_35 {dimension_numbers = #tpu.dot_dimension_numbers<[1], [0], [0], [1], [0, 0, 1, 1], [], []>} : vector<9x9xf32>, vector<9x8xf32>, vector<9x8xf32> -> vector<9x8xf32>
    %71 = vector.extract_strided_slice %16 {offsets = [0, 24], sizes = [9, 8], strides = [1, 1]} : vector<9x32xf32> to vector<9x8xf32>
    %72 = vector.extract_strided_slice %19 {offsets = [0, 24], sizes = [9, 8], strides = [1, 1]} : vector<9x32xf32> to vector<9x8xf32>
    %cst_36 = arith.constant dense<0.000000e+00> : vector<9x9xf32>
    %73 = tpu.matmul %71, %72, %cst_36 {dimension_numbers = #tpu.dot_dimension_numbers<[1], [1], [0], [0], [0, 0, 1, 0], [], []>} : vector<9x8xf32>, vector<9x8xf32>, vector<9x9xf32> -> vector<9x9xf32>
    %74 = arith.addf %73, %3 : vector<9x9xf32>
    %cst_37 = arith.constant dense<0xFF800000> : vector<9xf32>
    %75 = vector.multi_reduction <maximumf>, %74, %cst_37 [1] : vector<9x9xf32> to vector<9xf32>
    %76 = vector.shape_cast %75 : vector<9xf32> to vector<9x1xf32>
    %77 = vector.broadcast %76 : vector<9x1xf32> to vector<9x9xf32>
    %78 = arith.subf %74, %77 : vector<9x9xf32>
    %79 = math.exp %78 : vector<9x9xf32>
    %cst_38 = arith.constant dense<0.000000e+00> : vector<9xf32>
    %80 = vector.multi_reduction <add>, %79, %cst_38 [1] : vector<9x9xf32> to vector<9xf32>
    %81 = vector.shape_cast %80 : vector<9xf32> to vector<9x1xf32>
    %82 = tpu.reciprocal %81 {approx = true} : vector<9x1xf32> -> vector<9x1xf32>
    %83 = vector.broadcast %82 : vector<9x1xf32> to vector<9x9xf32>
    %84 = arith.mulf %79, %83 : vector<9x9xf32>
    %85 = vector.extract_strided_slice %22 {offsets = [0, 24], sizes = [9, 8], strides = [1, 1]} : vector<9x32xf32> to vector<9x8xf32>
    %cst_39 = arith.constant dense<0.000000e+00> : vector<9x8xf32>
    %86 = tpu.matmul %84, %85, %cst_39 {dimension_numbers = #tpu.dot_dimension_numbers<[1], [0], [0], [1], [0, 0, 1, 1], [], []>} : vector<9x9xf32>, vector<9x8xf32>, vector<9x8xf32> -> vector<9x8xf32>
    %87 = tpu.concatenate %38, %54, %70, %86 in 1 : vector<9x8xf32>, vector<9x8xf32>, vector<9x8xf32>, vector<9x8xf32> -> vector<9x32xf32>
    %cst_40 = arith.constant dense<0.000000e+00> : vector<9x32xf32>
    %88 = tpu.matmul %87, %10, %cst_40 {dimension_numbers = #tpu.dot_dimension_numbers<[1], [0], [0], [1], [0, 0, 1, 1], [], []>} : vector<9x32xf32>, vector<32x32xf32>, vector<9x32xf32> -> vector<9x32xf32>
    %89 = vector.broadcast %11 : vector<1x32xf32> to vector<9x32xf32>
    %90 = arith.addf %88, %89 : vector<9x32xf32>
    %91 = arith.addf %1, %90 : vector<9x32xf32>
    %c0_41 = arith.constant 0 : index
    %c0_42 = arith.constant 0 : index
    %92 = vector.load %arg11[%c0_41, %c0_42] : memref<1x32xf32, #tpu.memory_space<vmem>>, vector<1x32xf32>
    %c0_43 = arith.constant 0 : index
    %c0_44 = arith.constant 0 : index
    %93 = vector.load %arg12[%c0_43, %c0_44] : memref<1x32xf32, #tpu.memory_space<vmem>>, vector<1x32xf32>
    %cst_45 = arith.constant dense<0.000000e+00> : vector<9xf32>
    %94 = vector.multi_reduction <add>, %91, %cst_45 [1] : vector<9x32xf32> to vector<9xf32>
    %95 = vector.shape_cast %94 : vector<9xf32> to vector<9x1xf32>
    %cst_46 = arith.constant 3.200000e+01 : f32
    %96 = vector.broadcast %cst_46 : f32 to vector<9x1xf32>
    %97 = arith.divf %95, %96 : vector<9x1xf32>
    %98 = vector.broadcast %97 : vector<9x1xf32> to vector<9x32xf32>
    %99 = arith.subf %91, %98 : vector<9x32xf32>
    %100 = arith.mulf %99, %99 : vector<9x32xf32>
    %cst_47 = arith.constant dense<0.000000e+00> : vector<9xf32>
    %101 = vector.multi_reduction <add>, %100, %cst_47 [1] : vector<9x32xf32> to vector<9xf32>
    %102 = vector.shape_cast %101 : vector<9xf32> to vector<9x1xf32>
    %cst_48 = arith.constant 3.200000e+01 : f32
    %103 = vector.broadcast %cst_48 : f32 to vector<9x1xf32>
    %104 = arith.divf %102, %103 : vector<9x1xf32>
    %cst_49 = arith.constant 9.99999974E-6 : f32
    %105 = vector.broadcast %cst_49 : f32 to vector<9x1xf32>
    %106 = arith.addf %104, %105 : vector<9x1xf32>
    %107 = math.rsqrt %106 : vector<9x1xf32>
    %108 = vector.broadcast %107 : vector<9x1xf32> to vector<9x32xf32>
    %109 = arith.mulf %99, %108 : vector<9x32xf32>
    %110 = vector.broadcast %92 : vector<1x32xf32> to vector<9x32xf32>
    %111 = arith.mulf %109, %110 : vector<9x32xf32>
    %112 = vector.broadcast %93 : vector<1x32xf32> to vector<9x32xf32>
    %113 = arith.addf %111, %112 : vector<9x32xf32>
    %c0_50 = arith.constant 0 : index
    %c0_51 = arith.constant 0 : index
    %c0_52 = arith.constant 0 : index
    %114 = vector.load %arg13[%c0_50, %c0_51, %c0_52] : memref<1x9x32xf32, #tpu.memory_space<vmem>>, vector<1x9x32xf32>
    %115 = vector.shape_cast %114 : vector<1x9x32xf32> to vector<9x32xf32>
    %116 = vector.shape_cast %113 : vector<9x32xf32> to vector<1x9x32xf32>
    tpu.vector_store %arg13[%c0_50, %c0_51, %c0_52], %116 {strides = array<i32>} : memref<1x9x32xf32, #tpu.memory_space<vmem>>, vector<1x9x32xf32>,
    return
  }
  func.func @transform_0(%arg0: i32) -> (i32, i32, i32) {
    %c0_i32 = arith.constant 0 : i32
    %c0_i32_0 = arith.constant 0 : i32
    %c0_i32_1 = arith.constant 0 : i32
    return %arg0, %c0_i32, %c0_i32_0 : i32, i32, i32
  }
  func.func @transform_1(%arg0: i32) -> (i32, i32, i32) {
    %c0_i32 = arith.constant 0 : i32
    %c0_i32_0 = arith.constant 0 : i32
    %c0_i32_1 = arith.constant 0 : i32
    %c0_i32_2 = arith.constant 0 : i32
    return %c0_i32, %c0_i32_0, %c0_i32_1 : i32, i32, i32
  }
  func.func @transform_2(%arg0: i32) -> (i32, i32) {
    %c0_i32 = arith.constant 0 : i32
    %c0_i32_0 = arith.constant 0 : i32
    %c0_i32_1 = arith.constant 0 : i32
    return %c0_i32, %c0_i32_0 : i32, i32
  }
  func.func @transform_3(%arg0: i32) -> (i32, i32) {
    %c0_i32 = arith.constant 0 : i32
    %c0_i32_0 = arith.constant 0 : i32
    %c0_i32_1 = arith.constant 0 : i32
    return %c0_i32, %c0_i32_0 : i32, i32
  }
  func.func @transform_4(%arg0: i32) -> (i32, i32) {
    %c0_i32 = arith.constant 0 : i32
    %c0_i32_0 = arith.constant 0 : i32
    %c0_i32_1 = arith.constant 0 : i32
    return %c0_i32, %c0_i32_0 : i32, i32
  }
  func.func @transform_5(%arg0: i32) -> (i32, i32) {
    %c0_i32 = arith.constant 0 : i32
    %c0_i32_0 = arith.constant 0 : i32
    %c0_i32_1 = arith.constant 0 : i32
    return %c0_i32, %c0_i32_0 : i32, i32
  }
  func.func @transform_6(%arg0: i32) -> (i32, i32) {
    %c0_i32 = arith.constant 0 : i32
    %c0_i32_0 = arith.constant 0 : i32
    %c0_i32_1 = arith.constant 0 : i32
    return %c0_i32, %c0_i32_0 : i32, i32
  }
  func.func @transform_7(%arg0: i32) -> (i32, i32) {
    %c0_i32 = arith.constant 0 : i32
    %c0_i32_0 = arith.constant 0 : i32
    %c0_i32_1 = arith.constant 0 : i32
    return %c0_i32, %c0_i32_0 : i32, i32
  }
  func.func @transform_8(%arg0: i32) -> (i32, i32) {
    %c0_i32 = arith.constant 0 : i32
    %c0_i32_0 = arith.constant 0 : i32
    %c0_i32_1 = arith.constant 0 : i32
    return %c0_i32, %c0_i32_0 : i32, i32
  }
  func.func @transform_9(%arg0: i32) -> (i32, i32) {
    %c0_i32 = arith.constant 0 : i32
    %c0_i32_0 = arith.constant 0 : i32
    %c0_i32_1 = arith.constant 0 : i32
    return %c0_i32, %c0_i32_0 : i32, i32
  }
  func.func @transform_10(%arg0: i32) -> (i32, i32) {
    %c0_i32 = arith.constant 0 : i32
    %c0_i32_0 = arith.constant 0 : i32
    %c0_i32_1 = arith.constant 0 : i32
    return %c0_i32, %c0_i32_0 : i32, i32
  }
  func.func @transform_11(%arg0: i32) -> (i32, i32) {
    %c0_i32 = arith.constant 0 : i32
    %c0_i32_0 = arith.constant 0 : i32
    %c0_i32_1 = arith.constant 0 : i32
    return %c0_i32, %c0_i32_0 : i32, i32
  }
  func.func @transform_12(%arg0: i32) -> (i32, i32, i32) {
    %c0_i32 = arith.constant 0 : i32
    %c0_i32_0 = arith.constant 0 : i32
    %c0_i32_1 = arith.constant 0 : i32
    return %arg0, %c0_i32, %c0_i32_0 : i32, i32, i32
  }
}

module attributes {stable_mosaic.version = 11 : i64} {
  func.func @_ca_ffn_kernel(%arg0: i32, %arg1: memref<1x6x32xf32, #tpu.memory_space<vmem>>, %arg2: memref<1x4x32xf32, #tpu.memory_space<vmem>>, %arg3: memref<1x1x4xf32, #tpu.memory_space<vmem>>, %arg4: memref<32x32xf32, #tpu.memory_space<vmem>>, %arg5: memref<1x32xf32, #tpu.memory_space<vmem>>, %arg6: memref<32x32xf32, #tpu.memory_space<vmem>>, %arg7: memref<1x32xf32, #tpu.memory_space<vmem>>, %arg8: memref<32x32xf32, #tpu.memory_space<vmem>>, %arg9: memref<1x32xf32, #tpu.memory_space<vmem>>, %arg10: memref<32x32xf32, #tpu.memory_space<vmem>>, %arg11: memref<1x32xf32, #tpu.memory_space<vmem>>, %arg12: memref<1x32xf32, #tpu.memory_space<vmem>>, %arg13: memref<1x32xf32, #tpu.memory_space<vmem>>, %arg14: memref<32x64xf32, #tpu.memory_space<vmem>>, %arg15: memref<1x64xf32, #tpu.memory_space<vmem>>, %arg16: memref<64x32xf32, #tpu.memory_space<vmem>>, %arg17: memref<1x32xf32, #tpu.memory_space<vmem>>, %arg18: memref<1x32xf32, #tpu.memory_space<vmem>>, %arg19: memref<1x32xf32, #tpu.memory_space<vmem>>, %arg20: memref<1x6x32xf32, #tpu.memory_space<vmem>>) attributes {dimension_semantics = [#tpu.dimension_semantics<parallel>], iteration_bounds = array<i64: 9>, scalar_prefetch = 0 : i64, scratch_operands = 0 : i64, tpu.core_type = #tpu.core_type<tc>, window_params = [{pipeline_mode = #tpu.pipeline_mode<synchronous>, transform_indices = @transform_0, window_bounds = array<i64: 1, 6, 32>}, {transform_indices = @transform_1, window_bounds = array<i64: 1, 4, 32>}, {transform_indices = @transform_2, window_bounds = array<i64: 1, 1, 4>}, {pipeline_mode = #tpu.pipeline_mode<synchronous>, transform_indices = @transform_3, window_bounds = array<i64: 32, 32>}, {pipeline_mode = #tpu.pipeline_mode<synchronous>, transform_indices = @transform_4, window_bounds = array<i64: 1, 32>}, {pipeline_mode = #tpu.pipeline_mode<synchronous>, transform_indices = @transform_5, window_bounds = array<i64: 32, 32>}, {pipeline_mode = #tpu.pipeline_mode<synchronous>, transform_indices = @transform_6, window_bounds = array<i64: 1, 32>}, {pipeline_mode = #tpu.pipeline_mode<synchronous>, transform_indices = @transform_7, window_bounds = array<i64: 32, 32>}, {pipeline_mode = #tpu.pipeline_mode<synchronous>, transform_indices = @transform_8, window_bounds = array<i64: 1, 32>}, {pipeline_mode = #tpu.pipeline_mode<synchronous>, transform_indices = @transform_9, window_bounds = array<i64: 32, 32>}, {pipeline_mode = #tpu.pipeline_mode<synchronous>, transform_indices = @transform_10, window_bounds = array<i64: 1, 32>}, {pipeline_mode = #tpu.pipeline_mode<synchronous>, transform_indices = @transform_11, window_bounds = array<i64: 1, 32>}, {pipeline_mode = #tpu.pipeline_mode<synchronous>, transform_indices = @transform_12, window_bounds = array<i64: 1, 32>}, {pipeline_mode = #tpu.pipeline_mode<synchronous>, transform_indices = @transform_13, window_bounds = array<i64: 32, 64>}, {pipeline_mode = #tpu.pipeline_mode<synchronous>, transform_indices = @transform_14, window_bounds = array<i64: 1, 64>}, {pipeline_mode = #tpu.pipeline_mode<synchronous>, transform_indices = @transform_15, window_bounds = array<i64: 64, 32>}, {pipeline_mode = #tpu.pipeline_mode<synchronous>, transform_indices = @transform_16, window_bounds = array<i64: 1, 32>}, {pipeline_mode = #tpu.pipeline_mode<synchronous>, transform_indices = @transform_17, window_bounds = array<i64: 1, 32>}, {pipeline_mode = #tpu.pipeline_mode<synchronous>, transform_indices = @transform_18, window_bounds = array<i64: 1, 32>}, {transform_indices = @transform_19, window_bounds = array<i64: 1, 6, 32>}]} {
    %c0 = arith.constant 0 : index
    %c0_0 = arith.constant 0 : index
    %c0_1 = arith.constant 0 : index
    %0 = vector.load %arg1[%c0, %c0_0, %c0_1] : memref<1x6x32xf32, #tpu.memory_space<vmem>>, vector<1x6x32xf32>
    %1 = vector.shape_cast %0 : vector<1x6x32xf32> to vector<6x32xf32>
    %c0_2 = arith.constant 0 : index
    %c0_3 = arith.constant 0 : index
    %c0_4 = arith.constant 0 : index
    %2 = vector.load %arg2[%c0_2, %c0_3, %c0_4] : memref<1x4x32xf32, #tpu.memory_space<vmem>>, vector<1x4x32xf32>
    %3 = vector.shape_cast %2 : vector<1x4x32xf32> to vector<4x32xf32>
    %c0_5 = arith.constant 0 : index
    %c0_6 = arith.constant 0 : index
    %c0_7 = arith.constant 0 : index
    %4 = vector.load %arg3[%c0_5, %c0_6, %c0_7] : memref<1x1x4xf32, #tpu.memory_space<vmem>>, vector<1x1x4xf32>
    %5 = vector.shape_cast %4 : vector<1x1x4xf32> to vector<1x4xf32>
    %c0_8 = arith.constant 0 : index
    %c0_9 = arith.constant 0 : index
    %6 = vector.load %arg4[%c0_8, %c0_9] : memref<32x32xf32, #tpu.memory_space<vmem>>, vector<32x32xf32>
    %c0_10 = arith.constant 0 : index
    %c0_11 = arith.constant 0 : index
    %7 = vector.load %arg5[%c0_10, %c0_11] : memref<1x32xf32, #tpu.memory_space<vmem>>, vector<1x32xf32>
    %c0_12 = arith.constant 0 : index
    %c0_13 = arith.constant 0 : index
    %8 = vector.load %arg6[%c0_12, %c0_13] : memref<32x32xf32, #tpu.memory_space<vmem>>, vector<32x32xf32>
    %c0_14 = arith.constant 0 : index
    %c0_15 = arith.constant 0 : index
    %9 = vector.load %arg7[%c0_14, %c0_15] : memref<1x32xf32, #tpu.memory_space<vmem>>, vector<1x32xf32>
    %c0_16 = arith.constant 0 : index
    %c0_17 = arith.constant 0 : index
    %10 = vector.load %arg8[%c0_16, %c0_17] : memref<32x32xf32, #tpu.memory_space<vmem>>, vector<32x32xf32>
    %c0_18 = arith.constant 0 : index
    %c0_19 = arith.constant 0 : index
    %11 = vector.load %arg9[%c0_18, %c0_19] : memref<1x32xf32, #tpu.memory_space<vmem>>, vector<1x32xf32>
    %c0_20 = arith.constant 0 : index
    %c0_21 = arith.constant 0 : index
    %12 = vector.load %arg10[%c0_20, %c0_21] : memref<32x32xf32, #tpu.memory_space<vmem>>, vector<32x32xf32>
    %c0_22 = arith.constant 0 : index
    %c0_23 = arith.constant 0 : index
    %13 = vector.load %arg11[%c0_22, %c0_23] : memref<1x32xf32, #tpu.memory_space<vmem>>, vector<1x32xf32>
    %cst = arith.constant dense<0.000000e+00> : vector<6x32xf32>
    %14 = tpu.matmul %1, %6, %cst {dimension_numbers = #tpu.dot_dimension_numbers<[1], [0], [0], [1], [0, 0, 1, 1], [], []>} : vector<6x32xf32>, vector<32x32xf32>, vector<6x32xf32> -> vector<6x32xf32>
    %15 = vector.broadcast %7 : vector<1x32xf32> to vector<6x32xf32>
    %16 = arith.addf %14, %15 : vector<6x32xf32>
    %cst_24 = arith.constant 0.353553385 : f32
    %17 = vector.broadcast %cst_24 : f32 to vector<6x32xf32>
    %18 = arith.mulf %16, %17 : vector<6x32xf32>
    %cst_25 = arith.constant dense<0.000000e+00> : vector<4x32xf32>
    %19 = tpu.matmul %3, %8, %cst_25 {dimension_numbers = #tpu.dot_dimension_numbers<[1], [0], [0], [1], [0, 0, 1, 1], [], []>} : vector<4x32xf32>, vector<32x32xf32>, vector<4x32xf32> -> vector<4x32xf32>
    %20 = vector.broadcast %9 : vector<1x32xf32> to vector<4x32xf32>
    %21 = arith.addf %19, %20 : vector<4x32xf32>
    %cst_26 = arith.constant dense<0.000000e+00> : vector<4x32xf32>
    %22 = tpu.matmul %3, %10, %cst_26 {dimension_numbers = #tpu.dot_dimension_numbers<[1], [0], [0], [1], [0, 0, 1, 1], [], []>} : vector<4x32xf32>, vector<32x32xf32>, vector<4x32xf32> -> vector<4x32xf32>
    %23 = vector.broadcast %11 : vector<1x32xf32> to vector<4x32xf32>
    %24 = arith.addf %22, %23 : vector<4x32xf32>
    %25 = vector.extract_strided_slice %18 {offsets = [0, 0], sizes = [6, 8], strides = [1, 1]} : vector<6x32xf32> to vector<6x8xf32>
    %26 = vector.extract_strided_slice %21 {offsets = [0, 0], sizes = [4, 8], strides = [1, 1]} : vector<4x32xf32> to vector<4x8xf32>
    %cst_27 = arith.constant dense<0.000000e+00> : vector<6x4xf32>
    %27 = tpu.matmul %25, %26, %cst_27 {dimension_numbers = #tpu.dot_dimension_numbers<[1], [1], [0], [0], [0, 0, 1, 0], [], []>} : vector<6x8xf32>, vector<4x8xf32>, vector<6x4xf32> -> vector<6x4xf32>
    %28 = vector.broadcast %5 : vector<1x4xf32> to vector<6x4xf32>
    %29 = arith.addf %27, %28 : vector<6x4xf32>
    %cst_28 = arith.constant dense<0xFF800000> : vector<6xf32>
    %30 = vector.multi_reduction <maximumf>, %29, %cst_28 [1] : vector<6x4xf32> to vector<6xf32>
    %31 = vector.shape_cast %30 : vector<6xf32> to vector<6x1xf32>
    %32 = vector.broadcast %31 : vector<6x1xf32> to vector<6x4xf32>
    %33 = arith.subf %29, %32 : vector<6x4xf32>
    %34 = math.exp %33 : vector<6x4xf32>
    %cst_29 = arith.constant dense<0.000000e+00> : vector<6xf32>
    %35 = vector.multi_reduction <add>, %34, %cst_29 [1] : vector<6x4xf32> to vector<6xf32>
    %36 = vector.shape_cast %35 : vector<6xf32> to vector<6x1xf32>
    %37 = tpu.reciprocal %36 {approx = true} : vector<6x1xf32> -> vector<6x1xf32>
    %38 = vector.broadcast %37 : vector<6x1xf32> to vector<6x4xf32>
    %39 = arith.mulf %34, %38 : vector<6x4xf32>
    %40 = vector.extract_strided_slice %24 {offsets = [0, 0], sizes = [4, 8], strides = [1, 1]} : vector<4x32xf32> to vector<4x8xf32>
    %cst_30 = arith.constant dense<0.000000e+00> : vector<6x8xf32>
    %41 = tpu.matmul %39, %40, %cst_30 {dimension_numbers = #tpu.dot_dimension_numbers<[1], [0], [0], [1], [0, 0, 1, 1], [], []>} : vector<6x4xf32>, vector<4x8xf32>, vector<6x8xf32> -> vector<6x8xf32>
    %42 = vector.extract_strided_slice %18 {offsets = [0, 8], sizes = [6, 8], strides = [1, 1]} : vector<6x32xf32> to vector<6x8xf32>
    %43 = vector.extract_strided_slice %21 {offsets = [0, 8], sizes = [4, 8], strides = [1, 1]} : vector<4x32xf32> to vector<4x8xf32>
    %cst_31 = arith.constant dense<0.000000e+00> : vector<6x4xf32>
    %44 = tpu.matmul %42, %43, %cst_31 {dimension_numbers = #tpu.dot_dimension_numbers<[1], [1], [0], [0], [0, 0, 1, 0], [], []>} : vector<6x8xf32>, vector<4x8xf32>, vector<6x4xf32> -> vector<6x4xf32>
    %45 = vector.broadcast %5 : vector<1x4xf32> to vector<6x4xf32>
    %46 = arith.addf %44, %45 : vector<6x4xf32>
    %cst_32 = arith.constant dense<0xFF800000> : vector<6xf32>
    %47 = vector.multi_reduction <maximumf>, %46, %cst_32 [1] : vector<6x4xf32> to vector<6xf32>
    %48 = vector.shape_cast %47 : vector<6xf32> to vector<6x1xf32>
    %49 = vector.broadcast %48 : vector<6x1xf32> to vector<6x4xf32>
    %50 = arith.subf %46, %49 : vector<6x4xf32>
    %51 = math.exp %50 : vector<6x4xf32>
    %cst_33 = arith.constant dense<0.000000e+00> : vector<6xf32>
    %52 = vector.multi_reduction <add>, %51, %cst_33 [1] : vector<6x4xf32> to vector<6xf32>
    %53 = vector.shape_cast %52 : vector<6xf32> to vector<6x1xf32>
    %54 = tpu.reciprocal %53 {approx = true} : vector<6x1xf32> -> vector<6x1xf32>
    %55 = vector.broadcast %54 : vector<6x1xf32> to vector<6x4xf32>
    %56 = arith.mulf %51, %55 : vector<6x4xf32>
    %57 = vector.extract_strided_slice %24 {offsets = [0, 8], sizes = [4, 8], strides = [1, 1]} : vector<4x32xf32> to vector<4x8xf32>
    %cst_34 = arith.constant dense<0.000000e+00> : vector<6x8xf32>
    %58 = tpu.matmul %56, %57, %cst_34 {dimension_numbers = #tpu.dot_dimension_numbers<[1], [0], [0], [1], [0, 0, 1, 1], [], []>} : vector<6x4xf32>, vector<4x8xf32>, vector<6x8xf32> -> vector<6x8xf32>
    %59 = vector.extract_strided_slice %18 {offsets = [0, 16], sizes = [6, 8], strides = [1, 1]} : vector<6x32xf32> to vector<6x8xf32>
    %60 = vector.extract_strided_slice %21 {offsets = [0, 16], sizes = [4, 8], strides = [1, 1]} : vector<4x32xf32> to vector<4x8xf32>
    %cst_35 = arith.constant dense<0.000000e+00> : vector<6x4xf32>
    %61 = tpu.matmul %59, %60, %cst_35 {dimension_numbers = #tpu.dot_dimension_numbers<[1], [1], [0], [0], [0, 0, 1, 0], [], []>} : vector<6x8xf32>, vector<4x8xf32>, vector<6x4xf32> -> vector<6x4xf32>
    %62 = vector.broadcast %5 : vector<1x4xf32> to vector<6x4xf32>
    %63 = arith.addf %61, %62 : vector<6x4xf32>
    %cst_36 = arith.constant dense<0xFF800000> : vector<6xf32>
    %64 = vector.multi_reduction <maximumf>, %63, %cst_36 [1] : vector<6x4xf32> to vector<6xf32>
    %65 = vector.shape_cast %64 : vector<6xf32> to vector<6x1xf32>
    %66 = vector.broadcast %65 : vector<6x1xf32> to vector<6x4xf32>
    %67 = arith.subf %63, %66 : vector<6x4xf32>
    %68 = math.exp %67 : vector<6x4xf32>
    %cst_37 = arith.constant dense<0.000000e+00> : vector<6xf32>
    %69 = vector.multi_reduction <add>, %68, %cst_37 [1] : vector<6x4xf32> to vector<6xf32>
    %70 = vector.shape_cast %69 : vector<6xf32> to vector<6x1xf32>
    %71 = tpu.reciprocal %70 {approx = true} : vector<6x1xf32> -> vector<6x1xf32>
    %72 = vector.broadcast %71 : vector<6x1xf32> to vector<6x4xf32>
    %73 = arith.mulf %68, %72 : vector<6x4xf32>
    %74 = vector.extract_strided_slice %24 {offsets = [0, 16], sizes = [4, 8], strides = [1, 1]} : vector<4x32xf32> to vector<4x8xf32>
    %cst_38 = arith.constant dense<0.000000e+00> : vector<6x8xf32>
    %75 = tpu.matmul %73, %74, %cst_38 {dimension_numbers = #tpu.dot_dimension_numbers<[1], [0], [0], [1], [0, 0, 1, 1], [], []>} : vector<6x4xf32>, vector<4x8xf32>, vector<6x8xf32> -> vector<6x8xf32>
    %76 = vector.extract_strided_slice %18 {offsets = [0, 24], sizes = [6, 8], strides = [1, 1]} : vector<6x32xf32> to vector<6x8xf32>
    %77 = vector.extract_strided_slice %21 {offsets = [0, 24], sizes = [4, 8], strides = [1, 1]} : vector<4x32xf32> to vector<4x8xf32>
    %cst_39 = arith.constant dense<0.000000e+00> : vector<6x4xf32>
    %78 = tpu.matmul %76, %77, %cst_39 {dimension_numbers = #tpu.dot_dimension_numbers<[1], [1], [0], [0], [0, 0, 1, 0], [], []>} : vector<6x8xf32>, vector<4x8xf32>, vector<6x4xf32> -> vector<6x4xf32>
    %79 = vector.broadcast %5 : vector<1x4xf32> to vector<6x4xf32>
    %80 = arith.addf %78, %79 : vector<6x4xf32>
    %cst_40 = arith.constant dense<0xFF800000> : vector<6xf32>
    %81 = vector.multi_reduction <maximumf>, %80, %cst_40 [1] : vector<6x4xf32> to vector<6xf32>
    %82 = vector.shape_cast %81 : vector<6xf32> to vector<6x1xf32>
    %83 = vector.broadcast %82 : vector<6x1xf32> to vector<6x4xf32>
    %84 = arith.subf %80, %83 : vector<6x4xf32>
    %85 = math.exp %84 : vector<6x4xf32>
    %cst_41 = arith.constant dense<0.000000e+00> : vector<6xf32>
    %86 = vector.multi_reduction <add>, %85, %cst_41 [1] : vector<6x4xf32> to vector<6xf32>
    %87 = vector.shape_cast %86 : vector<6xf32> to vector<6x1xf32>
    %88 = tpu.reciprocal %87 {approx = true} : vector<6x1xf32> -> vector<6x1xf32>
    %89 = vector.broadcast %88 : vector<6x1xf32> to vector<6x4xf32>
    %90 = arith.mulf %85, %89 : vector<6x4xf32>
    %91 = vector.extract_strided_slice %24 {offsets = [0, 24], sizes = [4, 8], strides = [1, 1]} : vector<4x32xf32> to vector<4x8xf32>
    %cst_42 = arith.constant dense<0.000000e+00> : vector<6x8xf32>
    %92 = tpu.matmul %90, %91, %cst_42 {dimension_numbers = #tpu.dot_dimension_numbers<[1], [0], [0], [1], [0, 0, 1, 1], [], []>} : vector<6x4xf32>, vector<4x8xf32>, vector<6x8xf32> -> vector<6x8xf32>
    %93 = tpu.concatenate %41, %58, %75, %92 in 1 : vector<6x8xf32>, vector<6x8xf32>, vector<6x8xf32>, vector<6x8xf32> -> vector<6x32xf32>
    %cst_43 = arith.constant dense<0.000000e+00> : vector<6x32xf32>
    %94 = tpu.matmul %93, %12, %cst_43 {dimension_numbers = #tpu.dot_dimension_numbers<[1], [0], [0], [1], [0, 0, 1, 1], [], []>} : vector<6x32xf32>, vector<32x32xf32>, vector<6x32xf32> -> vector<6x32xf32>
    %95 = vector.broadcast %13 : vector<1x32xf32> to vector<6x32xf32>
    %96 = arith.addf %94, %95 : vector<6x32xf32>
    %97 = arith.addf %1, %96 : vector<6x32xf32>
    %c0_44 = arith.constant 0 : index
    %c0_45 = arith.constant 0 : index
    %98 = vector.load %arg12[%c0_44, %c0_45] : memref<1x32xf32, #tpu.memory_space<vmem>>, vector<1x32xf32>
    %c0_46 = arith.constant 0 : index
    %c0_47 = arith.constant 0 : index
    %99 = vector.load %arg13[%c0_46, %c0_47] : memref<1x32xf32, #tpu.memory_space<vmem>>, vector<1x32xf32>
    %cst_48 = arith.constant dense<0.000000e+00> : vector<6xf32>
    %100 = vector.multi_reduction <add>, %97, %cst_48 [1] : vector<6x32xf32> to vector<6xf32>
    %101 = vector.shape_cast %100 : vector<6xf32> to vector<6x1xf32>
    %cst_49 = arith.constant 3.200000e+01 : f32
    %102 = vector.broadcast %cst_49 : f32 to vector<6x1xf32>
    %103 = arith.divf %101, %102 : vector<6x1xf32>
    %104 = vector.broadcast %103 : vector<6x1xf32> to vector<6x32xf32>
    %105 = arith.subf %97, %104 : vector<6x32xf32>
    %106 = arith.mulf %105, %105 : vector<6x32xf32>
    %cst_50 = arith.constant dense<0.000000e+00> : vector<6xf32>
    %107 = vector.multi_reduction <add>, %106, %cst_50 [1] : vector<6x32xf32> to vector<6xf32>
    %108 = vector.shape_cast %107 : vector<6xf32> to vector<6x1xf32>
    %cst_51 = arith.constant 3.200000e+01 : f32
    %109 = vector.broadcast %cst_51 : f32 to vector<6x1xf32>
    %110 = arith.divf %108, %109 : vector<6x1xf32>
    %cst_52 = arith.constant 9.99999974E-6 : f32
    %111 = vector.broadcast %cst_52 : f32 to vector<6x1xf32>
    %112 = arith.addf %110, %111 : vector<6x1xf32>
    %113 = math.rsqrt %112 : vector<6x1xf32>
    %114 = vector.broadcast %113 : vector<6x1xf32> to vector<6x32xf32>
    %115 = arith.mulf %105, %114 : vector<6x32xf32>
    %116 = vector.broadcast %98 : vector<1x32xf32> to vector<6x32xf32>
    %117 = arith.mulf %115, %116 : vector<6x32xf32>
    %118 = vector.broadcast %99 : vector<1x32xf32> to vector<6x32xf32>
    %119 = arith.addf %117, %118 : vector<6x32xf32>
    %c0_53 = arith.constant 0 : index
    %c0_54 = arith.constant 0 : index
    %120 = vector.load %arg14[%c0_53, %c0_54] : memref<32x64xf32, #tpu.memory_space<vmem>>, vector<32x64xf32>
    %c0_55 = arith.constant 0 : index
    %c0_56 = arith.constant 0 : index
    %121 = vector.load %arg15[%c0_55, %c0_56] : memref<1x64xf32, #tpu.memory_space<vmem>>, vector<1x64xf32>
    %c0_57 = arith.constant 0 : index
    %c0_58 = arith.constant 0 : index
    %122 = vector.load %arg16[%c0_57, %c0_58] : memref<64x32xf32, #tpu.memory_space<vmem>>, vector<64x32xf32>
    %c0_59 = arith.constant 0 : index
    %c0_60 = arith.constant 0 : index
    %123 = vector.load %arg17[%c0_59, %c0_60] : memref<1x32xf32, #tpu.memory_space<vmem>>, vector<1x32xf32>
    %cst_61 = arith.constant dense<0.000000e+00> : vector<6x64xf32>
    %124 = tpu.matmul %119, %120, %cst_61 {dimension_numbers = #tpu.dot_dimension_numbers<[1], [0], [0], [1], [0, 0, 1, 1], [], []>} : vector<6x32xf32>, vector<32x64xf32>, vector<6x64xf32> -> vector<6x64xf32>
    %125 = vector.broadcast %121 : vector<1x64xf32> to vector<6x64xf32>
    %126 = arith.addf %124, %125 : vector<6x64xf32>
    %cst_62 = arith.constant 0.000000e+00 : f32
    %127 = vector.broadcast %cst_62 : f32 to vector<6x64xf32>
    %128 = arith.maximumf %126, %127 : vector<6x64xf32>
    %cst_63 = arith.constant dense<0.000000e+00> : vector<6x32xf32>
    %129 = tpu.matmul %128, %122, %cst_63 {dimension_numbers = #tpu.dot_dimension_numbers<[1], [0], [0], [1], [0, 0, 1, 1], [], []>} : vector<6x64xf32>, vector<64x32xf32>, vector<6x32xf32> -> vector<6x32xf32>
    %130 = vector.broadcast %123 : vector<1x32xf32> to vector<6x32xf32>
    %131 = arith.addf %129, %130 : vector<6x32xf32>
    %132 = arith.addf %119, %131 : vector<6x32xf32>
    %c0_64 = arith.constant 0 : index
    %c0_65 = arith.constant 0 : index
    %133 = vector.load %arg18[%c0_64, %c0_65] : memref<1x32xf32, #tpu.memory_space<vmem>>, vector<1x32xf32>
    %c0_66 = arith.constant 0 : index
    %c0_67 = arith.constant 0 : index
    %134 = vector.load %arg19[%c0_66, %c0_67] : memref<1x32xf32, #tpu.memory_space<vmem>>, vector<1x32xf32>
    %cst_68 = arith.constant dense<0.000000e+00> : vector<6xf32>
    %135 = vector.multi_reduction <add>, %132, %cst_68 [1] : vector<6x32xf32> to vector<6xf32>
    %136 = vector.shape_cast %135 : vector<6xf32> to vector<6x1xf32>
    %cst_69 = arith.constant 3.200000e+01 : f32
    %137 = vector.broadcast %cst_69 : f32 to vector<6x1xf32>
    %138 = arith.divf %136, %137 : vector<6x1xf32>
    %139 = vector.broadcast %138 : vector<6x1xf32> to vector<6x32xf32>
    %140 = arith.subf %132, %139 : vector<6x32xf32>
    %141 = arith.mulf %140, %140 : vector<6x32xf32>
    %cst_70 = arith.constant dense<0.000000e+00> : vector<6xf32>
    %142 = vector.multi_reduction <add>, %141, %cst_70 [1] : vector<6x32xf32> to vector<6xf32>
    %143 = vector.shape_cast %142 : vector<6xf32> to vector<6x1xf32>
    %cst_71 = arith.constant 3.200000e+01 : f32
    %144 = vector.broadcast %cst_71 : f32 to vector<6x1xf32>
    %145 = arith.divf %143, %144 : vector<6x1xf32>
    %cst_72 = arith.constant 9.99999974E-6 : f32
    %146 = vector.broadcast %cst_72 : f32 to vector<6x1xf32>
    %147 = arith.addf %145, %146 : vector<6x1xf32>
    %148 = math.rsqrt %147 : vector<6x1xf32>
    %149 = vector.broadcast %148 : vector<6x1xf32> to vector<6x32xf32>
    %150 = arith.mulf %140, %149 : vector<6x32xf32>
    %151 = vector.broadcast %133 : vector<1x32xf32> to vector<6x32xf32>
    %152 = arith.mulf %150, %151 : vector<6x32xf32>
    %153 = vector.broadcast %134 : vector<1x32xf32> to vector<6x32xf32>
    %154 = arith.addf %152, %153 : vector<6x32xf32>
    %c0_73 = arith.constant 0 : index
    %c0_74 = arith.constant 0 : index
    %c0_75 = arith.constant 0 : index
    %155 = vector.load %arg20[%c0_73, %c0_74, %c0_75] : memref<1x6x32xf32, #tpu.memory_space<vmem>>, vector<1x6x32xf32>
    %156 = vector.shape_cast %155 : vector<1x6x32xf32> to vector<6x32xf32>
    %157 = vector.shape_cast %154 : vector<6x32xf32> to vector<1x6x32xf32>
    tpu.vector_store %arg20[%c0_73, %c0_74, %c0_75], %157 {strides = array<i32>} : memref<1x6x32xf32, #tpu.memory_space<vmem>>, vector<1x6x32xf32>,
    return
  }
  func.func @transform_0(%arg0: i32) -> (i32, i32, i32) {
    %c0_i32 = arith.constant 0 : i32
    %c0_i32_0 = arith.constant 0 : i32
    %c0_i32_1 = arith.constant 0 : i32
    %c0_i32_2 = arith.constant 0 : i32
    return %c0_i32, %c0_i32_0, %c0_i32_1 : i32, i32, i32
  }
  func.func @transform_1(%arg0: i32) -> (i32, i32, i32) {
    %c0_i32 = arith.constant 0 : i32
    %c0_i32_0 = arith.constant 0 : i32
    %c0_i32_1 = arith.constant 0 : i32
    return %arg0, %c0_i32, %c0_i32_0 : i32, i32, i32
  }
  func.func @transform_2(%arg0: i32) -> (i32, i32, i32) {
    %c0_i32 = arith.constant 0 : i32
    %c0_i32_0 = arith.constant 0 : i32
    %c0_i32_1 = arith.constant 0 : i32
    return %arg0, %c0_i32, %c0_i32_0 : i32, i32, i32
  }
  func.func @transform_3(%arg0: i32) -> (i32, i32) {
    %c0_i32 = arith.constant 0 : i32
    %c0_i32_0 = arith.constant 0 : i32
    %c0_i32_1 = arith.constant 0 : i32
    return %c0_i32, %c0_i32_0 : i32, i32
  }
  func.func @transform_4(%arg0: i32) -> (i32, i32) {
    %c0_i32 = arith.constant 0 : i32
    %c0_i32_0 = arith.constant 0 : i32
    %c0_i32_1 = arith.constant 0 : i32
    return %c0_i32, %c0_i32_0 : i32, i32
  }
  func.func @transform_5(%arg0: i32) -> (i32, i32) {
    %c0_i32 = arith.constant 0 : i32
    %c0_i32_0 = arith.constant 0 : i32
    %c0_i32_1 = arith.constant 0 : i32
    return %c0_i32, %c0_i32_0 : i32, i32
  }
  func.func @transform_6(%arg0: i32) -> (i32, i32) {
    %c0_i32 = arith.constant 0 : i32
    %c0_i32_0 = arith.constant 0 : i32
    %c0_i32_1 = arith.constant 0 : i32
    return %c0_i32, %c0_i32_0 : i32, i32
  }
  func.func @transform_7(%arg0: i32) -> (i32, i32) {
    %c0_i32 = arith.constant 0 : i32
    %c0_i32_0 = arith.constant 0 : i32
    %c0_i32_1 = arith.constant 0 : i32
    return %c0_i32, %c0_i32_0 : i32, i32
  }
  func.func @transform_8(%arg0: i32) -> (i32, i32) {
    %c0_i32 = arith.constant 0 : i32
    %c0_i32_0 = arith.constant 0 : i32
    %c0_i32_1 = arith.constant 0 : i32
    return %c0_i32, %c0_i32_0 : i32, i32
  }
  func.func @transform_9(%arg0: i32) -> (i32, i32) {
    %c0_i32 = arith.constant 0 : i32
    %c0_i32_0 = arith.constant 0 : i32
    %c0_i32_1 = arith.constant 0 : i32
    return %c0_i32, %c0_i32_0 : i32, i32
  }
  func.func @transform_10(%arg0: i32) -> (i32, i32) {
    %c0_i32 = arith.constant 0 : i32
    %c0_i32_0 = arith.constant 0 : i32
    %c0_i32_1 = arith.constant 0 : i32
    return %c0_i32, %c0_i32_0 : i32, i32
  }
  func.func @transform_11(%arg0: i32) -> (i32, i32) {
    %c0_i32 = arith.constant 0 : i32
    %c0_i32_0 = arith.constant 0 : i32
    %c0_i32_1 = arith.constant 0 : i32
    return %c0_i32, %c0_i32_0 : i32, i32
  }
  func.func @transform_12(%arg0: i32) -> (i32, i32) {
    %c0_i32 = arith.constant 0 : i32
    %c0_i32_0 = arith.constant 0 : i32
    %c0_i32_1 = arith.constant 0 : i32
    return %c0_i32, %c0_i32_0 : i32, i32
  }
  func.func @transform_13(%arg0: i32) -> (i32, i32) {
    %c0_i32 = arith.constant 0 : i32
    %c0_i32_0 = arith.constant 0 : i32
    %c0_i32_1 = arith.constant 0 : i32
    return %c0_i32, %c0_i32_0 : i32, i32
  }
  func.func @transform_14(%arg0: i32) -> (i32, i32) {
    %c0_i32 = arith.constant 0 : i32
    %c0_i32_0 = arith.constant 0 : i32
    %c0_i32_1 = arith.constant 0 : i32
    return %c0_i32, %c0_i32_0 : i32, i32
  }
  func.func @transform_15(%arg0: i32) -> (i32, i32) {
    %c0_i32 = arith.constant 0 : i32
    %c0_i32_0 = arith.constant 0 : i32
    %c0_i32_1 = arith.constant 0 : i32
    return %c0_i32, %c0_i32_0 : i32, i32
  }
  func.func @transform_16(%arg0: i32) -> (i32, i32) {
    %c0_i32 = arith.constant 0 : i32
    %c0_i32_0 = arith.constant 0 : i32
    %c0_i32_1 = arith.constant 0 : i32
    return %c0_i32, %c0_i32_0 : i32, i32
  }
  func.func @transform_17(%arg0: i32) -> (i32, i32) {
    %c0_i32 = arith.constant 0 : i32
    %c0_i32_0 = arith.constant 0 : i32
    %c0_i32_1 = arith.constant 0 : i32
    return %c0_i32, %c0_i32_0 : i32, i32
  }
  func.func @transform_18(%arg0: i32) -> (i32, i32) {
    %c0_i32 = arith.constant 0 : i32
    %c0_i32_0 = arith.constant 0 : i32
    %c0_i32_1 = arith.constant 0 : i32
    return %c0_i32, %c0_i32_0 : i32, i32
  }
  func.func @transform_19(%arg0: i32) -> (i32, i32, i32) {
    %c0_i32 = arith.constant 0 : i32
    %c0_i32_0 = arith.constant 0 : i32
    %c0_i32_1 = arith.constant 0 : i32
    return %arg0, %c0_i32, %c0_i32_0 : i32, i32, i32
  }
}

module attributes {stable_mosaic.version = 11 : i64} {
  func.func @_ca_ffn_kernel(%arg0: i32, %arg1: memref<1x6x32xf32, #tpu.memory_space<vmem>>, %arg2: memref<1x4x32xf32, #tpu.memory_space<vmem>>, %arg3: memref<1x1x4xf32, #tpu.memory_space<vmem>>, %arg4: memref<32x32xf32, #tpu.memory_space<vmem>>, %arg5: memref<1x32xf32, #tpu.memory_space<vmem>>, %arg6: memref<32x32xf32, #tpu.memory_space<vmem>>, %arg7: memref<1x32xf32, #tpu.memory_space<vmem>>, %arg8: memref<32x32xf32, #tpu.memory_space<vmem>>, %arg9: memref<1x32xf32, #tpu.memory_space<vmem>>, %arg10: memref<32x32xf32, #tpu.memory_space<vmem>>, %arg11: memref<1x32xf32, #tpu.memory_space<vmem>>, %arg12: memref<1x32xf32, #tpu.memory_space<vmem>>, %arg13: memref<1x32xf32, #tpu.memory_space<vmem>>, %arg14: memref<32x64xf32, #tpu.memory_space<vmem>>, %arg15: memref<1x64xf32, #tpu.memory_space<vmem>>, %arg16: memref<64x32xf32, #tpu.memory_space<vmem>>, %arg17: memref<1x32xf32, #tpu.memory_space<vmem>>, %arg18: memref<1x32xf32, #tpu.memory_space<vmem>>, %arg19: memref<1x32xf32, #tpu.memory_space<vmem>>, %arg20: memref<1x6x32xf32, #tpu.memory_space<vmem>>) attributes {dimension_semantics = [#tpu.dimension_semantics<parallel>], iteration_bounds = array<i64: 9>, scalar_prefetch = 0 : i64, scratch_operands = 0 : i64, tpu.core_type = #tpu.core_type<tc>, window_params = [{transform_indices = @transform_0, window_bounds = array<i64: 1, 6, 32>}, {transform_indices = @transform_1, window_bounds = array<i64: 1, 4, 32>}, {transform_indices = @transform_2, window_bounds = array<i64: 1, 1, 4>}, {pipeline_mode = #tpu.pipeline_mode<synchronous>, transform_indices = @transform_3, window_bounds = array<i64: 32, 32>}, {pipeline_mode = #tpu.pipeline_mode<synchronous>, transform_indices = @transform_4, window_bounds = array<i64: 1, 32>}, {pipeline_mode = #tpu.pipeline_mode<synchronous>, transform_indices = @transform_5, window_bounds = array<i64: 32, 32>}, {pipeline_mode = #tpu.pipeline_mode<synchronous>, transform_indices = @transform_6, window_bounds = array<i64: 1, 32>}, {pipeline_mode = #tpu.pipeline_mode<synchronous>, transform_indices = @transform_7, window_bounds = array<i64: 32, 32>}, {pipeline_mode = #tpu.pipeline_mode<synchronous>, transform_indices = @transform_8, window_bounds = array<i64: 1, 32>}, {pipeline_mode = #tpu.pipeline_mode<synchronous>, transform_indices = @transform_9, window_bounds = array<i64: 32, 32>}, {pipeline_mode = #tpu.pipeline_mode<synchronous>, transform_indices = @transform_10, window_bounds = array<i64: 1, 32>}, {pipeline_mode = #tpu.pipeline_mode<synchronous>, transform_indices = @transform_11, window_bounds = array<i64: 1, 32>}, {pipeline_mode = #tpu.pipeline_mode<synchronous>, transform_indices = @transform_12, window_bounds = array<i64: 1, 32>}, {pipeline_mode = #tpu.pipeline_mode<synchronous>, transform_indices = @transform_13, window_bounds = array<i64: 32, 64>}, {pipeline_mode = #tpu.pipeline_mode<synchronous>, transform_indices = @transform_14, window_bounds = array<i64: 1, 64>}, {pipeline_mode = #tpu.pipeline_mode<synchronous>, transform_indices = @transform_15, window_bounds = array<i64: 64, 32>}, {pipeline_mode = #tpu.pipeline_mode<synchronous>, transform_indices = @transform_16, window_bounds = array<i64: 1, 32>}, {pipeline_mode = #tpu.pipeline_mode<synchronous>, transform_indices = @transform_17, window_bounds = array<i64: 1, 32>}, {pipeline_mode = #tpu.pipeline_mode<synchronous>, transform_indices = @transform_18, window_bounds = array<i64: 1, 32>}, {transform_indices = @transform_19, window_bounds = array<i64: 1, 6, 32>}]} {
    %c0 = arith.constant 0 : index
    %c0_0 = arith.constant 0 : index
    %c0_1 = arith.constant 0 : index
    %0 = vector.load %arg1[%c0, %c0_0, %c0_1] : memref<1x6x32xf32, #tpu.memory_space<vmem>>, vector<1x6x32xf32>
    %1 = vector.shape_cast %0 : vector<1x6x32xf32> to vector<6x32xf32>
    %c0_2 = arith.constant 0 : index
    %c0_3 = arith.constant 0 : index
    %c0_4 = arith.constant 0 : index
    %2 = vector.load %arg2[%c0_2, %c0_3, %c0_4] : memref<1x4x32xf32, #tpu.memory_space<vmem>>, vector<1x4x32xf32>
    %3 = vector.shape_cast %2 : vector<1x4x32xf32> to vector<4x32xf32>
    %c0_5 = arith.constant 0 : index
    %c0_6 = arith.constant 0 : index
    %c0_7 = arith.constant 0 : index
    %4 = vector.load %arg3[%c0_5, %c0_6, %c0_7] : memref<1x1x4xf32, #tpu.memory_space<vmem>>, vector<1x1x4xf32>
    %5 = vector.shape_cast %4 : vector<1x1x4xf32> to vector<1x4xf32>
    %c0_8 = arith.constant 0 : index
    %c0_9 = arith.constant 0 : index
    %6 = vector.load %arg4[%c0_8, %c0_9] : memref<32x32xf32, #tpu.memory_space<vmem>>, vector<32x32xf32>
    %c0_10 = arith.constant 0 : index
    %c0_11 = arith.constant 0 : index
    %7 = vector.load %arg5[%c0_10, %c0_11] : memref<1x32xf32, #tpu.memory_space<vmem>>, vector<1x32xf32>
    %c0_12 = arith.constant 0 : index
    %c0_13 = arith.constant 0 : index
    %8 = vector.load %arg6[%c0_12, %c0_13] : memref<32x32xf32, #tpu.memory_space<vmem>>, vector<32x32xf32>
    %c0_14 = arith.constant 0 : index
    %c0_15 = arith.constant 0 : index
    %9 = vector.load %arg7[%c0_14, %c0_15] : memref<1x32xf32, #tpu.memory_space<vmem>>, vector<1x32xf32>
    %c0_16 = arith.constant 0 : index
    %c0_17 = arith.constant 0 : index
    %10 = vector.load %arg8[%c0_16, %c0_17] : memref<32x32xf32, #tpu.memory_space<vmem>>, vector<32x32xf32>
    %c0_18 = arith.constant 0 : index
    %c0_19 = arith.constant 0 : index
    %11 = vector.load %arg9[%c0_18, %c0_19] : memref<1x32xf32, #tpu.memory_space<vmem>>, vector<1x32xf32>
    %c0_20 = arith.constant 0 : index
    %c0_21 = arith.constant 0 : index
    %12 = vector.load %arg10[%c0_20, %c0_21] : memref<32x32xf32, #tpu.memory_space<vmem>>, vector<32x32xf32>
    %c0_22 = arith.constant 0 : index
    %c0_23 = arith.constant 0 : index
    %13 = vector.load %arg11[%c0_22, %c0_23] : memref<1x32xf32, #tpu.memory_space<vmem>>, vector<1x32xf32>
    %cst = arith.constant dense<0.000000e+00> : vector<6x32xf32>
    %14 = tpu.matmul %1, %6, %cst {dimension_numbers = #tpu.dot_dimension_numbers<[1], [0], [0], [1], [0, 0, 1, 1], [], []>} : vector<6x32xf32>, vector<32x32xf32>, vector<6x32xf32> -> vector<6x32xf32>
    %15 = vector.broadcast %7 : vector<1x32xf32> to vector<6x32xf32>
    %16 = arith.addf %14, %15 : vector<6x32xf32>
    %cst_24 = arith.constant 0.353553385 : f32
    %17 = vector.broadcast %cst_24 : f32 to vector<6x32xf32>
    %18 = arith.mulf %16, %17 : vector<6x32xf32>
    %cst_25 = arith.constant dense<0.000000e+00> : vector<4x32xf32>
    %19 = tpu.matmul %3, %8, %cst_25 {dimension_numbers = #tpu.dot_dimension_numbers<[1], [0], [0], [1], [0, 0, 1, 1], [], []>} : vector<4x32xf32>, vector<32x32xf32>, vector<4x32xf32> -> vector<4x32xf32>
    %20 = vector.broadcast %9 : vector<1x32xf32> to vector<4x32xf32>
    %21 = arith.addf %19, %20 : vector<4x32xf32>
    %cst_26 = arith.constant dense<0.000000e+00> : vector<4x32xf32>
    %22 = tpu.matmul %3, %10, %cst_26 {dimension_numbers = #tpu.dot_dimension_numbers<[1], [0], [0], [1], [0, 0, 1, 1], [], []>} : vector<4x32xf32>, vector<32x32xf32>, vector<4x32xf32> -> vector<4x32xf32>
    %23 = vector.broadcast %11 : vector<1x32xf32> to vector<4x32xf32>
    %24 = arith.addf %22, %23 : vector<4x32xf32>
    %25 = vector.extract_strided_slice %18 {offsets = [0, 0], sizes = [6, 8], strides = [1, 1]} : vector<6x32xf32> to vector<6x8xf32>
    %26 = vector.extract_strided_slice %21 {offsets = [0, 0], sizes = [4, 8], strides = [1, 1]} : vector<4x32xf32> to vector<4x8xf32>
    %cst_27 = arith.constant dense<0.000000e+00> : vector<6x4xf32>
    %27 = tpu.matmul %25, %26, %cst_27 {dimension_numbers = #tpu.dot_dimension_numbers<[1], [1], [0], [0], [0, 0, 1, 0], [], []>} : vector<6x8xf32>, vector<4x8xf32>, vector<6x4xf32> -> vector<6x4xf32>
    %28 = vector.broadcast %5 : vector<1x4xf32> to vector<6x4xf32>
    %29 = arith.addf %27, %28 : vector<6x4xf32>
    %cst_28 = arith.constant dense<0xFF800000> : vector<6xf32>
    %30 = vector.multi_reduction <maximumf>, %29, %cst_28 [1] : vector<6x4xf32> to vector<6xf32>
    %31 = vector.shape_cast %30 : vector<6xf32> to vector<6x1xf32>
    %32 = vector.broadcast %31 : vector<6x1xf32> to vector<6x4xf32>
    %33 = arith.subf %29, %32 : vector<6x4xf32>
    %34 = math.exp %33 : vector<6x4xf32>
    %cst_29 = arith.constant dense<0.000000e+00> : vector<6xf32>
    %35 = vector.multi_reduction <add>, %34, %cst_29 [1] : vector<6x4xf32> to vector<6xf32>
    %36 = vector.shape_cast %35 : vector<6xf32> to vector<6x1xf32>
    %37 = tpu.reciprocal %36 {approx = true} : vector<6x1xf32> -> vector<6x1xf32>
    %38 = vector.broadcast %37 : vector<6x1xf32> to vector<6x4xf32>
    %39 = arith.mulf %34, %38 : vector<6x4xf32>
    %40 = vector.extract_strided_slice %24 {offsets = [0, 0], sizes = [4, 8], strides = [1, 1]} : vector<4x32xf32> to vector<4x8xf32>
    %cst_30 = arith.constant dense<0.000000e+00> : vector<6x8xf32>
    %41 = tpu.matmul %39, %40, %cst_30 {dimension_numbers = #tpu.dot_dimension_numbers<[1], [0], [0], [1], [0, 0, 1, 1], [], []>} : vector<6x4xf32>, vector<4x8xf32>, vector<6x8xf32> -> vector<6x8xf32>
    %42 = vector.extract_strided_slice %18 {offsets = [0, 8], sizes = [6, 8], strides = [1, 1]} : vector<6x32xf32> to vector<6x8xf32>
    %43 = vector.extract_strided_slice %21 {offsets = [0, 8], sizes = [4, 8], strides = [1, 1]} : vector<4x32xf32> to vector<4x8xf32>
    %cst_31 = arith.constant dense<0.000000e+00> : vector<6x4xf32>
    %44 = tpu.matmul %42, %43, %cst_31 {dimension_numbers = #tpu.dot_dimension_numbers<[1], [1], [0], [0], [0, 0, 1, 0], [], []>} : vector<6x8xf32>, vector<4x8xf32>, vector<6x4xf32> -> vector<6x4xf32>
    %45 = vector.broadcast %5 : vector<1x4xf32> to vector<6x4xf32>
    %46 = arith.addf %44, %45 : vector<6x4xf32>
    %cst_32 = arith.constant dense<0xFF800000> : vector<6xf32>
    %47 = vector.multi_reduction <maximumf>, %46, %cst_32 [1] : vector<6x4xf32> to vector<6xf32>
    %48 = vector.shape_cast %47 : vector<6xf32> to vector<6x1xf32>
    %49 = vector.broadcast %48 : vector<6x1xf32> to vector<6x4xf32>
    %50 = arith.subf %46, %49 : vector<6x4xf32>
    %51 = math.exp %50 : vector<6x4xf32>
    %cst_33 = arith.constant dense<0.000000e+00> : vector<6xf32>
    %52 = vector.multi_reduction <add>, %51, %cst_33 [1] : vector<6x4xf32> to vector<6xf32>
    %53 = vector.shape_cast %52 : vector<6xf32> to vector<6x1xf32>
    %54 = tpu.reciprocal %53 {approx = true} : vector<6x1xf32> -> vector<6x1xf32>
    %55 = vector.broadcast %54 : vector<6x1xf32> to vector<6x4xf32>
    %56 = arith.mulf %51, %55 : vector<6x4xf32>
    %57 = vector.extract_strided_slice %24 {offsets = [0, 8], sizes = [4, 8], strides = [1, 1]} : vector<4x32xf32> to vector<4x8xf32>
    %cst_34 = arith.constant dense<0.000000e+00> : vector<6x8xf32>
    %58 = tpu.matmul %56, %57, %cst_34 {dimension_numbers = #tpu.dot_dimension_numbers<[1], [0], [0], [1], [0, 0, 1, 1], [], []>} : vector<6x4xf32>, vector<4x8xf32>, vector<6x8xf32> -> vector<6x8xf32>
    %59 = vector.extract_strided_slice %18 {offsets = [0, 16], sizes = [6, 8], strides = [1, 1]} : vector<6x32xf32> to vector<6x8xf32>
    %60 = vector.extract_strided_slice %21 {offsets = [0, 16], sizes = [4, 8], strides = [1, 1]} : vector<4x32xf32> to vector<4x8xf32>
    %cst_35 = arith.constant dense<0.000000e+00> : vector<6x4xf32>
    %61 = tpu.matmul %59, %60, %cst_35 {dimension_numbers = #tpu.dot_dimension_numbers<[1], [1], [0], [0], [0, 0, 1, 0], [], []>} : vector<6x8xf32>, vector<4x8xf32>, vector<6x4xf32> -> vector<6x4xf32>
    %62 = vector.broadcast %5 : vector<1x4xf32> to vector<6x4xf32>
    %63 = arith.addf %61, %62 : vector<6x4xf32>
    %cst_36 = arith.constant dense<0xFF800000> : vector<6xf32>
    %64 = vector.multi_reduction <maximumf>, %63, %cst_36 [1] : vector<6x4xf32> to vector<6xf32>
    %65 = vector.shape_cast %64 : vector<6xf32> to vector<6x1xf32>
    %66 = vector.broadcast %65 : vector<6x1xf32> to vector<6x4xf32>
    %67 = arith.subf %63, %66 : vector<6x4xf32>
    %68 = math.exp %67 : vector<6x4xf32>
    %cst_37 = arith.constant dense<0.000000e+00> : vector<6xf32>
    %69 = vector.multi_reduction <add>, %68, %cst_37 [1] : vector<6x4xf32> to vector<6xf32>
    %70 = vector.shape_cast %69 : vector<6xf32> to vector<6x1xf32>
    %71 = tpu.reciprocal %70 {approx = true} : vector<6x1xf32> -> vector<6x1xf32>
    %72 = vector.broadcast %71 : vector<6x1xf32> to vector<6x4xf32>
    %73 = arith.mulf %68, %72 : vector<6x4xf32>
    %74 = vector.extract_strided_slice %24 {offsets = [0, 16], sizes = [4, 8], strides = [1, 1]} : vector<4x32xf32> to vector<4x8xf32>
    %cst_38 = arith.constant dense<0.000000e+00> : vector<6x8xf32>
    %75 = tpu.matmul %73, %74, %cst_38 {dimension_numbers = #tpu.dot_dimension_numbers<[1], [0], [0], [1], [0, 0, 1, 1], [], []>} : vector<6x4xf32>, vector<4x8xf32>, vector<6x8xf32> -> vector<6x8xf32>
    %76 = vector.extract_strided_slice %18 {offsets = [0, 24], sizes = [6, 8], strides = [1, 1]} : vector<6x32xf32> to vector<6x8xf32>
    %77 = vector.extract_strided_slice %21 {offsets = [0, 24], sizes = [4, 8], strides = [1, 1]} : vector<4x32xf32> to vector<4x8xf32>
    %cst_39 = arith.constant dense<0.000000e+00> : vector<6x4xf32>
    %78 = tpu.matmul %76, %77, %cst_39 {dimension_numbers = #tpu.dot_dimension_numbers<[1], [1], [0], [0], [0, 0, 1, 0], [], []>} : vector<6x8xf32>, vector<4x8xf32>, vector<6x4xf32> -> vector<6x4xf32>
    %79 = vector.broadcast %5 : vector<1x4xf32> to vector<6x4xf32>
    %80 = arith.addf %78, %79 : vector<6x4xf32>
    %cst_40 = arith.constant dense<0xFF800000> : vector<6xf32>
    %81 = vector.multi_reduction <maximumf>, %80, %cst_40 [1] : vector<6x4xf32> to vector<6xf32>
    %82 = vector.shape_cast %81 : vector<6xf32> to vector<6x1xf32>
    %83 = vector.broadcast %82 : vector<6x1xf32> to vector<6x4xf32>
    %84 = arith.subf %80, %83 : vector<6x4xf32>
    %85 = math.exp %84 : vector<6x4xf32>
    %cst_41 = arith.constant dense<0.000000e+00> : vector<6xf32>
    %86 = vector.multi_reduction <add>, %85, %cst_41 [1] : vector<6x4xf32> to vector<6xf32>
    %87 = vector.shape_cast %86 : vector<6xf32> to vector<6x1xf32>
    %88 = tpu.reciprocal %87 {approx = true} : vector<6x1xf32> -> vector<6x1xf32>
    %89 = vector.broadcast %88 : vector<6x1xf32> to vector<6x4xf32>
    %90 = arith.mulf %85, %89 : vector<6x4xf32>
    %91 = vector.extract_strided_slice %24 {offsets = [0, 24], sizes = [4, 8], strides = [1, 1]} : vector<4x32xf32> to vector<4x8xf32>
    %cst_42 = arith.constant dense<0.000000e+00> : vector<6x8xf32>
    %92 = tpu.matmul %90, %91, %cst_42 {dimension_numbers = #tpu.dot_dimension_numbers<[1], [0], [0], [1], [0, 0, 1, 1], [], []>} : vector<6x4xf32>, vector<4x8xf32>, vector<6x8xf32> -> vector<6x8xf32>
    %93 = tpu.concatenate %41, %58, %75, %92 in 1 : vector<6x8xf32>, vector<6x8xf32>, vector<6x8xf32>, vector<6x8xf32> -> vector<6x32xf32>
    %cst_43 = arith.constant dense<0.000000e+00> : vector<6x32xf32>
    %94 = tpu.matmul %93, %12, %cst_43 {dimension_numbers = #tpu.dot_dimension_numbers<[1], [0], [0], [1], [0, 0, 1, 1], [], []>} : vector<6x32xf32>, vector<32x32xf32>, vector<6x32xf32> -> vector<6x32xf32>
    %95 = vector.broadcast %13 : vector<1x32xf32> to vector<6x32xf32>
    %96 = arith.addf %94, %95 : vector<6x32xf32>
    %97 = arith.addf %1, %96 : vector<6x32xf32>
    %c0_44 = arith.constant 0 : index
    %c0_45 = arith.constant 0 : index
    %98 = vector.load %arg12[%c0_44, %c0_45] : memref<1x32xf32, #tpu.memory_space<vmem>>, vector<1x32xf32>
    %c0_46 = arith.constant 0 : index
    %c0_47 = arith.constant 0 : index
    %99 = vector.load %arg13[%c0_46, %c0_47] : memref<1x32xf32, #tpu.memory_space<vmem>>, vector<1x32xf32>
    %cst_48 = arith.constant dense<0.000000e+00> : vector<6xf32>
    %100 = vector.multi_reduction <add>, %97, %cst_48 [1] : vector<6x32xf32> to vector<6xf32>
    %101 = vector.shape_cast %100 : vector<6xf32> to vector<6x1xf32>
    %cst_49 = arith.constant 3.200000e+01 : f32
    %102 = vector.broadcast %cst_49 : f32 to vector<6x1xf32>
    %103 = arith.divf %101, %102 : vector<6x1xf32>
    %104 = vector.broadcast %103 : vector<6x1xf32> to vector<6x32xf32>
    %105 = arith.subf %97, %104 : vector<6x32xf32>
    %106 = arith.mulf %105, %105 : vector<6x32xf32>
    %cst_50 = arith.constant dense<0.000000e+00> : vector<6xf32>
    %107 = vector.multi_reduction <add>, %106, %cst_50 [1] : vector<6x32xf32> to vector<6xf32>
    %108 = vector.shape_cast %107 : vector<6xf32> to vector<6x1xf32>
    %cst_51 = arith.constant 3.200000e+01 : f32
    %109 = vector.broadcast %cst_51 : f32 to vector<6x1xf32>
    %110 = arith.divf %108, %109 : vector<6x1xf32>
    %cst_52 = arith.constant 9.99999974E-6 : f32
    %111 = vector.broadcast %cst_52 : f32 to vector<6x1xf32>
    %112 = arith.addf %110, %111 : vector<6x1xf32>
    %113 = math.rsqrt %112 : vector<6x1xf32>
    %114 = vector.broadcast %113 : vector<6x1xf32> to vector<6x32xf32>
    %115 = arith.mulf %105, %114 : vector<6x32xf32>
    %116 = vector.broadcast %98 : vector<1x32xf32> to vector<6x32xf32>
    %117 = arith.mulf %115, %116 : vector<6x32xf32>
    %118 = vector.broadcast %99 : vector<1x32xf32> to vector<6x32xf32>
    %119 = arith.addf %117, %118 : vector<6x32xf32>
    %c0_53 = arith.constant 0 : index
    %c0_54 = arith.constant 0 : index
    %120 = vector.load %arg14[%c0_53, %c0_54] : memref<32x64xf32, #tpu.memory_space<vmem>>, vector<32x64xf32>
    %c0_55 = arith.constant 0 : index
    %c0_56 = arith.constant 0 : index
    %121 = vector.load %arg15[%c0_55, %c0_56] : memref<1x64xf32, #tpu.memory_space<vmem>>, vector<1x64xf32>
    %c0_57 = arith.constant 0 : index
    %c0_58 = arith.constant 0 : index
    %122 = vector.load %arg16[%c0_57, %c0_58] : memref<64x32xf32, #tpu.memory_space<vmem>>, vector<64x32xf32>
    %c0_59 = arith.constant 0 : index
    %c0_60 = arith.constant 0 : index
    %123 = vector.load %arg17[%c0_59, %c0_60] : memref<1x32xf32, #tpu.memory_space<vmem>>, vector<1x32xf32>
    %cst_61 = arith.constant dense<0.000000e+00> : vector<6x64xf32>
    %124 = tpu.matmul %119, %120, %cst_61 {dimension_numbers = #tpu.dot_dimension_numbers<[1], [0], [0], [1], [0, 0, 1, 1], [], []>} : vector<6x32xf32>, vector<32x64xf32>, vector<6x64xf32> -> vector<6x64xf32>
    %125 = vector.broadcast %121 : vector<1x64xf32> to vector<6x64xf32>
    %126 = arith.addf %124, %125 : vector<6x64xf32>
    %cst_62 = arith.constant 0.000000e+00 : f32
    %127 = vector.broadcast %cst_62 : f32 to vector<6x64xf32>
    %128 = arith.maximumf %126, %127 : vector<6x64xf32>
    %cst_63 = arith.constant dense<0.000000e+00> : vector<6x32xf32>
    %129 = tpu.matmul %128, %122, %cst_63 {dimension_numbers = #tpu.dot_dimension_numbers<[1], [0], [0], [1], [0, 0, 1, 1], [], []>} : vector<6x64xf32>, vector<64x32xf32>, vector<6x32xf32> -> vector<6x32xf32>
    %130 = vector.broadcast %123 : vector<1x32xf32> to vector<6x32xf32>
    %131 = arith.addf %129, %130 : vector<6x32xf32>
    %132 = arith.addf %119, %131 : vector<6x32xf32>
    %c0_64 = arith.constant 0 : index
    %c0_65 = arith.constant 0 : index
    %133 = vector.load %arg18[%c0_64, %c0_65] : memref<1x32xf32, #tpu.memory_space<vmem>>, vector<1x32xf32>
    %c0_66 = arith.constant 0 : index
    %c0_67 = arith.constant 0 : index
    %134 = vector.load %arg19[%c0_66, %c0_67] : memref<1x32xf32, #tpu.memory_space<vmem>>, vector<1x32xf32>
    %cst_68 = arith.constant dense<0.000000e+00> : vector<6xf32>
    %135 = vector.multi_reduction <add>, %132, %cst_68 [1] : vector<6x32xf32> to vector<6xf32>
    %136 = vector.shape_cast %135 : vector<6xf32> to vector<6x1xf32>
    %cst_69 = arith.constant 3.200000e+01 : f32
    %137 = vector.broadcast %cst_69 : f32 to vector<6x1xf32>
    %138 = arith.divf %136, %137 : vector<6x1xf32>
    %139 = vector.broadcast %138 : vector<6x1xf32> to vector<6x32xf32>
    %140 = arith.subf %132, %139 : vector<6x32xf32>
    %141 = arith.mulf %140, %140 : vector<6x32xf32>
    %cst_70 = arith.constant dense<0.000000e+00> : vector<6xf32>
    %142 = vector.multi_reduction <add>, %141, %cst_70 [1] : vector<6x32xf32> to vector<6xf32>
    %143 = vector.shape_cast %142 : vector<6xf32> to vector<6x1xf32>
    %cst_71 = arith.constant 3.200000e+01 : f32
    %144 = vector.broadcast %cst_71 : f32 to vector<6x1xf32>
    %145 = arith.divf %143, %144 : vector<6x1xf32>
    %cst_72 = arith.constant 9.99999974E-6 : f32
    %146 = vector.broadcast %cst_72 : f32 to vector<6x1xf32>
    %147 = arith.addf %145, %146 : vector<6x1xf32>
    %148 = math.rsqrt %147 : vector<6x1xf32>
    %149 = vector.broadcast %148 : vector<6x1xf32> to vector<6x32xf32>
    %150 = arith.mulf %140, %149 : vector<6x32xf32>
    %151 = vector.broadcast %133 : vector<1x32xf32> to vector<6x32xf32>
    %152 = arith.mulf %150, %151 : vector<6x32xf32>
    %153 = vector.broadcast %134 : vector<1x32xf32> to vector<6x32xf32>
    %154 = arith.addf %152, %153 : vector<6x32xf32>
    %c0_73 = arith.constant 0 : index
    %c0_74 = arith.constant 0 : index
    %c0_75 = arith.constant 0 : index
    %155 = vector.load %arg20[%c0_73, %c0_74, %c0_75] : memref<1x6x32xf32, #tpu.memory_space<vmem>>, vector<1x6x32xf32>
    %156 = vector.shape_cast %155 : vector<1x6x32xf32> to vector<6x32xf32>
    %157 = vector.shape_cast %154 : vector<6x32xf32> to vector<1x6x32xf32>
    tpu.vector_store %arg20[%c0_73, %c0_74, %c0_75], %157 {strides = array<i32>} : memref<1x6x32xf32, #tpu.memory_space<vmem>>, vector<1x6x32xf32>,
    return
  }
  func.func @transform_0(%arg0: i32) -> (i32, i32, i32) {
    %c0_i32 = arith.constant 0 : i32
    %c0_i32_0 = arith.constant 0 : i32
    %c0_i32_1 = arith.constant 0 : i32
    return %arg0, %c0_i32, %c0_i32_0 : i32, i32, i32
  }
  func.func @transform_1(%arg0: i32) -> (i32, i32, i32) {
    %c0_i32 = arith.constant 0 : i32
    %c0_i32_0 = arith.constant 0 : i32
    %c0_i32_1 = arith.constant 0 : i32
    return %arg0, %c0_i32, %c0_i32_0 : i32, i32, i32
  }
  func.func @transform_2(%arg0: i32) -> (i32, i32, i32) {
    %c0_i32 = arith.constant 0 : i32
    %c0_i32_0 = arith.constant 0 : i32
    %c0_i32_1 = arith.constant 0 : i32
    return %arg0, %c0_i32, %c0_i32_0 : i32, i32, i32
  }
  func.func @transform_3(%arg0: i32) -> (i32, i32) {
    %c0_i32 = arith.constant 0 : i32
    %c0_i32_0 = arith.constant 0 : i32
    %c0_i32_1 = arith.constant 0 : i32
    return %c0_i32, %c0_i32_0 : i32, i32
  }
  func.func @transform_4(%arg0: i32) -> (i32, i32) {
    %c0_i32 = arith.constant 0 : i32
    %c0_i32_0 = arith.constant 0 : i32
    %c0_i32_1 = arith.constant 0 : i32
    return %c0_i32, %c0_i32_0 : i32, i32
  }
  func.func @transform_5(%arg0: i32) -> (i32, i32) {
    %c0_i32 = arith.constant 0 : i32
    %c0_i32_0 = arith.constant 0 : i32
    %c0_i32_1 = arith.constant 0 : i32
    return %c0_i32, %c0_i32_0 : i32, i32
  }
  func.func @transform_6(%arg0: i32) -> (i32, i32) {
    %c0_i32 = arith.constant 0 : i32
    %c0_i32_0 = arith.constant 0 : i32
    %c0_i32_1 = arith.constant 0 : i32
    return %c0_i32, %c0_i32_0 : i32, i32
  }
  func.func @transform_7(%arg0: i32) -> (i32, i32) {
    %c0_i32 = arith.constant 0 : i32
    %c0_i32_0 = arith.constant 0 : i32
    %c0_i32_1 = arith.constant 0 : i32
    return %c0_i32, %c0_i32_0 : i32, i32
  }
  func.func @transform_8(%arg0: i32) -> (i32, i32) {
    %c0_i32 = arith.constant 0 : i32
    %c0_i32_0 = arith.constant 0 : i32
    %c0_i32_1 = arith.constant 0 : i32
    return %c0_i32, %c0_i32_0 : i32, i32
  }
  func.func @transform_9(%arg0: i32) -> (i32, i32) {
    %c0_i32 = arith.constant 0 : i32
    %c0_i32_0 = arith.constant 0 : i32
    %c0_i32_1 = arith.constant 0 : i32
    return %c0_i32, %c0_i32_0 : i32, i32
  }
  func.func @transform_10(%arg0: i32) -> (i32, i32) {
    %c0_i32 = arith.constant 0 : i32
    %c0_i32_0 = arith.constant 0 : i32
    %c0_i32_1 = arith.constant 0 : i32
    return %c0_i32, %c0_i32_0 : i32, i32
  }
  func.func @transform_11(%arg0: i32) -> (i32, i32) {
    %c0_i32 = arith.constant 0 : i32
    %c0_i32_0 = arith.constant 0 : i32
    %c0_i32_1 = arith.constant 0 : i32
    return %c0_i32, %c0_i32_0 : i32, i32
  }
  func.func @transform_12(%arg0: i32) -> (i32, i32) {
    %c0_i32 = arith.constant 0 : i32
    %c0_i32_0 = arith.constant 0 : i32
    %c0_i32_1 = arith.constant 0 : i32
    return %c0_i32, %c0_i32_0 : i32, i32
  }
  func.func @transform_13(%arg0: i32) -> (i32, i32) {
    %c0_i32 = arith.constant 0 : i32
    %c0_i32_0 = arith.constant 0 : i32
    %c0_i32_1 = arith.constant 0 : i32
    return %c0_i32, %c0_i32_0 : i32, i32
  }
  func.func @transform_14(%arg0: i32) -> (i32, i32) {
    %c0_i32 = arith.constant 0 : i32
    %c0_i32_0 = arith.constant 0 : i32
    %c0_i32_1 = arith.constant 0 : i32
    return %c0_i32, %c0_i32_0 : i32, i32
  }
  func.func @transform_15(%arg0: i32) -> (i32, i32) {
    %c0_i32 = arith.constant 0 : i32
    %c0_i32_0 = arith.constant 0 : i32
    %c0_i32_1 = arith.constant 0 : i32
    return %c0_i32, %c0_i32_0 : i32, i32
  }
  func.func @transform_16(%arg0: i32) -> (i32, i32) {
    %c0_i32 = arith.constant 0 : i32
    %c0_i32_0 = arith.constant 0 : i32
    %c0_i32_1 = arith.constant 0 : i32
    return %c0_i32, %c0_i32_0 : i32, i32
  }
  func.func @transform_17(%arg0: i32) -> (i32, i32) {
    %c0_i32 = arith.constant 0 : i32
    %c0_i32_0 = arith.constant 0 : i32
    %c0_i32_1 = arith.constant 0 : i32
    return %c0_i32, %c0_i32_0 : i32, i32
  }
  func.func @transform_18(%arg0: i32) -> (i32, i32) {
    %c0_i32 = arith.constant 0 : i32
    %c0_i32_0 = arith.constant 0 : i32
    %c0_i32_1 = arith.constant 0 : i32
    return %c0_i32, %c0_i32_0 : i32, i32
  }
  func.func @transform_19(%arg0: i32) -> (i32, i32, i32) {
    %c0_i32 = arith.constant 0 : i32
    %c0_i32_0 = arith.constant 0 : i32
    %c0_i32_1 = arith.constant 0 : i32
    return %arg0, %c0_i32, %c0_i32_0 : i32, i32, i32
  }
}

module attributes {stable_mosaic.version = 11 : i64} {
  func.func @_proj_kernel(%arg0: i32, %arg1: memref<54x32xf32, #tpu.memory_space<vmem>>, %arg2: memref<32x1xf32, #tpu.memory_space<vmem>>, %arg3: memref<54x1xf32, #tpu.memory_space<vmem>>) attributes {dimension_semantics = [#tpu.dimension_semantics<arbitrary>], iteration_bounds = array<i64: 1>, scalar_prefetch = 0 : i64, scratch_operands = 0 : i64, tpu.core_type = #tpu.core_type<tc>, window_params = [{pipeline_mode = #tpu.pipeline_mode<synchronous>, transform_indices = @transform_0, window_bounds = array<i64: 54, 32>}, {pipeline_mode = #tpu.pipeline_mode<synchronous>, transform_indices = @transform_1, window_bounds = array<i64: 32, 1>}, {pipeline_mode = #tpu.pipeline_mode<synchronous>, transform_indices = @transform_2, window_bounds = array<i64: 54, 1>}]} {
    %c0 = arith.constant 0 : index
    %c0_0 = arith.constant 0 : index
    %0 = vector.load %arg1[%c0, %c0_0] : memref<54x32xf32, #tpu.memory_space<vmem>>, vector<54x32xf32>
    %c0_1 = arith.constant 0 : index
    %c0_2 = arith.constant 0 : index
    %1 = vector.load %arg2[%c0_1, %c0_2] : memref<32x1xf32, #tpu.memory_space<vmem>>, vector<32x1xf32>
    %cst = arith.constant dense<0.000000e+00> : vector<54x1xf32>
    %2 = tpu.matmul %0, %1, %cst {dimension_numbers = #tpu.dot_dimension_numbers<[1], [0], [0], [1], [0, 0, 1, 1], [], []>} : vector<54x32xf32>, vector<32x1xf32>, vector<54x1xf32> -> vector<54x1xf32>
    %c0_3 = arith.constant 0 : index
    %c0_4 = arith.constant 0 : index
    %3 = vector.load %arg3[%c0_3, %c0_4] : memref<54x1xf32, #tpu.memory_space<vmem>>, vector<54x1xf32>
    tpu.vector_store %arg3[%c0_3, %c0_4], %2 {strides = array<i32>} : memref<54x1xf32, #tpu.memory_space<vmem>>, vector<54x1xf32>,
    return
  }
  func.func @transform_0(%arg0: i32) -> (i32, i32) {
    %c0_i32 = arith.constant 0 : i32
    %c0_i32_0 = arith.constant 0 : i32
    %c0_i32_1 = arith.constant 0 : i32
    return %c0_i32, %c0_i32_0 : i32, i32
  }
  func.func @transform_1(%arg0: i32) -> (i32, i32) {
    %c0_i32 = arith.constant 0 : i32
    %c0_i32_0 = arith.constant 0 : i32
    %c0_i32_1 = arith.constant 0 : i32
    return %c0_i32, %c0_i32_0 : i32, i32
  }
  func.func @transform_2(%arg0: i32) -> (i32, i32) {
    %c0_i32 = arith.constant 0 : i32
    %c0_i32_0 = arith.constant 0 : i32
    %c0_i32_1 = arith.constant 0 : i32
    return %c0_i32, %c0_i32_0 : i32, i32
  }
}

</mosaic_0001>

<llo_original>
// kernel: transmot_forward.9
$region0: #{transmot_forward.9}
  #allocation0 [shape = 'u32[]', space=smem, size = 0x4, offset = 0x4, fixed_abs, tag = 'smem constant byte address 0x4 - core index']
  #allocation1 [shape = 'u32[72,128]{1,0:T(1,128)}', space=vmem, size = 0x9000, scoped, tag = 'internal scratch']
  %s0 = inlined_call_operand.vmem [shape: f32[32,12], index: 0, kind: input, shape index: {}]
  %s1 = inlined_call_operand.vmem [shape: f32[12,32], index: 1, kind: input, shape index: {}]
  %s2 = inlined_call_operand.vmem [shape: f32[1,32], index: 2, kind: input, shape index: {}]
  %s3 = inlined_call_operand.vmem [shape: f32[32,1], index: 3, kind: input, shape index: {}]
  %s4 = inlined_call_operand.vmem [shape: f32[32,32], index: 4, kind: output, shape index: {}]
  %s5 = sld [smem:[#allocation0]]
  $region26: #{transmot_forward.9} parent=0
    _
  %s7 = ssub.s32 1, %s5
  %s8 = scalar_select 0, %s7, %s5
  // Predicated region
  $region2: #{transmot_forward.9} parent=0 // pred_check
    _
  $region3: #{transmot_forward.9} parent=0 // pred_check_branch
    %10 = sbr.rel (0) target = $region5
  $region4: #{transmot_forward.9} parent=0 // pred_region
    _
  $region5: #{transmot_forward.9} parent=0 // pred_fallthru
    _
  // Predicated region
  $region6: #{transmot_forward.9} parent=0 // pred_check
    _
  $region7: #{transmot_forward.9} parent=0 // pred_check_branch
    %12 = sbr.rel (0) target = $region9
  $region8: #{transmot_forward.9} parent=0 // pred_region
    _
  $region9: #{transmot_forward.9} parent=0 // pred_fallthru
    _
  // Predicated region
  $region10: #{transmot_forward.9} parent=0 // pred_check
    _
  $region11: #{transmot_forward.9} parent=0 // pred_check_branch
    %14 = sbr.rel (0) target = $region13
  $region12: #{transmot_forward.9} parent=0 // pred_region
    _
  $region13: #{transmot_forward.9} parent=0 // pred_fallthru
    _
  // Predicated region
  $region14: #{transmot_forward.9} parent=0 // pred_check
    _
  $region15: #{transmot_forward.9} parent=0 // pred_check_branch
    %16 = sbr.rel (0) target = $region17
  $region16: #{transmot_forward.9} parent=0 // pred_region
    _
  $region17: #{transmot_forward.9} parent=0 // pred_fallthru
    _
  %v17 = vld [vmem:[%s0] sm:$0xff]
  %v18 = vld [vmem:[%s0 + $0x8] sm:$0xff]
  %v19 = vld [vmem:[%s0 + $0x10] sm:$0xff]
  %v20 = vld [vmem:[%s0 + $0x18] sm:$0xff]
  %v21 = vld [vmem:[%s1] sm:$0xff]
  %v22 = vld [vmem:[%s1 + $0x8] sm:$0xf]
  %v23 = vld [vmem:[%s2] sm:$0x1]
  %v25 = vperm.slane %v23, 0
  %vm27 = vcmask 97280
  %v29 = vsel %vm27, %v17, 0
  %v32 = vsel %vm27, %v18, 0
  %v35 = vsel %vm27, %v19, 0
  %v38 = vsel %vm27, %v20, 0
  %vm40 = vcmask 1043456
  %v42 = vsel %vm40, %v22, 0
  %44 = vmatpush.msra.mxu0 0.0
  %45 = vmatpush.msra.mxu0 0.0
  %46 = vmatpush.msra.mxu0 0.0
  %47 = vmatpush.msra.mxu0 0.0
  %48 = vmatpush.msra.mxu0 0.0
  %49 = vmatpush.msra.mxu0 0.0
  %50 = vmatpush.msra.mxu0 0.0
  %51 = vmatpush.msra.mxu0 0.0
  %52 = vmatpush.msra.mxu0 0.0
  %53 = vmatpush.msra.mxu0 0.0
  %54 = vmatpush.msra.mxu0 0.0
  %55 = vmatpush.msra.mxu0 0.0
  %56 = vmatpush.msra.mxu0 0.0
  %57 = vmatpush.msra.mxu0 0.0
  %58 = vmatpush.msra.mxu0 %v42
  %59 = vmatpush.msra.mxu0 %v21
  %60 = vmatmul.f32.gmra.mxu0 %v29
  %v61 = vpop.f32.mrf.mxu0
  %v62 = vadd.f32 %v25, %v61
  %63 = vmatmul.f32.gmra.mxu0 %v32
  %v64 = vpop.f32.mrf.mxu0
  %v65 = vadd.f32 %v25, %v64
  %66 = vmatmul.f32.gmra.mxu0 %v35
  %v67 = vpop.f32.mrf.mxu0
  %v68 = vadd.f32 %v25, %v67
  %69 = vmatmul.f32.gmra.mxu0 %v38
  %v70 = vpop.f32.mrf.mxu0
  %v71 = vadd.f32 %v25, %v70
  %72 = vdwg.mxu0
  %v73 = vmax.f32 %v62, 0.0
  %v74 = vmax.f32 %v65, 0.0
  %v75 = vmax.f32 %v68, 0.0
  %v76 = vmax.f32 %v71, 0.0
  %v77 = vld [vmem:[%s3] sm:$0xff]
  %v78 = vld [vmem:[%s3 + $0x8] sm:$0xff]
  %v79 = vld [vmem:[%s3 + $0x10] sm:$0xff]
  %v80 = vld [vmem:[%s3 + $0x18] sm:$0xff]
  %82 = vset.pattern.permute.xlu0 0
  %83 = vperm.xlu0 %82, %v77
  %v84 = vpop.permute.xlu0 %83
  %87 = vset.pattern.permute.xlu0 0
  %88 = vperm.xlu0 %87, %v78
  %v89 = vpop.permute.xlu0 %88
  %92 = vset.pattern.permute.xlu0 0
  %93 = vperm.xlu0 %92, %v79
  %v94 = vpop.permute.xlu0 %93
  %97 = vset.pattern.permute.xlu0 0
  %98 = vperm.xlu0 %97, %v80
  %v99 = vpop.permute.xlu0 %98
  %v101 = vmul.f32 %v73, %v84
  %v102 = vmul.f32 %v74, %v89
  %v103 = vmul.f32 %v75, %v94
  %v104 = vmul.f32 %v76, %v99
  %vm105 = vcmask 261120
  %106 = vst.msk [vmem:[%s4] sm:$0xff] %vm105, %v101
  %107 = vst.msk [vmem:[%s4 + $0x8] sm:$0xff] %vm105, %v102
  %108 = vst.msk [vmem:[%s4 + $0x10] sm:$0xff] %vm105, %v103
  %109 = vst.msk [vmem:[%s4 + $0x18] sm:$0xff] %vm105, %v104
  // Predicated region
  $region18: #{transmot_forward.9} parent=0 // pred_check
    _
  $region19: #{transmot_forward.9} parent=0 // pred_check_branch
    %111 = sbr.rel (0) target = $region21
  $region20: #{transmot_forward.9} parent=0 // pred_region
    _
  $region21: #{transmot_forward.9} parent=0 // pred_fallthru
    _
  // Predicated region
  $region22: #{transmot_forward.9} parent=0 // pred_check
    _
  $region23: #{transmot_forward.9} parent=0 // pred_check_branch
    %113 = sbr.rel (0) target = $region25
  $region24: #{transmot_forward.9} parent=0 // pred_region
    _
  $region25: #{transmot_forward.9} parent=0 // pred_fallthru
    _

// kernel: transmot_forward.12
$region0: #{transmot_forward.12}
  #allocation0 [shape = 'u32[]', space=smem, size = 0x4, offset = 0x4, fixed_abs, tag = 'smem constant byte address 0x4 - core index']
  #allocation1 [shape = 'u32[72,128]{1,0:T(1,128)}', space=vmem, size = 0x9000, scoped, tag = 'internal scratch']
  %s0 = inlined_call_operand.vmem [shape: f32[6,12], index: 0, kind: input, shape index: {}]
  %s1 = inlined_call_operand.vmem [shape: f32[12,32], index: 1, kind: input, shape index: {}]
  %s2 = inlined_call_operand.vmem [shape: f32[1,32], index: 2, kind: input, shape index: {}]
  %s3 = inlined_call_operand.vmem [shape: f32[6,1], index: 3, kind: input, shape index: {}]
  %s4 = inlined_call_operand.vmem [shape: f32[6,32], index: 4, kind: output, shape index: {}]
  %s5 = sld [smem:[#allocation0]]
  $region26: #{transmot_forward.12} parent=0
    _
  %s7 = ssub.s32 1, %s5
  %s8 = scalar_select 0, %s7, %s5
  // Predicated region
  $region2: #{transmot_forward.12} parent=0 // pred_check
    _
  $region3: #{transmot_forward.12} parent=0 // pred_check_branch
    %10 = sbr.rel (0) target = $region5
  $region4: #{transmot_forward.12} parent=0 // pred_region
    _
  $region5: #{transmot_forward.12} parent=0 // pred_fallthru
    _
  // Predicated region
  $region6: #{transmot_forward.12} parent=0 // pred_check
    _
  $region7: #{transmot_forward.12} parent=0 // pred_check_branch
    %12 = sbr.rel (0) target = $region9
  $region8: #{transmot_forward.12} parent=0 // pred_region
    _
  $region9: #{transmot_forward.12} parent=0 // pred_fallthru
    _
  // Predicated region
  $region10: #{transmot_forward.12} parent=0 // pred_check
    _
  $region11: #{transmot_forward.12} parent=0 // pred_check_branch
    %14 = sbr.rel (0) target = $region13
  $region12: #{transmot_forward.12} parent=0 // pred_region
    _
  $region13: #{transmot_forward.12} parent=0 // pred_fallthru
    _
  // Predicated region
  $region14: #{transmot_forward.12} parent=0 // pred_check
    _
  $region15: #{transmot_forward.12} parent=0 // pred_check_branch
    %16 = sbr.rel (0) target = $region17
  $region16: #{transmot_forward.12} parent=0 // pred_region
    _
  $region17: #{transmot_forward.12} parent=0 // pred_fallthru
    _
  %v17 = vld [vmem:[%s0] sm:$0x3f]
  %v18 = vld [vmem:[%s1] sm:$0xff]
  %v19 = vld [vmem:[%s1 + $0x8] sm:$0xf]
  %v20 = vld [vmem:[%s2] sm:$0x1]
  %v22 = vperm.slane %v20, 0
  %vm24 = vcmask 97280
  %v26 = vsel %vm24, %v17, 0
  %vm28 = vcmask 1043456
  %v30 = vsel %vm28, %v19, 0
  %32 = vmatpush.msra.mxu0 0.0
  %33 = vmatpush.msra.mxu0 0.0
  %34 = vmatpush.msra.mxu0 0.0
  %35 = vmatpush.msra.mxu0 0.0
  %36 = vmatpush.msra.mxu0 0.0
  %37 = vmatpush.msra.mxu0 0.0
  %38 = vmatpush.msra.mxu0 0.0
  %39 = vmatpush.msra.mxu0 0.0
  %40 = vmatpush.msra.mxu0 0.0
  %41 = vmatpush.msra.mxu0 0.0
  %42 = vmatpush.msra.mxu0 0.0
  %43 = vmatpush.msra.mxu0 0.0
  %44 = vmatpush.msra.mxu0 0.0
  %45 = vmatpush.msra.mxu0 0.0
  %46 = vmatpush.msra.mxu0 %v30
  %47 = vmatpush.msra.mxu0 %v18
  %48 = vmatmul.f32.gmra.mxu0 %v26
  %v49 = vpop.f32.mrf.mxu0
  %v50 = vadd.f32 %v22, %v49
  %51 = vdwg.mxu0
  %v52 = vmax.f32 %v50, 0.0
  %v53 = vld [vmem:[%s3] sm:$0x3f]
  %55 = vset.pattern.permute.xlu0 0
  %56 = vperm.xlu0 %55, %v53
  %v57 = vpop.permute.xlu0 %56
  %v59 = vmul.f32 %v52, %v57
  %vm60 = vcmask 259072
  %61 = vst.msk [vmem:[%s4] sm:$0x3f] %vm60, %v59
  // Predicated region
  $region18: #{transmot_forward.12} parent=0 // pred_check
    _
  $region19: #{transmot_forward.12} parent=0 // pred_check_branch
    %63 = sbr.rel (0) target = $region21
  $region20: #{transmot_forward.12} parent=0 // pred_region
    _
  $region21: #{transmot_forward.12} parent=0 // pred_fallthru
    _
  // Predicated region
  $region22: #{transmot_forward.12} parent=0 // pred_check
    _
  $region23: #{transmot_forward.12} parent=0 // pred_check_branch
    %65 = sbr.rel (0) target = $region25
  $region24: #{transmot_forward.12} parent=0 // pred_region
    _
  $region25: #{transmot_forward.12} parent=0 // pred_fallthru
    _

// kernel: transmot_forward.10
$region0: #{transmot_forward.10}
  #allocation0 [shape = 'u32[]', space=smem, size = 0x4, offset = 0x4, fixed_abs, tag = 'smem constant byte address 0x4 - core index']
  #allocation1 [shape = 'u32[72,128]{1,0:T(1,128)}', space=vmem, size = 0x9000, scoped, tag = 'internal scratch']
  %s0 = inlined_call_operand.vmem [shape: f32[4,8,32], index: 0, kind: input, shape index: {}]
  %s1 = inlined_call_operand.vmem [shape: f32[1,8,8], index: 1, kind: input, shape index: {}]
  %s2 = inlined_call_operand.vmem [shape: f32[4,1,8], index: 2, kind: input, shape index: {}]
  %s3 = inlined_call_operand.vmem [shape: f32[2,32,32], index: 3, kind: input, shape index: {}]
  %s4 = inlined_call_operand.vmem [shape: f32[2,1,32], index: 4, kind: input, shape index: {}]
  %s5 = inlined_call_operand.vmem [shape: f32[2,32,32], index: 5, kind: input, shape index: {}]
  %s6 = inlined_call_operand.vmem [shape: f32[2,1,32], index: 6, kind: input, shape index: {}]
  %s7 = inlined_call_operand.vmem [shape: f32[2,32,32], index: 7, kind: input, shape index: {}]
  %s8 = inlined_call_operand.vmem [shape: f32[2,1,32], index: 8, kind: input, shape index: {}]
  %s9 = inlined_call_operand.vmem [shape: f32[2,32,32], index: 9, kind: input, shape index: {}]
  %s10 = inlined_call_operand.vmem [shape: f32[2,1,32], index: 10, kind: input, shape index: {}]
  %s11 = inlined_call_operand.vmem [shape: f32[2,1,32], index: 11, kind: input, shape index: {}]
  %s12 = inlined_call_operand.vmem [shape: f32[2,1,32], index: 12, kind: input, shape index: {}]
  %s13 = inlined_call_operand.vmem [shape: f32[2,32,64], index: 13, kind: input, shape index: {}]
  %s14 = inlined_call_operand.vmem [shape: f32[2,1,64], index: 14, kind: input, shape index: {}]
  %s15 = inlined_call_operand.vmem [shape: f32[2,64,32], index: 15, kind: input, shape index: {}]
  %s16 = inlined_call_operand.vmem [shape: f32[2,1,32], index: 16, kind: input, shape index: {}]
  %s17 = inlined_call_operand.vmem [shape: f32[2,1,32], index: 17, kind: input, shape index: {}]
  %s18 = inlined_call_operand.vmem [shape: f32[2,1,32], index: 18, kind: input, shape index: {}]
  %s19 = inlined_call_operand.vmem [shape: f32[4,8,32], index: 19, kind: output, shape index: {}]
  %s20 = sld [smem:[#allocation0]]
  $region113: #{transmot_forward.10} parent=0
    _
  %s22 = ssub.s32 1, %s20
  %s23 = scalar_select 0, %s22, %s20
  loop: start=0, step=1, limit=10
  $region2: #{transmot_forward.10} parent=0 // loop_pre_header
    _
  $region3: #{transmot_forward.10} parent=0 // loop_header
    %s25 = sphi 0, %s29
    %p26 = scmp.ge.s32.totalorder %s25, 10
    %s32 = sphi 0, %s44
    %s33 = sphi 0, %s40
    %s34 = sphi 0, %s32
    %s35 = sphi 0, %s33
    %s36 = sphi 0, %s34
    %s37 = sphi 0, %s35
    %s47 = sphi 0, %s49
    %s50 = sphi 0, %s47
    %s51 = sphi 0, %s50
    %s67 = sphi 0, %s51
    %s71 = sphi 0, %s71
    %s73 = sphi 0, %s71
    %s74 = sphi 0, %s73
    %s88 = sphi 0, %s74
    %s94 = sphi 0, %s96
    %s97 = sphi 0, %s94
    %s98 = sphi 0, %s97
    %s114 = sphi 0, %s98
    %s120 = sphi 0, %s122
    %s123 = sphi 0, %s120
    %s124 = sphi 0, %s123
    %s140 = sphi 0, %s124
    %s146 = sphi 0, %s148
    %s149 = sphi 0, %s146
    %s150 = sphi 0, %s149
    %s166 = sphi 0, %s150
    %s172 = sphi 0, %s174
    %s175 = sphi 0, %s172
    %s176 = sphi 0, %s175
    %s192 = sphi 0, %s176
    %s198 = sphi 0, %s200
    %s201 = sphi 0, %s198
    %s202 = sphi 0, %s201
    %s218 = sphi 0, %s202
    %s224 = sphi 0, %s226
    %s227 = sphi 0, %s224
    %s228 = sphi 0, %s227
    %s244 = sphi 0, %s228
    %s250 = sphi 0, %s252
    %s253 = sphi 0, %s250
    %s254 = sphi 0, %s253
    %s270 = sphi 0, %s254
    %s276 = sphi 0, %s278
    %s279 = sphi 0, %s276
    %s280 = sphi 0, %s279
    %s296 = sphi 0, %s280
    %s302 = sphi 0, %s304
    %s305 = sphi 0, %s302
    %s306 = sphi 0, %s305
    %s322 = sphi 0, %s306
    %s328 = sphi 0, %s330
    %s331 = sphi 0, %s328
    %s332 = sphi 0, %s331
    %s348 = sphi 0, %s332
    %s354 = sphi 0, %s356
    %s357 = sphi 0, %s354
    %s358 = sphi 0, %s357
    %s374 = sphi 0, %s358
    %s380 = sphi 0, %s382
    %s383 = sphi 0, %s380
    %s384 = sphi 0, %s383
    %s400 = sphi 0, %s384
    %s406 = sphi 0, %s408
    %s409 = sphi 0, %s406
    %s410 = sphi 0, %s409
    %s426 = sphi 0, %s410
    %s432 = sphi 0, %s434
    %s435 = sphi 0, %s432
    %s436 = sphi 0, %s435
    %s452 = sphi 0, %s436
    %s458 = sphi 0, %s460
    %s461 = sphi 0, %s458
    %s462 = sphi 0, %s461
    %s478 = sphi 0, %s462
    %s484 = sphi 0, %s486
    %s487 = sphi 0, %s484
    %s488 = sphi 0, %s487
    %s504 = sphi 0, %s488
    %s510 = sphi 0, %s512
    %s513 = sphi 0, %s510
    %s514 = sphi 0, %s513
    %s530 = sphi 0, %s514
    %s536 = sphi 0, %s538
    %s539 = sphi 0, %s536
    %s540 = sphi 0, %s539
    %s556 = sphi 0, %s540
  $region4: #{transmot_forward.10} parent=0 // loop_header_branch
    %28 = sbr.rel (%p26) target = $region8
  $region5: #{transmot_forward.10} parent=0 // loop_body
    %s30 = ssub.s32 %s25, 1
    %s31 = ssub.s32 %s25, 2
    %s38 = sadd.s32 1, %s33
    %p39 = scmp.ge.s32.totalorder %s38, 2
    %s40 = scalar_select %p39, 0, %s38
    %s41 = sadd.s32 1, %s32
    %s42 = scalar_select %p39, %s41, %s32
    %p43 = scmp.ge.s32.totalorder %s42, 4
    %s44 = scalar_select %p43, 0, %s42
    %s45 = ssub.s32 %s32, %s44
    %p46 = scmp.eq.s32.totalorder %s45, 0
    %s48 = sadd.s32 %s47, 1
    %s49 = scalar_select %p46, %s47, %s48
    %p52 = pneg %p46
    %p53 = scmp.eq.s32.totalorder %s25, 7
    %p54 = por %p52, %p53
    %p55 = scmp.ne.s32.totalorder %s47, %s50
    %p56 = scmp.eq.s32.totalorder %s25, 0
    %p57 = por %p55, %p56
    %p58 = scmp.ne.s32.totalorder %s47, %s50
    %p59 = scmp.eq.s32.totalorder %s30, 7
    %p60 = por %p58, %p59
    %p61 = scmp.ne.s32.totalorder %s50, %s51
    %p62 = scmp.eq.s32.totalorder %s30, 0
    %p63 = por %p61, %p62
    %p64 = scmp.ne.s32.totalorder %s50, %s51
    %p65 = scmp.eq.s32.totalorder %s31, 7
    %p66 = por %p64, %p65
    %p68 = scmp.ne.s32.totalorder %s51, %s67
    %p69 = scmp.eq.s32.totalorder %s31, 0
    %p70 = por %p68, %p69
    %s72 = sadd.s32 %s71, 1
    %p75 = scmp.eq.s32.totalorder %s25, 7
    %p76 = scmp.ne.s32.totalorder %s71, %s73
    %p77 = scmp.eq.s32.totalorder %s25, 0
    %p78 = por %p76, %p77
    %p79 = scmp.ne.s32.totalorder %s71, %s73
    %p80 = scmp.eq.s32.totalorder %s30, 7
    %p81 = por %p79, %p80
    %p82 = scmp.ne.s32.totalorder %s73, %s74
    %p83 = scmp.eq.s32.totalorder %s30, 0
    %p84 = por %p82, %p83
    %p85 = scmp.ne.s32.totalorder %s73, %s74
    %p86 = scmp.eq.s32.totalorder %s31, 7
    %p87 = por %p85, %p86
    %p89 = scmp.ne.s32.totalorder %s74, %s88
    %p90 = scmp.eq.s32.totalorder %s31, 0
    %p91 = por %p89, %p90
    %s92 = ssub.s32 %s32, %s44
    %p93 = scmp.eq.s32.totalorder %s92, 0
    %s95 = sadd.s32 %s94, 1
    %s96 = scalar_select %p93, %s94, %s95
    %p99 = pneg %p93
    %p100 = scmp.eq.s32.totalorder %s25, 7
    %p101 = por %p99, %p100
    %p102 = scmp.ne.s32.totalorder %s94, %s97
    %p103 = scmp.eq.s32.totalorder %s25, 0
    %p104 = por %p102, %p103
    %p105 = scmp.ne.s32.totalorder %s94, %s97
    %p106 = scmp.eq.s32.totalorder %s30, 7
    %p107 = por %p105, %p106
    %p108 = scmp.ne.s32.totalorder %s97, %s98
    %p109 = scmp.eq.s32.totalorder %s30, 0
    %p110 = por %p108, %p109
    %p111 = scmp.ne.s32.totalorder %s97, %s98
    %p112 = scmp.eq.s32.totalorder %s31, 7
    %p113 = por %p111, %p112
    %p115 = scmp.ne.s32.totalorder %s98, %s114
    %p116 = scmp.eq.s32.totalorder %s31, 0
    %p117 = por %p115, %p116
    %s118 = ssub.s32 %s33, %s40
    %p119 = scmp.eq.s32.totalorder %s118, 0
    %s121 = sadd.s32 %s120, 1
    %s122 = scalar_select %p119, %s120, %s121
    %p125 = pneg %p119
    %p126 = scmp.eq.s32.totalorder %s25, 7
    %p127 = por %p125, %p126
    %p128 = scmp.ne.s32.totalorder %s120, %s123
    %p129 = scmp.eq.s32.totalorder %s25, 0
    %p130 = por %p128, %p129
    %p131 = scmp.ne.s32.totalorder %s120, %s123
    %p132 = scmp.eq.s32.totalorder %s30, 7
    %p133 = por %p131, %p132
    %p134 = scmp.ne.s32.totalorder %s123, %s124
    %p135 = scmp.eq.s32.totalorder %s30, 0
    %p136 = por %p134, %p135
    %p137 = scmp.ne.s32.totalorder %s123, %s124
    %p138 = scmp.eq.s32.totalorder %s31, 7
    %p139 = por %p137, %p138
    %p141 = scmp.ne.s32.totalorder %s124, %s140
    %p142 = scmp.eq.s32.totalorder %s31, 0
    %p143 = por %p141, %p142
    %s144 = ssub.s32 %s33, %s40
    %p145 = scmp.eq.s32.totalorder %s144, 0
    %s147 = sadd.s32 %s146, 1
    %s148 = scalar_select %p145, %s146, %s147
    %p151 = pneg %p145
    %p152 = scmp.eq.s32.totalorder %s25, 7
    %p153 = por %p151, %p152
    %p154 = scmp.ne.s32.totalorder %s146, %s149
    %p155 = scmp.eq.s32.totalorder %s25, 0
    %p156 = por %p154, %p155
    %p157 = scmp.ne.s32.totalorder %s146, %s149
    %p158 = scmp.eq.s32.totalorder %s30, 7
    %p159 = por %p157, %p158
    %p160 = scmp.ne.s32.totalorder %s149, %s150
    %p161 = scmp.eq.s32.totalorder %s30, 0
    %p162 = por %p160, %p161
    %p163 = scmp.ne.s32.totalorder %s149, %s150
    %p164 = scmp.eq.s32.totalorder %s31, 7
    %p165 = por %p163, %p164
    %p167 = scmp.ne.s32.totalorder %s150, %s166
    %p168 = scmp.eq.s32.totalorder %s31, 0
    %p169 = por %p167, %p168
    %s170 = ssub.s32 %s33, %s40
    %p171 = scmp.eq.s32.totalorder %s170, 0
    %s173 = sadd.s32 %s172, 1
    %s174 = scalar_select %p171, %s172, %s173
    %p177 = pneg %p171
    %p178 = scmp.eq.s32.totalorder %s25, 7
    %p179 = por %p177, %p178
    %p180 = scmp.ne.s32.totalorder %s172, %s175
    %p181 = scmp.eq.s32.totalorder %s25, 0
    %p182 = por %p180, %p181
    %p183 = scmp.ne.s32.totalorder %s172, %s175
    %p184 = scmp.eq.s32.totalorder %s30, 7
    %p185 = por %p183, %p184
    %p186 = scmp.ne.s32.totalorder %s175, %s176
    %p187 = scmp.eq.s32.totalorder %s30, 0
    %p188 = por %p186, %p187
    %p189 = scmp.ne.s32.totalorder %s175, %s176
    %p190 = scmp.eq.s32.totalorder %s31, 7
    %p191 = por %p189, %p190
    %p193 = scmp.ne.s32.totalorder %s176, %s192
    %p194 = scmp.eq.s32.totalorder %s31, 0
    %p195 = por %p193, %p194
    %s196 = ssub.s32 %s33, %s40
    %p197 = scmp.eq.s32.totalorder %s196, 0
    %s199 = sadd.s32 %s198, 1
    %s200 = scalar_select %p197, %s198, %s199
    %p203 = pneg %p197
    %p204 = scmp.eq.s32.totalorder %s25, 7
    %p205 = por %p203, %p204
    %p206 = scmp.ne.s32.totalorder %s198, %s201
    %p207 = scmp.eq.s32.totalorder %s25, 0
    %p208 = por %p206, %p207
    %p209 = scmp.ne.s32.totalorder %s198, %s201
    %p210 = scmp.eq.s32.totalorder %s30, 7
    %p211 = por %p209, %p210
    %p212 = scmp.ne.s32.totalorder %s201, %s202
    %p213 = scmp.eq.s32.totalorder %s30, 0
    %p214 = por %p212, %p213
    %p215 = scmp.ne.s32.totalorder %s201, %s202
    %p216 = scmp.eq.s32.totalorder %s31, 7
    %p217 = por %p215, %p216
    %p219 = scmp.ne.s32.totalorder %s202, %s218
    %p220 = scmp.eq.s32.totalorder %s31, 0
    %p221 = por %p219, %p220
    %s222 = ssub.s32 %s33, %s40
    %p223 = scmp.eq.s32.totalorder %s222, 0
    %s225 = sadd.s32 %s224, 1
    %s226 = scalar_select %p223, %s224, %s225
    %p229 = pneg %p223
    %p230 = scmp.eq.s32.totalorder %s25, 7
    %p231 = por %p229, %p230
    %p232 = scmp.ne.s32.totalorder %s224, %s227
    %p233 = scmp.eq.s32.totalorder %s25, 0
    %p234 = por %p232, %p233
    %p235 = scmp.ne.s32.totalorder %s224, %s227
    %p236 = scmp.eq.s32.totalorder %s30, 7
    %p237 = por %p235, %p236
    %p238 = scmp.ne.s32.totalorder %s227, %s228
    %p239 = scmp.eq.s32.totalorder %s30, 0
    %p240 = por %p238, %p239
    %p241 = scmp.ne.s32.totalorder %s227, %s228
    %p242 = scmp.eq.s32.totalorder %s31, 7
    %p243 = por %p241, %p242
    %p245 = scmp.ne.s32.totalorder %s228, %s244
    %p246 = scmp.eq.s32.totalorder %s31, 0
    %p247 = por %p245, %p246
    %s248 = ssub.s32 %s33, %s40
    %p249 = scmp.eq.s32.totalorder %s248, 0
    %s251 = sadd.s32 %s250, 1
    %s252 = scalar_select %p249, %s250, %s251
    %p255 = pneg %p249
    %p256 = scmp.eq.s32.totalorder %s25, 7
    %p257 = por %p255, %p256
    %p258 = scmp.ne.s32.totalorder %s250, %s253
    %p259 = scmp.eq.s32.totalorder %s25, 0
    %p260 = por %p258, %p259
    %p261 = scmp.ne.s32.totalorder %s250, %s253
    %p262 = scmp.eq.s32.totalorder %s30, 7
    %p263 = por %p261, %p262
    %p264 = scmp.ne.s32.totalorder %s253, %s254
    %p265 = scmp.eq.s32.totalorder %s30, 0
    %p266 = por %p264, %p265
    %p267 = scmp.ne.s32.totalorder %s253, %s254
    %p268 = scmp.eq.s32.totalorder %s31, 7
    %p269 = por %p267, %p268
    %p271 = scmp.ne.s32.totalorder %s254, %s270
    %p272 = scmp.eq.s32.totalorder %s31, 0
    %p273 = por %p271, %p272
    %s274 = ssub.s32 %s33, %s40
    %p275 = scmp.eq.s32.totalorder %s274, 0
    %s277 = sadd.s32 %s276, 1
    %s278 = scalar_select %p275, %s276, %s277
    %p281 = pneg %p275
    %p282 = scmp.eq.s32.totalorder %s25, 7
    %p283 = por %p281, %p282
    %p284 = scmp.ne.s32.totalorder %s276, %s279
    %p285 = scmp.eq.s32.totalorder %s25, 0
    %p286 = por %p284, %p285
    %p287 = scmp.ne.s32.totalorder %s276, %s279
    %p288 = scmp.eq.s32.totalorder %s30, 7
    %p289 = por %p287, %p288
    %p290 = scmp.ne.s32.totalorder %s279, %s280
    %p291 = scmp.eq.s32.totalorder %s30, 0
    %p292 = por %p290, %p291
    %p293 = scmp.ne.s32.totalorder %s279, %s280
    %p294 = scmp.eq.s32.totalorder %s31, 7
    %p295 = por %p293, %p294
    %p297 = scmp.ne.s32.totalorder %s280, %s296
    %p298 = scmp.eq.s32.totalorder %s31, 0
    %p299 = por %p297, %p298
    %s300 = ssub.s32 %s33, %s40
    %p301 = scmp.eq.s32.totalorder %s300, 0
    %s303 = sadd.s32 %s302, 1
    %s304 = scalar_select %p301, %s302, %s303
    %p307 = pneg %p301
    %p308 = scmp.eq.s32.totalorder %s25, 7
    %p309 = por %p307, %p308
    %p310 = scmp.ne.s32.totalorder %s302, %s305
    %p311 = scmp.eq.s32.totalorder %s25, 0
    %p312 = por %p310, %p311
    %p313 = scmp.ne.s32.totalorder %s302, %s305
    %p314 = scmp.eq.s32.totalorder %s30, 7
    %p315 = por %p313, %p314
    %p316 = scmp.ne.s32.totalorder %s305, %s306
    %p317 = scmp.eq.s32.totalorder %s30, 0
    %p318 = por %p316, %p317
    %p319 = scmp.ne.s32.totalorder %s305, %s306
    %p320 = scmp.eq.s32.totalorder %s31, 7
    %p321 = por %p319, %p320
    %p323 = scmp.ne.s32.totalorder %s306, %s322
    %p324 = scmp.eq.s32.totalorder %s31, 0
    %p325 = por %p323, %p324
    %s326 = ssub.s32 %s33, %s40
    %p327 = scmp.eq.s32.totalorder %s326, 0
    %s329 = sadd.s32 %s328, 1
    %s330 = scalar_select %p327, %s328, %s329
    %p333 = pneg %p327
    %p334 = scmp.eq.s32.totalorder %s25, 7
    %p335 = por %p333, %p334
    %p336 = scmp.ne.s32.totalorder %s328, %s331
    %p337 = scmp.eq.s32.totalorder %s25, 0
    %p338 = por %p336, %p337
    %p339 = scmp.ne.s32.totalorder %s328, %s331
    %p340 = scmp.eq.s32.totalorder %s30, 7
    %p341 = por %p339, %p340
    %p342 = scmp.ne.s32.totalorder %s331, %s332
    %p343 = scmp.eq.s32.totalorder %s30, 0
    %p344 = por %p342, %p343
    %p345 = scmp.ne.s32.totalorder %s331, %s332
    %p346 = scmp.eq.s32.totalorder %s31, 7
    %p347 = por %p345, %p346
    %p349 = scmp.ne.s32.totalorder %s332, %s348
    %p350 = scmp.eq.s32.totalorder %s31, 0
    %p351 = por %p349, %p350
    %s352 = ssub.s32 %s33, %s40
    %p353 = scmp.eq.s32.totalorder %s352, 0
    %s355 = sadd.s32 %s354, 1
    %s356 = scalar_select %p353, %s354, %s355
    %p359 = pneg %p353
    %p360 = scmp.eq.s32.totalorder %s25, 7
    %p361 = por %p359, %p360
    %p362 = scmp.ne.s32.totalorder %s354, %s357
    %p363 = scmp.eq.s32.totalorder %s25, 0
    %p364 = por %p362, %p363
    %p365 = scmp.ne.s32.totalorder %s354, %s357
    %p366 = scmp.eq.s32.totalorder %s30, 7
    %p367 = por %p365, %p366
    %p368 = scmp.ne.s32.totalorder %s357, %s358
    %p369 = scmp.eq.s32.totalorder %s30, 0
    %p370 = por %p368, %p369
    %p371 = scmp.ne.s32.totalorder %s357, %s358
    %p372 = scmp.eq.s32.totalorder %s31, 7
    %p373 = por %p371, %p372
    %p375 = scmp.ne.s32.totalorder %s358, %s374
    %p376 = scmp.eq.s32.totalorder %s31, 0
    %p377 = por %p375, %p376
    %s378 = ssub.s32 %s33, %s40
    %p379 = scmp.eq.s32.totalorder %s378, 0
    %s381 = sadd.s32 %s380, 1
    %s382 = scalar_select %p379, %s380, %s381
    %p385 = pneg %p379
    %p386 = scmp.eq.s32.totalorder %s25, 7
    %p387 = por %p385, %p386
    %p388 = scmp.ne.s32.totalorder %s380, %s383
    %p389 = scmp.eq.s32.totalorder %s25, 0
    %p390 = por %p388, %p389
    %p391 = scmp.ne.s32.totalorder %s380, %s383
    %p392 = scmp.eq.s32.totalorder %s30, 7
    %p393 = por %p391, %p392
    %p394 = scmp.ne.s32.totalorder %s383, %s384
    %p395 = scmp.eq.s32.totalorder %s30, 0
    %p396 = por %p394, %p395
    %p397 = scmp.ne.s32.totalorder %s383, %s384
    %p398 = scmp.eq.s32.totalorder %s31, 7
    %p399 = por %p397, %p398
    %p401 = scmp.ne.s32.totalorder %s384, %s400
    %p402 = scmp.eq.s32.totalorder %s31, 0
    %p403 = por %p401, %p402
    %s404 = ssub.s32 %s33, %s40
    %p405 = scmp.eq.s32.totalorder %s404, 0
    %s407 = sadd.s32 %s406, 1
    %s408 = scalar_select %p405, %s406, %s407
    %p411 = pneg %p405
    %p412 = scmp.eq.s32.totalorder %s25, 7
    %p413 = por %p411, %p412
    %p414 = scmp.ne.s32.totalorder %s406, %s409
    %p415 = scmp.eq.s32.totalorder %s25, 0
    %p416 = por %p414, %p415
    %p417 = scmp.ne.s32.totalorder %s406, %s409
    %p418 = scmp.eq.s32.totalorder %s30, 7
    %p419 = por %p417, %p418
    %p420 = scmp.ne.s32.totalorder %s409, %s410
    %p421 = scmp.eq.s32.totalorder %s30, 0
    %p422 = por %p420, %p421
    %p423 = scmp.ne.s32.totalorder %s409, %s410
    %p424 = scmp.eq.s32.totalorder %s31, 7
    %p425 = por %p423, %p424
    %p427 = scmp.ne.s32.totalorder %s410, %s426
    %p428 = scmp.eq.s32.totalorder %s31, 0
    %p429 = por %p427, %p428
    %s430 = ssub.s32 %s33, %s40
    %p431 = scmp.eq.s32.totalorder %s430, 0
    %s433 = sadd.s32 %s432, 1
    %s434 = scalar_select %p431, %s432, %s433
    %p437 = pneg %p431
    %p438 = scmp.eq.s32.totalorder %s25, 7
    %p439 = por %p437, %p438
    %p440 = scmp.ne.s32.totalorder %s432, %s435
    %p441 = scmp.eq.s32.totalorder %s25, 0
    %p442 = por %p440, %p441
    %p443 = scmp.ne.s32.totalorder %s432, %s435
    %p444 = scmp.eq.s32.totalorder %s30, 7
    %p445 = por %p443, %p444
    %p446 = scmp.ne.s32.totalorder %s435, %s436
    %p447 = scmp.eq.s32.totalorder %s30, 0
    %p448 = por %p446, %p447
    %p449 = scmp.ne.s32.totalorder %s435, %s436
    %p450 = scmp.eq.s32.totalorder %s31, 7
    %p451 = por %p449, %p450
    %p453 = scmp.ne.s32.totalorder %s436, %s452
    %p454 = scmp.eq.s32.totalorder %s31, 0
    %p455 = por %p453, %p454
    %s456 = ssub.s32 %s33, %s40
    %p457 = scmp.eq.s32.totalorder %s456, 0
    %s459 = sadd.s32 %s458, 1
    %s460 = scalar_select %p457, %s458, %s459
    %p463 = pneg %p457
    %p464 = scmp.eq.s32.totalorder %s25, 7
    %p465 = por %p463, %p464
    %p466 = scmp.ne.s32.totalorder %s458, %s461
    %p467 = scmp.eq.s32.totalorder %s25, 0
    %p468 = por %p466, %p467
    %p469 = scmp.ne.s32.totalorder %s458, %s461
    %p470 = scmp.eq.s32.totalorder %s30, 7
    %p471 = por %p469, %p470
    %p472 = scmp.ne.s32.totalorder %s461, %s462
    %p473 = scmp.eq.s32.totalorder %s30, 0
    %p474 = por %p472, %p473
    %p475 = scmp.ne.s32.totalorder %s461, %s462
    %p476 = scmp.eq.s32.totalorder %s31, 7
    %p477 = por %p475, %p476
    %p479 = scmp.ne.s32.totalorder %s462, %s478
    %p480 = scmp.eq.s32.totalorder %s31, 0
    %p481 = por %p479, %p480
    %s482 = ssub.s32 %s33, %s40
    %p483 = scmp.eq.s32.totalorder %s482, 0
    %s485 = sadd.s32 %s484, 1
    %s486 = scalar_select %p483, %s484, %s485
    %p489 = pneg %p483
    %p490 = scmp.eq.s32.totalorder %s25, 7
    %p491 = por %p489, %p490
    %p492 = scmp.ne.s32.totalorder %s484, %s487
    %p493 = scmp.eq.s32.totalorder %s25, 0
    %p494 = por %p492, %p493
    %p495 = scmp.ne.s32.totalorder %s484, %s487
    %p496 = scmp.eq.s32.totalorder %s30, 7
    %p497 = por %p495, %p496
    %p498 = scmp.ne.s32.totalorder %s487, %s488
    %p499 = scmp.eq.s32.totalorder %s30, 0
    %p500 = por %p498, %p499
    %p501 = scmp.ne.s32.totalorder %s487, %s488
    %p502 = scmp.eq.s32.totalorder %s31, 7
    %p503 = por %p501, %p502
    %p505 = scmp.ne.s32.totalorder %s488, %s504
    %p506 = scmp.eq.s32.totalorder %s31, 0
    %p507 = por %p505, %p506
    %s508 = ssub.s32 %s33, %s40
    %p509 = scmp.eq.s32.totalorder %s508, 0
    %s511 = sadd.s32 %s510, 1
    %s512 = scalar_select %p509, %s510, %s511
    %p515 = pneg %p509
    %p516 = scmp.eq.s32.totalorder %s25, 7
    %p517 = por %p515, %p516
    %p518 = scmp.ne.s32.totalorder %s510, %s513
    %p519 = scmp.eq.s32.totalorder %s25, 0
    %p520 = por %p518, %p519
    %p521 = scmp.ne.s32.totalorder %s510, %s513
    %p522 = scmp.eq.s32.totalorder %s30, 7
    %p523 = por %p521, %p522
    %p524 = scmp.ne.s32.totalorder %s513, %s514
    %p525 = scmp.eq.s32.totalorder %s30, 0
    %p526 = por %p524, %p525
    %p527 = scmp.ne.s32.totalorder %s513, %s514
    %p528 = scmp.eq.s32.totalorder %s31, 7
    %p529 = por %p527, %p528
    %p531 = scmp.ne.s32.totalorder %s514, %s530
    %p532 = scmp.eq.s32.totalorder %s31, 0
    %p533 = por %p531, %p532
    %s534 = ssub.s32 %s32, %s44
    %p535 = scmp.eq.s32.totalorder %s534, 0
    %s537 = sadd.s32 %s536, 1
    %s538 = scalar_select %p535, %s536, %s537
    %p541 = pneg %p535
    %p542 = scmp.eq.s32.totalorder %s25, 7
    %p543 = por %p541, %p542
    %p544 = scmp.ne.s32.totalorder %s536, %s539
    %p545 = scmp.eq.s32.totalorder %s25, 0
    %p546 = por %p544, %p545
    %p547 = scmp.ne.s32.totalorder %s536, %s539
    %p548 = scmp.eq.s32.totalorder %s30, 7
    %p549 = por %p547, %p548
    %p550 = scmp.ne.s32.totalorder %s539, %s540
    %p551 = scmp.eq.s32.totalorder %s30, 0
    %p552 = por %p550, %p551
    %p553 = scmp.ne.s32.totalorder %s539, %s540
    %p554 = scmp.eq.s32.totalorder %s31, 7
    %p555 = por %p553, %p554
    %p557 = scmp.ne.s32.totalorder %s540, %s556
    %p558 = scmp.eq.s32.totalorder %s31, 0
    %p559 = por %p557, %p558
    %p560 = scmp.le.s32.totalorder 1, %s25
    %p561 = scmp.lt.s32.totalorder %s25, 9
    %p562 = pnand %p560, %p561
    %p563 = pneg %p562
    // Predicated region
    $region9: #{transmot_forward.10} parent=5 // pred_check
      _
    $region10: #{transmot_forward.10} parent=5 // pred_check_branch
      %565 = sbr.rel (%p562) target = $region12
    $region11: #{transmot_forward.10} parent=5 // pred_region
      %s566 = ssub.s32 %s25, 1
      // Predicated region
      $region13: #{transmot_forward.10} parent=11 // pred_check
        %p567 = pneg %p84
      $region14: #{transmot_forward.10} parent=11 // pred_check_branch
        %569 = sbr.rel (%p567) target = $region16
      $region15: #{transmot_forward.10} parent=11 // pred_region
        _
      $region16: #{transmot_forward.10} parent=11 // pred_fallthru
        _
    $region12: #{transmot_forward.10} parent=5 // pred_fallthru
      _
    %p570 = scmp.lt.s32.totalorder %s25, 8
    // Predicated region
    $region17: #{transmot_forward.10} parent=5 // pred_check
      %p571 = pneg %p570
    $region18: #{transmot_forward.10} parent=5 // pred_check_branch
      %573 = sbr.rel (%p571) target = $region20
    $region19: #{transmot_forward.10} parent=5 // pred_region
      // Predicated region
      $region21: #{transmot_forward.10} parent=19 // pred_check
        %p574 = pneg %p57
      $region22: #{transmot_forward.10} parent=19 // pred_check_branch
        %576 = sbr.rel (%p574) target = $region24
      $region23: #{transmot_forward.10} parent=19 // pred_region
        %p577 = scmp.lt.s32.totalorder %s32, 3
        %s578 = scalar_select %p577, %s32, 3
        %s579 = smul.addr %s578, 8
        %s580 = scalar_lea.vmem %s0, %s579
      $region24: #{transmot_forward.10} parent=19 // pred_fallthru
        _
      // Predicated region
      $region25: #{transmot_forward.10} parent=19 // pred_check
        %p581 = pneg %p104
      $region26: #{transmot_forward.10} parent=19 // pred_check_branch
        %583 = sbr.rel (%p581) target = $region28
      $region27: #{transmot_forward.10} parent=19 // pred_region
        %p584 = scmp.lt.s32.totalorder %s32, 3
        %s585 = scalar_select %p584, %s32, 3
        %s586 = scalar_lea.vmem %s2, %s585
      $region28: #{transmot_forward.10} parent=19 // pred_fallthru
        _
      // Predicated region
      $region29: #{transmot_forward.10} parent=19 // pred_check
        %p587 = pneg %p130
      $region30: #{transmot_forward.10} parent=19 // pred_check_branch
        %589 = sbr.rel (%p587) target = $region32
      $region31: #{transmot_forward.10} parent=19 // pred_region
        %p590 = scmp.lt.s32.totalorder %s33, 1
        %s591 = scalar_select %p590, %s33, 1
        %s592 = smul.addr %s591, 4
        %s593 = smul.addr %s592, 8
        %s594 = scalar_lea.vmem %s3, %s593
      $region32: #{transmot_forward.10} parent=19 // pred_fallthru
        _
      // Predicated region
      $region33: #{transmot_forward.10} parent=19 // pred_check
        %p595 = pneg %p156
      $region34: #{transmot_forward.10} parent=19 // pred_check_branch
        %597 = sbr.rel (%p595) target = $region36
      $region35: #{transmot_forward.10} parent=19 // pred_region
        %p598 = scmp.lt.s32.totalorder %s33, 1
        %s599 = scalar_select %p598, %s33, 1
        %s600 = scalar_lea.vmem %s4, %s599
      $region36: #{transmot_forward.10} parent=19 // pred_fallthru
        _
      // Predicated region
      $region37: #{transmot_forward.10} parent=19 // pred_check
        %p601 = pneg %p182
      $region38: #{transmot_forward.10} parent=19 // pred_check_branch
        %603 = sbr.rel (%p601) target = $region40
      $region39: #{transmot_forward.10} parent=19 // pred_region
        %p604 = scmp.lt.s32.totalorder %s33, 1
        %s605 = scalar_select %p604, %s33, 1
        %s606 = smul.addr %s605, 4
        %s607 = smul.addr %s606, 8
        %s608 = scalar_lea.vmem %s5, %s607
      $region40: #{transmot_forward.10} parent=19 // pred_fallthru
        _
      // Predicated region
      $region41: #{transmot_forward.10} parent=19 // pred_check
        %p609 = pneg %p208
      $region42: #{transmot_forward.10} parent=19 // pred_check_branch
        %611 = sbr.rel (%p609) target = $region44
      $region43: #{transmot_forward.10} parent=19 // pred_region
        %p612 = scmp.lt.s32.totalorder %s33, 1
        %s613 = scalar_select %p612, %s33, 1
        %s614 = scalar_lea.vmem %s6, %s613
      $region44: #{transmot_forward.10} parent=19 // pred_fallthru
        _
      // Predicated region
      $region45: #{transmot_forward.10} parent=19 // pred_check
        %p615 = pneg %p234
      $region46: #{transmot_forward.10} parent=19 // pred_check_branch
        %617 = sbr.rel (%p615) target = $region48
      $region47: #{transmot_forward.10} parent=19 // pred_region
        %p618 = scmp.lt.s32.totalorder %s33, 1
        %s619 = scalar_select %p618, %s33, 1
        %s620 = smul.addr %s619, 4
        %s621 = smul.addr %s620, 8
        %s622 = scalar_lea.vmem %s7, %s621
      $region48: #{transmot_forward.10} parent=19 // pred_fallthru
        _
      // Predicated region
      $region49: #{transmot_forward.10} parent=19 // pred_check
        %p623 = pneg %p260
      $region50: #{transmot_forward.10} parent=19 // pred_check_branch
        %625 = sbr.rel (%p623) target = $region52
      $region51: #{transmot_forward.10} parent=19 // pred_region
        %p626 = scmp.lt.s32.totalorder %s33, 1
        %s627 = scalar_select %p626, %s33, 1
        %s628 = scalar_lea.vmem %s8, %s627
      $region52: #{transmot_forward.10} parent=19 // pred_fallthru
        _
      // Predicated region
      $region53: #{transmot_forward.10} parent=19 // pred_check
        %p629 = pneg %p286
      $region54: #{transmot_forward.10} parent=19 // pred_check_branch
        %631 = sbr.rel (%p629) target = $region56
      $region55: #{transmot_forward.10} parent=19 // pred_region
        %p632 = scmp.lt.s32.totalorder %s33, 1
        %s633 = scalar_select %p632, %s33, 1
        %s634 = smul.addr %s633, 4
        %s635 = smul.addr %s634, 8
        %s636 = scalar_lea.vmem %s9, %s635
      $region56: #{transmot_forward.10} parent=19 // pred_fallthru
        _
      // Predicated region
      $region57: #{transmot_forward.10} parent=19 // pred_check
        %p637 = pneg %p312
      $region58: #{transmot_forward.10} parent=19 // pred_check_branch
        %639 = sbr.rel (%p637) target = $region60
      $region59: #{transmot_forward.10} parent=19 // pred_region
        %p640 = scmp.lt.s32.totalorder %s33, 1
        %s641 = scalar_select %p640, %s33, 1
        %s642 = scalar_lea.vmem %s10, %s641
      $region60: #{transmot_forward.10} parent=19 // pred_fallthru
        _
      // Predicated region
      $region61: #{transmot_forward.10} parent=19 // pred_check
        %p643 = pneg %p338
      $region62: #{transmot_forward.10} parent=19 // pred_check_branch
        %645 = sbr.rel (%p643) target = $region64
      $region63: #{transmot_forward.10} parent=19 // pred_region
        %p646 = scmp.lt.s32.totalorder %s33, 1
        %s647 = scalar_select %p646, %s33, 1
        %s648 = scalar_lea.vmem %s11, %s647
      $region64: #{transmot_forward.10} parent=19 // pred_fallthru
        _
      // Predicated region
      $region65: #{transmot_forward.10} parent=19 // pred_check
        %p649 = pneg %p364
      $region66: #{transmot_forward.10} parent=19 // pred_check_branch
        %651 = sbr.rel (%p649) target = $region68
      $region67: #{transmot_forward.10} parent=19 // pred_region
        %p652 = scmp.lt.s32.totalorder %s33, 1
        %s653 = scalar_select %p652, %s33, 1
        %s654 = scalar_lea.vmem %s12, %s653
      $region68: #{transmot_forward.10} parent=19 // pred_fallthru
        _
      // Predicated region
      $region69: #{transmot_forward.10} parent=19 // pred_check
        %p655 = pneg %p390
      $region70: #{transmot_forward.10} parent=19 // pred_check_branch
        %657 = sbr.rel (%p655) target = $region72
      $region71: #{transmot_forward.10} parent=19 // pred_region
        %p658 = scmp.lt.s32.totalorder %s33, 1
        %s659 = scalar_select %p658, %s33, 1
        %s660 = smul.addr %s659, 4
        %s661 = smul.addr %s660, 8
        %s662 = scalar_lea.vmem %s13, %s661
      $region72: #{transmot_forward.10} parent=19 // pred_fallthru
        _
      // Predicated region
      $region73: #{transmot_forward.10} parent=19 // pred_check
        %p663 = pneg %p416
      $region74: #{transmot_forward.10} parent=19 // pred_check_branch
        %665 = sbr.rel (%p663) target = $region76
      $region75: #{transmot_forward.10} parent=19 // pred_region
        %p666 = scmp.lt.s32.totalorder %s33, 1
        %s667 = scalar_select %p666, %s33, 1
        %s668 = scalar_lea.vmem %s14, %s667
      $region76: #{transmot_forward.10} parent=19 // pred_fallthru
        _
      // Predicated region
      $region77: #{transmot_forward.10} parent=19 // pred_check
        %p669 = pneg %p442
      $region78: #{transmot_forward.10} parent=19 // pred_check_branch
        %671 = sbr.rel (%p669) target = $region80
      $region79: #{transmot_forward.10} parent=19 // pred_region
        %p672 = scmp.lt.s32.totalorder %s33, 1
        %s673 = scalar_select %p672, %s33, 1
        %s674 = smul.addr %s673, 8
        %s675 = smul.addr %s674, 8
        %s676 = scalar_lea.vmem %s15, %s675
      $region80: #{transmot_forward.10} parent=19 // pred_fallthru
        _
      // Predicated region
      $region81: #{transmot_forward.10} parent=19 // pred_check
        %p677 = pneg %p468
      $region82: #{transmot_forward.10} parent=19 // pred_check_branch
        %679 = sbr.rel (%p677) target = $region84
      $region83: #{transmot_forward.10} parent=19 // pred_region
        %p680 = scmp.lt.s32.totalorder %s33, 1
        %s681 = scalar_select %p680, %s33, 1
        %s682 = scalar_lea.vmem %s16, %s681
      $region84: #{transmot_forward.10} parent=19 // pred_fallthru
        _
      // Predicated region
      $region85: #{transmot_forward.10} parent=19 // pred_check
        %p683 = pneg %p494
      $region86: #{transmot_forward.10} parent=19 // pred_check_branch
        %685 = sbr.rel (%p683) target = $region88
      $region87: #{transmot_forward.10} parent=19 // pred_region
        %p686 = scmp.lt.s32.totalorder %s33, 1
        %s687 = scalar_select %p686, %s33, 1
        %s688 = scalar_lea.vmem %s17, %s687
      $region88: #{transmot_forward.10} parent=19 // pred_fallthru
        _
      // Predicated region
      $region89: #{transmot_forward.10} parent=19 // pred_check
        %p689 = pneg %p520
      $region90: #{transmot_forward.10} parent=19 // pred_check_branch
        %691 = sbr.rel (%p689) target = $region92
      $region91: #{transmot_forward.10} parent=19 // pred_region
        %p692 = scmp.lt.s32.totalorder %s33, 1
        %s693 = scalar_select %p692, %s33, 1
        %s694 = scalar_lea.vmem %s18, %s693
      $region92: #{transmot_forward.10} parent=19 // pred_fallthru
        _
    $region20: #{transmot_forward.10} parent=5 // pred_fallthru
      _
    %p695 = scmp.le.s32.totalorder 1, %s25
    %p696 = scmp.lt.s32.totalorder %s25, 9
    %p697 = pnand %p695, %p696
    %p698 = pneg %p697
    // Predicated region
    $region93: #{transmot_forward.10} parent=5 // pred_check
      _
    $region94: #{transmot_forward.10} parent=5 // pred_check_branch
      %700 = sbr.rel (%p697) target = $region96
    $region95: #{transmot_forward.10} parent=5 // pred_region
      %s701 = ssub.s32 %s25, 1
      %p702 = scmp.lt.s32.totalorder %s34, 3
      %s703 = scalar_select %p702, %s34, 3
      %s704 = smul.addr %s703, 8
      %s705 = scalar_lea.vmem %s0, %s704
      %p706 = pneg %p63
      %p707 = pneg %p60
      %p708 = pneg %p84
      %p709 = pneg %p81
      %p710 = scmp.lt.s32.totalorder %s34, 3
      %s711 = scalar_select %p710, %s34, 3
      %s712 = scalar_lea.vmem %s2, %s711
      %p713 = pneg %p110
      %p714 = pneg %p107
      %p715 = scmp.lt.s32.totalorder %s35, 1
      %s716 = scalar_select %p715, %s35, 1
      %s717 = smul.addr %s716, 4
      %s718 = smul.addr %s717, 8
      %s719 = scalar_lea.vmem %s3, %s718
      %p720 = pneg %p136
      %p721 = pneg %p133
      %p722 = scmp.lt.s32.totalorder %s35, 1
      %s723 = scalar_select %p722, %s35, 1
      %s724 = scalar_lea.vmem %s4, %s723
      %p725 = pneg %p162
      %p726 = pneg %p159
      %p727 = scmp.lt.s32.totalorder %s35, 1
      %s728 = scalar_select %p727, %s35, 1
      %s729 = smul.addr %s728, 4
      %s730 = smul.addr %s729, 8
      %s731 = scalar_lea.vmem %s5, %s730
      %p732 = pneg %p188
      %p733 = pneg %p185
      %p734 = scmp.lt.s32.totalorder %s35, 1
      %s735 = scalar_select %p734, %s35, 1
      %s736 = scalar_lea.vmem %s6, %s735
      %p737 = pneg %p214
      %p738 = pneg %p211
      %p739 = scmp.lt.s32.totalorder %s35, 1
      %s740 = scalar_select %p739, %s35, 1
      %s741 = smul.addr %s740, 4
      %s742 = smul.addr %s741, 8
      %s743 = scalar_lea.vmem %s7, %s742
      %p744 = pneg %p240
      %p745 = pneg %p237
      %p746 = scmp.lt.s32.totalorder %s35, 1
      %s747 = scalar_select %p746, %s35, 1
      %s748 = scalar_lea.vmem %s8, %s747
      %p749 = pneg %p266
      %p750 = pneg %p263
      %p751 = scmp.lt.s32.totalorder %s35, 1
      %s752 = scalar_select %p751, %s35, 1
      %s753 = smul.addr %s752, 4
      %s754 = smul.addr %s753, 8
      %s755 = scalar_lea.vmem %s9, %s754
      %p756 = pneg %p292
      %p757 = pneg %p289
      %p758 = scmp.lt.s32.totalorder %s35, 1
      %s759 = scalar_select %p758, %s35, 1
      %s760 = scalar_lea.vmem %s10, %s759
      %p761 = pneg %p318
      %p762 = pneg %p315
      %p763 = scmp.lt.s32.totalorder %s35, 1
      %s764 = scalar_select %p763, %s35, 1
      %s765 = scalar_lea.vmem %s11, %s764
      %p766 = pneg %p344
      %p767 = pneg %p341
      %p768 = scmp.lt.s32.totalorder %s35, 1
      %s769 = scalar_select %p768, %s35, 1
      %s770 = scalar_lea.vmem %s12, %s769
      %p771 = pneg %p370
      %p772 = pneg %p367
      %p773 = scmp.lt.s32.totalorder %s35, 1
      %s774 = scalar_select %p773, %s35, 1
      %s775 = smul.addr %s774, 4
      %s776 = smul.addr %s775, 8
      %s777 = scalar_lea.vmem %s13, %s776
      %p778 = pneg %p396
      %p779 = pneg %p393
      %p780 = scmp.lt.s32.totalorder %s35, 1
      %s781 = scalar_select %p780, %s35, 1
      %s782 = scalar_lea.vmem %s14, %s781
      %p783 = pneg %p422
      %p784 = pneg %p419
      %p785 = scmp.lt.s32.totalorder %s35, 1
      %s786 = scalar_select %p785, %s35, 1
      %s787 = smul.addr %s786, 8
      %s788 = smul.addr %s787, 8
      %s789 = scalar_lea.vmem %s15, %s788
      %p790 = pneg %p448
      %p791 = pneg %p445
      %p792 = scmp.lt.s32.totalorder %s35, 1
      %s793 = scalar_select %p792, %s35, 1
      %s794 = scalar_lea.vmem %s16, %s793
      %p795 = pneg %p474
      %p796 = pneg %p471
      %p797 = scmp.lt.s32.totalorder %s35, 1
      %s798 = scalar_select %p797, %s35, 1
      %s799 = scalar_lea.vmem %s17, %s798
      %p800 = pneg %p500
      %p801 = pneg %p497
      %p802 = scmp.lt.s32.totalorder %s35, 1
      %s803 = scalar_select %p802, %s35, 1
      %s804 = scalar_lea.vmem %s18, %s803
      %p805 = pneg %p526
      %p806 = pneg %p523
      %p807 = pneg %p552
      %p808 = pneg %p549
      %p809 = scmp.lt.s32.totalorder %s34, 3
      %s810 = scalar_select %p809, %s34, 3
      %s811 = smul.addr %s810, 8
      %s812 = scalar_lea.vmem %s19, %s811
      %p813 = scmp.lt.s32.totalorder %s34, 3
      %s814 = scalar_select %p813, %s34, 3
      %s815 = smul.addr %s814, 8
      %s816 = scalar_lea.vmem %s0, %s815
      %p817 = scmp.lt.s32.totalorder %s34, 3
      %s818 = scalar_select %p817, %s34, 3
      %s819 = scalar_lea.vmem %s2, %s818
      %p820 = scmp.lt.s32.totalorder %s35, 1
      %s821 = scalar_select %p820, %s35, 1
      %s822 = smul.addr %s821, 4
      %s823 = smul.addr %s822, 8
      %s824 = scalar_lea.vmem %s3, %s823
      %p825 = scmp.lt.s32.totalorder %s35, 1
      %s826 = scalar_select %p825, %s35, 1
      %s827 = scalar_lea.vmem %s4, %s826
      %p828 = scmp.lt.s32.totalorder %s35, 1
      %s829 = scalar_select %p828, %s35, 1
      %s830 = smul.addr %s829, 4
      %s831 = smul.addr %s830, 8
      %s832 = scalar_lea.vmem %s5, %s831
      %p833 = scmp.lt.s32.totalorder %s35, 1
      %s834 = scalar_select %p833, %s35, 1
      %s835 = scalar_lea.vmem %s6, %s834
      %p836 = scmp.lt.s32.totalorder %s35, 1
      %s837 = scalar_select %p836, %s35, 1
      %s838 = smul.addr %s837, 4
      %s839 = smul.addr %s838, 8
      %s840 = scalar_lea.vmem %s7, %s839
      %p841 = scmp.lt.s32.totalorder %s35, 1
      %s842 = scalar_select %p841, %s35, 1
      %s843 = scalar_lea.vmem %s8, %s842
      %p844 = scmp.lt.s32.totalorder %s35, 1
      %s845 = scalar_select %p844, %s35, 1
      %s846 = smul.addr %s845, 4
      %s847 = smul.addr %s846, 8
      %s848 = scalar_lea.vmem %s9, %s847
      %p849 = scmp.lt.s32.totalorder %s35, 1
      %s850 = scalar_select %p849, %s35, 1
      %s851 = scalar_lea.vmem %s10, %s850
      %p852 = scmp.lt.s32.totalorder %s35, 1
      %s853 = scalar_select %p852, %s35, 1
      %s854 = scalar_lea.vmem %s11, %s853
      %p855 = scmp.lt.s32.totalorder %s35, 1
      %s856 = scalar_select %p855, %s35, 1
      %s857 = scalar_lea.vmem %s12, %s856
      %p858 = scmp.lt.s32.totalorder %s35, 1
      %s859 = scalar_select %p858, %s35, 1
      %s860 = smul.addr %s859, 4
      %s861 = smul.addr %s860, 8
      %s862 = scalar_lea.vmem %s13, %s861
      %p863 = scmp.lt.s32.totalorder %s35, 1
      %s864 = scalar_select %p863, %s35, 1
      %s865 = scalar_lea.vmem %s14, %s864
      %p866 = scmp.lt.s32.totalorder %s35, 1
      %s867 = scalar_select %p866, %s35, 1
      %s868 = smul.addr %s867, 8
      %s869 = smul.addr %s868, 8
      %s870 = scalar_lea.vmem %s15, %s869
      %p871 = scmp.lt.s32.totalorder %s35, 1
      %s872 = scalar_select %p871, %s35, 1
      %s873 = scalar_lea.vmem %s16, %s872
      %p874 = scmp.lt.s32.totalorder %s35, 1
      %s875 = scalar_select %p874, %s35, 1
      %s876 = scalar_lea.vmem %s17, %s875
      %p877 = scmp.lt.s32.totalorder %s35, 1
      %s878 = scalar_select %p877, %s35, 1
      %s879 = scalar_lea.vmem %s18, %s878
      %p880 = scmp.lt.s32.totalorder %s34, 3
      %s881 = scalar_select %p880, %s34, 3
      %s882 = smul.addr %s881, 8
      %s883 = scalar_lea.vmem %s19, %s882
      %p884 = scmp.eq.s32.totalorder %s35, 0
      // Predicated region
      $region97: #{transmot_forward.10} parent=95 // pred_check
        %p885 = pneg %p884
      $region98: #{transmot_forward.10} parent=95 // pred_check_branch
        %887 = sbr.rel (%p885) target = $region100
      $region99: #{transmot_forward.10} parent=95 // pred_region
        %v888 = vld [vmem:[%s816] sm:$0xff]
        %vm889 = vcmask 261120
        %890 = vst.msk [vmem:[%s883] sm:$0xff] %vm889, %v888
      $region100: #{transmot_forward.10} parent=95 // pred_fallthru
        _
      %v891 = vld [vmem:[%s883] sm:$0xff]
      %v892 = vld [vmem:[%s1] sm:$0xff]
      %v893 = vld [vmem:[%s819] sm:$0x1]
      %v895 = vperm.slane %v893, 0
      %v897 = vadd.f32 %v892, %v895
      %v898 = vld [vmem:[%s824] sm:$0xff]
      %v899 = vld [vmem:[%s824 + $0x8] sm:$0xff]
      %v900 = vld [vmem:[%s824 + $0x10] sm:$0xff]
      %v901 = vld [vmem:[%s824 + $0x18] sm:$0xff]
      %v902 = vld [vmem:[%s827] sm:$0x1]
      %v903 = vld [vmem:[%s832] sm:$0xff]
      %v904 = vld [vmem:[%s832 + $0x8] sm:$0xff]
      %v905 = vld [vmem:[%s832 + $0x10] sm:$0xff]
      %v906 = vld [vmem:[%s832 + $0x18] sm:$0xff]
      %v907 = vld [vmem:[%s835] sm:$0x1]
      %v908 = vld [vmem:[%s840] sm:$0xff]
      %v909 = vld [vmem:[%s840 + $0x8] sm:$0xff]
      %v910 = vld [vmem:[%s840 + $0x10] sm:$0xff]
      %v911 = vld [vmem:[%s840 + $0x18] sm:$0xff]
      %v912 = vld [vmem:[%s843] sm:$0x1]
      %v913 = vld [vmem:[%s848] sm:$0xff]
      %v914 = vld [vmem:[%s848 + $0x8] sm:$0xff]
      %v915 = vld [vmem:[%s848 + $0x10] sm:$0xff]
      %v916 = vld [vmem:[%s848 + $0x18] sm:$0xff]
      %v917 = vld [vmem:[%s851] sm:$0x1]
      %v919 = vperm.slane %v902, 0
      %vm921 = vcmask 261120
      %v923 = vsel %vm921, %v891, 0
      %925 = vmatpush.msra.mxu0 0.0
      %926 = vmatpush.msra.mxu0 0.0
      %927 = vmatpush.msra.mxu0 0.0
      %928 = vmatpush.msra.mxu0 0.0
      %929 = vmatpush.msra.mxu0 0.0
      %930 = vmatpush.msra.mxu0 0.0
      %931 = vmatpush.msra.mxu0 0.0
      %932 = vmatpush.msra.mxu0 0.0
      %933 = vmatpush.msra.mxu0 0.0
      %934 = vmatpush.msra.mxu0 0.0
      %935 = vmatpush.msra.mxu0 0.0
      %936 = vmatpush.msra.mxu0 0.0
      %937 = vmatpush.msra.mxu0 %v901
      %938 = vmatpush.msra.mxu0 %v900
      %939 = vmatpush.msra.mxu0 %v899
      %940 = vmatpush.msra.mxu0 %v898
      %941 = vmatmul.f32.gmra.mxu0 %v923
      %v942 = vpop.f32.mrf.mxu0
      %v943 = vadd.f32 %v919, %v942
      %944 = vdwg.mxu0
      %v945 = vmul.f32 %v943, 0.35355338
      %v947 = vperm.slane %v907, 0
      %949 = vmatpush.msra.mxu0 0.0
      %950 = vmatpush.msra.mxu0 0.0
      %951 = vmatpush.msra.mxu0 0.0
      %952 = vmatpush.msra.mxu0 0.0
      %953 = vmatpush.msra.mxu0 0.0
      %954 = vmatpush.msra.mxu0 0.0
      %955 = vmatpush.msra.mxu0 0.0
      %956 = vmatpush.msra.mxu0 0.0
      %957 = vmatpush.msra.mxu0 0.0
      %958 = vmatpush.msra.mxu0 0.0
      %959 = vmatpush.msra.mxu0 0.0
      %960 = vmatpush.msra.mxu0 0.0
      %961 = vmatpush.msra.mxu0 %v906
      %962 = vmatpush.msra.mxu0 %v905
      %963 = vmatpush.msra.mxu0 %v904
      %964 = vmatpush.msra.mxu0 %v903
      %965 = vmatmul.f32.gmra.mxu0 %v923
      %v966 = vpop.f32.mrf.mxu0
      %v967 = vadd.f32 %v947, %v966
      %968 = vdwg.mxu0
      %v970 = vperm.slane %v912, 0
      %972 = vmatpush.msra.mxu0 0.0
      %973 = vmatpush.msra.mxu0 0.0
      %974 = vmatpush.msra.mxu0 0.0
      %975 = vmatpush.msra.mxu0 0.0
      %976 = vmatpush.msra.mxu0 0.0
      %977 = vmatpush.msra.mxu0 0.0
      %978 = vmatpush.msra.mxu0 0.0
      %979 = vmatpush.msra.mxu0 0.0
      %980 = vmatpush.msra.mxu0 0.0
      %981 = vmatpush.msra.mxu0 0.0
      %982 = vmatpush.msra.mxu0 0.0
      %983 = vmatpush.msra.mxu0 0.0
      %984 = vmatpush.msra.mxu0 %v911
      %985 = vmatpush.msra.mxu0 %v910
      %986 = vmatpush.msra.mxu0 %v909
      %987 = vmatpush.msra.mxu0 %v908
      %988 = vmatmul.f32.gmra.mxu0 %v923
      %v989 = vpop.f32.mrf.mxu0
      %v990 = vadd.f32 %v970, %v989
      %991 = vdwg.mxu0
      %vm992 = vcmask 64512
      %v994 = vsel %vm992, %v945, 0
      %v997 = vsel %vm992, %v967, 0
      %999 = vmatpush.xpose.msra.mxu0 0.0
      %1000 = vmatpush.xpose.msra.mxu0 0.0
      %1001 = vmatpush.xpose.msra.mxu0 0.0
      %1002 = vmatpush.xpose.msra.mxu0 0.0
      %1003 = vmatpush.xpose.msra.mxu0 0.0
      %1004 = vmatpush.xpose.msra.mxu0 0.0
      %1005 = vmatpush.xpose.msra.mxu0 0.0
      %1006 = vmatpush.xpose.msra.mxu0 0.0
      %1007 = vmatpush.xpose.msra.mxu0 0.0
      %1008 = vmatpush.xpose.msra.mxu0 0.0
      %1009 = vmatpush.xpose.msra.mxu0 0.0
      %1010 = vmatpush.xpose.msra.mxu0 0.0
      %1011 = vmatpush.xpose.msra.mxu0 0.0
      %1012 = vmatpush.xpose.msra.mxu0 0.0
      %1013 = vmatpush.xpose.msra.mxu0 0.0
      %1014 = vmatpush.xpose.msra.mxu0 %v997
      %1015 = vmatmul.f32.gmra.mxu0 %v994
      %v1016 = vpop.f32.mrf.mxu0
      %v1017 = vadd.f32 %v897, %v1016
      %1018 = vdwg.mxu0
      %v1019 = vsel %vm992, %v1017, -inf
      %1020 = vmax.xlane.f32.xlu0 %v1019
      %v1021 = vpop.xlane.xlu0 %1020
      %v1022 = vsub.f32 %v1017, %v1021
      %v1023 = vmul.f32 %v1022, 1.442695
      %v1024 = vpow.pop %v1023
      %v1025 = vsel %vm992, %v1024, 0.0
      %1026 = vadd.xlane.f32.xlu0 %v1025
      %v1027 = vpop.xlane.xlu0 %1026
      %v1028 = vrcp.pop %v1027
      %v1029 = vmul.f32 %v1024, %v1028
      %v1031 = vsel %vm992, %v1029, 0
      %1033 = vmatpush.msra.mxu0 0.0
      %1034 = vmatpush.msra.mxu0 0.0
      %1035 = vmatpush.msra.mxu0 0.0
      %1036 = vmatpush.msra.mxu0 0.0
      %1037 = vmatpush.msra.mxu0 0.0
      %1038 = vmatpush.msra.mxu0 0.0
      %1039 = vmatpush.msra.mxu0 0.0
      %1040 = vmatpush.msra.mxu0 0.0
      %1041 = vmatpush.msra.mxu0 0.0
      %1042 = vmatpush.msra.mxu0 0.0
      %1043 = vmatpush.msra.mxu0 0.0
      %1044 = vmatpush.msra.mxu0 0.0
      %1045 = vmatpush.msra.mxu0 0.0
      %1046 = vmatpush.msra.mxu0 0.0
      %1047 = vmatpush.msra.mxu0 0.0
      %1048 = vmatpush.msra.mxu0 %v990
      %1049 = vmatmul.f32.gmra.mxu0 %v1031
      %v1050 = vpop.f32.mrf.mxu0
      %v1051 = vadd.f32 0.0, %v1050
      %1052 = vdwg.mxu0
      %1053 = vrot.lane.b32.xlu0 %v945, 120
      %v1054 = vpop.permute.xlu0 %1053
      %1055 = vrot.lane.b32.xlu0 %v967, 120
      %v1056 = vpop.permute.xlu0 %1055
      %v1057 = vsel %vm992, %v1054, 0
      %v1059 = vsel %vm992, %v1056, 0
      %1061 = vmatpush.xpose.msra.mxu0 0.0
      %1062 = vmatpush.xpose.msra.mxu0 0.0
      %1063 = vmatpush.xpose.msra.mxu0 0.0
      %1064 = vmatpush.xpose.msra.mxu0 0.0
      %1065 = vmatpush.xpose.msra.mxu0 0.0
      %1066 = vmatpush.xpose.msra.mxu0 0.0
      %1067 = vmatpush.xpose.msra.mxu0 0.0
      %1068 = vmatpush.xpose.msra.mxu0 0.0
      %1069 = vmatpush.xpose.msra.mxu0 0.0
      %1070 = vmatpush.xpose.msra.mxu0 0.0
      %1071 = vmatpush.xpose.msra.mxu0 0.0
      %1072 = vmatpush.xpose.msra.mxu0 0.0
      %1073 = vmatpush.xpose.msra.mxu0 0.0
      %1074 = vmatpush.xpose.msra.mxu0 0.0
      %1075 = vmatpush.xpose.msra.mxu0 0.0
      %1076 = vmatpush.xpose.msra.mxu0 %v1059
      %1077 = vmatmul.f32.gmra.mxu0 %v1057
      %v1078 = vpop.f32.mrf.mxu0
      %v1079 = vadd.f32 %v897, %v1078
      %1080 = vdwg.mxu0
      %v1081 = vsel %vm992, %v1079, -inf
      %1082 = vmax.xlane.f32.xlu0 %v1081
      %v1083 = vpop.xlane.xlu0 %1082
      %v1084 = vsub.f32 %v1079, %v1083
      %v1085 = vmul.f32 %v1084, 1.442695
      %v1086 = vpow.pop %v1085
      %v1087 = vsel %vm992, %v1086, 0.0
      %1088 = vadd.xlane.f32.xlu0 %v1087
      %v1089 = vpop.xlane.xlu0 %1088
      %v1090 = vrcp.pop %v1089
      %v1091 = vmul.f32 %v1086, %v1090
      %1093 = vrot.lane.b32.xlu0 %v990, 120
      %v1094 = vpop.permute.xlu0 %1093
      %v1097 = vsel %vm992, %v1091, 0
      %1099 = vmatpush.msra.mxu0 0.0
      %1100 = vmatpush.msra.mxu0 0.0
      %1101 = vmatpush.msra.mxu0 0.0
      %1102 = vmatpush.msra.mxu0 0.0
      %1103 = vmatpush.msra.mxu0 0.0
      %1104 = vmatpush.msra.mxu0 0.0
      %1105 = vmatpush.msra.mxu0 0.0
      %1106 = vmatpush.msra.mxu0 0.0
      %1107 = vmatpush.msra.mxu0 0.0
      %1108 = vmatpush.msra.mxu0 0.0
      %1109 = vmatpush.msra.mxu0 0.0
      %1110 = vmatpush.msra.mxu0 0.0
      %1111 = vmatpush.msra.mxu0 0.0
      %1112 = vmatpush.msra.mxu0 0.0
      %1113 = vmatpush.msra.mxu0 0.0
      %1114 = vmatpush.msra.mxu0 %v1094
      %1115 = vmatmul.f32.gmra.mxu0 %v1097
      %v1116 = vpop.f32.mrf.mxu0
      %v1117 = vadd.f32 0.0, %v1116
      %1118 = vdwg.mxu0
      %1119 = vrot.lane.b32.xlu0 %v945, 112
      %v1120 = vpop.permute.xlu0 %1119
      %1121 = vrot.lane.b32.xlu0 %v967, 112
      %v1122 = vpop.permute.xlu0 %1121
      %v1123 = vsel %vm992, %v1120, 0
      %v1125 = vsel %vm992, %v1122, 0
      %1127 = vmatpush.xpose.msra.mxu0 0.0
      %1128 = vmatpush.xpose.msra.mxu0 0.0
      %1129 = vmatpush.xpose.msra.mxu0 0.0
      %1130 = vmatpush.xpose.msra.mxu0 0.0
      %1131 = vmatpush.xpose.msra.mxu0 0.0
      %1132 = vmatpush.xpose.msra.mxu0 0.0
      %1133 = vmatpush.xpose.msra.mxu0 0.0
      %1134 = vmatpush.xpose.msra.mxu0 0.0
      %1135 = vmatpush.xpose.msra.mxu0 0.0
      %1136 = vmatpush.xpose.msra.mxu0 0.0
      %1137 = vmatpush.xpose.msra.mxu0 0.0
      %1138 = vmatpush.xpose.msra.mxu0 0.0
      %1139 = vmatpush.xpose.msra.mxu0 0.0
      %1140 = vmatpush.xpose.msra.mxu0 0.0
      %1141 = vmatpush.xpose.msra.mxu0 0.0
      %1142 = vmatpush.xpose.msra.mxu0 %v1125
      %1143 = vmatmul.f32.gmra.mxu0 %v1123
      %v1144 = vpop.f32.mrf.mxu0
      %v1145 = vadd.f32 %v897, %v1144
      %1146 = vdwg.mxu0
      %v1147 = vsel %vm992, %v1145, -inf
      %1148 = vmax.xlane.f32.xlu0 %v1147
      %v1149 = vpop.xlane.xlu0 %1148
      %v1150 = vsub.f32 %v1145, %v1149
      %v1151 = vmul.f32 %v1150, 1.442695
      %v1152 = vpow.pop %v1151
      %v1153 = vsel %vm992, %v1152, 0.0
      %1154 = vadd.xlane.f32.xlu0 %v1153
      %v1155 = vpop.xlane.xlu0 %1154
      %v1156 = vrcp.pop %v1155
      %v1157 = vmul.f32 %v1152, %v1156
      %1158 = vrot.lane.b32.xlu0 %v990, 112
      %v1159 = vpop.permute.xlu0 %1158
      %v1162 = vsel %vm992, %v1157, 0
      %1164 = vmatpush.msra.mxu0 0.0
      %1165 = vmatpush.msra.mxu0 0.0
      %1166 = vmatpush.msra.mxu0 0.0
      %1167 = vmatpush.msra.mxu0 0.0
      %1168 = vmatpush.msra.mxu0 0.0
      %1169 = vmatpush.msra.mxu0 0.0
      %1170 = vmatpush.msra.mxu0 0.0
      %1171 = vmatpush.msra.mxu0 0.0
      %1172 = vmatpush.msra.mxu0 0.0
      %1173 = vmatpush.msra.mxu0 0.0
      %1174 = vmatpush.msra.mxu0 0.0
      %1175 = vmatpush.msra.mxu0 0.0
      %1176 = vmatpush.msra.mxu0 0.0
      %1177 = vmatpush.msra.mxu0 0.0
      %1178 = vmatpush.msra.mxu0 0.0
      %1179 = vmatpush.msra.mxu0 %v1159
      %1180 = vmatmul.f32.gmra.mxu0 %v1162
      %v1181 = vpop.f32.mrf.mxu0
      %v1182 = vadd.f32 0.0, %v1181
      %1183 = vdwg.mxu0
      %1184 = vrot.lane.b32.xlu0 %v945, 104
      %v1185 = vpop.permute.xlu0 %1184
      %1186 = vrot.lane.b32.xlu0 %v967, 104
      %v1187 = vpop.permute.xlu0 %1186
      %v1188 = vsel %vm992, %v1185, 0
      %v1190 = vsel %vm992, %v1187, 0
      %1192 = vmatpush.xpose.msra.mxu0 0.0
      %1193 = vmatpush.xpose.msra.mxu0 0.0
      %1194 = vmatpush.xpose.msra.mxu0 0.0
      %1195 = vmatpush.xpose.msra.mxu0 0.0
      %1196 = vmatpush.xpose.msra.mxu0 0.0
      %1197 = vmatpush.xpose.msra.mxu0 0.0
      %1198 = vmatpush.xpose.msra.mxu0 0.0
      %1199 = vmatpush.xpose.msra.mxu0 0.0
      %1200 = vmatpush.xpose.msra.mxu0 0.0
      %1201 = vmatpush.xpose.msra.mxu0 0.0
      %1202 = vmatpush.xpose.msra.mxu0 0.0
      %1203 = vmatpush.xpose.msra.mxu0 0.0
      %1204 = vmatpush.xpose.msra.mxu0 0.0
      %1205 = vmatpush.xpose.msra.mxu0 0.0
      %1206 = vmatpush.xpose.msra.mxu0 0.0
      %1207 = vmatpush.xpose.msra.mxu0 %v1190
      %1208 = vmatmul.f32.gmra.mxu0 %v1188
      %v1209 = vpop.f32.mrf.mxu0
      %v1210 = vadd.f32 %v897, %v1209
      %1211 = vdwg.mxu0
      %v1212 = vsel %vm992, %v1210, -inf
      %1213 = vmax.xlane.f32.xlu0 %v1212
      %v1214 = vpop.xlane.xlu0 %1213
      %v1215 = vsub.f32 %v1210, %v1214
      %v1216 = vmul.f32 %v1215, 1.442695
      %v1217 = vpow.pop %v1216
      %v1218 = vsel %vm992, %v1217, 0.0
      %1219 = vadd.xlane.f32.xlu0 %v1218
      %v1220 = vpop.xlane.xlu0 %1219
      %v1221 = vrcp.pop %v1220
      %v1222 = vmul.f32 %v1217, %v1221
      %1223 = vrot.lane.b32.xlu0 %v990, 104
      %v1224 = vpop.permute.xlu0 %1223
      %v1227 = vsel %vm992, %v1222, 0
      %1229 = vmatpush.msra.mxu0 0.0
      %1230 = vmatpush.msra.mxu0 0.0
      %1231 = vmatpush.msra.mxu0 0.0
      %1232 = vmatpush.msra.mxu0 0.0
      %1233 = vmatpush.msra.mxu0 0.0
      %1234 = vmatpush.msra.mxu0 0.0
      %1235 = vmatpush.msra.mxu0 0.0
      %1236 = vmatpush.msra.mxu0 0.0
      %1237 = vmatpush.msra.mxu0 0.0
      %1238 = vmatpush.msra.mxu0 0.0
      %1239 = vmatpush.msra.mxu0 0.0
      %1240 = vmatpush.msra.mxu0 0.0
      %1241 = vmatpush.msra.mxu0 0.0
      %1242 = vmatpush.msra.mxu0 0.0
      %1243 = vmatpush.msra.mxu0 0.0
      %1244 = vmatpush.msra.mxu0 %v1224
      %1245 = vmatmul.f32.gmra.mxu0 %v1227
      %v1246 = vpop.f32.mrf.mxu0
      %v1247 = vadd.f32 0.0, %v1246
      %1248 = vdwg.mxu0
      %1250 = vrot.lane.b32.xlu0 %v1117, 8
      %v1251 = vpop.permute.xlu0 %1250
      %1254 = vrot.lane.b32.xlu0 %v1182, 16
      %v1255 = vpop.permute.xlu0 %1254
      %1258 = vrot.lane.b32.xlu0 %v1247, 24
      %v1259 = vpop.permute.xlu0 %1258
      %v1261 = vsel %vm992, %v1051, %v1251
      %vm1262 = vcmask 130048
      %v1263 = vsel %vm1262, %v1261, %v1255
      %vm1264 = vcmask 195584
      %v1265 = vsel %vm1264, %v1263, %v1259
      %v1267 = vperm.slane %v917, 0
      %v1270 = vsel %vm921, %v1265, 0
      %1272 = vmatpush.msra.mxu0 0.0
      %1273 = vmatpush.msra.mxu0 0.0
      %1274 = vmatpush.msra.mxu0 0.0
      %1275 = vmatpush.msra.mxu0 0.0
      %1276 = vmatpush.msra.mxu0 0.0
      %1277 = vmatpush.msra.mxu0 0.0
      %1278 = vmatpush.msra.mxu0 0.0
      %1279 = vmatpush.msra.mxu0 0.0
      %1280 = vmatpush.msra.mxu0 0.0
      %1281 = vmatpush.msra.mxu0 0.0
      %1282 = vmatpush.msra.mxu0 0.0
      %1283 = vmatpush.msra.mxu0 0.0
      %1284 = vmatpush.msra.mxu0 %v916
      %1285 = vmatpush.msra.mxu0 %v915
      %1286 = vmatpush.msra.mxu0 %v914
      %1287 = vmatpush.msra.mxu0 %v913
      %1288 = vmatmul.f32.gmra.mxu0 %v1270
      %v1289 = vpop.f32.mrf.mxu0
      %v1290 = vadd.f32 %v1267, %v1289
      %1291 = vdwg.mxu0
      %v1292 = vadd.f32 %v891, %v1290
      %v1293 = vld [vmem:[%s854] sm:$0x1]
      %v1294 = vld [vmem:[%s857] sm:$0x1]
      %v1295 = vsel %vm921, %v1292, 0.0
      %1296 = vadd.xlane.f32.xlu0 %v1295
      %v1297 = vpop.xlane.xlu0 %1296
      %v1298 = vrcp.pop 32.0
      %v1299 = vmul.f32 32.0, %v1298
      %v1300 = vsub.f32 1.0, %v1299
      %v1301 = vmul.f32 %v1298, %v1300
      %v1302 = vadd.f32 %v1298, %v1301
      %vm1303 = vweird.f32 %v1298
      %v1304 = vsel %vm1303, %v1298, %v1302
      %v1305 = vmul.f32 %v1297, %v1304
      %v1306 = vsub.f32 %v1292, %v1305
      %v1307 = vmul.f32 %v1306, %v1306
      %v1308 = vsel %vm921, %v1307, 0.0
      %1309 = vadd.xlane.f32.xlu0 %v1308
      %v1310 = vpop.xlane.xlu0 %1309
      %v1311 = vmul.f32 %v1310, %v1304
      %v1312 = vadd.f32 %v1311, 1e-05
      %v1313 = vrsqrt.pop %v1312
      %v1314 = vmul.f32 %v1313, %v1312
      %v1315 = vmul.f32 %v1314, %v1313
      %v1316 = vmul.f32 0.5, %v1315
      %v1317 = vsub.f32 1.5, %v1316
      %v1318 = vmul.f32 %v1313, %v1317
      %vm1319 = vweird.f32 %v1312
      %vm1320 = vweird.f32 %v1313
      %vm1321 = vmor %vm1319, %vm1320
      %v1322 = vsel %vm1321, %v1313, %v1318
      %v1323 = vmul.f32 %v1306, %v1322
      %v1325 = vperm.slane %v1293, 0
      %v1327 = vmul.f32 %v1323, %v1325
      %v1329 = vperm.slane %v1294, 0
      %v1331 = vadd.f32 %v1327, %v1329
      %v1332 = vld [vmem:[%s862] sm:$0xff]
      %v1333 = vld [vmem:[%s862 + $0x8] sm:$0xff]
      %v1334 = vld [vmem:[%s862 + $0x10] sm:$0xff]
      %v1335 = vld [vmem:[%s862 + $0x18] sm:$0xff]
      %v1336 = vld [vmem:[%s865] sm:$0x1]
      %v1337 = vld [vmem:[%s870] sm:$0xff]
      %v1338 = vld [vmem:[%s870 + $0x8] sm:$0xff]
      %v1339 = vld [vmem:[%s870 + $0x10] sm:$0xff]
      %v1340 = vld [vmem:[%s870 + $0x18] sm:$0xff]
      %v1341 = vld [vmem:[%s870 + $0x20] sm:$0xff]
      %v1342 = vld [vmem:[%s870 + $0x28] sm:$0xff]
      %v1343 = vld [vmem:[%s870 + $0x30] sm:$0xff]
      %v1344 = vld [vmem:[%s870 + $0x38] sm:$0xff]
      %v1345 = vld [vmem:[%s873] sm:$0x1]
      %v1347 = vperm.slane %v1336, 0
      %v1350 = vsel %vm921, %v1331, 0
      %1352 = vmatpush.msra.mxu0 0.0
      %1353 = vmatpush.msra.mxu0 0.0
      %1354 = vmatpush.msra.mxu0 0.0
      %1355 = vmatpush.msra.mxu0 0.0
      %1356 = vmatpush.msra.mxu0 0.0
      %1357 = vmatpush.msra.mxu0 0.0
      %1358 = vmatpush.msra.mxu0 0.0
      %1359 = vmatpush.msra.mxu0 0.0
      %1360 = vmatpush.msra.mxu0 0.0
      %1361 = vmatpush.msra.mxu0 0.0
      %1362 = vmatpush.msra.mxu0 0.0
      %1363 = vmatpush.msra.mxu0 0.0
      %1364 = vmatpush.msra.mxu0 %v1335
      %1365 = vmatpush.msra.mxu0 %v1334
      %1366 = vmatpush.msra.mxu0 %v1333
      %1367 = vmatpush.msra.mxu0 %v1332
      %1368 = vmatmul.f32.gmra.mxu0 %v1350
      %v1369 = vpop.f32.mrf.mxu0
      %v1370 = vadd.f32 %v1347, %v1369
      %1371 = vdwg.mxu0
      %v1372 = vmax.f32 %v1370, 0.0
      %v1374 = vperm.slane %v1345, 0
      %vm1376 = vcmask 523264
      %v1378 = vsel %vm1376, %v1372, 0
      %1380 = vmatpush.msra.mxu0 0.0
      %1381 = vmatpush.msra.mxu0 0.0
      %1382 = vmatpush.msra.mxu0 0.0
      %1383 = vmatpush.msra.mxu0 0.0
      %1384 = vmatpush.msra.mxu0 0.0
      %1385 = vmatpush.msra.mxu0 0.0
      %1386 = vmatpush.msra.mxu0 0.0
      %1387 = vmatpush.msra.mxu0 0.0
      %1388 = vmatpush.msra.mxu0 %v1344
      %1389 = vmatpush.msra.mxu0 %v1343
      %1390 = vmatpush.msra.mxu0 %v1342
      %1391 = vmatpush.msra.mxu0 %v1341
      %1392 = vmatpush.msra.mxu0 %v1340
      %1393 = vmatpush.msra.mxu0 %v1339
      %1394 = vmatpush.msra.mxu0 %v1338
      %1395 = vmatpush.msra.mxu0 %v1337
      %1396 = vmatmul.f32.gmra.mxu0 %v1378
      %v1397 = vpop.f32.mrf.mxu0
      %v1398 = vadd.f32 %v1374, %v1397
      %1399 = vdwg.mxu0
      %v1400 = vadd.f32 %v1331, %v1398
      %v1401 = vld [vmem:[%s876] sm:$0x1]
      %v1402 = vld [vmem:[%s879] sm:$0x1]
      %v1403 = vsel %vm921, %v1400, 0.0
      %1404 = vadd.xlane.f32.xlu0 %v1403
      %v1405 = vpop.xlane.xlu0 %1404
      %v1406 = vmul.f32 %v1405, %v1304
      %v1407 = vsub.f32 %v1400, %v1406
      %v1408 = vmul.f32 %v1407, %v1407
      %v1409 = vsel %vm921, %v1408, 0.0
      %1410 = vadd.xlane.f32.xlu0 %v1409
      %v1411 = vpop.xlane.xlu0 %1410
      %v1412 = vmul.f32 %v1411, %v1304
      %v1413 = vadd.f32 %v1412, 1e-05
      %v1414 = vrsqrt.pop %v1413
      %v1415 = vmul.f32 %v1414, %v1413
      %v1416 = vmul.f32 %v1415, %v1414
      %v1417 = vmul.f32 0.5, %v1416
      %v1418 = vsub.f32 1.5, %v1417
      %v1419 = vmul.f32 %v1414, %v1418
      %vm1420 = vweird.f32 %v1413
      %vm1421 = vweird.f32 %v1414
      %vm1422 = vmor %vm1420, %vm1421
      %v1423 = vsel %vm1422, %v1414, %v1419
      %v1424 = vmul.f32 %v1407, %v1423
      %v1426 = vperm.slane %v1401, 0
      %v1428 = vmul.f32 %v1424, %v1426
      %v1430 = vperm.slane %v1402, 0
      %v1432 = vadd.f32 %v1428, %v1430
      %1433 = vst.msk [vmem:[%s883] sm:$0xff] %vm921, %v1432
      %p1434 = scmp.lt.s32.totalorder %s34, 3
      %s1435 = scalar_select %p1434, %s34, 3
      %s1436 = smul.addr %s1435, 8
      %s1437 = scalar_lea.vmem %s19, %s1436
      // Predicated region
      $region101: #{transmot_forward.10} parent=95 // pred_check
        %p1438 = pneg %p549
      $region102: #{transmot_forward.10} parent=95 // pred_check_branch
        %1440 = sbr.rel (%p1438) target = $region104
      $region103: #{transmot_forward.10} parent=95 // pred_region
        _
      $region104: #{transmot_forward.10} parent=95 // pred_fallthru
        _
    $region96: #{transmot_forward.10} parent=5 // pred_fallthru
      _
    %p1441 = scmp.le.s32.totalorder 2, %s25
    // Predicated region
    $region105: #{transmot_forward.10} parent=5 // pred_check
      %p1442 = pneg %p1441
    $region106: #{transmot_forward.10} parent=5 // pred_check_branch
      %1444 = sbr.rel (%p1442) target = $region108
    $region107: #{transmot_forward.10} parent=5 // pred_region
      %s1445 = ssub.s32 %s25, 2
      // Predicated region
      $region109: #{transmot_forward.10} parent=107 // pred_check
        %p1446 = pneg %p555
      $region110: #{transmot_forward.10} parent=107 // pred_check_branch
        %1448 = sbr.rel (%p1446) target = $region112
      $region111: #{transmot_forward.10} parent=107 // pred_region
        %p1449 = scmp.lt.s32.totalorder %s36, 3
        %s1450 = scalar_select %p1449, %s36, 3
        %s1451 = smul.addr %s1450, 8
        %s1452 = scalar_lea.vmem %s19, %s1451
      $region112: #{transmot_forward.10} parent=107 // pred_fallthru
        _
    $region108: #{transmot_forward.10} parent=5 // pred_fallthru
      _
  $region6: #{transmot_forward.10} parent=0 // loop_footer
    %s29 = sadd.s32 1, %s25
  $region7: #{transmot_forward.10} parent=0 // loop_footer_branch
    %24 = sbr.rel target = $region3
  $region8: #{transmot_forward.10} parent=0 // loop_exit
    _

// kernel: transmot_forward.13
$region0: #{transmot_forward.13}
  #allocation0 [shape = 'u32[]', space=smem, size = 0x4, offset = 0x4, fixed_abs, tag = 'smem constant byte address 0x4 - core index']
  #allocation1 [shape = 'u32[72,128]{1,0:T(1,128)}', space=vmem, size = 0x9000, scoped, tag = 'internal scratch']
  %s0 = inlined_call_operand.vmem [shape: f32[6,32], index: 0, kind: input, shape index: {}]
  %s1 = inlined_call_operand.vmem [shape: f32[32,32], index: 1, kind: input, shape index: {}]
  %s2 = inlined_call_operand.vmem [shape: f32[1,32], index: 2, kind: input, shape index: {}]
  %s3 = inlined_call_operand.vmem [shape: f32[32,32], index: 3, kind: input, shape index: {}]
  %s4 = inlined_call_operand.vmem [shape: f32[1,32], index: 4, kind: input, shape index: {}]
  %s5 = inlined_call_operand.vmem [shape: f32[1,32], index: 5, kind: input, shape index: {}]
  %s6 = inlined_call_operand.vmem [shape: f32[1,32], index: 6, kind: input, shape index: {}]
  %s7 = inlined_call_operand.vmem [shape: f32[6,32], index: 7, kind: output, shape index: {}]
  %s8 = sld [smem:[#allocation0]]
  $region38: #{transmot_forward.13} parent=0
    _
  %s10 = ssub.s32 1, %s8
  %s11 = scalar_select 0, %s10, %s8
  // Predicated region
  $region2: #{transmot_forward.13} parent=0 // pred_check
    _
  $region3: #{transmot_forward.13} parent=0 // pred_check_branch
    %13 = sbr.rel (0) target = $region5
  $region4: #{transmot_forward.13} parent=0 // pred_region
    _
  $region5: #{transmot_forward.13} parent=0 // pred_fallthru
    _
  // Predicated region
  $region6: #{transmot_forward.13} parent=0 // pred_check
    _
  $region7: #{transmot_forward.13} parent=0 // pred_check_branch
    %15 = sbr.rel (0) target = $region9
  $region8: #{transmot_forward.13} parent=0 // pred_region
    _
  $region9: #{transmot_forward.13} parent=0 // pred_fallthru
    _
  // Predicated region
  $region10: #{transmot_forward.13} parent=0 // pred_check
    _
  $region11: #{transmot_forward.13} parent=0 // pred_check_branch
    %17 = sbr.rel (0) target = $region13
  $region12: #{transmot_forward.13} parent=0 // pred_region
    _
  $region13: #{transmot_forward.13} parent=0 // pred_fallthru
    _
  // Predicated region
  $region14: #{transmot_forward.13} parent=0 // pred_check
    _
  $region15: #{transmot_forward.13} parent=0 // pred_check_branch
    %19 = sbr.rel (0) target = $region17
  $region16: #{transmot_forward.13} parent=0 // pred_region
    _
  $region17: #{transmot_forward.13} parent=0 // pred_fallthru
    _
  // Predicated region
  $region18: #{transmot_forward.13} parent=0 // pred_check
    _
  $region19: #{transmot_forward.13} parent=0 // pred_check_branch
    %21 = sbr.rel (0) target = $region21
  $region20: #{transmot_forward.13} parent=0 // pred_region
    _
  $region21: #{transmot_forward.13} parent=0 // pred_fallthru
    _
  // Predicated region
  $region22: #{transmot_forward.13} parent=0 // pred_check
    _
  $region23: #{transmot_forward.13} parent=0 // pred_check_branch
    %23 = sbr.rel (0) target = $region25
  $region24: #{transmot_forward.13} parent=0 // pred_region
    _
  $region25: #{transmot_forward.13} parent=0 // pred_fallthru
    _
  // Predicated region
  $region26: #{transmot_forward.13} parent=0 // pred_check
    _
  $region27: #{transmot_forward.13} parent=0 // pred_check_branch
    %25 = sbr.rel (0) target = $region29
  $region28: #{transmot_forward.13} parent=0 // pred_region
    _
  $region29: #{transmot_forward.13} parent=0 // pred_fallthru
    _
  %v26 = vld [vmem:[%s0] sm:$0x3f]
  %v27 = vld [vmem:[%s1] sm:$0xff]
  %v28 = vld [vmem:[%s1 + $0x8] sm:$0xff]
  %v29 = vld [vmem:[%s1 + $0x10] sm:$0xff]
  %v30 = vld [vmem:[%s1 + $0x18] sm:$0xff]
  %v31 = vld [vmem:[%s2] sm:$0x1]
  %v33 = vperm.slane %v31, 0
  %vm35 = vcmask 261120
  %v37 = vsel %vm35, %v26, 0
  %39 = vmatpush.msra.mxu0 0.0
  %40 = vmatpush.msra.mxu0 0.0
  %41 = vmatpush.msra.mxu0 0.0
  %42 = vmatpush.msra.mxu0 0.0
  %43 = vmatpush.msra.mxu0 0.0
  %44 = vmatpush.msra.mxu0 0.0
  %45 = vmatpush.msra.mxu0 0.0
  %46 = vmatpush.msra.mxu0 0.0
  %47 = vmatpush.msra.mxu0 0.0
  %48 = vmatpush.msra.mxu0 0.0
  %49 = vmatpush.msra.mxu0 0.0
  %50 = vmatpush.msra.mxu0 0.0
  %51 = vmatpush.msra.mxu0 %v30
  %52 = vmatpush.msra.mxu0 %v29
  %53 = vmatpush.msra.mxu0 %v28
  %54 = vmatpush.msra.mxu0 %v27
  %55 = vmatmul.f32.gmra.mxu0 %v37
  %v56 = vpop.f32.mrf.mxu0
  %v57 = vadd.f32 %v33, %v56
  %58 = vdwg.mxu0
  %v59 = vld [vmem:[%s3] sm:$0xff]
  %v60 = vld [vmem:[%s3 + $0x8] sm:$0xff]
  %v61 = vld [vmem:[%s3 + $0x10] sm:$0xff]
  %v62 = vld [vmem:[%s3 + $0x18] sm:$0xff]
  %v63 = vld [vmem:[%s4] sm:$0x1]
  %v65 = vperm.slane %v63, 0
  %v68 = vsel %vm35, %v57, 0
  %70 = vmatpush.msra.mxu0 0.0
  %71 = vmatpush.msra.mxu0 0.0
  %72 = vmatpush.msra.mxu0 0.0
  %73 = vmatpush.msra.mxu0 0.0
  %74 = vmatpush.msra.mxu0 0.0
  %75 = vmatpush.msra.mxu0 0.0
  %76 = vmatpush.msra.mxu0 0.0
  %77 = vmatpush.msra.mxu0 0.0
  %78 = vmatpush.msra.mxu0 0.0
  %79 = vmatpush.msra.mxu0 0.0
  %80 = vmatpush.msra.mxu0 0.0
  %81 = vmatpush.msra.mxu0 0.0
  %82 = vmatpush.msra.mxu0 %v62
  %83 = vmatpush.msra.mxu0 %v61
  %84 = vmatpush.msra.mxu0 %v60
  %85 = vmatpush.msra.mxu0 %v59
  %86 = vmatmul.f32.gmra.mxu0 %v68
  %v87 = vpop.f32.mrf.mxu0
  %v88 = vadd.f32 %v65, %v87
  %89 = vdwg.mxu0
  %v90 = vadd.f32 %v26, %v88
  %v91 = vld [vmem:[%s5] sm:$0x1]
  %v92 = vld [vmem:[%s6] sm:$0x1]
  %vm93 = vcmask 259072
  %v94 = vsel %vm93, %v90, 0.0
  %95 = vadd.xlane.f32.xlu0 %v94
  %v96 = vpop.xlane.xlu0 %95
  %v97 = vrcp.pop 32.0
  %v98 = vmul.f32 32.0, %v97
  %v99 = vsub.f32 1.0, %v98
  %v100 = vmul.f32 %v97, %v99
  %v101 = vadd.f32 %v97, %v100
  %vm102 = vweird.f32 %v97
  %v103 = vsel %vm102, %v97, %v101
  %v104 = vmul.f32 %v96, %v103
  %v105 = vsub.f32 %v90, %v104
  %v106 = vmul.f32 %v105, %v105
  %v107 = vsel %vm93, %v106, 0.0
  %108 = vadd.xlane.f32.xlu0 %v107
  %v109 = vpop.xlane.xlu0 %108
  %v110 = vmul.f32 %v109, %v103
  %v111 = vadd.f32 %v110, 1e-05
  %v112 = vrsqrt.pop %v111
  %v113 = vmul.f32 %v112, %v111
  %v114 = vmul.f32 %v113, %v112
  %v115 = vmul.f32 0.5, %v114
  %v116 = vsub.f32 1.5, %v115
  %v117 = vmul.f32 %v112, %v116
  %vm118 = vweird.f32 %v111
  %vm119 = vweird.f32 %v112
  %vm120 = vmor %vm118, %vm119
  %v121 = vsel %vm120, %v112, %v117
  %v122 = vmul.f32 %v105, %v121
  %v124 = vperm.slane %v91, 0
  %v126 = vmul.f32 %v122, %v124
  %v128 = vperm.slane %v92, 0
  %v130 = vadd.f32 %v126, %v128
  %131 = vst.msk [vmem:[%s7] sm:$0x3f] %vm93, %v130
  // Predicated region
  $region30: #{transmot_forward.13} parent=0 // pred_check
    _
  $region31: #{transmot_forward.13} parent=0 // pred_check_branch
    %133 = sbr.rel (0) target = $region33
  $region32: #{transmot_forward.13} parent=0 // pred_region
    _
  $region33: #{transmot_forward.13} parent=0 // pred_fallthru
    _
  // Predicated region
  $region34: #{transmot_forward.13} parent=0 // pred_check
    _
  $region35: #{transmot_forward.13} parent=0 // pred_check_branch
    %135 = sbr.rel (0) target = $region37
  $region36: #{transmot_forward.13} parent=0 // pred_region
    _
  $region37: #{transmot_forward.13} parent=0 // pred_fallthru
    _

// kernel: transmot_forward.11
$region0: #{transmot_forward.11}
  #allocation0 [shape = 'u32[]', space=smem, size = 0x4, offset = 0x4, fixed_abs, tag = 'smem constant byte address 0x4 - core index']
  #allocation1 [shape = 'u32[72,128]{1,0:T(1,128)}', space=vmem, size = 0x9000, scoped, tag = 'internal scratch']
  %s0 = inlined_call_operand.vmem [shape: f32[8,4,32], index: 0, kind: input, shape index: {}]
  %s1 = inlined_call_operand.vmem [shape: f32[1,4,4], index: 1, kind: input, shape index: {}]
  %s2 = inlined_call_operand.vmem [shape: f32[8,1,4], index: 2, kind: input, shape index: {}]
  %s3 = inlined_call_operand.vmem [shape: f32[2,32,32], index: 3, kind: input, shape index: {}]
  %s4 = inlined_call_operand.vmem [shape: f32[2,1,32], index: 4, kind: input, shape index: {}]
  %s5 = inlined_call_operand.vmem [shape: f32[2,32,32], index: 5, kind: input, shape index: {}]
  %s6 = inlined_call_operand.vmem [shape: f32[2,1,32], index: 6, kind: input, shape index: {}]
  %s7 = inlined_call_operand.vmem [shape: f32[2,32,32], index: 7, kind: input, shape index: {}]
  %s8 = inlined_call_operand.vmem [shape: f32[2,1,32], index: 8, kind: input, shape index: {}]
  %s9 = inlined_call_operand.vmem [shape: f32[2,32,32], index: 9, kind: input, shape index: {}]
  %s10 = inlined_call_operand.vmem [shape: f32[2,1,32], index: 10, kind: input, shape index: {}]
  %s11 = inlined_call_operand.vmem [shape: f32[2,1,32], index: 11, kind: input, shape index: {}]
  %s12 = inlined_call_operand.vmem [shape: f32[2,1,32], index: 12, kind: input, shape index: {}]
  %s13 = inlined_call_operand.vmem [shape: f32[2,32,64], index: 13, kind: input, shape index: {}]
  %s14 = inlined_call_operand.vmem [shape: f32[2,1,64], index: 14, kind: input, shape index: {}]
  %s15 = inlined_call_operand.vmem [shape: f32[2,64,32], index: 15, kind: input, shape index: {}]
  %s16 = inlined_call_operand.vmem [shape: f32[2,1,32], index: 16, kind: input, shape index: {}]
  %s17 = inlined_call_operand.vmem [shape: f32[2,1,32], index: 17, kind: input, shape index: {}]
  %s18 = inlined_call_operand.vmem [shape: f32[2,1,32], index: 18, kind: input, shape index: {}]
  %s19 = inlined_call_operand.vmem [shape: f32[8,4,32], index: 19, kind: output, shape index: {}]
  %s20 = sld [smem:[#allocation0]]
  $region113: #{transmot_forward.11} parent=0
    _
  %s22 = ssub.s32 1, %s20
  %s23 = scalar_select 0, %s22, %s20
  loop: start=0, step=1, limit=18
  $region2: #{transmot_forward.11} parent=0 // loop_pre_header
    _
  $region3: #{transmot_forward.11} parent=0 // loop_header
    %s25 = sphi 0, %s29
    %p26 = scmp.ge.s32.totalorder %s25, 18
    %s32 = sphi 0, %s44
    %s33 = sphi 0, %s40
    %s34 = sphi 0, %s32
    %s35 = sphi 0, %s33
    %s36 = sphi 0, %s34
    %s37 = sphi 0, %s35
    %s47 = sphi 0, %s49
    %s50 = sphi 0, %s47
    %s51 = sphi 0, %s50
    %s67 = sphi 0, %s51
    %s71 = sphi 0, %s71
    %s73 = sphi 0, %s71
    %s74 = sphi 0, %s73
    %s88 = sphi 0, %s74
    %s94 = sphi 0, %s96
    %s97 = sphi 0, %s94
    %s98 = sphi 0, %s97
    %s114 = sphi 0, %s98
    %s120 = sphi 0, %s122
    %s123 = sphi 0, %s120
    %s124 = sphi 0, %s123
    %s140 = sphi 0, %s124
    %s146 = sphi 0, %s148
    %s149 = sphi 0, %s146
    %s150 = sphi 0, %s149
    %s166 = sphi 0, %s150
    %s172 = sphi 0, %s174
    %s175 = sphi 0, %s172
    %s176 = sphi 0, %s175
    %s192 = sphi 0, %s176
    %s198 = sphi 0, %s200
    %s201 = sphi 0, %s198
    %s202 = sphi 0, %s201
    %s218 = sphi 0, %s202
    %s224 = sphi 0, %s226
    %s227 = sphi 0, %s224
    %s228 = sphi 0, %s227
    %s244 = sphi 0, %s228
    %s250 = sphi 0, %s252
    %s253 = sphi 0, %s250
    %s254 = sphi 0, %s253
    %s270 = sphi 0, %s254
    %s276 = sphi 0, %s278
    %s279 = sphi 0, %s276
    %s280 = sphi 0, %s279
    %s296 = sphi 0, %s280
    %s302 = sphi 0, %s304
    %s305 = sphi 0, %s302
    %s306 = sphi 0, %s305
    %s322 = sphi 0, %s306
    %s328 = sphi 0, %s330
    %s331 = sphi 0, %s328
    %s332 = sphi 0, %s331
    %s348 = sphi 0, %s332
    %s354 = sphi 0, %s356
    %s357 = sphi 0, %s354
    %s358 = sphi 0, %s357
    %s374 = sphi 0, %s358
    %s380 = sphi 0, %s382
    %s383 = sphi 0, %s380
    %s384 = sphi 0, %s383
    %s400 = sphi 0, %s384
    %s406 = sphi 0, %s408
    %s409 = sphi 0, %s406
    %s410 = sphi 0, %s409
    %s426 = sphi 0, %s410
    %s432 = sphi 0, %s434
    %s435 = sphi 0, %s432
    %s436 = sphi 0, %s435
    %s452 = sphi 0, %s436
    %s458 = sphi 0, %s460
    %s461 = sphi 0, %s458
    %s462 = sphi 0, %s461
    %s478 = sphi 0, %s462
    %s484 = sphi 0, %s486
    %s487 = sphi 0, %s484
    %s488 = sphi 0, %s487
    %s504 = sphi 0, %s488
    %s510 = sphi 0, %s512
    %s513 = sphi 0, %s510
    %s514 = sphi 0, %s513
    %s530 = sphi 0, %s514
    %s536 = sphi 0, %s538
    %s539 = sphi 0, %s536
    %s540 = sphi 0, %s539
    %s556 = sphi 0, %s540
  $region4: #{transmot_forward.11} parent=0 // loop_header_branch
    %28 = sbr.rel (%p26) target = $region8
  $region5: #{transmot_forward.11} parent=0 // loop_body
    %s30 = ssub.s32 %s25, 1
    %s31 = ssub.s32 %s25, 2
    %s38 = sadd.s32 1, %s33
    %p39 = scmp.ge.s32.totalorder %s38, 2
    %s40 = scalar_select %p39, 0, %s38
    %s41 = sadd.s32 1, %s32
    %s42 = scalar_select %p39, %s41, %s32
    %p43 = scmp.ge.s32.totalorder %s42, 8
    %s44 = scalar_select %p43, 0, %s42
    %s45 = ssub.s32 %s32, %s44
    %p46 = scmp.eq.s32.totalorder %s45, 0
    %s48 = sadd.s32 %s47, 1
    %s49 = scalar_select %p46, %s47, %s48
    %p52 = pneg %p46
    %p53 = scmp.eq.s32.totalorder %s25, 15
    %p54 = por %p52, %p53
    %p55 = scmp.ne.s32.totalorder %s47, %s50
    %p56 = scmp.eq.s32.totalorder %s25, 0
    %p57 = por %p55, %p56
    %p58 = scmp.ne.s32.totalorder %s47, %s50
    %p59 = scmp.eq.s32.totalorder %s30, 15
    %p60 = por %p58, %p59
    %p61 = scmp.ne.s32.totalorder %s50, %s51
    %p62 = scmp.eq.s32.totalorder %s30, 0
    %p63 = por %p61, %p62
    %p64 = scmp.ne.s32.totalorder %s50, %s51
    %p65 = scmp.eq.s32.totalorder %s31, 15
    %p66 = por %p64, %p65
    %p68 = scmp.ne.s32.totalorder %s51, %s67
    %p69 = scmp.eq.s32.totalorder %s31, 0
    %p70 = por %p68, %p69
    %s72 = sadd.s32 %s71, 1
    %p75 = scmp.eq.s32.totalorder %s25, 15
    %p76 = scmp.ne.s32.totalorder %s71, %s73
    %p77 = scmp.eq.s32.totalorder %s25, 0
    %p78 = por %p76, %p77
    %p79 = scmp.ne.s32.totalorder %s71, %s73
    %p80 = scmp.eq.s32.totalorder %s30, 15
    %p81 = por %p79, %p80
    %p82 = scmp.ne.s32.totalorder %s73, %s74
    %p83 = scmp.eq.s32.totalorder %s30, 0
    %p84 = por %p82, %p83
    %p85 = scmp.ne.s32.totalorder %s73, %s74
    %p86 = scmp.eq.s32.totalorder %s31, 15
    %p87 = por %p85, %p86
    %p89 = scmp.ne.s32.totalorder %s74, %s88
    %p90 = scmp.eq.s32.totalorder %s31, 0
    %p91 = por %p89, %p90
    %s92 = ssub.s32 %s32, %s44
    %p93 = scmp.eq.s32.totalorder %s92, 0
    %s95 = sadd.s32 %s94, 1
    %s96 = scalar_select %p93, %s94, %s95
    %p99 = pneg %p93
    %p100 = scmp.eq.s32.totalorder %s25, 15
    %p101 = por %p99, %p100
    %p102 = scmp.ne.s32.totalorder %s94, %s97
    %p103 = scmp.eq.s32.totalorder %s25, 0
    %p104 = por %p102, %p103
    %p105 = scmp.ne.s32.totalorder %s94, %s97
    %p106 = scmp.eq.s32.totalorder %s30, 15
    %p107 = por %p105, %p106
    %p108 = scmp.ne.s32.totalorder %s97, %s98
    %p109 = scmp.eq.s32.totalorder %s30, 0
    %p110 = por %p108, %p109
    %p111 = scmp.ne.s32.totalorder %s97, %s98
    %p112 = scmp.eq.s32.totalorder %s31, 15
    %p113 = por %p111, %p112
    %p115 = scmp.ne.s32.totalorder %s98, %s114
    %p116 = scmp.eq.s32.totalorder %s31, 0
    %p117 = por %p115, %p116
    %s118 = ssub.s32 %s33, %s40
    %p119 = scmp.eq.s32.totalorder %s118, 0
    %s121 = sadd.s32 %s120, 1
    %s122 = scalar_select %p119, %s120, %s121
    %p125 = pneg %p119
    %p126 = scmp.eq.s32.totalorder %s25, 15
    %p127 = por %p125, %p126
    %p128 = scmp.ne.s32.totalorder %s120, %s123
    %p129 = scmp.eq.s32.totalorder %s25, 0
    %p130 = por %p128, %p129
    %p131 = scmp.ne.s32.totalorder %s120, %s123
    %p132 = scmp.eq.s32.totalorder %s30, 15
    %p133 = por %p131, %p132
    %p134 = scmp.ne.s32.totalorder %s123, %s124
    %p135 = scmp.eq.s32.totalorder %s30, 0
    %p136 = por %p134, %p135
    %p137 = scmp.ne.s32.totalorder %s123, %s124
    %p138 = scmp.eq.s32.totalorder %s31, 15
    %p139 = por %p137, %p138
    %p141 = scmp.ne.s32.totalorder %s124, %s140
    %p142 = scmp.eq.s32.totalorder %s31, 0
    %p143 = por %p141, %p142
    %s144 = ssub.s32 %s33, %s40
    %p145 = scmp.eq.s32.totalorder %s144, 0
    %s147 = sadd.s32 %s146, 1
    %s148 = scalar_select %p145, %s146, %s147
    %p151 = pneg %p145
    %p152 = scmp.eq.s32.totalorder %s25, 15
    %p153 = por %p151, %p152
    %p154 = scmp.ne.s32.totalorder %s146, %s149
    %p155 = scmp.eq.s32.totalorder %s25, 0
    %p156 = por %p154, %p155
    %p157 = scmp.ne.s32.totalorder %s146, %s149
    %p158 = scmp.eq.s32.totalorder %s30, 15
    %p159 = por %p157, %p158
    %p160 = scmp.ne.s32.totalorder %s149, %s150
    %p161 = scmp.eq.s32.totalorder %s30, 0
    %p162 = por %p160, %p161
    %p163 = scmp.ne.s32.totalorder %s149, %s150
    %p164 = scmp.eq.s32.totalorder %s31, 15
    %p165 = por %p163, %p164
    %p167 = scmp.ne.s32.totalorder %s150, %s166
    %p168 = scmp.eq.s32.totalorder %s31, 0
    %p169 = por %p167, %p168
    %s170 = ssub.s32 %s33, %s40
    %p171 = scmp.eq.s32.totalorder %s170, 0
    %s173 = sadd.s32 %s172, 1
    %s174 = scalar_select %p171, %s172, %s173
    %p177 = pneg %p171
    %p178 = scmp.eq.s32.totalorder %s25, 15
    %p179 = por %p177, %p178
    %p180 = scmp.ne.s32.totalorder %s172, %s175
    %p181 = scmp.eq.s32.totalorder %s25, 0
    %p182 = por %p180, %p181
    %p183 = scmp.ne.s32.totalorder %s172, %s175
    %p184 = scmp.eq.s32.totalorder %s30, 15
    %p185 = por %p183, %p184
    %p186 = scmp.ne.s32.totalorder %s175, %s176
    %p187 = scmp.eq.s32.totalorder %s30, 0
    %p188 = por %p186, %p187
    %p189 = scmp.ne.s32.totalorder %s175, %s176
    %p190 = scmp.eq.s32.totalorder %s31, 15
    %p191 = por %p189, %p190
    %p193 = scmp.ne.s32.totalorder %s176, %s192
    %p194 = scmp.eq.s32.totalorder %s31, 0
    %p195 = por %p193, %p194
    %s196 = ssub.s32 %s33, %s40
    %p197 = scmp.eq.s32.totalorder %s196, 0
    %s199 = sadd.s32 %s198, 1
    %s200 = scalar_select %p197, %s198, %s199
    %p203 = pneg %p197
    %p204 = scmp.eq.s32.totalorder %s25, 15
    %p205 = por %p203, %p204
    %p206 = scmp.ne.s32.totalorder %s198, %s201
    %p207 = scmp.eq.s32.totalorder %s25, 0
    %p208 = por %p206, %p207
    %p209 = scmp.ne.s32.totalorder %s198, %s201
    %p210 = scmp.eq.s32.totalorder %s30, 15
    %p211 = por %p209, %p210
    %p212 = scmp.ne.s32.totalorder %s201, %s202
    %p213 = scmp.eq.s32.totalorder %s30, 0
    %p214 = por %p212, %p213
    %p215 = scmp.ne.s32.totalorder %s201, %s202
    %p216 = scmp.eq.s32.totalorder %s31, 15
    %p217 = por %p215, %p216
    %p219 = scmp.ne.s32.totalorder %s202, %s218
    %p220 = scmp.eq.s32.totalorder %s31, 0
    %p221 = por %p219, %p220
    %s222 = ssub.s32 %s33, %s40
    %p223 = scmp.eq.s32.totalorder %s222, 0
    %s225 = sadd.s32 %s224, 1
    %s226 = scalar_select %p223, %s224, %s225
    %p229 = pneg %p223
    %p230 = scmp.eq.s32.totalorder %s25, 15
    %p231 = por %p229, %p230
    %p232 = scmp.ne.s32.totalorder %s224, %s227
    %p233 = scmp.eq.s32.totalorder %s25, 0
    %p234 = por %p232, %p233
    %p235 = scmp.ne.s32.totalorder %s224, %s227
    %p236 = scmp.eq.s32.totalorder %s30, 15
    %p237 = por %p235, %p236
    %p238 = scmp.ne.s32.totalorder %s227, %s228
    %p239 = scmp.eq.s32.totalorder %s30, 0
    %p240 = por %p238, %p239
    %p241 = scmp.ne.s32.totalorder %s227, %s228
    %p242 = scmp.eq.s32.totalorder %s31, 15
    %p243 = por %p241, %p242
    %p245 = scmp.ne.s32.totalorder %s228, %s244
    %p246 = scmp.eq.s32.totalorder %s31, 0
    %p247 = por %p245, %p246
    %s248 = ssub.s32 %s33, %s40
    %p249 = scmp.eq.s32.totalorder %s248, 0
    %s251 = sadd.s32 %s250, 1
    %s252 = scalar_select %p249, %s250, %s251
    %p255 = pneg %p249
    %p256 = scmp.eq.s32.totalorder %s25, 15
    %p257 = por %p255, %p256
    %p258 = scmp.ne.s32.totalorder %s250, %s253
    %p259 = scmp.eq.s32.totalorder %s25, 0
    %p260 = por %p258, %p259
    %p261 = scmp.ne.s32.totalorder %s250, %s253
    %p262 = scmp.eq.s32.totalorder %s30, 15
    %p263 = por %p261, %p262
    %p264 = scmp.ne.s32.totalorder %s253, %s254
    %p265 = scmp.eq.s32.totalorder %s30, 0
    %p266 = por %p264, %p265
    %p267 = scmp.ne.s32.totalorder %s253, %s254
    %p268 = scmp.eq.s32.totalorder %s31, 15
    %p269 = por %p267, %p268
    %p271 = scmp.ne.s32.totalorder %s254, %s270
    %p272 = scmp.eq.s32.totalorder %s31, 0
    %p273 = por %p271, %p272
    %s274 = ssub.s32 %s33, %s40
    %p275 = scmp.eq.s32.totalorder %s274, 0
    %s277 = sadd.s32 %s276, 1
    %s278 = scalar_select %p275, %s276, %s277
    %p281 = pneg %p275
    %p282 = scmp.eq.s32.totalorder %s25, 15
    %p283 = por %p281, %p282
    %p284 = scmp.ne.s32.totalorder %s276, %s279
    %p285 = scmp.eq.s32.totalorder %s25, 0
    %p286 = por %p284, %p285
    %p287 = scmp.ne.s32.totalorder %s276, %s279
    %p288 = scmp.eq.s32.totalorder %s30, 15
    %p289 = por %p287, %p288
    %p290 = scmp.ne.s32.totalorder %s279, %s280
    %p291 = scmp.eq.s32.totalorder %s30, 0
    %p292 = por %p290, %p291
    %p293 = scmp.ne.s32.totalorder %s279, %s280
    %p294 = scmp.eq.s32.totalorder %s31, 15
    %p295 = por %p293, %p294
    %p297 = scmp.ne.s32.totalorder %s280, %s296
    %p298 = scmp.eq.s32.totalorder %s31, 0
    %p299 = por %p297, %p298
    %s300 = ssub.s32 %s33, %s40
    %p301 = scmp.eq.s32.totalorder %s300, 0
    %s303 = sadd.s32 %s302, 1
    %s304 = scalar_select %p301, %s302, %s303
    %p307 = pneg %p301
    %p308 = scmp.eq.s32.totalorder %s25, 15
    %p309 = por %p307, %p308
    %p310 = scmp.ne.s32.totalorder %s302, %s305
    %p311 = scmp.eq.s32.totalorder %s25, 0
    %p312 = por %p310, %p311
    %p313 = scmp.ne.s32.totalorder %s302, %s305
    %p314 = scmp.eq.s32.totalorder %s30, 15
    %p315 = por %p313, %p314
    %p316 = scmp.ne.s32.totalorder %s305, %s306
    %p317 = scmp.eq.s32.totalorder %s30, 0
    %p318 = por %p316, %p317
    %p319 = scmp.ne.s32.totalorder %s305, %s306
    %p320 = scmp.eq.s32.totalorder %s31, 15
    %p321 = por %p319, %p320
    %p323 = scmp.ne.s32.totalorder %s306, %s322
    %p324 = scmp.eq.s32.totalorder %s31, 0
    %p325 = por %p323, %p324
    %s326 = ssub.s32 %s33, %s40
    %p327 = scmp.eq.s32.totalorder %s326, 0
    %s329 = sadd.s32 %s328, 1
    %s330 = scalar_select %p327, %s328, %s329
    %p333 = pneg %p327
    %p334 = scmp.eq.s32.totalorder %s25, 15
    %p335 = por %p333, %p334
    %p336 = scmp.ne.s32.totalorder %s328, %s331
    %p337 = scmp.eq.s32.totalorder %s25, 0
    %p338 = por %p336, %p337
    %p339 = scmp.ne.s32.totalorder %s328, %s331
    %p340 = scmp.eq.s32.totalorder %s30, 15
    %p341 = por %p339, %p340
    %p342 = scmp.ne.s32.totalorder %s331, %s332
    %p343 = scmp.eq.s32.totalorder %s30, 0
    %p344 = por %p342, %p343
    %p345 = scmp.ne.s32.totalorder %s331, %s332
    %p346 = scmp.eq.s32.totalorder %s31, 15
    %p347 = por %p345, %p346
    %p349 = scmp.ne.s32.totalorder %s332, %s348
    %p350 = scmp.eq.s32.totalorder %s31, 0
    %p351 = por %p349, %p350
    %s352 = ssub.s32 %s33, %s40
    %p353 = scmp.eq.s32.totalorder %s352, 0
    %s355 = sadd.s32 %s354, 1
    %s356 = scalar_select %p353, %s354, %s355
    %p359 = pneg %p353
    %p360 = scmp.eq.s32.totalorder %s25, 15
    %p361 = por %p359, %p360
    %p362 = scmp.ne.s32.totalorder %s354, %s357
    %p363 = scmp.eq.s32.totalorder %s25, 0
    %p364 = por %p362, %p363
    %p365 = scmp.ne.s32.totalorder %s354, %s357
    %p366 = scmp.eq.s32.totalorder %s30, 15
    %p367 = por %p365, %p366
    %p368 = scmp.ne.s32.totalorder %s357, %s358
    %p369 = scmp.eq.s32.totalorder %s30, 0
    %p370 = por %p368, %p369
    %p371 = scmp.ne.s32.totalorder %s357, %s358
    %p372 = scmp.eq.s32.totalorder %s31, 15
    %p373 = por %p371, %p372
    %p375 = scmp.ne.s32.totalorder %s358, %s374
    %p376 = scmp.eq.s32.totalorder %s31, 0
    %p377 = por %p375, %p376
    %s378 = ssub.s32 %s33, %s40
    %p379 = scmp.eq.s32.totalorder %s378, 0
    %s381 = sadd.s32 %s380, 1
    %s382 = scalar_select %p379, %s380, %s381
    %p385 = pneg %p379
    %p386 = scmp.eq.s32.totalorder %s25, 15
    %p387 = por %p385, %p386
    %p388 = scmp.ne.s32.totalorder %s380, %s383
    %p389 = scmp.eq.s32.totalorder %s25, 0
    %p390 = por %p388, %p389
    %p391 = scmp.ne.s32.totalorder %s380, %s383
    %p392 = scmp.eq.s32.totalorder %s30, 15
    %p393 = por %p391, %p392
    %p394 = scmp.ne.s32.totalorder %s383, %s384
    %p395 = scmp.eq.s32.totalorder %s30, 0
    %p396 = por %p394, %p395
    %p397 = scmp.ne.s32.totalorder %s383, %s384
    %p398 = scmp.eq.s32.totalorder %s31, 15
    %p399 = por %p397, %p398
    %p401 = scmp.ne.s32.totalorder %s384, %s400
    %p402 = scmp.eq.s32.totalorder %s31, 0
    %p403 = por %p401, %p402
    %s404 = ssub.s32 %s33, %s40
    %p405 = scmp.eq.s32.totalorder %s404, 0
    %s407 = sadd.s32 %s406, 1
    %s408 = scalar_select %p405, %s406, %s407
    %p411 = pneg %p405
    %p412 = scmp.eq.s32.totalorder %s25, 15
    %p413 = por %p411, %p412
    %p414 = scmp.ne.s32.totalorder %s406, %s409
    %p415 = scmp.eq.s32.totalorder %s25, 0
    %p416 = por %p414, %p415
    %p417 = scmp.ne.s32.totalorder %s406, %s409
    %p418 = scmp.eq.s32.totalorder %s30, 15
    %p419 = por %p417, %p418
    %p420 = scmp.ne.s32.totalorder %s409, %s410
    %p421 = scmp.eq.s32.totalorder %s30, 0
    %p422 = por %p420, %p421
    %p423 = scmp.ne.s32.totalorder %s409, %s410
    %p424 = scmp.eq.s32.totalorder %s31, 15
    %p425 = por %p423, %p424
    %p427 = scmp.ne.s32.totalorder %s410, %s426
    %p428 = scmp.eq.s32.totalorder %s31, 0
    %p429 = por %p427, %p428
    %s430 = ssub.s32 %s33, %s40
    %p431 = scmp.eq.s32.totalorder %s430, 0
    %s433 = sadd.s32 %s432, 1
    %s434 = scalar_select %p431, %s432, %s433
    %p437 = pneg %p431
    %p438 = scmp.eq.s32.totalorder %s25, 15
    %p439 = por %p437, %p438
    %p440 = scmp.ne.s32.totalorder %s432, %s435
    %p441 = scmp.eq.s32.totalorder %s25, 0
    %p442 = por %p440, %p441
    %p443 = scmp.ne.s32.totalorder %s432, %s435
    %p444 = scmp.eq.s32.totalorder %s30, 15
    %p445 = por %p443, %p444
    %p446 = scmp.ne.s32.totalorder %s435, %s436
    %p447 = scmp.eq.s32.totalorder %s30, 0
    %p448 = por %p446, %p447
    %p449 = scmp.ne.s32.totalorder %s435, %s436
    %p450 = scmp.eq.s32.totalorder %s31, 15
    %p451 = por %p449, %p450
    %p453 = scmp.ne.s32.totalorder %s436, %s452
    %p454 = scmp.eq.s32.totalorder %s31, 0
    %p455 = por %p453, %p454
    %s456 = ssub.s32 %s33, %s40
    %p457 = scmp.eq.s32.totalorder %s456, 0
    %s459 = sadd.s32 %s458, 1
    %s460 = scalar_select %p457, %s458, %s459
    %p463 = pneg %p457
    %p464 = scmp.eq.s32.totalorder %s25, 15
    %p465 = por %p463, %p464
    %p466 = scmp.ne.s32.totalorder %s458, %s461
    %p467 = scmp.eq.s32.totalorder %s25, 0
    %p468 = por %p466, %p467
    %p469 = scmp.ne.s32.totalorder %s458, %s461
    %p470 = scmp.eq.s32.totalorder %s30, 15
    %p471 = por %p469, %p470
    %p472 = scmp.ne.s32.totalorder %s461, %s462
    %p473 = scmp.eq.s32.totalorder %s30, 0
    %p474 = por %p472, %p473
    %p475 = scmp.ne.s32.totalorder %s461, %s462
    %p476 = scmp.eq.s32.totalorder %s31, 15
    %p477 = por %p475, %p476
    %p479 = scmp.ne.s32.totalorder %s462, %s478
    %p480 = scmp.eq.s32.totalorder %s31, 0
    %p481 = por %p479, %p480
    %s482 = ssub.s32 %s33, %s40
    %p483 = scmp.eq.s32.totalorder %s482, 0
    %s485 = sadd.s32 %s484, 1
    %s486 = scalar_select %p483, %s484, %s485
    %p489 = pneg %p483
    %p490 = scmp.eq.s32.totalorder %s25, 15
    %p491 = por %p489, %p490
    %p492 = scmp.ne.s32.totalorder %s484, %s487
    %p493 = scmp.eq.s32.totalorder %s25, 0
    %p494 = por %p492, %p493
    %p495 = scmp.ne.s32.totalorder %s484, %s487
    %p496 = scmp.eq.s32.totalorder %s30, 15
    %p497 = por %p495, %p496
    %p498 = scmp.ne.s32.totalorder %s487, %s488
    %p499 = scmp.eq.s32.totalorder %s30, 0
    %p500 = por %p498, %p499
    %p501 = scmp.ne.s32.totalorder %s487, %s488
    %p502 = scmp.eq.s32.totalorder %s31, 15
    %p503 = por %p501, %p502
    %p505 = scmp.ne.s32.totalorder %s488, %s504
    %p506 = scmp.eq.s32.totalorder %s31, 0
    %p507 = por %p505, %p506
    %s508 = ssub.s32 %s33, %s40
    %p509 = scmp.eq.s32.totalorder %s508, 0
    %s511 = sadd.s32 %s510, 1
    %s512 = scalar_select %p509, %s510, %s511
    %p515 = pneg %p509
    %p516 = scmp.eq.s32.totalorder %s25, 15
    %p517 = por %p515, %p516
    %p518 = scmp.ne.s32.totalorder %s510, %s513
    %p519 = scmp.eq.s32.totalorder %s25, 0
    %p520 = por %p518, %p519
    %p521 = scmp.ne.s32.totalorder %s510, %s513
    %p522 = scmp.eq.s32.totalorder %s30, 15
    %p523 = por %p521, %p522
    %p524 = scmp.ne.s32.totalorder %s513, %s514
    %p525 = scmp.eq.s32.totalorder %s30, 0
    %p526 = por %p524, %p525
    %p527 = scmp.ne.s32.totalorder %s513, %s514
    %p528 = scmp.eq.s32.totalorder %s31, 15
    %p529 = por %p527, %p528
    %p531 = scmp.ne.s32.totalorder %s514, %s530
    %p532 = scmp.eq.s32.totalorder %s31, 0
    %p533 = por %p531, %p532
    %s534 = ssub.s32 %s32, %s44
    %p535 = scmp.eq.s32.totalorder %s534, 0
    %s537 = sadd.s32 %s536, 1
    %s538 = scalar_select %p535, %s536, %s537
    %p541 = pneg %p535
    %p542 = scmp.eq.s32.totalorder %s25, 15
    %p543 = por %p541, %p542
    %p544 = scmp.ne.s32.totalorder %s536, %s539
    %p545 = scmp.eq.s32.totalorder %s25, 0
    %p546 = por %p544, %p545
    %p547 = scmp.ne.s32.totalorder %s536, %s539
    %p548 = scmp.eq.s32.totalorder %s30, 15
    %p549 = por %p547, %p548
    %p550 = scmp.ne.s32.totalorder %s539, %s540
    %p551 = scmp.eq.s32.totalorder %s30, 0
    %p552 = por %p550, %p551
    %p553 = scmp.ne.s32.totalorder %s539, %s540
    %p554 = scmp.eq.s32.totalorder %s31, 15
    %p555 = por %p553, %p554
    %p557 = scmp.ne.s32.totalorder %s540, %s556
    %p558 = scmp.eq.s32.totalorder %s31, 0
    %p559 = por %p557, %p558
    %p560 = scmp.le.s32.totalorder 1, %s25
    %p561 = scmp.lt.s32.totalorder %s25, 17
    %p562 = pnand %p560, %p561
    %p563 = pneg %p562
    // Predicated region
    $region9: #{transmot_forward.11} parent=5 // pred_check
      _
    $region10: #{transmot_forward.11} parent=5 // pred_check_branch
      %565 = sbr.rel (%p562) target = $region12
    $region11: #{transmot_forward.11} parent=5 // pred_region
      %s566 = ssub.s32 %s25, 1
      // Predicated region
      $region13: #{transmot_forward.11} parent=11 // pred_check
        %p567 = pneg %p84
      $region14: #{transmot_forward.11} parent=11 // pred_check_branch
        %569 = sbr.rel (%p567) target = $region16
      $region15: #{transmot_forward.11} parent=11 // pred_region
        _
      $region16: #{transmot_forward.11} parent=11 // pred_fallthru
        _
    $region12: #{transmot_forward.11} parent=5 // pred_fallthru
      _
    %p570 = scmp.lt.s32.totalorder %s25, 16
    // Predicated region
    $region17: #{transmot_forward.11} parent=5 // pred_check
      %p571 = pneg %p570
    $region18: #{transmot_forward.11} parent=5 // pred_check_branch
      %573 = sbr.rel (%p571) target = $region20
    $region19: #{transmot_forward.11} parent=5 // pred_region
      // Predicated region
      $region21: #{transmot_forward.11} parent=19 // pred_check
        %p574 = pneg %p57
      $region22: #{transmot_forward.11} parent=19 // pred_check_branch
        %576 = sbr.rel (%p574) target = $region24
      $region23: #{transmot_forward.11} parent=19 // pred_region
        %p577 = scmp.lt.s32.totalorder %s32, 7
        %s578 = scalar_select %p577, %s32, 7
        %s579 = smul.addr %s578, 4
        %s580 = scalar_lea.vmem %s0, %s579
      $region24: #{transmot_forward.11} parent=19 // pred_fallthru
        _
      // Predicated region
      $region25: #{transmot_forward.11} parent=19 // pred_check
        %p581 = pneg %p104
      $region26: #{transmot_forward.11} parent=19 // pred_check_branch
        %583 = sbr.rel (%p581) target = $region28
      $region27: #{transmot_forward.11} parent=19 // pred_region
        %p584 = scmp.lt.s32.totalorder %s32, 7
        %s585 = scalar_select %p584, %s32, 7
        %s586 = scalar_lea.vmem %s2, %s585
      $region28: #{transmot_forward.11} parent=19 // pred_fallthru
        _
      // Predicated region
      $region29: #{transmot_forward.11} parent=19 // pred_check
        %p587 = pneg %p130
      $region30: #{transmot_forward.11} parent=19 // pred_check_branch
        %589 = sbr.rel (%p587) target = $region32
      $region31: #{transmot_forward.11} parent=19 // pred_region
        %p590 = scmp.lt.s32.totalorder %s33, 1
        %s591 = scalar_select %p590, %s33, 1
        %s592 = smul.addr %s591, 4
        %s593 = smul.addr %s592, 8
        %s594 = scalar_lea.vmem %s3, %s593
      $region32: #{transmot_forward.11} parent=19 // pred_fallthru
        _
      // Predicated region
      $region33: #{transmot_forward.11} parent=19 // pred_check
        %p595 = pneg %p156
      $region34: #{transmot_forward.11} parent=19 // pred_check_branch
        %597 = sbr.rel (%p595) target = $region36
      $region35: #{transmot_forward.11} parent=19 // pred_region
        %p598 = scmp.lt.s32.totalorder %s33, 1
        %s599 = scalar_select %p598, %s33, 1
        %s600 = scalar_lea.vmem %s4, %s599
      $region36: #{transmot_forward.11} parent=19 // pred_fallthru
        _
      // Predicated region
      $region37: #{transmot_forward.11} parent=19 // pred_check
        %p601 = pneg %p182
      $region38: #{transmot_forward.11} parent=19 // pred_check_branch
        %603 = sbr.rel (%p601) target = $region40
      $region39: #{transmot_forward.11} parent=19 // pred_region
        %p604 = scmp.lt.s32.totalorder %s33, 1
        %s605 = scalar_select %p604, %s33, 1
        %s606 = smul.addr %s605, 4
        %s607 = smul.addr %s606, 8
        %s608 = scalar_lea.vmem %s5, %s607
      $region40: #{transmot_forward.11} parent=19 // pred_fallthru
        _
      // Predicated region
      $region41: #{transmot_forward.11} parent=19 // pred_check
        %p609 = pneg %p208
      $region42: #{transmot_forward.11} parent=19 // pred_check_branch
        %611 = sbr.rel (%p609) target = $region44
      $region43: #{transmot_forward.11} parent=19 // pred_region
        %p612 = scmp.lt.s32.totalorder %s33, 1
        %s613 = scalar_select %p612, %s33, 1
        %s614 = scalar_lea.vmem %s6, %s613
      $region44: #{transmot_forward.11} parent=19 // pred_fallthru
        _
      // Predicated region
      $region45: #{transmot_forward.11} parent=19 // pred_check
        %p615 = pneg %p234
      $region46: #{transmot_forward.11} parent=19 // pred_check_branch
        %617 = sbr.rel (%p615) target = $region48
      $region47: #{transmot_forward.11} parent=19 // pred_region
        %p618 = scmp.lt.s32.totalorder %s33, 1
        %s619 = scalar_select %p618, %s33, 1
        %s620 = smul.addr %s619, 4
        %s621 = smul.addr %s620, 8
        %s622 = scalar_lea.vmem %s7, %s621
      $region48: #{transmot_forward.11} parent=19 // pred_fallthru
        _
      // Predicated region
      $region49: #{transmot_forward.11} parent=19 // pred_check
        %p623 = pneg %p260
      $region50: #{transmot_forward.11} parent=19 // pred_check_branch
        %625 = sbr.rel (%p623) target = $region52
      $region51: #{transmot_forward.11} parent=19 // pred_region
        %p626 = scmp.lt.s32.totalorder %s33, 1
        %s627 = scalar_select %p626, %s33, 1
        %s628 = scalar_lea.vmem %s8, %s627
      $region52: #{transmot_forward.11} parent=19 // pred_fallthru
        _
      // Predicated region
      $region53: #{transmot_forward.11} parent=19 // pred_check
        %p629 = pneg %p286
      $region54: #{transmot_forward.11} parent=19 // pred_check_branch
        %631 = sbr.rel (%p629) target = $region56
      $region55: #{transmot_forward.11} parent=19 // pred_region
        %p632 = scmp.lt.s32.totalorder %s33, 1
        %s633 = scalar_select %p632, %s33, 1
        %s634 = smul.addr %s633, 4
        %s635 = smul.addr %s634, 8
        %s636 = scalar_lea.vmem %s9, %s635
      $region56: #{transmot_forward.11} parent=19 // pred_fallthru
        _
      // Predicated region
      $region57: #{transmot_forward.11} parent=19 // pred_check
        %p637 = pneg %p312
      $region58: #{transmot_forward.11} parent=19 // pred_check_branch
        %639 = sbr.rel (%p637) target = $region60
      $region59: #{transmot_forward.11} parent=19 // pred_region
        %p640 = scmp.lt.s32.totalorder %s33, 1
        %s641 = scalar_select %p640, %s33, 1
        %s642 = scalar_lea.vmem %s10, %s641
      $region60: #{transmot_forward.11} parent=19 // pred_fallthru
        _
      // Predicated region
      $region61: #{transmot_forward.11} parent=19 // pred_check
        %p643 = pneg %p338
      $region62: #{transmot_forward.11} parent=19 // pred_check_branch
        %645 = sbr.rel (%p643) target = $region64
      $region63: #{transmot_forward.11} parent=19 // pred_region
        %p646 = scmp.lt.s32.totalorder %s33, 1
        %s647 = scalar_select %p646, %s33, 1
        %s648 = scalar_lea.vmem %s11, %s647
      $region64: #{transmot_forward.11} parent=19 // pred_fallthru
        _
      // Predicated region
      $region65: #{transmot_forward.11} parent=19 // pred_check
        %p649 = pneg %p364
      $region66: #{transmot_forward.11} parent=19 // pred_check_branch
        %651 = sbr.rel (%p649) target = $region68
      $region67: #{transmot_forward.11} parent=19 // pred_region
        %p652 = scmp.lt.s32.totalorder %s33, 1
        %s653 = scalar_select %p652, %s33, 1
        %s654 = scalar_lea.vmem %s12, %s653
      $region68: #{transmot_forward.11} parent=19 // pred_fallthru
        _
      // Predicated region
      $region69: #{transmot_forward.11} parent=19 // pred_check
        %p655 = pneg %p390
      $region70: #{transmot_forward.11} parent=19 // pred_check_branch
        %657 = sbr.rel (%p655) target = $region72
      $region71: #{transmot_forward.11} parent=19 // pred_region
        %p658 = scmp.lt.s32.totalorder %s33, 1
        %s659 = scalar_select %p658, %s33, 1
        %s660 = smul.addr %s659, 4
        %s661 = smul.addr %s660, 8
        %s662 = scalar_lea.vmem %s13, %s661
      $region72: #{transmot_forward.11} parent=19 // pred_fallthru
        _
      // Predicated region
      $region73: #{transmot_forward.11} parent=19 // pred_check
        %p663 = pneg %p416
      $region74: #{transmot_forward.11} parent=19 // pred_check_branch
        %665 = sbr.rel (%p663) target = $region76
      $region75: #{transmot_forward.11} parent=19 // pred_region
        %p666 = scmp.lt.s32.totalorder %s33, 1
        %s667 = scalar_select %p666, %s33, 1
        %s668 = scalar_lea.vmem %s14, %s667
      $region76: #{transmot_forward.11} parent=19 // pred_fallthru
        _
      // Predicated region
      $region77: #{transmot_forward.11} parent=19 // pred_check
        %p669 = pneg %p442
      $region78: #{transmot_forward.11} parent=19 // pred_check_branch
        %671 = sbr.rel (%p669) target = $region80
      $region79: #{transmot_forward.11} parent=19 // pred_region
        %p672 = scmp.lt.s32.totalorder %s33, 1
        %s673 = scalar_select %p672, %s33, 1
        %s674 = smul.addr %s673, 8
        %s675 = smul.addr %s674, 8
        %s676 = scalar_lea.vmem %s15, %s675
      $region80: #{transmot_forward.11} parent=19 // pred_fallthru
        _
      // Predicated region
      $region81: #{transmot_forward.11} parent=19 // pred_check
        %p677 = pneg %p468
      $region82: #{transmot_forward.11} parent=19 // pred_check_branch
        %679 = sbr.rel (%p677) target = $region84
      $region83: #{transmot_forward.11} parent=19 // pred_region
        %p680 = scmp.lt.s32.totalorder %s33, 1
        %s681 = scalar_select %p680, %s33, 1
        %s682 = scalar_lea.vmem %s16, %s681
      $region84: #{transmot_forward.11} parent=19 // pred_fallthru
        _
      // Predicated region
      $region85: #{transmot_forward.11} parent=19 // pred_check
        %p683 = pneg %p494
      $region86: #{transmot_forward.11} parent=19 // pred_check_branch
        %685 = sbr.rel (%p683) target = $region88
      $region87: #{transmot_forward.11} parent=19 // pred_region
        %p686 = scmp.lt.s32.totalorder %s33, 1
        %s687 = scalar_select %p686, %s33, 1
        %s688 = scalar_lea.vmem %s17, %s687
      $region88: #{transmot_forward.11} parent=19 // pred_fallthru
        _
      // Predicated region
      $region89: #{transmot_forward.11} parent=19 // pred_check
        %p689 = pneg %p520
      $region90: #{transmot_forward.11} parent=19 // pred_check_branch
        %691 = sbr.rel (%p689) target = $region92
      $region91: #{transmot_forward.11} parent=19 // pred_region
        %p692 = scmp.lt.s32.totalorder %s33, 1
        %s693 = scalar_select %p692, %s33, 1
        %s694 = scalar_lea.vmem %s18, %s693
      $region92: #{transmot_forward.11} parent=19 // pred_fallthru
        _
    $region20: #{transmot_forward.11} parent=5 // pred_fallthru
      _
    %p695 = scmp.le.s32.totalorder 1, %s25
    %p696 = scmp.lt.s32.totalorder %s25, 17
    %p697 = pnand %p695, %p696
    %p698 = pneg %p697
    // Predicated region
    $region93: #{transmot_forward.11} parent=5 // pred_check
      _
    $region94: #{transmot_forward.11} parent=5 // pred_check_branch
      %700 = sbr.rel (%p697) target = $region96
    $region95: #{transmot_forward.11} parent=5 // pred_region
      %s701 = ssub.s32 %s25, 1
      %p702 = scmp.lt.s32.totalorder %s34, 7
      %s703 = scalar_select %p702, %s34, 7
      %s704 = smul.addr %s703, 4
      %s705 = scalar_lea.vmem %s0, %s704
      %p706 = pneg %p63
      %p707 = pneg %p60
      %p708 = pneg %p84
      %p709 = pneg %p81
      %p710 = scmp.lt.s32.totalorder %s34, 7
      %s711 = scalar_select %p710, %s34, 7
      %s712 = scalar_lea.vmem %s2, %s711
      %p713 = pneg %p110
      %p714 = pneg %p107
      %p715 = scmp.lt.s32.totalorder %s35, 1
      %s716 = scalar_select %p715, %s35, 1
      %s717 = smul.addr %s716, 4
      %s718 = smul.addr %s717, 8
      %s719 = scalar_lea.vmem %s3, %s718
      %p720 = pneg %p136
      %p721 = pneg %p133
      %p722 = scmp.lt.s32.totalorder %s35, 1
      %s723 = scalar_select %p722, %s35, 1
      %s724 = scalar_lea.vmem %s4, %s723
      %p725 = pneg %p162
      %p726 = pneg %p159
      %p727 = scmp.lt.s32.totalorder %s35, 1
      %s728 = scalar_select %p727, %s35, 1
      %s729 = smul.addr %s728, 4
      %s730 = smul.addr %s729, 8
      %s731 = scalar_lea.vmem %s5, %s730
      %p732 = pneg %p188
      %p733 = pneg %p185
      %p734 = scmp.lt.s32.totalorder %s35, 1
      %s735 = scalar_select %p734, %s35, 1
      %s736 = scalar_lea.vmem %s6, %s735
      %p737 = pneg %p214
      %p738 = pneg %p211
      %p739 = scmp.lt.s32.totalorder %s35, 1
      %s740 = scalar_select %p739, %s35, 1
      %s741 = smul.addr %s740, 4
      %s742 = smul.addr %s741, 8
      %s743 = scalar_lea.vmem %s7, %s742
      %p744 = pneg %p240
      %p745 = pneg %p237
      %p746 = scmp.lt.s32.totalorder %s35, 1
      %s747 = scalar_select %p746, %s35, 1
      %s748 = scalar_lea.vmem %s8, %s747
      %p749 = pneg %p266
      %p750 = pneg %p263
      %p751 = scmp.lt.s32.totalorder %s35, 1
      %s752 = scalar_select %p751, %s35, 1
      %s753 = smul.addr %s752, 4
      %s754 = smul.addr %s753, 8
      %s755 = scalar_lea.vmem %s9, %s754
      %p756 = pneg %p292
      %p757 = pneg %p289
      %p758 = scmp.lt.s32.totalorder %s35, 1
      %s759 = scalar_select %p758, %s35, 1
      %s760 = scalar_lea.vmem %s10, %s759
      %p761 = pneg %p318
      %p762 = pneg %p315
      %p763 = scmp.lt.s32.totalorder %s35, 1
      %s764 = scalar_select %p763, %s35, 1
      %s765 = scalar_lea.vmem %s11, %s764
      %p766 = pneg %p344
      %p767 = pneg %p341
      %p768 = scmp.lt.s32.totalorder %s35, 1
      %s769 = scalar_select %p768, %s35, 1
      %s770 = scalar_lea.vmem %s12, %s769
      %p771 = pneg %p370
      %p772 = pneg %p367
      %p773 = scmp.lt.s32.totalorder %s35, 1
      %s774 = scalar_select %p773, %s35, 1
      %s775 = smul.addr %s774, 4
      %s776 = smul.addr %s775, 8
      %s777 = scalar_lea.vmem %s13, %s776
      %p778 = pneg %p396
      %p779 = pneg %p393
      %p780 = scmp.lt.s32.totalorder %s35, 1
      %s781 = scalar_select %p780, %s35, 1
      %s782 = scalar_lea.vmem %s14, %s781
      %p783 = pneg %p422
      %p784 = pneg %p419
      %p785 = scmp.lt.s32.totalorder %s35, 1
      %s786 = scalar_select %p785, %s35, 1
      %s787 = smul.addr %s786, 8
      %s788 = smul.addr %s787, 8
      %s789 = scalar_lea.vmem %s15, %s788
      %p790 = pneg %p448
      %p791 = pneg %p445
      %p792 = scmp.lt.s32.totalorder %s35, 1
      %s793 = scalar_select %p792, %s35, 1
      %s794 = scalar_lea.vmem %s16, %s793
      %p795 = pneg %p474
      %p796 = pneg %p471
      %p797 = scmp.lt.s32.totalorder %s35, 1
      %s798 = scalar_select %p797, %s35, 1
      %s799 = scalar_lea.vmem %s17, %s798
      %p800 = pneg %p500
      %p801 = pneg %p497
      %p802 = scmp.lt.s32.totalorder %s35, 1
      %s803 = scalar_select %p802, %s35, 1
      %s804 = scalar_lea.vmem %s18, %s803
      %p805 = pneg %p526
      %p806 = pneg %p523
      %p807 = pneg %p552
      %p808 = pneg %p549
      %p809 = scmp.lt.s32.totalorder %s34, 7
      %s810 = scalar_select %p809, %s34, 7
      %s811 = smul.addr %s810, 4
      %s812 = scalar_lea.vmem %s19, %s811
      %p813 = scmp.lt.s32.totalorder %s34, 7
      %s814 = scalar_select %p813, %s34, 7
      %s815 = smul.addr %s814, 4
      %s816 = scalar_lea.vmem %s0, %s815
      %p817 = scmp.lt.s32.totalorder %s34, 7
      %s818 = scalar_select %p817, %s34, 7
      %s819 = scalar_lea.vmem %s2, %s818
      %p820 = scmp.lt.s32.totalorder %s35, 1
      %s821 = scalar_select %p820, %s35, 1
      %s822 = smul.addr %s821, 4
      %s823 = smul.addr %s822, 8
      %s824 = scalar_lea.vmem %s3, %s823
      %p825 = scmp.lt.s32.totalorder %s35, 1
      %s826 = scalar_select %p825, %s35, 1
      %s827 = scalar_lea.vmem %s4, %s826
      %p828 = scmp.lt.s32.totalorder %s35, 1
      %s829 = scalar_select %p828, %s35, 1
      %s830 = smul.addr %s829, 4
      %s831 = smul.addr %s830, 8
      %s832 = scalar_lea.vmem %s5, %s831
      %p833 = scmp.lt.s32.totalorder %s35, 1
      %s834 = scalar_select %p833, %s35, 1
      %s835 = scalar_lea.vmem %s6, %s834
      %p836 = scmp.lt.s32.totalorder %s35, 1
      %s837 = scalar_select %p836, %s35, 1
      %s838 = smul.addr %s837, 4
      %s839 = smul.addr %s838, 8
      %s840 = scalar_lea.vmem %s7, %s839
      %p841 = scmp.lt.s32.totalorder %s35, 1
      %s842 = scalar_select %p841, %s35, 1
      %s843 = scalar_lea.vmem %s8, %s842
      %p844 = scmp.lt.s32.totalorder %s35, 1
      %s845 = scalar_select %p844, %s35, 1
      %s846 = smul.addr %s845, 4
      %s847 = smul.addr %s846, 8
      %s848 = scalar_lea.vmem %s9, %s847
      %p849 = scmp.lt.s32.totalorder %s35, 1
      %s850 = scalar_select %p849, %s35, 1
      %s851 = scalar_lea.vmem %s10, %s850
      %p852 = scmp.lt.s32.totalorder %s35, 1
      %s853 = scalar_select %p852, %s35, 1
      %s854 = scalar_lea.vmem %s11, %s853
      %p855 = scmp.lt.s32.totalorder %s35, 1
      %s856 = scalar_select %p855, %s35, 1
      %s857 = scalar_lea.vmem %s12, %s856
      %p858 = scmp.lt.s32.totalorder %s35, 1
      %s859 = scalar_select %p858, %s35, 1
      %s860 = smul.addr %s859, 4
      %s861 = smul.addr %s860, 8
      %s862 = scalar_lea.vmem %s13, %s861
      %p863 = scmp.lt.s32.totalorder %s35, 1
      %s864 = scalar_select %p863, %s35, 1
      %s865 = scalar_lea.vmem %s14, %s864
      %p866 = scmp.lt.s32.totalorder %s35, 1
      %s867 = scalar_select %p866, %s35, 1
      %s868 = smul.addr %s867, 8
      %s869 = smul.addr %s868, 8
      %s870 = scalar_lea.vmem %s15, %s869
      %p871 = scmp.lt.s32.totalorder %s35, 1
      %s872 = scalar_select %p871, %s35, 1
      %s873 = scalar_lea.vmem %s16, %s872
      %p874 = scmp.lt.s32.totalorder %s35, 1
      %s875 = scalar_select %p874, %s35, 1
      %s876 = scalar_lea.vmem %s17, %s875
      %p877 = scmp.lt.s32.totalorder %s35, 1
      %s878 = scalar_select %p877, %s35, 1
      %s879 = scalar_lea.vmem %s18, %s878
      %p880 = scmp.lt.s32.totalorder %s34, 7
      %s881 = scalar_select %p880, %s34, 7
      %s882 = smul.addr %s881, 4
      %s883 = scalar_lea.vmem %s19, %s882
      %p884 = scmp.eq.s32.totalorder %s35, 0
      // Predicated region
      $region97: #{transmot_forward.11} parent=95 // pred_check
        %p885 = pneg %p884
      $region98: #{transmot_forward.11} parent=95 // pred_check_branch
        %887 = sbr.rel (%p885) target = $region100
      $region99: #{transmot_forward.11} parent=95 // pred_region
        %v888 = vld [vmem:[%s816] sm:$0xf]
        %vm889 = vcmask 257024
        %890 = vst.msk [vmem:[%s883] sm:$0xf] %vm889, %v888
      $region100: #{transmot_forward.11} parent=95 // pred_fallthru
        _
      %v891 = vld [vmem:[%s883] sm:$0xf]
      %v892 = vld [vmem:[%s1] sm:$0xf]
      %v893 = vld [vmem:[%s819] sm:$0x1]
      %v895 = vperm.slane %v893, 0
      %v897 = vadd.f32 %v892, %v895
      %v898 = vld [vmem:[%s824] sm:$0xff]
      %v899 = vld [vmem:[%s824 + $0x8] sm:$0xff]
      %v900 = vld [vmem:[%s824 + $0x10] sm:$0xff]
      %v901 = vld [vmem:[%s824 + $0x18] sm:$0xff]
      %v902 = vld [vmem:[%s827] sm:$0x1]
      %v903 = vld [vmem:[%s832] sm:$0xff]
      %v904 = vld [vmem:[%s832 + $0x8] sm:$0xff]
      %v905 = vld [vmem:[%s832 + $0x10] sm:$0xff]
      %v906 = vld [vmem:[%s832 + $0x18] sm:$0xff]
      %v907 = vld [vmem:[%s835] sm:$0x1]
      %v908 = vld [vmem:[%s840] sm:$0xff]
      %v909 = vld [vmem:[%s840 + $0x8] sm:$0xff]
      %v910 = vld [vmem:[%s840 + $0x10] sm:$0xff]
      %v911 = vld [vmem:[%s840 + $0x18] sm:$0xff]
      %v912 = vld [vmem:[%s843] sm:$0x1]
      %v913 = vld [vmem:[%s848] sm:$0xff]
      %v914 = vld [vmem:[%s848 + $0x8] sm:$0xff]
      %v915 = vld [vmem:[%s848 + $0x10] sm:$0xff]
      %v916 = vld [vmem:[%s848 + $0x18] sm:$0xff]
      %v917 = vld [vmem:[%s851] sm:$0x1]
      %v919 = vperm.slane %v902, 0
      %vm921 = vcmask 261120
      %v923 = vsel %vm921, %v891, 0
      %925 = vmatpush.msra.mxu0 0.0
      %926 = vmatpush.msra.mxu0 0.0
      %927 = vmatpush.msra.mxu0 0.0
      %928 = vmatpush.msra.mxu0 0.0
      %929 = vmatpush.msra.mxu0 0.0
      %930 = vmatpush.msra.mxu0 0.0
      %931 = vmatpush.msra.mxu0 0.0
      %932 = vmatpush.msra.mxu0 0.0
      %933 = vmatpush.msra.mxu0 0.0
      %934 = vmatpush.msra.mxu0 0.0
      %935 = vmatpush.msra.mxu0 0.0
      %936 = vmatpush.msra.mxu0 0.0
      %937 = vmatpush.msra.mxu0 %v901
      %938 = vmatpush.msra.mxu0 %v900
      %939 = vmatpush.msra.mxu0 %v899
      %940 = vmatpush.msra.mxu0 %v898
      %941 = vmatmul.f32.gmra.mxu0 %v923
      %v942 = vpop.f32.mrf.mxu0
      %v943 = vadd.f32 %v919, %v942
      %944 = vdwg.mxu0
      %v945 = vmul.f32 %v943, 0.35355338
      %v947 = vperm.slane %v907, 0
      %949 = vmatpush.msra.mxu0 0.0
      %950 = vmatpush.msra.mxu0 0.0
      %951 = vmatpush.msra.mxu0 0.0
      %952 = vmatpush.msra.mxu0 0.0
      %953 = vmatpush.msra.mxu0 0.0
      %954 = vmatpush.msra.mxu0 0.0
      %955 = vmatpush.msra.mxu0 0.0
      %956 = vmatpush.msra.mxu0 0.0
      %957 = vmatpush.msra.mxu0 0.0
      %958 = vmatpush.msra.mxu0 0.0
      %959 = vmatpush.msra.mxu0 0.0
      %960 = vmatpush.msra.mxu0 0.0
      %961 = vmatpush.msra.mxu0 %v906
      %962 = vmatpush.msra.mxu0 %v905
      %963 = vmatpush.msra.mxu0 %v904
      %964 = vmatpush.msra.mxu0 %v903
      %965 = vmatmul.f32.gmra.mxu0 %v923
      %v966 = vpop.f32.mrf.mxu0
      %v967 = vadd.f32 %v947, %v966
      %968 = vdwg.mxu0
      %v970 = vperm.slane %v912, 0
      %972 = vmatpush.msra.mxu0 0.0
      %973 = vmatpush.msra.mxu0 0.0
      %974 = vmatpush.msra.mxu0 0.0
      %975 = vmatpush.msra.mxu0 0.0
      %976 = vmatpush.msra.mxu0 0.0
      %977 = vmatpush.msra.mxu0 0.0
      %978 = vmatpush.msra.mxu0 0.0
      %979 = vmatpush.msra.mxu0 0.0
      %980 = vmatpush.msra.mxu0 0.0
      %981 = vmatpush.msra.mxu0 0.0
      %982 = vmatpush.msra.mxu0 0.0
      %983 = vmatpush.msra.mxu0 0.0
      %984 = vmatpush.msra.mxu0 %v911
      %985 = vmatpush.msra.mxu0 %v910
      %986 = vmatpush.msra.mxu0 %v909
      %987 = vmatpush.msra.mxu0 %v908
      %988 = vmatmul.f32.gmra.mxu0 %v923
      %v989 = vpop.f32.mrf.mxu0
      %v990 = vadd.f32 %v970, %v989
      %991 = vdwg.mxu0
      %vm992 = vcmask 64512
      %v994 = vsel %vm992, %v945, 0
      %v997 = vsel %vm992, %v967, 0
      %999 = vmatpush.xpose.msra.mxu0 0.0
      %1000 = vmatpush.xpose.msra.mxu0 0.0
      %1001 = vmatpush.xpose.msra.mxu0 0.0
      %1002 = vmatpush.xpose.msra.mxu0 0.0
      %1003 = vmatpush.xpose.msra.mxu0 0.0
      %1004 = vmatpush.xpose.msra.mxu0 0.0
      %1005 = vmatpush.xpose.msra.mxu0 0.0
      %1006 = vmatpush.xpose.msra.mxu0 0.0
      %1007 = vmatpush.xpose.msra.mxu0 0.0
      %1008 = vmatpush.xpose.msra.mxu0 0.0
      %1009 = vmatpush.xpose.msra.mxu0 0.0
      %1010 = vmatpush.xpose.msra.mxu0 0.0
      %1011 = vmatpush.xpose.msra.mxu0 0.0
      %1012 = vmatpush.xpose.msra.mxu0 0.0
      %1013 = vmatpush.xpose.msra.mxu0 0.0
      %1014 = vmatpush.xpose.msra.mxu0 %v997
      %1015 = vmatmul.f32.gmra.mxu0 %v994
      %v1016 = vpop.f32.mrf.mxu0
      %v1017 = vadd.f32 %v897, %v1016
      %1018 = vdwg.mxu0
      %vm1019 = vcmask 27648
      %v1020 = vsel %vm1019, %v1017, -inf
      %1021 = vmax.xlane.f32.xlu0 %v1020
      %v1022 = vpop.xlane.xlu0 %1021
      %v1023 = vsub.f32 %v1017, %v1022
      %v1024 = vmul.f32 %v1023, 1.442695
      %v1025 = vpow.pop %v1024
      %v1026 = vsel %vm1019, %v1025, 0.0
      %1027 = vadd.xlane.f32.xlu0 %v1026
      %v1028 = vpop.xlane.xlu0 %1027
      %v1029 = vrcp.pop %v1028
      %v1030 = vmul.f32 %v1025, %v1029
      %vm1031 = vcmask 31744
      %v1033 = vsel %vm1031, %v1030, 0
      %vm1035 = vcmask 1043456
      %v1037 = vsel %vm1035, %v990, 0
      %1039 = vmatpush.msra.mxu0 0.0
      %1040 = vmatpush.msra.mxu0 0.0
      %1041 = vmatpush.msra.mxu0 0.0
      %1042 = vmatpush.msra.mxu0 0.0
      %1043 = vmatpush.msra.mxu0 0.0
      %1044 = vmatpush.msra.mxu0 0.0
      %1045 = vmatpush.msra.mxu0 0.0
      %1046 = vmatpush.msra.mxu0 0.0
      %1047 = vmatpush.msra.mxu0 0.0
      %1048 = vmatpush.msra.mxu0 0.0
      %1049 = vmatpush.msra.mxu0 0.0
      %1050 = vmatpush.msra.mxu0 0.0
      %1051 = vmatpush.msra.mxu0 0.0
      %1052 = vmatpush.msra.mxu0 0.0
      %1053 = vmatpush.msra.mxu0 0.0
      %1054 = vmatpush.msra.mxu0 %v1037
      %1055 = vmatmul.f32.gmra.mxu0 %v1033
      %v1056 = vpop.f32.mrf.mxu0
      %v1057 = vadd.f32 0.0, %v1056
      %1058 = vdwg.mxu0
      %1059 = vrot.lane.b32.xlu0 %v945, 120
      %v1060 = vpop.permute.xlu0 %1059
      %1061 = vrot.lane.b32.xlu0 %v967, 120
      %v1062 = vpop.permute.xlu0 %1061
      %v1063 = vsel %vm992, %v1060, 0
      %v1065 = vsel %vm992, %v1062, 0
      %1067 = vmatpush.xpose.msra.mxu0 0.0
      %1068 = vmatpush.xpose.msra.mxu0 0.0
      %1069 = vmatpush.xpose.msra.mxu0 0.0
      %1070 = vmatpush.xpose.msra.mxu0 0.0
      %1071 = vmatpush.xpose.msra.mxu0 0.0
      %1072 = vmatpush.xpose.msra.mxu0 0.0
      %1073 = vmatpush.xpose.msra.mxu0 0.0
      %1074 = vmatpush.xpose.msra.mxu0 0.0
      %1075 = vmatpush.xpose.msra.mxu0 0.0
      %1076 = vmatpush.xpose.msra.mxu0 0.0
      %1077 = vmatpush.xpose.msra.mxu0 0.0
      %1078 = vmatpush.xpose.msra.mxu0 0.0
      %1079 = vmatpush.xpose.msra.mxu0 0.0
      %1080 = vmatpush.xpose.msra.mxu0 0.0
      %1081 = vmatpush.xpose.msra.mxu0 0.0
      %1082 = vmatpush.xpose.msra.mxu0 %v1065
      %1083 = vmatmul.f32.gmra.mxu0 %v1063
      %v1084 = vpop.f32.mrf.mxu0
      %v1085 = vadd.f32 %v897, %v1084
      %1086 = vdwg.mxu0
      %v1087 = vsel %vm1019, %v1085, -inf
      %1088 = vmax.xlane.f32.xlu0 %v1087
      %v1089 = vpop.xlane.xlu0 %1088
      %v1090 = vsub.f32 %v1085, %v1089
      %v1091 = vmul.f32 %v1090, 1.442695
      %v1092 = vpow.pop %v1091
      %v1093 = vsel %vm1019, %v1092, 0.0
      %1094 = vadd.xlane.f32.xlu0 %v1093
      %v1095 = vpop.xlane.xlu0 %1094
      %v1096 = vrcp.pop %v1095
      %v1097 = vmul.f32 %v1092, %v1096
      %1098 = vrot.lane.b32.xlu0 %v990, 120
      %v1099 = vpop.permute.xlu0 %1098
      %v1101 = vsel %vm1031, %v1097, 0
      %v1103 = vsel %vm1035, %v1099, 0
      %1105 = vmatpush.msra.mxu0 0.0
      %1106 = vmatpush.msra.mxu0 0.0
      %1107 = vmatpush.msra.mxu0 0.0
      %1108 = vmatpush.msra.mxu0 0.0
      %1109 = vmatpush.msra.mxu0 0.0
      %1110 = vmatpush.msra.mxu0 0.0
      %1111 = vmatpush.msra.mxu0 0.0
      %1112 = vmatpush.msra.mxu0 0.0
      %1113 = vmatpush.msra.mxu0 0.0
      %1114 = vmatpush.msra.mxu0 0.0
      %1115 = vmatpush.msra.mxu0 0.0
      %1116 = vmatpush.msra.mxu0 0.0
      %1117 = vmatpush.msra.mxu0 0.0
      %1118 = vmatpush.msra.mxu0 0.0
      %1119 = vmatpush.msra.mxu0 0.0
      %1120 = vmatpush.msra.mxu0 %v1103
      %1121 = vmatmul.f32.gmra.mxu0 %v1101
      %v1122 = vpop.f32.mrf.mxu0
      %v1123 = vadd.f32 0.0, %v1122
      %1124 = vdwg.mxu0
      %1125 = vrot.lane.b32.xlu0 %v945, 112
      %v1126 = vpop.permute.xlu0 %1125
      %1127 = vrot.lane.b32.xlu0 %v967, 112
      %v1128 = vpop.permute.xlu0 %1127
      %v1129 = vsel %vm992, %v1126, 0
      %v1131 = vsel %vm992, %v1128, 0
      %1133 = vmatpush.xpose.msra.mxu0 0.0
      %1134 = vmatpush.xpose.msra.mxu0 0.0
      %1135 = vmatpush.xpose.msra.mxu0 0.0
      %1136 = vmatpush.xpose.msra.mxu0 0.0
      %1137 = vmatpush.xpose.msra.mxu0 0.0
      %1138 = vmatpush.xpose.msra.mxu0 0.0
      %1139 = vmatpush.xpose.msra.mxu0 0.0
      %1140 = vmatpush.xpose.msra.mxu0 0.0
      %1141 = vmatpush.xpose.msra.mxu0 0.0
      %1142 = vmatpush.xpose.msra.mxu0 0.0
      %1143 = vmatpush.xpose.msra.mxu0 0.0
      %1144 = vmatpush.xpose.msra.mxu0 0.0
      %1145 = vmatpush.xpose.msra.mxu0 0.0
      %1146 = vmatpush.xpose.msra.mxu0 0.0
      %1147 = vmatpush.xpose.msra.mxu0 0.0
      %1148 = vmatpush.xpose.msra.mxu0 %v1131
      %1149 = vmatmul.f32.gmra.mxu0 %v1129
      %v1150 = vpop.f32.mrf.mxu0
      %v1151 = vadd.f32 %v897, %v1150
      %1152 = vdwg.mxu0
      %v1153 = vsel %vm1019, %v1151, -inf
      %1154 = vmax.xlane.f32.xlu0 %v1153
      %v1155 = vpop.xlane.xlu0 %1154
      %v1156 = vsub.f32 %v1151, %v1155
      %v1157 = vmul.f32 %v1156, 1.442695
      %v1158 = vpow.pop %v1157
      %v1159 = vsel %vm1019, %v1158, 0.0
      %1160 = vadd.xlane.f32.xlu0 %v1159
      %v1161 = vpop.xlane.xlu0 %1160
      %v1162 = vrcp.pop %v1161
      %v1163 = vmul.f32 %v1158, %v1162
      %1164 = vrot.lane.b32.xlu0 %v990, 112
      %v1165 = vpop.permute.xlu0 %1164
      %v1167 = vsel %vm1031, %v1163, 0
      %v1169 = vsel %vm1035, %v1165, 0
      %1171 = vmatpush.msra.mxu0 0.0
      %1172 = vmatpush.msra.mxu0 0.0
      %1173 = vmatpush.msra.mxu0 0.0
      %1174 = vmatpush.msra.mxu0 0.0
      %1175 = vmatpush.msra.mxu0 0.0
      %1176 = vmatpush.msra.mxu0 0.0
      %1177 = vmatpush.msra.mxu0 0.0
      %1178 = vmatpush.msra.mxu0 0.0
      %1179 = vmatpush.msra.mxu0 0.0
      %1180 = vmatpush.msra.mxu0 0.0
      %1181 = vmatpush.msra.mxu0 0.0
      %1182 = vmatpush.msra.mxu0 0.0
      %1183 = vmatpush.msra.mxu0 0.0
      %1184 = vmatpush.msra.mxu0 0.0
      %1185 = vmatpush.msra.mxu0 0.0
      %1186 = vmatpush.msra.mxu0 %v1169
      %1187 = vmatmul.f32.gmra.mxu0 %v1167
      %v1188 = vpop.f32.mrf.mxu0
      %v1189 = vadd.f32 0.0, %v1188
      %1190 = vdwg.mxu0
      %1191 = vrot.lane.b32.xlu0 %v945, 104
      %v1192 = vpop.permute.xlu0 %1191
      %1193 = vrot.lane.b32.xlu0 %v967, 104
      %v1194 = vpop.permute.xlu0 %1193
      %v1195 = vsel %vm992, %v1192, 0
      %v1197 = vsel %vm992, %v1194, 0
      %1199 = vmatpush.xpose.msra.mxu0 0.0
      %1200 = vmatpush.xpose.msra.mxu0 0.0
      %1201 = vmatpush.xpose.msra.mxu0 0.0
      %1202 = vmatpush.xpose.msra.mxu0 0.0
      %1203 = vmatpush.xpose.msra.mxu0 0.0
      %1204 = vmatpush.xpose.msra.mxu0 0.0
      %1205 = vmatpush.xpose.msra.mxu0 0.0
      %1206 = vmatpush.xpose.msra.mxu0 0.0
      %1207 = vmatpush.xpose.msra.mxu0 0.0
      %1208 = vmatpush.xpose.msra.mxu0 0.0
      %1209 = vmatpush.xpose.msra.mxu0 0.0
      %1210 = vmatpush.xpose.msra.mxu0 0.0
      %1211 = vmatpush.xpose.msra.mxu0 0.0
      %1212 = vmatpush.xpose.msra.mxu0 0.0
      %1213 = vmatpush.xpose.msra.mxu0 0.0
      %1214 = vmatpush.xpose.msra.mxu0 %v1197
      %1215 = vmatmul.f32.gmra.mxu0 %v1195
      %v1216 = vpop.f32.mrf.mxu0
      %v1217 = vadd.f32 %v897, %v1216
      %1218 = vdwg.mxu0
      %v1219 = vsel %vm1019, %v1217, -inf
      %1220 = vmax.xlane.f32.xlu0 %v1219
      %v1221 = vpop.xlane.xlu0 %1220
      %v1222 = vsub.f32 %v1217, %v1221
      %v1223 = vmul.f32 %v1222, 1.442695
      %v1224 = vpow.pop %v1223
      %v1225 = vsel %vm1019, %v1224, 0.0
      %1226 = vadd.xlane.f32.xlu0 %v1225
      %v1227 = vpop.xlane.xlu0 %1226
      %v1228 = vrcp.pop %v1227
      %v1229 = vmul.f32 %v1224, %v1228
      %1230 = vrot.lane.b32.xlu0 %v990, 104
      %v1231 = vpop.permute.xlu0 %1230
      %v1233 = vsel %vm1031, %v1229, 0
      %v1235 = vsel %vm1035, %v1231, 0
      %1237 = vmatpush.msra.mxu0 0.0
      %1238 = vmatpush.msra.mxu0 0.0
      %1239 = vmatpush.msra.mxu0 0.0
      %1240 = vmatpush.msra.mxu0 0.0
      %1241 = vmatpush.msra.mxu0 0.0
      %1242 = vmatpush.msra.mxu0 0.0
      %1243 = vmatpush.msra.mxu0 0.0
      %1244 = vmatpush.msra.mxu0 0.0
      %1245 = vmatpush.msra.mxu0 0.0
      %1246 = vmatpush.msra.mxu0 0.0
      %1247 = vmatpush.msra.mxu0 0.0
      %1248 = vmatpush.msra.mxu0 0.0
      %1249 = vmatpush.msra.mxu0 0.0
      %1250 = vmatpush.msra.mxu0 0.0
      %1251 = vmatpush.msra.mxu0 0.0
      %1252 = vmatpush.msra.mxu0 %v1235
      %1253 = vmatmul.f32.gmra.mxu0 %v1233
      %v1254 = vpop.f32.mrf.mxu0
      %v1255 = vadd.f32 0.0, %v1254
      %1256 = vdwg.mxu0
      %1258 = vrot.lane.b32.xlu0 %v1123, 8
      %v1259 = vpop.permute.xlu0 %1258
      %1262 = vrot.lane.b32.xlu0 %v1189, 16
      %v1263 = vpop.permute.xlu0 %1262
      %1266 = vrot.lane.b32.xlu0 %v1255, 24
      %v1267 = vpop.permute.xlu0 %1266
      %v1269 = vsel %vm992, %v1057, %v1259
      %vm1270 = vcmask 130048
      %v1271 = vsel %vm1270, %v1269, %v1263
      %vm1272 = vcmask 195584
      %v1273 = vsel %vm1272, %v1271, %v1267
      %v1275 = vperm.slane %v917, 0
      %v1278 = vsel %vm921, %v1273, 0
      %1280 = vmatpush.msra.mxu0 0.0
      %1281 = vmatpush.msra.mxu0 0.0
      %1282 = vmatpush.msra.mxu0 0.0
      %1283 = vmatpush.msra.mxu0 0.0
      %1284 = vmatpush.msra.mxu0 0.0
      %1285 = vmatpush.msra.mxu0 0.0
      %1286 = vmatpush.msra.mxu0 0.0
      %1287 = vmatpush.msra.mxu0 0.0
      %1288 = vmatpush.msra.mxu0 0.0
      %1289 = vmatpush.msra.mxu0 0.0
      %1290 = vmatpush.msra.mxu0 0.0
      %1291 = vmatpush.msra.mxu0 0.0
      %1292 = vmatpush.msra.mxu0 %v916
      %1293 = vmatpush.msra.mxu0 %v915
      %1294 = vmatpush.msra.mxu0 %v914
      %1295 = vmatpush.msra.mxu0 %v913
      %1296 = vmatmul.f32.gmra.mxu0 %v1278
      %v1297 = vpop.f32.mrf.mxu0
      %v1298 = vadd.f32 %v1275, %v1297
      %1299 = vdwg.mxu0
      %v1300 = vadd.f32 %v891, %v1298
      %v1301 = vld [vmem:[%s854] sm:$0x1]
      %v1302 = vld [vmem:[%s857] sm:$0x1]
      %vm1303 = vcmask 257024
      %v1304 = vsel %vm1303, %v1300, 0.0
      %1305 = vadd.xlane.f32.xlu0 %v1304
      %v1306 = vpop.xlane.xlu0 %1305
      %v1307 = vrcp.pop 32.0
      %v1308 = vmul.f32 32.0, %v1307
      %v1309 = vsub.f32 1.0, %v1308
      %v1310 = vmul.f32 %v1307, %v1309
      %v1311 = vadd.f32 %v1307, %v1310
      %vm1312 = vweird.f32 %v1307
      %v1313 = vsel %vm1312, %v1307, %v1311
      %v1314 = vmul.f32 %v1306, %v1313
      %v1315 = vsub.f32 %v1300, %v1314
      %v1316 = vmul.f32 %v1315, %v1315
      %v1317 = vsel %vm1303, %v1316, 0.0
      %1318 = vadd.xlane.f32.xlu0 %v1317
      %v1319 = vpop.xlane.xlu0 %1318
      %v1320 = vmul.f32 %v1319, %v1313
      %v1321 = vadd.f32 %v1320, 1e-05
      %v1322 = vrsqrt.pop %v1321
      %v1323 = vmul.f32 %v1322, %v1321
      %v1324 = vmul.f32 %v1323, %v1322
      %v1325 = vmul.f32 0.5, %v1324
      %v1326 = vsub.f32 1.5, %v1325
      %v1327 = vmul.f32 %v1322, %v1326
      %vm1328 = vweird.f32 %v1321
      %vm1329 = vweird.f32 %v1322
      %vm1330 = vmor %vm1328, %vm1329
      %v1331 = vsel %vm1330, %v1322, %v1327
      %v1332 = vmul.f32 %v1315, %v1331
      %v1334 = vperm.slane %v1301, 0
      %v1336 = vmul.f32 %v1332, %v1334
      %v1338 = vperm.slane %v1302, 0
      %v1340 = vadd.f32 %v1336, %v1338
      %v1341 = vld [vmem:[%s862] sm:$0xff]
      %v1342 = vld [vmem:[%s862 + $0x8] sm:$0xff]
      %v1343 = vld [vmem:[%s862 + $0x10] sm:$0xff]
      %v1344 = vld [vmem:[%s862 + $0x18] sm:$0xff]
      %v1345 = vld [vmem:[%s865] sm:$0x1]
      %v1346 = vld [vmem:[%s870] sm:$0xff]
      %v1347 = vld [vmem:[%s870 + $0x8] sm:$0xff]
      %v1348 = vld [vmem:[%s870 + $0x10] sm:$0xff]
      %v1349 = vld [vmem:[%s870 + $0x18] sm:$0xff]
      %v1350 = vld [vmem:[%s870 + $0x20] sm:$0xff]
      %v1351 = vld [vmem:[%s870 + $0x28] sm:$0xff]
      %v1352 = vld [vmem:[%s870 + $0x30] sm:$0xff]
      %v1353 = vld [vmem:[%s870 + $0x38] sm:$0xff]
      %v1354 = vld [vmem:[%s873] sm:$0x1]
      %v1356 = vperm.slane %v1345, 0
      %v1359 = vsel %vm921, %v1340, 0
      %1361 = vmatpush.msra.mxu0 0.0
      %1362 = vmatpush.msra.mxu0 0.0
      %1363 = vmatpush.msra.mxu0 0.0
      %1364 = vmatpush.msra.mxu0 0.0
      %1365 = vmatpush.msra.mxu0 0.0
      %1366 = vmatpush.msra.mxu0 0.0
      %1367 = vmatpush.msra.mxu0 0.0
      %1368 = vmatpush.msra.mxu0 0.0
      %1369 = vmatpush.msra.mxu0 0.0
      %1370 = vmatpush.msra.mxu0 0.0
      %1371 = vmatpush.msra.mxu0 0.0
      %1372 = vmatpush.msra.mxu0 0.0
      %1373 = vmatpush.msra.mxu0 %v1344
      %1374 = vmatpush.msra.mxu0 %v1343
      %1375 = vmatpush.msra.mxu0 %v1342
      %1376 = vmatpush.msra.mxu0 %v1341
      %1377 = vmatmul.f32.gmra.mxu0 %v1359
      %v1378 = vpop.f32.mrf.mxu0
      %v1379 = vadd.f32 %v1356, %v1378
      %1380 = vdwg.mxu0
      %v1381 = vmax.f32 %v1379, 0.0
      %v1383 = vperm.slane %v1354, 0
      %vm1385 = vcmask 523264
      %v1387 = vsel %vm1385, %v1381, 0
      %1389 = vmatpush.msra.mxu0 0.0
      %1390 = vmatpush.msra.mxu0 0.0
      %1391 = vmatpush.msra.mxu0 0.0
      %1392 = vmatpush.msra.mxu0 0.0
      %1393 = vmatpush.msra.mxu0 0.0
      %1394 = vmatpush.msra.mxu0 0.0
      %1395 = vmatpush.msra.mxu0 0.0
      %1396 = vmatpush.msra.mxu0 0.0
      %1397 = vmatpush.msra.mxu0 %v1353
      %1398 = vmatpush.msra.mxu0 %v1352
      %1399 = vmatpush.msra.mxu0 %v1351
      %1400 = vmatpush.msra.mxu0 %v1350
      %1401 = vmatpush.msra.mxu0 %v1349
      %1402 = vmatpush.msra.mxu0 %v1348
      %1403 = vmatpush.msra.mxu0 %v1347
      %1404 = vmatpush.msra.mxu0 %v1346
      %1405 = vmatmul.f32.gmra.mxu0 %v1387
      %v1406 = vpop.f32.mrf.mxu0
      %v1407 = vadd.f32 %v1383, %v1406
      %1408 = vdwg.mxu0
      %v1409 = vadd.f32 %v1340, %v1407
      %v1410 = vld [vmem:[%s876] sm:$0x1]
      %v1411 = vld [vmem:[%s879] sm:$0x1]
      %v1412 = vsel %vm1303, %v1409, 0.0
      %1413 = vadd.xlane.f32.xlu0 %v1412
      %v1414 = vpop.xlane.xlu0 %1413
      %v1415 = vmul.f32 %v1414, %v1313
      %v1416 = vsub.f32 %v1409, %v1415
      %v1417 = vmul.f32 %v1416, %v1416
      %v1418 = vsel %vm1303, %v1417, 0.0
      %1419 = vadd.xlane.f32.xlu0 %v1418
      %v1420 = vpop.xlane.xlu0 %1419
      %v1421 = vmul.f32 %v1420, %v1313
      %v1422 = vadd.f32 %v1421, 1e-05
      %v1423 = vrsqrt.pop %v1422
      %v1424 = vmul.f32 %v1423, %v1422
      %v1425 = vmul.f32 %v1424, %v1423
      %v1426 = vmul.f32 0.5, %v1425
      %v1427 = vsub.f32 1.5, %v1426
      %v1428 = vmul.f32 %v1423, %v1427
      %vm1429 = vweird.f32 %v1422
      %vm1430 = vweird.f32 %v1423
      %vm1431 = vmor %vm1429, %vm1430
      %v1432 = vsel %vm1431, %v1423, %v1428
      %v1433 = vmul.f32 %v1416, %v1432
      %v1435 = vperm.slane %v1410, 0
      %v1437 = vmul.f32 %v1433, %v1435
      %v1439 = vperm.slane %v1411, 0
      %v1441 = vadd.f32 %v1437, %v1439
      %1442 = vst.msk [vmem:[%s883] sm:$0xf] %vm1303, %v1441
      %p1443 = scmp.lt.s32.totalorder %s34, 7
      %s1444 = scalar_select %p1443, %s34, 7
      %s1445 = smul.addr %s1444, 4
      %s1446 = scalar_lea.vmem %s19, %s1445
      // Predicated region
      $region101: #{transmot_forward.11} parent=95 // pred_check
        %p1447 = pneg %p549
      $region102: #{transmot_forward.11} parent=95 // pred_check_branch
        %1449 = sbr.rel (%p1447) target = $region104
      $region103: #{transmot_forward.11} parent=95 // pred_region
        _
      $region104: #{transmot_forward.11} parent=95 // pred_fallthru
        _
    $region96: #{transmot_forward.11} parent=5 // pred_fallthru
      _
    %p1450 = scmp.le.s32.totalorder 2, %s25
    // Predicated region
    $region105: #{transmot_forward.11} parent=5 // pred_check
      %p1451 = pneg %p1450
    $region106: #{transmot_forward.11} parent=5 // pred_check_branch
      %1453 = sbr.rel (%p1451) target = $region108
    $region107: #{transmot_forward.11} parent=5 // pred_region
      %s1454 = ssub.s32 %s25, 2
      // Predicated region
      $region109: #{transmot_forward.11} parent=107 // pred_check
        %p1455 = pneg %p555
      $region110: #{transmot_forward.11} parent=107 // pred_check_branch
        %1457 = sbr.rel (%p1455) target = $region112
      $region111: #{transmot_forward.11} parent=107 // pred_region
        %p1458 = scmp.lt.s32.totalorder %s36, 7
        %s1459 = scalar_select %p1458, %s36, 7
        %s1460 = smul.addr %s1459, 4
        %s1461 = scalar_lea.vmem %s19, %s1460
      $region112: #{transmot_forward.11} parent=107 // pred_fallthru
        _
    $region108: #{transmot_forward.11} parent=5 // pred_fallthru
      _
  $region6: #{transmot_forward.11} parent=0 // loop_footer
    %s29 = sadd.s32 1, %s25
  $region7: #{transmot_forward.11} parent=0 // loop_footer_branch
    %24 = sbr.rel target = $region3
  $region8: #{transmot_forward.11} parent=0 // loop_exit
    _

// kernel: transmot_forward.17
$region0: #{transmot_forward.17}
  #allocation0 [shape = 'u32[]', space=smem, size = 0x4, offset = 0x4, fixed_abs, tag = 'smem constant byte address 0x4 - core index']
  #allocation1 [shape = 'u32[72,128]{1,0:T(1,128)}', space=vmem, size = 0x9000, scoped, tag = 'internal scratch']
  %s0 = inlined_call_operand.vmem [shape: f32[54,32], index: 0, kind: input, shape index: {}]
  %s1 = inlined_call_operand.vmem [shape: f32[32,1], index: 1, kind: input, shape index: {}]
  %s2 = inlined_call_operand.vmem [shape: f32[54,1], index: 2, kind: output, shape index: {}]
  %s3 = sld [smem:[#allocation0]]
  $region18: #{transmot_forward.17} parent=0
    _
  %s5 = ssub.s32 1, %s3
  %s6 = scalar_select 0, %s5, %s3
  // Predicated region
  $region2: #{transmot_forward.17} parent=0 // pred_check
    _
  $region3: #{transmot_forward.17} parent=0 // pred_check_branch
    %8 = sbr.rel (0) target = $region5
  $region4: #{transmot_forward.17} parent=0 // pred_region
    _
  $region5: #{transmot_forward.17} parent=0 // pred_fallthru
    _
  // Predicated region
  $region6: #{transmot_forward.17} parent=0 // pred_check
    _
  $region7: #{transmot_forward.17} parent=0 // pred_check_branch
    %10 = sbr.rel (0) target = $region9
  $region8: #{transmot_forward.17} parent=0 // pred_region
    _
  $region9: #{transmot_forward.17} parent=0 // pred_fallthru
    _
  %v11 = vld [vmem:[%s0] sm:$0xff]
  %v12 = vld [vmem:[%s0 + $0x8] sm:$0xff]
  %v13 = vld [vmem:[%s0 + $0x10] sm:$0xff]
  %v14 = vld [vmem:[%s0 + $0x18] sm:$0xff]
  %v15 = vld [vmem:[%s0 + $0x20] sm:$0xff]
  %v16 = vld [vmem:[%s0 + $0x28] sm:$0xff]
  %v17 = vld [vmem:[%s0 + $0x30] sm:$0x3f]
  %v18 = vld [vmem:[%s1] sm:$0xff]
  %v19 = vld [vmem:[%s1 + $0x8] sm:$0xff]
  %v20 = vld [vmem:[%s1 + $0x10] sm:$0xff]
  %v21 = vld [vmem:[%s1 + $0x18] sm:$0xff]
  %vm22 = vcmask 261120
  %v24 = vsel %vm22, %v11, 0
  %v27 = vsel %vm22, %v12, 0
  %v30 = vsel %vm22, %v13, 0
  %v33 = vsel %vm22, %v14, 0
  %v36 = vsel %vm22, %v15, 0
  %v39 = vsel %vm22, %v16, 0
  %v42 = vsel %vm22, %v17, 0
  %44 = vmatpush.msra.mxu0 0.0
  %45 = vmatpush.msra.mxu0 0.0
  %46 = vmatpush.msra.mxu0 0.0
  %47 = vmatpush.msra.mxu0 0.0
  %48 = vmatpush.msra.mxu0 0.0
  %49 = vmatpush.msra.mxu0 0.0
  %50 = vmatpush.msra.mxu0 0.0
  %51 = vmatpush.msra.mxu0 0.0
  %52 = vmatpush.msra.mxu0 0.0
  %53 = vmatpush.msra.mxu0 0.0
  %54 = vmatpush.msra.mxu0 0.0
  %55 = vmatpush.msra.mxu0 0.0
  %56 = vmatpush.msra.mxu0 %v21
  %57 = vmatpush.msra.mxu0 %v20
  %58 = vmatpush.msra.mxu0 %v19
  %59 = vmatpush.msra.mxu0 %v18
  %60 = vmatmul.f32.gmra.mxu0 %v24
  %v61 = vpop.f32.mrf.mxu0
  %v62 = vadd.f32 0.0, %v61
  %63 = vmatmul.f32.gmra.mxu0 %v27
  %v64 = vpop.f32.mrf.mxu0
  %v65 = vadd.f32 0.0, %v64
  %66 = vmatmul.f32.gmra.mxu0 %v30
  %v67 = vpop.f32.mrf.mxu0
  %v68 = vadd.f32 0.0, %v67
  %69 = vmatmul.f32.gmra.mxu0 %v33
  %v70 = vpop.f32.mrf.mxu0
  %v71 = vadd.f32 0.0, %v70
  %72 = vmatmul.f32.gmra.mxu0 %v36
  %v73 = vpop.f32.mrf.mxu0
  %v74 = vadd.f32 0.0, %v73
  %75 = vmatmul.f32.gmra.mxu0 %v39
  %v76 = vpop.f32.mrf.mxu0
  %v77 = vadd.f32 0.0, %v76
  %78 = vmatmul.f32.gmra.mxu0 %v42
  %v79 = vpop.f32.mrf.mxu0
  %v80 = vadd.f32 0.0, %v79
  %81 = vdwg.mxu0
  %vm82 = vcmask 7168
  %83 = vst.msk [vmem:[%s2] sm:$0xff] %vm82, %v62
  %84 = vst.msk [vmem:[%s2 + $0x8] sm:$0xff] %vm82, %v65
  %85 = vst.msk [vmem:[%s2 + $0x10] sm:$0xff] %vm82, %v68
  %86 = vst.msk [vmem:[%s2 + $0x18] sm:$0xff] %vm82, %v71
  %87 = vst.msk [vmem:[%s2 + $0x20] sm:$0xff] %vm82, %v74
  %88 = vst.msk [vmem:[%s2 + $0x28] sm:$0xff] %vm82, %v77
  %vm89 = vcmask 5120
  %90 = vst.msk [vmem:[%s2 + $0x30] sm:$0x3f] %vm89, %v80
  // Predicated region
  $region10: #{transmot_forward.17} parent=0 // pred_check
    _
  $region11: #{transmot_forward.17} parent=0 // pred_check_branch
    %92 = sbr.rel (0) target = $region13
  $region12: #{transmot_forward.17} parent=0 // pred_region
    _
  $region13: #{transmot_forward.17} parent=0 // pred_fallthru
    _
  // Predicated region
  $region14: #{transmot_forward.17} parent=0 // pred_check
    _
  $region15: #{transmot_forward.17} parent=0 // pred_check_branch
    %94 = sbr.rel (0) target = $region17
  $region16: #{transmot_forward.17} parent=0 // pred_region
    _
  $region17: #{transmot_forward.17} parent=0 // pred_fallthru
    _

// kernel: transmot_forward.15
$region0: #{transmot_forward.15}
  #allocation0 [shape = 'u32[]', space=smem, size = 0x4, offset = 0x4, fixed_abs, tag = 'smem constant byte address 0x4 - core index']
  #allocation1 [shape = 'u32[72,128]{1,0:T(1,128)}', space=vmem, size = 0x9000, scoped, tag = 'internal scratch']
  %s0 = inlined_call_operand.vmem [shape: f32[6,9,32], index: 0, kind: input, shape index: {}]
  %s1 = inlined_call_operand.vmem [shape: f32[1,9,9], index: 1, kind: input, shape index: {}]
  %s2 = inlined_call_operand.vmem [shape: f32[32,32], index: 2, kind: input, shape index: {}]
  %s3 = inlined_call_operand.vmem [shape: f32[1,32], index: 3, kind: input, shape index: {}]
  %s4 = inlined_call_operand.vmem [shape: f32[32,32], index: 4, kind: input, shape index: {}]
  %s5 = inlined_call_operand.vmem [shape: f32[1,32], index: 5, kind: input, shape index: {}]
  %s6 = inlined_call_operand.vmem [shape: f32[32,32], index: 6, kind: input, shape index: {}]
  %s7 = inlined_call_operand.vmem [shape: f32[1,32], index: 7, kind: input, shape index: {}]
  %s8 = inlined_call_operand.vmem [shape: f32[32,32], index: 8, kind: input, shape index: {}]
  %s9 = inlined_call_operand.vmem [shape: f32[1,32], index: 9, kind: input, shape index: {}]
  %s10 = inlined_call_operand.vmem [shape: f32[1,32], index: 10, kind: input, shape index: {}]
  %s11 = inlined_call_operand.vmem [shape: f32[1,32], index: 11, kind: input, shape index: {}]
  %s12 = inlined_call_operand.vmem [shape: f32[6,9,32], index: 12, kind: output, shape index: {}]
  %s13 = sld [smem:[#allocation0]]
  $region81: #{transmot_forward.15} parent=0
    _
  %s15 = ssub.s32 1, %s13
  %s16 = scalar_select 0, %s15, %s13
  loop: start=0, step=1, limit=8
  $region2: #{transmot_forward.15} parent=0 // loop_pre_header
    _
  $region3: #{transmot_forward.15} parent=0 // loop_header
    %s18 = sphi 0, %s22
    %p19 = scmp.ge.s32.totalorder %s18, 8
    %s28 = sphi 0, %s30
    %s31 = sphi 0, %s28
    %s32 = sphi 0, %s31
    %s48 = sphi 0, %s32
    %s52 = sphi 0, %s52
    %s54 = sphi 0, %s52
    %s55 = sphi 0, %s54
    %s69 = sphi 0, %s55
    %s73 = sphi 0, %s73
    %s75 = sphi 0, %s73
    %s76 = sphi 0, %s75
    %s90 = sphi 0, %s76
    %s94 = sphi 0, %s94
    %s96 = sphi 0, %s94
    %s97 = sphi 0, %s96
    %s111 = sphi 0, %s97
    %s115 = sphi 0, %s115
    %s117 = sphi 0, %s115
    %s118 = sphi 0, %s117
    %s132 = sphi 0, %s118
    %s136 = sphi 0, %s136
    %s138 = sphi 0, %s136
    %s139 = sphi 0, %s138
    %s153 = sphi 0, %s139
    %s157 = sphi 0, %s157
    %s159 = sphi 0, %s157
    %s160 = sphi 0, %s159
    %s174 = sphi 0, %s160
    %s178 = sphi 0, %s178
    %s180 = sphi 0, %s178
    %s181 = sphi 0, %s180
    %s195 = sphi 0, %s181
    %s199 = sphi 0, %s199
    %s201 = sphi 0, %s199
    %s202 = sphi 0, %s201
    %s216 = sphi 0, %s202
    %s220 = sphi 0, %s220
    %s222 = sphi 0, %s220
    %s223 = sphi 0, %s222
    %s237 = sphi 0, %s223
    %s241 = sphi 0, %s241
    %s243 = sphi 0, %s241
    %s244 = sphi 0, %s243
    %s258 = sphi 0, %s244
    %s262 = sphi 0, %s262
    %s264 = sphi 0, %s262
    %s265 = sphi 0, %s264
    %s279 = sphi 0, %s265
    %s285 = sphi 0, %s287
    %s288 = sphi 0, %s285
    %s289 = sphi 0, %s288
    %s305 = sphi 0, %s289
  $region4: #{transmot_forward.15} parent=0 // loop_header_branch
    %21 = sbr.rel (%p19) target = $region8
  $region5: #{transmot_forward.15} parent=0 // loop_body
    %s23 = ssub.s32 %s18, 1
    %s24 = ssub.s32 %s18, 2
    %s25 = sadd.s32 %s18, 1
    %s26 = ssub.s32 %s18, %s25
    %p27 = scmp.eq.s32.totalorder %s26, 0
    %s29 = sadd.s32 %s28, 1
    %s30 = scalar_select %p27, %s28, %s29
    %p33 = pneg %p27
    %p34 = scmp.eq.s32.totalorder %s18, 5
    %p35 = por %p33, %p34
    %p36 = scmp.ne.s32.totalorder %s28, %s31
    %p37 = scmp.eq.s32.totalorder %s18, 0
    %p38 = por %p36, %p37
    %p39 = scmp.ne.s32.totalorder %s28, %s31
    %p40 = scmp.eq.s32.totalorder %s23, 5
    %p41 = por %p39, %p40
    %p42 = scmp.ne.s32.totalorder %s31, %s32
    %p43 = scmp.eq.s32.totalorder %s23, 0
    %p44 = por %p42, %p43
    %p45 = scmp.ne.s32.totalorder %s31, %s32
    %p46 = scmp.eq.s32.totalorder %s24, 5
    %p47 = por %p45, %p46
    %p49 = scmp.ne.s32.totalorder %s32, %s48
    %p50 = scmp.eq.s32.totalorder %s24, 0
    %p51 = por %p49, %p50
    %s53 = sadd.s32 %s52, 1
    %p56 = scmp.eq.s32.totalorder %s18, 5
    %p57 = scmp.ne.s32.totalorder %s52, %s54
    %p58 = scmp.eq.s32.totalorder %s18, 0
    %p59 = por %p57, %p58
    %p60 = scmp.ne.s32.totalorder %s52, %s54
    %p61 = scmp.eq.s32.totalorder %s23, 5
    %p62 = por %p60, %p61
    %p63 = scmp.ne.s32.totalorder %s54, %s55
    %p64 = scmp.eq.s32.totalorder %s23, 0
    %p65 = por %p63, %p64
    %p66 = scmp.ne.s32.totalorder %s54, %s55
    %p67 = scmp.eq.s32.totalorder %s24, 5
    %p68 = por %p66, %p67
    %p70 = scmp.ne.s32.totalorder %s55, %s69
    %p71 = scmp.eq.s32.totalorder %s24, 0
    %p72 = por %p70, %p71
    %s74 = sadd.s32 %s73, 1
    %p77 = scmp.eq.s32.totalorder %s18, 5
    %p78 = scmp.ne.s32.totalorder %s73, %s75
    %p79 = scmp.eq.s32.totalorder %s18, 0
    %p80 = por %p78, %p79
    %p81 = scmp.ne.s32.totalorder %s73, %s75
    %p82 = scmp.eq.s32.totalorder %s23, 5
    %p83 = por %p81, %p82
    %p84 = scmp.ne.s32.totalorder %s75, %s76
    %p85 = scmp.eq.s32.totalorder %s23, 0
    %p86 = por %p84, %p85
    %p87 = scmp.ne.s32.totalorder %s75, %s76
    %p88 = scmp.eq.s32.totalorder %s24, 5
    %p89 = por %p87, %p88
    %p91 = scmp.ne.s32.totalorder %s76, %s90
    %p92 = scmp.eq.s32.totalorder %s24, 0
    %p93 = por %p91, %p92
    %s95 = sadd.s32 %s94, 1
    %p98 = scmp.eq.s32.totalorder %s18, 5
    %p99 = scmp.ne.s32.totalorder %s94, %s96
    %p100 = scmp.eq.s32.totalorder %s18, 0
    %p101 = por %p99, %p100
    %p102 = scmp.ne.s32.totalorder %s94, %s96
    %p103 = scmp.eq.s32.totalorder %s23, 5
    %p104 = por %p102, %p103
    %p105 = scmp.ne.s32.totalorder %s96, %s97
    %p106 = scmp.eq.s32.totalorder %s23, 0
    %p107 = por %p105, %p106
    %p108 = scmp.ne.s32.totalorder %s96, %s97
    %p109 = scmp.eq.s32.totalorder %s24, 5
    %p110 = por %p108, %p109
    %p112 = scmp.ne.s32.totalorder %s97, %s111
    %p113 = scmp.eq.s32.totalorder %s24, 0
    %p114 = por %p112, %p113
    %s116 = sadd.s32 %s115, 1
    %p119 = scmp.eq.s32.totalorder %s18, 5
    %p120 = scmp.ne.s32.totalorder %s115, %s117
    %p121 = scmp.eq.s32.totalorder %s18, 0
    %p122 = por %p120, %p121
    %p123 = scmp.ne.s32.totalorder %s115, %s117
    %p124 = scmp.eq.s32.totalorder %s23, 5
    %p125 = por %p123, %p124
    %p126 = scmp.ne.s32.totalorder %s117, %s118
    %p127 = scmp.eq.s32.totalorder %s23, 0
    %p128 = por %p126, %p127
    %p129 = scmp.ne.s32.totalorder %s117, %s118
    %p130 = scmp.eq.s32.totalorder %s24, 5
    %p131 = por %p129, %p130
    %p133 = scmp.ne.s32.totalorder %s118, %s132
    %p134 = scmp.eq.s32.totalorder %s24, 0
    %p135 = por %p133, %p134
    %s137 = sadd.s32 %s136, 1
    %p140 = scmp.eq.s32.totalorder %s18, 5
    %p141 = scmp.ne.s32.totalorder %s136, %s138
    %p142 = scmp.eq.s32.totalorder %s18, 0
    %p143 = por %p141, %p142
    %p144 = scmp.ne.s32.totalorder %s136, %s138
    %p145 = scmp.eq.s32.totalorder %s23, 5
    %p146 = por %p144, %p145
    %p147 = scmp.ne.s32.totalorder %s138, %s139
    %p148 = scmp.eq.s32.totalorder %s23, 0
    %p149 = por %p147, %p148
    %p150 = scmp.ne.s32.totalorder %s138, %s139
    %p151 = scmp.eq.s32.totalorder %s24, 5
    %p152 = por %p150, %p151
    %p154 = scmp.ne.s32.totalorder %s139, %s153
    %p155 = scmp.eq.s32.totalorder %s24, 0
    %p156 = por %p154, %p155
    %s158 = sadd.s32 %s157, 1
    %p161 = scmp.eq.s32.totalorder %s18, 5
    %p162 = scmp.ne.s32.totalorder %s157, %s159
    %p163 = scmp.eq.s32.totalorder %s18, 0
    %p164 = por %p162, %p163
    %p165 = scmp.ne.s32.totalorder %s157, %s159
    %p166 = scmp.eq.s32.totalorder %s23, 5
    %p167 = por %p165, %p166
    %p168 = scmp.ne.s32.totalorder %s159, %s160
    %p169 = scmp.eq.s32.totalorder %s23, 0
    %p170 = por %p168, %p169
    %p171 = scmp.ne.s32.totalorder %s159, %s160
    %p172 = scmp.eq.s32.totalorder %s24, 5
    %p173 = por %p171, %p172
    %p175 = scmp.ne.s32.totalorder %s160, %s174
    %p176 = scmp.eq.s32.totalorder %s24, 0
    %p177 = por %p175, %p176
    %s179 = sadd.s32 %s178, 1
    %p182 = scmp.eq.s32.totalorder %s18, 5
    %p183 = scmp.ne.s32.totalorder %s178, %s180
    %p184 = scmp.eq.s32.totalorder %s18, 0
    %p185 = por %p183, %p184
    %p186 = scmp.ne.s32.totalorder %s178, %s180
    %p187 = scmp.eq.s32.totalorder %s23, 5
    %p188 = por %p186, %p187
    %p189 = scmp.ne.s32.totalorder %s180, %s181
    %p190 = scmp.eq.s32.totalorder %s23, 0
    %p191 = por %p189, %p190
    %p192 = scmp.ne.s32.totalorder %s180, %s181
    %p193 = scmp.eq.s32.totalorder %s24, 5
    %p194 = por %p192, %p193
    %p196 = scmp.ne.s32.totalorder %s181, %s195
    %p197 = scmp.eq.s32.totalorder %s24, 0
    %p198 = por %p196, %p197
    %s200 = sadd.s32 %s199, 1
    %p203 = scmp.eq.s32.totalorder %s18, 5
    %p204 = scmp.ne.s32.totalorder %s199, %s201
    %p205 = scmp.eq.s32.totalorder %s18, 0
    %p206 = por %p204, %p205
    %p207 = scmp.ne.s32.totalorder %s199, %s201
    %p208 = scmp.eq.s32.totalorder %s23, 5
    %p209 = por %p207, %p208
    %p210 = scmp.ne.s32.totalorder %s201, %s202
    %p211 = scmp.eq.s32.totalorder %s23, 0
    %p212 = por %p210, %p211
    %p213 = scmp.ne.s32.totalorder %s201, %s202
    %p214 = scmp.eq.s32.totalorder %s24, 5
    %p215 = por %p213, %p214
    %p217 = scmp.ne.s32.totalorder %s202, %s216
    %p218 = scmp.eq.s32.totalorder %s24, 0
    %p219 = por %p217, %p218
    %s221 = sadd.s32 %s220, 1
    %p224 = scmp.eq.s32.totalorder %s18, 5
    %p225 = scmp.ne.s32.totalorder %s220, %s222
    %p226 = scmp.eq.s32.totalorder %s18, 0
    %p227 = por %p225, %p226
    %p228 = scmp.ne.s32.totalorder %s220, %s222
    %p229 = scmp.eq.s32.totalorder %s23, 5
    %p230 = por %p228, %p229
    %p231 = scmp.ne.s32.totalorder %s222, %s223
    %p232 = scmp.eq.s32.totalorder %s23, 0
    %p233 = por %p231, %p232
    %p234 = scmp.ne.s32.totalorder %s222, %s223
    %p235 = scmp.eq.s32.totalorder %s24, 5
    %p236 = por %p234, %p235
    %p238 = scmp.ne.s32.totalorder %s223, %s237
    %p239 = scmp.eq.s32.totalorder %s24, 0
    %p240 = por %p238, %p239
    %s242 = sadd.s32 %s241, 1
    %p245 = scmp.eq.s32.totalorder %s18, 5
    %p246 = scmp.ne.s32.totalorder %s241, %s243
    %p247 = scmp.eq.s32.totalorder %s18, 0
    %p248 = por %p246, %p247
    %p249 = scmp.ne.s32.totalorder %s241, %s243
    %p250 = scmp.eq.s32.totalorder %s23, 5
    %p251 = por %p249, %p250
    %p252 = scmp.ne.s32.totalorder %s243, %s244
    %p253 = scmp.eq.s32.totalorder %s23, 0
    %p254 = por %p252, %p253
    %p255 = scmp.ne.s32.totalorder %s243, %s244
    %p256 = scmp.eq.s32.totalorder %s24, 5
    %p257 = por %p255, %p256
    %p259 = scmp.ne.s32.totalorder %s244, %s258
    %p260 = scmp.eq.s32.totalorder %s24, 0
    %p261 = por %p259, %p260
    %s263 = sadd.s32 %s262, 1
    %p266 = scmp.eq.s32.totalorder %s18, 5
    %p267 = scmp.ne.s32.totalorder %s262, %s264
    %p268 = scmp.eq.s32.totalorder %s18, 0
    %p269 = por %p267, %p268
    %p270 = scmp.ne.s32.totalorder %s262, %s264
    %p271 = scmp.eq.s32.totalorder %s23, 5
    %p272 = por %p270, %p271
    %p273 = scmp.ne.s32.totalorder %s264, %s265
    %p274 = scmp.eq.s32.totalorder %s23, 0
    %p275 = por %p273, %p274
    %p276 = scmp.ne.s32.totalorder %s264, %s265
    %p277 = scmp.eq.s32.totalorder %s24, 5
    %p278 = por %p276, %p277
    %p280 = scmp.ne.s32.totalorder %s265, %s279
    %p281 = scmp.eq.s32.totalorder %s24, 0
    %p282 = por %p280, %p281
    %s283 = ssub.s32 %s18, %s25
    %p284 = scmp.eq.s32.totalorder %s283, 0
    %s286 = sadd.s32 %s285, 1
    %s287 = scalar_select %p284, %s285, %s286
    %p290 = pneg %p284
    %p291 = scmp.eq.s32.totalorder %s18, 5
    %p292 = por %p290, %p291
    %p293 = scmp.ne.s32.totalorder %s285, %s288
    %p294 = scmp.eq.s32.totalorder %s18, 0
    %p295 = por %p293, %p294
    %p296 = scmp.ne.s32.totalorder %s285, %s288
    %p297 = scmp.eq.s32.totalorder %s23, 5
    %p298 = por %p296, %p297
    %p299 = scmp.ne.s32.totalorder %s288, %s289
    %p300 = scmp.eq.s32.totalorder %s23, 0
    %p301 = por %p299, %p300
    %p302 = scmp.ne.s32.totalorder %s288, %s289
    %p303 = scmp.eq.s32.totalorder %s24, 5
    %p304 = por %p302, %p303
    %p306 = scmp.ne.s32.totalorder %s289, %s305
    %p307 = scmp.eq.s32.totalorder %s24, 0
    %p308 = por %p306, %p307
    %p309 = scmp.le.s32.totalorder 1, %s18
    %p310 = scmp.lt.s32.totalorder %s18, 7
    %p311 = pnand %p309, %p310
    %p312 = pneg %p311
    // Predicated region
    $region9: #{transmot_forward.15} parent=5 // pred_check
      _
    $region10: #{transmot_forward.15} parent=5 // pred_check_branch
      %314 = sbr.rel (%p311) target = $region12
    $region11: #{transmot_forward.15} parent=5 // pred_region
      %s315 = ssub.s32 %s18, 1
      // Predicated region
      $region13: #{transmot_forward.15} parent=11 // pred_check
        %p316 = pneg %p65
      $region14: #{transmot_forward.15} parent=11 // pred_check_branch
        %318 = sbr.rel (%p316) target = $region16
      $region15: #{transmot_forward.15} parent=11 // pred_region
        _
      $region16: #{transmot_forward.15} parent=11 // pred_fallthru
        _
      // Predicated region
      $region17: #{transmot_forward.15} parent=11 // pred_check
        %p319 = pneg %p86
      $region18: #{transmot_forward.15} parent=11 // pred_check_branch
        %321 = sbr.rel (%p319) target = $region20
      $region19: #{transmot_forward.15} parent=11 // pred_region
        _
      $region20: #{transmot_forward.15} parent=11 // pred_fallthru
        _
      // Predicated region
      $region21: #{transmot_forward.15} parent=11 // pred_check
        %p322 = pneg %p107
      $region22: #{transmot_forward.15} parent=11 // pred_check_branch
        %324 = sbr.rel (%p322) target = $region24
      $region23: #{transmot_forward.15} parent=11 // pred_region
        _
      $region24: #{transmot_forward.15} parent=11 // pred_fallthru
        _
      // Predicated region
      $region25: #{transmot_forward.15} parent=11 // pred_check
        %p325 = pneg %p128
      $region26: #{transmot_forward.15} parent=11 // pred_check_branch
        %327 = sbr.rel (%p325) target = $region28
      $region27: #{transmot_forward.15} parent=11 // pred_region
        _
      $region28: #{transmot_forward.15} parent=11 // pred_fallthru
        _
      // Predicated region
      $region29: #{transmot_forward.15} parent=11 // pred_check
        %p328 = pneg %p149
      $region30: #{transmot_forward.15} parent=11 // pred_check_branch
        %330 = sbr.rel (%p328) target = $region32
      $region31: #{transmot_forward.15} parent=11 // pred_region
        _
      $region32: #{transmot_forward.15} parent=11 // pred_fallthru
        _
      // Predicated region
      $region33: #{transmot_forward.15} parent=11 // pred_check
        %p331 = pneg %p170
      $region34: #{transmot_forward.15} parent=11 // pred_check_branch
        %333 = sbr.rel (%p331) target = $region36
      $region35: #{transmot_forward.15} parent=11 // pred_region
        _
      $region36: #{transmot_forward.15} parent=11 // pred_fallthru
        _
      // Predicated region
      $region37: #{transmot_forward.15} parent=11 // pred_check
        %p334 = pneg %p191
      $region38: #{transmot_forward.15} parent=11 // pred_check_branch
        %336 = sbr.rel (%p334) target = $region40
      $region39: #{transmot_forward.15} parent=11 // pred_region
        _
      $region40: #{transmot_forward.15} parent=11 // pred_fallthru
        _
      // Predicated region
      $region41: #{transmot_forward.15} parent=11 // pred_check
        %p337 = pneg %p212
      $region42: #{transmot_forward.15} parent=11 // pred_check_branch
        %339 = sbr.rel (%p337) target = $region44
      $region43: #{transmot_forward.15} parent=11 // pred_region
        _
      $region44: #{transmot_forward.15} parent=11 // pred_fallthru
        _
      // Predicated region
      $region45: #{transmot_forward.15} parent=11 // pred_check
        %p340 = pneg %p233
      $region46: #{transmot_forward.15} parent=11 // pred_check_branch
        %342 = sbr.rel (%p340) target = $region48
      $region47: #{transmot_forward.15} parent=11 // pred_region
        _
      $region48: #{transmot_forward.15} parent=11 // pred_fallthru
        _
      // Predicated region
      $region49: #{transmot_forward.15} parent=11 // pred_check
        %p343 = pneg %p254
      $region50: #{transmot_forward.15} parent=11 // pred_check_branch
        %345 = sbr.rel (%p343) target = $region52
      $region51: #{transmot_forward.15} parent=11 // pred_region
        _
      $region52: #{transmot_forward.15} parent=11 // pred_fallthru
        _
      // Predicated region
      $region53: #{transmot_forward.15} parent=11 // pred_check
        %p346 = pneg %p275
      $region54: #{transmot_forward.15} parent=11 // pred_check_branch
        %348 = sbr.rel (%p346) target = $region56
      $region55: #{transmot_forward.15} parent=11 // pred_region
        _
      $region56: #{transmot_forward.15} parent=11 // pred_fallthru
        _
    $region12: #{transmot_forward.15} parent=5 // pred_fallthru
      _
    %p349 = scmp.lt.s32.totalorder %s18, 6
    // Predicated region
    $region57: #{transmot_forward.15} parent=5 // pred_check
      %p350 = pneg %p349
    $region58: #{transmot_forward.15} parent=5 // pred_check_branch
      %352 = sbr.rel (%p350) target = $region60
    $region59: #{transmot_forward.15} parent=5 // pred_region
      // Predicated region
      $region61: #{transmot_forward.15} parent=59 // pred_check
        %p353 = pneg %p38
      $region62: #{transmot_forward.15} parent=59 // pred_check_branch
        %355 = sbr.rel (%p353) target = $region64
      $region63: #{transmot_forward.15} parent=59 // pred_region
        %p356 = scmp.lt.s32.totalorder %s18, 5
        %s357 = scalar_select %p356, %s18, 5
        %s358 = smul.addr %s357, 2
        %s359 = smul.addr %s358, 8
        %s360 = scalar_lea.vmem %s0, %s359
      $region64: #{transmot_forward.15} parent=59 // pred_fallthru
        _
    $region60: #{transmot_forward.15} parent=5 // pred_fallthru
      _
    %p361 = scmp.le.s32.totalorder 1, %s18
    %p362 = scmp.lt.s32.totalorder %s18, 7
    %p363 = pnand %p361, %p362
    %p364 = pneg %p363
    // Predicated region
    $region65: #{transmot_forward.15} parent=5 // pred_check
      _
    $region66: #{transmot_forward.15} parent=5 // pred_check_branch
      %366 = sbr.rel (%p363) target = $region68
    $region67: #{transmot_forward.15} parent=5 // pred_region
      %s367 = ssub.s32 %s18, 1
      %p368 = scmp.lt.s32.totalorder %s23, 5
      %s369 = scalar_select %p368, %s23, 5
      %s370 = smul.addr %s369, 2
      %s371 = smul.addr %s370, 8
      %s372 = scalar_lea.vmem %s0, %s371
      %p373 = pneg %p44
      %p374 = pneg %p41
      %p375 = pneg %p65
      %p376 = pneg %p62
      %p377 = pneg %p86
      %p378 = pneg %p83
      %p379 = pneg %p107
      %p380 = pneg %p104
      %p381 = pneg %p128
      %p382 = pneg %p125
      %p383 = pneg %p149
      %p384 = pneg %p146
      %p385 = pneg %p170
      %p386 = pneg %p167
      %p387 = pneg %p191
      %p388 = pneg %p188
      %p389 = pneg %p212
      %p390 = pneg %p209
      %p391 = pneg %p233
      %p392 = pneg %p230
      %p393 = pneg %p254
      %p394 = pneg %p251
      %p395 = pneg %p275
      %p396 = pneg %p272
      %p397 = pneg %p301
      %p398 = pneg %p298
      %p399 = scmp.lt.s32.totalorder %s23, 5
      %s400 = scalar_select %p399, %s23, 5
      %s401 = smul.addr %s400, 2
      %s402 = smul.addr %s401, 8
      %s403 = scalar_lea.vmem %s12, %s402
      %p404 = scmp.lt.s32.totalorder %s23, 5
      %s405 = scalar_select %p404, %s23, 5
      %s406 = smul.addr %s405, 2
      %s407 = smul.addr %s406, 8
      %s408 = scalar_lea.vmem %s0, %s407
      %p409 = scmp.lt.s32.totalorder %s23, 5
      %s410 = scalar_select %p409, %s23, 5
      %s411 = smul.addr %s410, 2
      %s412 = smul.addr %s411, 8
      %s413 = scalar_lea.vmem %s12, %s412
      %v414 = vld [vmem:[%s408] sm:$0xff]
      %v415 = vld [vmem:[%s408 + $0x8] sm:$0x1]
      %v416 = vld [vmem:[%s1] sm:$0xff]
      %v417 = vld [vmem:[%s1 + $0x8] sm:$0x1]
      %v418 = vld [vmem:[%s2] sm:$0xff]
      %v419 = vld [vmem:[%s2 + $0x8] sm:$0xff]
      %v420 = vld [vmem:[%s2 + $0x10] sm:$0xff]
      %v421 = vld [vmem:[%s2 + $0x18] sm:$0xff]
      %v422 = vld [vmem:[%s3] sm:$0x1]
      %v423 = vld [vmem:[%s4] sm:$0xff]
      %v424 = vld [vmem:[%s4 + $0x8] sm:$0xff]
      %v425 = vld [vmem:[%s4 + $0x10] sm:$0xff]
      %v426 = vld [vmem:[%s4 + $0x18] sm:$0xff]
      %v427 = vld [vmem:[%s5] sm:$0x1]
      %v428 = vld [vmem:[%s6] sm:$0xff]
      %v429 = vld [vmem:[%s6 + $0x8] sm:$0xff]
      %v430 = vld [vmem:[%s6 + $0x10] sm:$0xff]
      %v431 = vld [vmem:[%s6 + $0x18] sm:$0xff]
      %v432 = vld [vmem:[%s7] sm:$0x1]
      %v433 = vld [vmem:[%s8] sm:$0xff]
      %v434 = vld [vmem:[%s8 + $0x8] sm:$0xff]
      %v435 = vld [vmem:[%s8 + $0x10] sm:$0xff]
      %v436 = vld [vmem:[%s8 + $0x18] sm:$0xff]
      %v437 = vld [vmem:[%s9] sm:$0x1]
      %v439 = vperm.slane %v422, 0
      %vm441 = vcmask 261120
      %v443 = vsel %vm441, %v414, 0
      %v446 = vsel %vm441, %v415, 0
      %448 = vmatpush.msra.mxu0 0.0
      %449 = vmatpush.msra.mxu0 0.0
      %450 = vmatpush.msra.mxu0 0.0
      %451 = vmatpush.msra.mxu0 0.0
      %452 = vmatpush.msra.mxu0 0.0
      %453 = vmatpush.msra.mxu0 0.0
      %454 = vmatpush.msra.mxu0 0.0
      %455 = vmatpush.msra.mxu0 0.0
      %456 = vmatpush.msra.mxu0 0.0
      %457 = vmatpush.msra.mxu0 0.0
      %458 = vmatpush.msra.mxu0 0.0
      %459 = vmatpush.msra.mxu0 0.0
      %460 = vmatpush.msra.mxu0 %v421
      %461 = vmatpush.msra.mxu0 %v420
      %462 = vmatpush.msra.mxu0 %v419
      %463 = vmatpush.msra.mxu0 %v418
      %464 = vmatmul.f32.gmra.mxu0 %v443
      %v465 = vpop.f32.mrf.mxu0
      %v466 = vadd.f32 %v439, %v465
      %467 = vmatmul.f32.gmra.mxu0 %v446
      %v468 = vpop.f32.mrf.mxu0
      %v469 = vadd.f32 %v439, %v468
      %470 = vdwg.mxu0
      %v471 = vmul.f32 %v466, 0.35355338
      %v472 = vmul.f32 %v469, 0.35355338
      %v474 = vperm.slane %v427, 0
      %476 = vmatpush.msra.mxu0 0.0
      %477 = vmatpush.msra.mxu0 0.0
      %478 = vmatpush.msra.mxu0 0.0
      %479 = vmatpush.msra.mxu0 0.0
      %480 = vmatpush.msra.mxu0 0.0
      %481 = vmatpush.msra.mxu0 0.0
      %482 = vmatpush.msra.mxu0 0.0
      %483 = vmatpush.msra.mxu0 0.0
      %484 = vmatpush.msra.mxu0 0.0
      %485 = vmatpush.msra.mxu0 0.0
      %486 = vmatpush.msra.mxu0 0.0
      %487 = vmatpush.msra.mxu0 0.0
      %488 = vmatpush.msra.mxu0 %v426
      %489 = vmatpush.msra.mxu0 %v425
      %490 = vmatpush.msra.mxu0 %v424
      %491 = vmatpush.msra.mxu0 %v423
      %492 = vmatmul.f32.gmra.mxu0 %v443
      %v493 = vpop.f32.mrf.mxu0
      %v494 = vadd.f32 %v474, %v493
      %495 = vmatmul.f32.gmra.mxu0 %v446
      %v496 = vpop.f32.mrf.mxu0
      %v497 = vadd.f32 %v474, %v496
      %498 = vdwg.mxu0
      %v500 = vperm.slane %v432, 0
      %502 = vmatpush.msra.mxu0 0.0
      %503 = vmatpush.msra.mxu0 0.0
      %504 = vmatpush.msra.mxu0 0.0
      %505 = vmatpush.msra.mxu0 0.0
      %506 = vmatpush.msra.mxu0 0.0
      %507 = vmatpush.msra.mxu0 0.0
      %508 = vmatpush.msra.mxu0 0.0
      %509 = vmatpush.msra.mxu0 0.0
      %510 = vmatpush.msra.mxu0 0.0
      %511 = vmatpush.msra.mxu0 0.0
      %512 = vmatpush.msra.mxu0 0.0
      %513 = vmatpush.msra.mxu0 0.0
      %514 = vmatpush.msra.mxu0 %v431
      %515 = vmatpush.msra.mxu0 %v430
      %516 = vmatpush.msra.mxu0 %v429
      %517 = vmatpush.msra.mxu0 %v428
      %518 = vmatmul.f32.gmra.mxu0 %v443
      %v519 = vpop.f32.mrf.mxu0
      %v520 = vadd.f32 %v500, %v519
      %521 = vmatmul.f32.gmra.mxu0 %v446
      %v522 = vpop.f32.mrf.mxu0
      %v523 = vadd.f32 %v500, %v522
      %524 = vdwg.mxu0
      %vm525 = vcmask 64512
      %v527 = vsel %vm525, %v471, 0
      %v530 = vsel %vm525, %v472, 0
      %v533 = vsel %vm525, %v494, 0
      %v536 = vsel %vm525, %v497, 0
      %538 = vmatpush.xpose.msra.mxu0 0.0
      %539 = vmatpush.xpose.msra.mxu0 0.0
      %540 = vmatpush.xpose.msra.mxu0 0.0
      %541 = vmatpush.xpose.msra.mxu0 0.0
      %542 = vmatpush.xpose.msra.mxu0 0.0
      %543 = vmatpush.xpose.msra.mxu0 0.0
      %544 = vmatpush.xpose.msra.mxu0 0.0
      %545 = vmatpush.xpose.msra.mxu0 0.0
      %546 = vmatpush.xpose.msra.mxu0 0.0
      %547 = vmatpush.xpose.msra.mxu0 0.0
      %548 = vmatpush.xpose.msra.mxu0 0.0
      %549 = vmatpush.xpose.msra.mxu0 0.0
      %550 = vmatpush.xpose.msra.mxu0 0.0
      %551 = vmatpush.xpose.msra.mxu0 0.0
      %552 = vmatpush.xpose.msra.mxu0 %v536
      %553 = vmatpush.xpose.msra.mxu0 %v533
      %554 = vmatmul.f32.gmra.mxu0 %v527
      %v555 = vpop.f32.mrf.mxu0
      %v556 = vadd.f32 %v416, %v555
      %557 = vmatmul.f32.gmra.mxu0 %v530
      %v558 = vpop.f32.mrf.mxu0
      %v559 = vadd.f32 %v417, %v558
      %560 = vdwg.mxu0
      %vm561 = vcmask 72704
      %v562 = vsel %vm561, %v556, -inf
      %563 = vmax.xlane.f32.xlu0 %v562
      %v564 = vpop.xlane.xlu0 %563
      %vm565 = vcmask 65536
      %v566 = vsel %vm565, %v559, -inf
      %567 = vmax.xlane.f32.xlu0 %v566
      %v568 = vpop.xlane.xlu0 %567
      %v569 = vsub.f32 %v556, %v564
      %v570 = vsub.f32 %v559, %v568
      %v571 = vmul.f32 %v569, 1.442695
      %v572 = vpow.pop %v571
      %v573 = vmul.f32 %v570, 1.442695
      %v574 = vpow.pop %v573
      %v575 = vsel %vm561, %v572, 0.0
      %576 = vadd.xlane.f32.xlu0 %v575
      %v577 = vpop.xlane.xlu0 %576
      %v578 = vsel %vm565, %v574, 0.0
      %579 = vadd.xlane.f32.xlu0 %v578
      %v580 = vpop.xlane.xlu0 %579
      %v581 = vrcp.pop %v577
      %v582 = vrcp.pop %v580
      %v583 = vmul.f32 %v572, %v581
      %v584 = vmul.f32 %v574, %v582
      %v586 = vsel %vm561, %v583, 0
      %v589 = vsel %vm561, %v584, 0
      %vm591 = vcmask 1040384
      %v593 = vsel %vm591, %v523, 0
      %595 = vmatpush.msra.mxu0 0.0
      %596 = vmatpush.msra.mxu0 0.0
      %597 = vmatpush.msra.mxu0 0.0
      %598 = vmatpush.msra.mxu0 0.0
      %599 = vmatpush.msra.mxu0 0.0
      %600 = vmatpush.msra.mxu0 0.0
      %601 = vmatpush.msra.mxu0 0.0
      %602 = vmatpush.msra.mxu0 0.0
      %603 = vmatpush.msra.mxu0 0.0
      %604 = vmatpush.msra.mxu0 0.0
      %605 = vmatpush.msra.mxu0 0.0
      %606 = vmatpush.msra.mxu0 0.0
      %607 = vmatpush.msra.mxu0 0.0
      %608 = vmatpush.msra.mxu0 0.0
      %609 = vmatpush.msra.mxu0 %v593
      %610 = vmatpush.msra.mxu0 %v520
      %611 = vmatmul.f32.gmra.mxu0 %v586
      %v612 = vpop.f32.mrf.mxu0
      %v613 = vadd.f32 0.0, %v612
      %614 = vmatmul.f32.gmra.mxu0 %v589
      %v615 = vpop.f32.mrf.mxu0
      %v616 = vadd.f32 0.0, %v615
      %617 = vdwg.mxu0
      %618 = vrot.lane.b32.xlu0 %v471, 120
      %v619 = vpop.permute.xlu0 %618
      %620 = vrot.lane.b32.xlu0 %v472, 120
      %v621 = vpop.permute.xlu0 %620
      %622 = vrot.lane.b32.xlu0 %v494, 120
      %v623 = vpop.permute.xlu0 %622
      %624 = vrot.lane.b32.xlu0 %v497, 120
      %v625 = vpop.permute.xlu0 %624
      %v626 = vsel %vm525, %v619, 0
      %v628 = vsel %vm525, %v621, 0
      %v630 = vsel %vm525, %v623, 0
      %v632 = vsel %vm525, %v625, 0
      %634 = vmatpush.xpose.msra.mxu0 0.0
      %635 = vmatpush.xpose.msra.mxu0 0.0
      %636 = vmatpush.xpose.msra.mxu0 0.0
      %637 = vmatpush.xpose.msra.mxu0 0.0
      %638 = vmatpush.xpose.msra.mxu0 0.0
      %639 = vmatpush.xpose.msra.mxu0 0.0
      %640 = vmatpush.xpose.msra.mxu0 0.0
      %641 = vmatpush.xpose.msra.mxu0 0.0
      %642 = vmatpush.xpose.msra.mxu0 0.0
      %643 = vmatpush.xpose.msra.mxu0 0.0
      %644 = vmatpush.xpose.msra.mxu0 0.0
      %645 = vmatpush.xpose.msra.mxu0 0.0
      %646 = vmatpush.xpose.msra.mxu0 0.0
      %647 = vmatpush.xpose.msra.mxu0 0.0
      %648 = vmatpush.xpose.msra.mxu0 %v632
      %649 = vmatpush.xpose.msra.mxu0 %v630
      %650 = vmatmul.f32.gmra.mxu0 %v626
      %v651 = vpop.f32.mrf.mxu0
      %v652 = vadd.f32 %v416, %v651
      %653 = vmatmul.f32.gmra.mxu0 %v628
      %v654 = vpop.f32.mrf.mxu0
      %v655 = vadd.f32 %v417, %v654
      %656 = vdwg.mxu0
      %v657 = vsel %vm561, %v652, -inf
      %658 = vmax.xlane.f32.xlu0 %v657
      %v659 = vpop.xlane.xlu0 %658
      %v660 = vsel %vm565, %v655, -inf
      %661 = vmax.xlane.f32.xlu0 %v660
      %v662 = vpop.xlane.xlu0 %661
      %v663 = vsub.f32 %v652, %v659
      %v664 = vsub.f32 %v655, %v662
      %v665 = vmul.f32 %v663, 1.442695
      %v666 = vpow.pop %v665
      %v667 = vmul.f32 %v664, 1.442695
      %v668 = vpow.pop %v667
      %v669 = vsel %vm561, %v666, 0.0
      %670 = vadd.xlane.f32.xlu0 %v669
      %v671 = vpop.xlane.xlu0 %670
      %v672 = vsel %vm565, %v668, 0.0
      %673 = vadd.xlane.f32.xlu0 %v672
      %v674 = vpop.xlane.xlu0 %673
      %v675 = vrcp.pop %v671
      %v676 = vrcp.pop %v674
      %v677 = vmul.f32 %v666, %v675
      %v678 = vmul.f32 %v668, %v676
      %680 = vrot.lane.b32.xlu0 %v520, 120
      %v681 = vpop.permute.xlu0 %680
      %682 = vrot.lane.b32.xlu0 %v523, 120
      %v683 = vpop.permute.xlu0 %682
      %v686 = vsel %vm561, %v677, 0
      %v689 = vsel %vm561, %v678, 0
      %v691 = vsel %vm591, %v683, 0
      %693 = vmatpush.msra.mxu0 0.0
      %694 = vmatpush.msra.mxu0 0.0
      %695 = vmatpush.msra.mxu0 0.0
      %696 = vmatpush.msra.mxu0 0.0
      %697 = vmatpush.msra.mxu0 0.0
      %698 = vmatpush.msra.mxu0 0.0
      %699 = vmatpush.msra.mxu0 0.0
      %700 = vmatpush.msra.mxu0 0.0
      %701 = vmatpush.msra.mxu0 0.0
      %702 = vmatpush.msra.mxu0 0.0
      %703 = vmatpush.msra.mxu0 0.0
      %704 = vmatpush.msra.mxu0 0.0
      %705 = vmatpush.msra.mxu0 0.0
      %706 = vmatpush.msra.mxu0 0.0
      %707 = vmatpush.msra.mxu0 %v691
      %708 = vmatpush.msra.mxu0 %v681
      %709 = vmatmul.f32.gmra.mxu0 %v686
      %v710 = vpop.f32.mrf.mxu0
      %v711 = vadd.f32 0.0, %v710
      %712 = vmatmul.f32.gmra.mxu0 %v689
      %v713 = vpop.f32.mrf.mxu0
      %v714 = vadd.f32 0.0, %v713
      %715 = vdwg.mxu0
      %716 = vrot.lane.b32.xlu0 %v471, 112
      %v717 = vpop.permute.xlu0 %716
      %718 = vrot.lane.b32.xlu0 %v472, 112
      %v719 = vpop.permute.xlu0 %718
      %720 = vrot.lane.b32.xlu0 %v494, 112
      %v721 = vpop.permute.xlu0 %720
      %722 = vrot.lane.b32.xlu0 %v497, 112
      %v723 = vpop.permute.xlu0 %722
      %v724 = vsel %vm525, %v717, 0
      %v726 = vsel %vm525, %v719, 0
      %v728 = vsel %vm525, %v721, 0
      %v730 = vsel %vm525, %v723, 0
      %732 = vmatpush.xpose.msra.mxu0 0.0
      %733 = vmatpush.xpose.msra.mxu0 0.0
      %734 = vmatpush.xpose.msra.mxu0 0.0
      %735 = vmatpush.xpose.msra.mxu0 0.0
      %736 = vmatpush.xpose.msra.mxu0 0.0
      %737 = vmatpush.xpose.msra.mxu0 0.0
      %738 = vmatpush.xpose.msra.mxu0 0.0
      %739 = vmatpush.xpose.msra.mxu0 0.0
      %740 = vmatpush.xpose.msra.mxu0 0.0
      %741 = vmatpush.xpose.msra.mxu0 0.0
      %742 = vmatpush.xpose.msra.mxu0 0.0
      %743 = vmatpush.xpose.msra.mxu0 0.0
      %744 = vmatpush.xpose.msra.mxu0 0.0
      %745 = vmatpush.xpose.msra.mxu0 0.0
      %746 = vmatpush.xpose.msra.mxu0 %v730
      %747 = vmatpush.xpose.msra.mxu0 %v728
      %748 = vmatmul.f32.gmra.mxu0 %v724
      %v749 = vpop.f32.mrf.mxu0
      %v750 = vadd.f32 %v416, %v749
      %751 = vmatmul.f32.gmra.mxu0 %v726
      %v752 = vpop.f32.mrf.mxu0
      %v753 = vadd.f32 %v417, %v752
      %754 = vdwg.mxu0
      %v755 = vsel %vm561, %v750, -inf
      %756 = vmax.xlane.f32.xlu0 %v755
      %v757 = vpop.xlane.xlu0 %756
      %v758 = vsel %vm565, %v753, -inf
      %759 = vmax.xlane.f32.xlu0 %v758
      %v760 = vpop.xlane.xlu0 %759
      %v761 = vsub.f32 %v750, %v757
      %v762 = vsub.f32 %v753, %v760
      %v763 = vmul.f32 %v761, 1.442695
      %v764 = vpow.pop %v763
      %v765 = vmul.f32 %v762, 1.442695
      %v766 = vpow.pop %v765
      %v767 = vsel %vm561, %v764, 0.0
      %768 = vadd.xlane.f32.xlu0 %v767
      %v769 = vpop.xlane.xlu0 %768
      %v770 = vsel %vm565, %v766, 0.0
      %771 = vadd.xlane.f32.xlu0 %v770
      %v772 = vpop.xlane.xlu0 %771
      %v773 = vrcp.pop %v769
      %v774 = vrcp.pop %v772
      %v775 = vmul.f32 %v764, %v773
      %v776 = vmul.f32 %v766, %v774
      %777 = vrot.lane.b32.xlu0 %v520, 112
      %v778 = vpop.permute.xlu0 %777
      %779 = vrot.lane.b32.xlu0 %v523, 112
      %v780 = vpop.permute.xlu0 %779
      %v783 = vsel %vm561, %v775, 0
      %v786 = vsel %vm561, %v776, 0
      %v788 = vsel %vm591, %v780, 0
      %790 = vmatpush.msra.mxu0 0.0
      %791 = vmatpush.msra.mxu0 0.0
      %792 = vmatpush.msra.mxu0 0.0
      %793 = vmatpush.msra.mxu0 0.0
      %794 = vmatpush.msra.mxu0 0.0
      %795 = vmatpush.msra.mxu0 0.0
      %796 = vmatpush.msra.mxu0 0.0
      %797 = vmatpush.msra.mxu0 0.0
      %798 = vmatpush.msra.mxu0 0.0
      %799 = vmatpush.msra.mxu0 0.0
      %800 = vmatpush.msra.mxu0 0.0
      %801 = vmatpush.msra.mxu0 0.0
      %802 = vmatpush.msra.mxu0 0.0
      %803 = vmatpush.msra.mxu0 0.0
      %804 = vmatpush.msra.mxu0 %v788
      %805 = vmatpush.msra.mxu0 %v778
      %806 = vmatmul.f32.gmra.mxu0 %v783
      %v807 = vpop.f32.mrf.mxu0
      %v808 = vadd.f32 0.0, %v807
      %809 = vmatmul.f32.gmra.mxu0 %v786
      %v810 = vpop.f32.mrf.mxu0
      %v811 = vadd.f32 0.0, %v810
      %812 = vdwg.mxu0
      %813 = vrot.lane.b32.xlu0 %v471, 104
      %v814 = vpop.permute.xlu0 %813
      %815 = vrot.lane.b32.xlu0 %v472, 104
      %v816 = vpop.permute.xlu0 %815
      %817 = vrot.lane.b32.xlu0 %v494, 104
      %v818 = vpop.permute.xlu0 %817
      %819 = vrot.lane.b32.xlu0 %v497, 104
      %v820 = vpop.permute.xlu0 %819
      %v821 = vsel %vm525, %v814, 0
      %v823 = vsel %vm525, %v816, 0
      %v825 = vsel %vm525, %v818, 0
      %v827 = vsel %vm525, %v820, 0
      %829 = vmatpush.xpose.msra.mxu0 0.0
      %830 = vmatpush.xpose.msra.mxu0 0.0
      %831 = vmatpush.xpose.msra.mxu0 0.0
      %832 = vmatpush.xpose.msra.mxu0 0.0
      %833 = vmatpush.xpose.msra.mxu0 0.0
      %834 = vmatpush.xpose.msra.mxu0 0.0
      %835 = vmatpush.xpose.msra.mxu0 0.0
      %836 = vmatpush.xpose.msra.mxu0 0.0
      %837 = vmatpush.xpose.msra.mxu0 0.0
      %838 = vmatpush.xpose.msra.mxu0 0.0
      %839 = vmatpush.xpose.msra.mxu0 0.0
      %840 = vmatpush.xpose.msra.mxu0 0.0
      %841 = vmatpush.xpose.msra.mxu0 0.0
      %842 = vmatpush.xpose.msra.mxu0 0.0
      %843 = vmatpush.xpose.msra.mxu0 %v827
      %844 = vmatpush.xpose.msra.mxu0 %v825
      %845 = vmatmul.f32.gmra.mxu0 %v821
      %v846 = vpop.f32.mrf.mxu0
      %v847 = vadd.f32 %v416, %v846
      %848 = vmatmul.f32.gmra.mxu0 %v823
      %v849 = vpop.f32.mrf.mxu0
      %v850 = vadd.f32 %v417, %v849
      %851 = vdwg.mxu0
      %v852 = vsel %vm561, %v847, -inf
      %853 = vmax.xlane.f32.xlu0 %v852
      %v854 = vpop.xlane.xlu0 %853
      %v855 = vsel %vm565, %v850, -inf
      %856 = vmax.xlane.f32.xlu0 %v855
      %v857 = vpop.xlane.xlu0 %856
      %v858 = vsub.f32 %v847, %v854
      %v859 = vsub.f32 %v850, %v857
      %v860 = vmul.f32 %v858, 1.442695
      %v861 = vpow.pop %v860
      %v862 = vmul.f32 %v859, 1.442695
      %v863 = vpow.pop %v862
      %v864 = vsel %vm561, %v861, 0.0
      %865 = vadd.xlane.f32.xlu0 %v864
      %v866 = vpop.xlane.xlu0 %865
      %v867 = vsel %vm565, %v863, 0.0
      %868 = vadd.xlane.f32.xlu0 %v867
      %v869 = vpop.xlane.xlu0 %868
      %v870 = vrcp.pop %v866
      %v871 = vrcp.pop %v869
      %v872 = vmul.f32 %v861, %v870
      %v873 = vmul.f32 %v863, %v871
      %874 = vrot.lane.b32.xlu0 %v520, 104
      %v875 = vpop.permute.xlu0 %874
      %876 = vrot.lane.b32.xlu0 %v523, 104
      %v877 = vpop.permute.xlu0 %876
      %v880 = vsel %vm561, %v872, 0
      %v883 = vsel %vm561, %v873, 0
      %v885 = vsel %vm591, %v877, 0
      %887 = vmatpush.msra.mxu0 0.0
      %888 = vmatpush.msra.mxu0 0.0
      %889 = vmatpush.msra.mxu0 0.0
      %890 = vmatpush.msra.mxu0 0.0
      %891 = vmatpush.msra.mxu0 0.0
      %892 = vmatpush.msra.mxu0 0.0
      %893 = vmatpush.msra.mxu0 0.0
      %894 = vmatpush.msra.mxu0 0.0
      %895 = vmatpush.msra.mxu0 0.0
      %896 = vmatpush.msra.mxu0 0.0
      %897 = vmatpush.msra.mxu0 0.0
      %898 = vmatpush.msra.mxu0 0.0
      %899 = vmatpush.msra.mxu0 0.0
      %900 = vmatpush.msra.mxu0 0.0
      %901 = vmatpush.msra.mxu0 %v885
      %902 = vmatpush.msra.mxu0 %v875
      %903 = vmatmul.f32.gmra.mxu0 %v880
      %v904 = vpop.f32.mrf.mxu0
      %v905 = vadd.f32 0.0, %v904
      %906 = vmatmul.f32.gmra.mxu0 %v883
      %v907 = vpop.f32.mrf.mxu0
      %v908 = vadd.f32 0.0, %v907
      %909 = vdwg.mxu0
      %912 = vrot.lane.b32.xlu0 %v711, 8
      %v913 = vpop.permute.xlu0 %912
      %914 = vrot.lane.b32.xlu0 %v714, 8
      %v915 = vpop.permute.xlu0 %914
      %920 = vrot.lane.b32.xlu0 %v808, 16
      %v921 = vpop.permute.xlu0 %920
      %922 = vrot.lane.b32.xlu0 %v811, 16
      %v923 = vpop.permute.xlu0 %922
      %928 = vrot.lane.b32.xlu0 %v905, 24
      %v929 = vpop.permute.xlu0 %928
      %930 = vrot.lane.b32.xlu0 %v908, 24
      %v931 = vpop.permute.xlu0 %930
      %v934 = vsel %vm525, %v613, %v913
      %v935 = vsel %vm525, %v616, %v915
      %vm936 = vcmask 130048
      %v937 = vsel %vm936, %v934, %v921
      %v938 = vsel %vm936, %v935, %v923
      %vm939 = vcmask 195584
      %v940 = vsel %vm939, %v937, %v929
      %v941 = vsel %vm939, %v938, %v931
      %v943 = vperm.slane %v437, 0
      %v946 = vsel %vm441, %v940, 0
      %v949 = vsel %vm441, %v941, 0
      %951 = vmatpush.msra.mxu0 0.0
      %952 = vmatpush.msra.mxu0 0.0
      %953 = vmatpush.msra.mxu0 0.0
      %954 = vmatpush.msra.mxu0 0.0
      %955 = vmatpush.msra.mxu0 0.0
      %956 = vmatpush.msra.mxu0 0.0
      %957 = vmatpush.msra.mxu0 0.0
      %958 = vmatpush.msra.mxu0 0.0
      %959 = vmatpush.msra.mxu0 0.0
      %960 = vmatpush.msra.mxu0 0.0
      %961 = vmatpush.msra.mxu0 0.0
      %962 = vmatpush.msra.mxu0 0.0
      %963 = vmatpush.msra.mxu0 %v436
      %964 = vmatpush.msra.mxu0 %v435
      %965 = vmatpush.msra.mxu0 %v434
      %966 = vmatpush.msra.mxu0 %v433
      %967 = vmatmul.f32.gmra.mxu0 %v946
      %v968 = vpop.f32.mrf.mxu0
      %v969 = vadd.f32 %v943, %v968
      %970 = vmatmul.f32.gmra.mxu0 %v949
      %v971 = vpop.f32.mrf.mxu0
      %v972 = vadd.f32 %v943, %v971
      %973 = vdwg.mxu0
      %v974 = vadd.f32 %v414, %v969
      %v975 = vadd.f32 %v415, %v972
      %v976 = vld [vmem:[%s10] sm:$0x1]
      %v977 = vld [vmem:[%s11] sm:$0x1]
      %v978 = vsel %vm441, %v974, 0.0
      %979 = vadd.xlane.f32.xlu0 %v978
      %v980 = vpop.xlane.xlu0 %979
      %vm981 = vcmask 253952
      %v982 = vsel %vm981, %v975, 0.0
      %983 = vadd.xlane.f32.xlu0 %v982
      %v984 = vpop.xlane.xlu0 %983
      %v985 = vrcp.pop 32.0
      %v986 = vmul.f32 32.0, %v985
      %v987 = vsub.f32 1.0, %v986
      %v988 = vmul.f32 %v985, %v987
      %v989 = vadd.f32 %v985, %v988
      %vm990 = vweird.f32 %v985
      %v991 = vsel %vm990, %v985, %v989
      %v992 = vmul.f32 %v980, %v991
      %v993 = vmul.f32 %v984, %v991
      %v994 = vsub.f32 %v974, %v992
      %v995 = vsub.f32 %v975, %v993
      %v996 = vmul.f32 %v994, %v994
      %v997 = vmul.f32 %v995, %v995
      %v998 = vsel %vm441, %v996, 0.0
      %999 = vadd.xlane.f32.xlu0 %v998
      %v1000 = vpop.xlane.xlu0 %999
      %v1001 = vsel %vm981, %v997, 0.0
      %1002 = vadd.xlane.f32.xlu0 %v1001
      %v1003 = vpop.xlane.xlu0 %1002
      %v1004 = vmul.f32 %v1000, %v991
      %v1005 = vmul.f32 %v1003, %v991
      %v1006 = vadd.f32 %v1004, 1e-05
      %v1007 = vadd.f32 %v1005, 1e-05
      %v1008 = vrsqrt.pop %v1006
      %v1009 = vmul.f32 %v1008, %v1006
      %v1010 = vmul.f32 %v1009, %v1008
      %v1011 = vmul.f32 0.5, %v1010
      %v1012 = vsub.f32 1.5, %v1011
      %v1013 = vmul.f32 %v1008, %v1012
      %vm1014 = vweird.f32 %v1006
      %vm1015 = vweird.f32 %v1008
      %vm1016 = vmor %vm1014, %vm1015
      %v1017 = vsel %vm1016, %v1008, %v1013
      %v1018 = vrsqrt.pop %v1007
      %v1019 = vmul.f32 %v1018, %v1007
      %v1020 = vmul.f32 %v1019, %v1018
      %v1021 = vmul.f32 0.5, %v1020
      %v1022 = vsub.f32 1.5, %v1021
      %v1023 = vmul.f32 %v1018, %v1022
      %vm1024 = vweird.f32 %v1007
      %vm1025 = vweird.f32 %v1018
      %vm1026 = vmor %vm1024, %vm1025
      %v1027 = vsel %vm1026, %v1018, %v1023
      %v1028 = vmul.f32 %v994, %v1017
      %v1029 = vmul.f32 %v995, %v1027
      %v1031 = vperm.slane %v976, 0
      %v1033 = vmul.f32 %v1028, %v1031
      %v1034 = vmul.f32 %v1029, %v1031
      %v1036 = vperm.slane %v977, 0
      %v1038 = vadd.f32 %v1033, %v1036
      %v1039 = vadd.f32 %v1034, %v1036
      %1040 = vst.msk [vmem:[%s413] sm:$0xff] %vm441, %v1038
      %1041 = vst.msk [vmem:[%s413 + $0x8] sm:$0x1] %vm981, %v1039
      %p1042 = scmp.lt.s32.totalorder %s23, 5
      %s1043 = scalar_select %p1042, %s23, 5
      %s1044 = smul.addr %s1043, 2
      %s1045 = smul.addr %s1044, 8
      %s1046 = scalar_lea.vmem %s12, %s1045
      // Predicated region
      $region69: #{transmot_forward.15} parent=67 // pred_check
        %p1047 = pneg %p298
      $region70: #{transmot_forward.15} parent=67 // pred_check_branch
        %1049 = sbr.rel (%p1047) target = $region72
      $region71: #{transmot_forward.15} parent=67 // pred_region
        _
      $region72: #{transmot_forward.15} parent=67 // pred_fallthru
        _
    $region68: #{transmot_forward.15} parent=5 // pred_fallthru
      _
    %p1050 = scmp.le.s32.totalorder 2, %s18
    // Predicated region
    $region73: #{transmot_forward.15} parent=5 // pred_check
      %p1051 = pneg %p1050
    $region74: #{transmot_forward.15} parent=5 // pred_check_branch
      %1053 = sbr.rel (%p1051) target = $region76
    $region75: #{transmot_forward.15} parent=5 // pred_region
      %s1054 = ssub.s32 %s18, 2
      // Predicated region
      $region77: #{transmot_forward.15} parent=75 // pred_check
        %p1055 = pneg %p304
      $region78: #{transmot_forward.15} parent=75 // pred_check_branch
        %1057 = sbr.rel (%p1055) target = $region80
      $region79: #{transmot_forward.15} parent=75 // pred_region
        %p1058 = scmp.lt.s32.totalorder %s24, 5
        %s1059 = scalar_select %p1058, %s24, 5
        %s1060 = smul.addr %s1059, 2
        %s1061 = smul.addr %s1060, 8
        %s1062 = scalar_lea.vmem %s12, %s1061
      $region80: #{transmot_forward.15} parent=75 // pred_fallthru
        _
    $region76: #{transmot_forward.15} parent=5 // pred_fallthru
      _
  $region6: #{transmot_forward.15} parent=0 // loop_footer
    %s22 = sadd.s32 1, %s18
  $region7: #{transmot_forward.15} parent=0 // loop_footer_branch
    %17 = sbr.rel target = $region3
  $region8: #{transmot_forward.15} parent=0 // loop_exit
    _

// kernel: transmot_forward.16
$region0: #{transmot_forward.16}
  #allocation0 [shape = 'u32[]', space=smem, size = 0x4, offset = 0x4, fixed_abs, tag = 'smem constant byte address 0x4 - core index']
  #allocation1 [shape = 'u32[72,128]{1,0:T(1,128)}', space=vmem, size = 0x9000, scoped, tag = 'internal scratch']
  %s0 = inlined_call_operand.vmem [shape: f32[9,6,32], index: 0, kind: input, shape index: {}]
  %s1 = inlined_call_operand.vmem [shape: f32[9,4,32], index: 1, kind: input, shape index: {}]
  %s2 = inlined_call_operand.vmem [shape: f32[9,1,4], index: 2, kind: input, shape index: {}]
  %s3 = inlined_call_operand.vmem [shape: f32[32,32], index: 3, kind: input, shape index: {}]
  %s4 = inlined_call_operand.vmem [shape: f32[1,32], index: 4, kind: input, shape index: {}]
  %s5 = inlined_call_operand.vmem [shape: f32[32,32], index: 5, kind: input, shape index: {}]
  %s6 = inlined_call_operand.vmem [shape: f32[1,32], index: 6, kind: input, shape index: {}]
  %s7 = inlined_call_operand.vmem [shape: f32[32,32], index: 7, kind: input, shape index: {}]
  %s8 = inlined_call_operand.vmem [shape: f32[1,32], index: 8, kind: input, shape index: {}]
  %s9 = inlined_call_operand.vmem [shape: f32[32,32], index: 9, kind: input, shape index: {}]
  %s10 = inlined_call_operand.vmem [shape: f32[1,32], index: 10, kind: input, shape index: {}]
  %s11 = inlined_call_operand.vmem [shape: f32[1,32], index: 11, kind: input, shape index: {}]
  %s12 = inlined_call_operand.vmem [shape: f32[1,32], index: 12, kind: input, shape index: {}]
  %s13 = inlined_call_operand.vmem [shape: f32[32,64], index: 13, kind: input, shape index: {}]
  %s14 = inlined_call_operand.vmem [shape: f32[1,64], index: 14, kind: input, shape index: {}]
  %s15 = inlined_call_operand.vmem [shape: f32[64,32], index: 15, kind: input, shape index: {}]
  %s16 = inlined_call_operand.vmem [shape: f32[1,32], index: 16, kind: input, shape index: {}]
  %s17 = inlined_call_operand.vmem [shape: f32[1,32], index: 17, kind: input, shape index: {}]
  %s18 = inlined_call_operand.vmem [shape: f32[1,32], index: 18, kind: input, shape index: {}]
  %s19 = inlined_call_operand.vmem [shape: f32[9,6,32], index: 19, kind: output, shape index: {}]
  %s20 = sld [smem:[#allocation0]]
  $region109: #{transmot_forward.16} parent=0
    _
  %s22 = ssub.s32 1, %s20
  %s23 = scalar_select 0, %s22, %s20
  loop: start=0, step=1, limit=11
  $region2: #{transmot_forward.16} parent=0 // loop_pre_header
    _
  $region3: #{transmot_forward.16} parent=0 // loop_header
    %s25 = sphi 0, %s29
    %p26 = scmp.ge.s32.totalorder %s25, 11
    %s35 = sphi 0, %s37
    %s38 = sphi 0, %s35
    %s39 = sphi 0, %s38
    %s55 = sphi 0, %s39
    %s61 = sphi 0, %s63
    %s64 = sphi 0, %s61
    %s65 = sphi 0, %s64
    %s81 = sphi 0, %s65
    %s87 = sphi 0, %s89
    %s90 = sphi 0, %s87
    %s91 = sphi 0, %s90
    %s107 = sphi 0, %s91
    %s111 = sphi 0, %s111
    %s113 = sphi 0, %s111
    %s114 = sphi 0, %s113
    %s128 = sphi 0, %s114
    %s132 = sphi 0, %s132
    %s134 = sphi 0, %s132
    %s135 = sphi 0, %s134
    %s149 = sphi 0, %s135
    %s153 = sphi 0, %s153
    %s155 = sphi 0, %s153
    %s156 = sphi 0, %s155
    %s170 = sphi 0, %s156
    %s174 = sphi 0, %s174
    %s176 = sphi 0, %s174
    %s177 = sphi 0, %s176
    %s191 = sphi 0, %s177
    %s195 = sphi 0, %s195
    %s197 = sphi 0, %s195
    %s198 = sphi 0, %s197
    %s212 = sphi 0, %s198
    %s216 = sphi 0, %s216
    %s218 = sphi 0, %s216
    %s219 = sphi 0, %s218
    %s233 = sphi 0, %s219
    %s237 = sphi 0, %s237
    %s239 = sphi 0, %s237
    %s240 = sphi 0, %s239
    %s254 = sphi 0, %s240
    %s258 = sphi 0, %s258
    %s260 = sphi 0, %s258
    %s261 = sphi 0, %s260
    %s275 = sphi 0, %s261
    %s279 = sphi 0, %s279
    %s281 = sphi 0, %s279
    %s282 = sphi 0, %s281
    %s296 = sphi 0, %s282
    %s300 = sphi 0, %s300
    %s302 = sphi 0, %s300
    %s303 = sphi 0, %s302
    %s317 = sphi 0, %s303
    %s321 = sphi 0, %s321
    %s323 = sphi 0, %s321
    %s324 = sphi 0, %s323
    %s338 = sphi 0, %s324
    %s342 = sphi 0, %s342
    %s344 = sphi 0, %s342
    %s345 = sphi 0, %s344
    %s359 = sphi 0, %s345
    %s363 = sphi 0, %s363
    %s365 = sphi 0, %s363
    %s366 = sphi 0, %s365
    %s380 = sphi 0, %s366
    %s384 = sphi 0, %s384
    %s386 = sphi 0, %s384
    %s387 = sphi 0, %s386
    %s401 = sphi 0, %s387
    %s405 = sphi 0, %s405
    %s407 = sphi 0, %s405
    %s408 = sphi 0, %s407
    %s422 = sphi 0, %s408
    %s426 = sphi 0, %s426
    %s428 = sphi 0, %s426
    %s429 = sphi 0, %s428
    %s443 = sphi 0, %s429
    %s449 = sphi 0, %s451
    %s452 = sphi 0, %s449
    %s453 = sphi 0, %s452
    %s469 = sphi 0, %s453
  $region4: #{transmot_forward.16} parent=0 // loop_header_branch
    %28 = sbr.rel (%p26) target = $region8
  $region5: #{transmot_forward.16} parent=0 // loop_body
    %s30 = ssub.s32 %s25, 1
    %s31 = ssub.s32 %s25, 2
    %s32 = sadd.s32 %s25, 1
    %s33 = ssub.s32 %s25, %s32
    %p34 = scmp.eq.s32.totalorder %s33, 0
    %s36 = sadd.s32 %s35, 1
    %s37 = scalar_select %p34, %s35, %s36
    %p40 = pneg %p34
    %p41 = scmp.eq.s32.totalorder %s25, 8
    %p42 = por %p40, %p41
    %p43 = scmp.ne.s32.totalorder %s35, %s38
    %p44 = scmp.eq.s32.totalorder %s25, 0
    %p45 = por %p43, %p44
    %p46 = scmp.ne.s32.totalorder %s35, %s38
    %p47 = scmp.eq.s32.totalorder %s30, 8
    %p48 = por %p46, %p47
    %p49 = scmp.ne.s32.totalorder %s38, %s39
    %p50 = scmp.eq.s32.totalorder %s30, 0
    %p51 = por %p49, %p50
    %p52 = scmp.ne.s32.totalorder %s38, %s39
    %p53 = scmp.eq.s32.totalorder %s31, 8
    %p54 = por %p52, %p53
    %p56 = scmp.ne.s32.totalorder %s39, %s55
    %p57 = scmp.eq.s32.totalorder %s31, 0
    %p58 = por %p56, %p57
    %s59 = ssub.s32 %s25, %s32
    %p60 = scmp.eq.s32.totalorder %s59, 0
    %s62 = sadd.s32 %s61, 1
    %s63 = scalar_select %p60, %s61, %s62
    %p66 = pneg %p60
    %p67 = scmp.eq.s32.totalorder %s25, 8
    %p68 = por %p66, %p67
    %p69 = scmp.ne.s32.totalorder %s61, %s64
    %p70 = scmp.eq.s32.totalorder %s25, 0
    %p71 = por %p69, %p70
    %p72 = scmp.ne.s32.totalorder %s61, %s64
    %p73 = scmp.eq.s32.totalorder %s30, 8
    %p74 = por %p72, %p73
    %p75 = scmp.ne.s32.totalorder %s64, %s65
    %p76 = scmp.eq.s32.totalorder %s30, 0
    %p77 = por %p75, %p76
    %p78 = scmp.ne.s32.totalorder %s64, %s65
    %p79 = scmp.eq.s32.totalorder %s31, 8
    %p80 = por %p78, %p79
    %p82 = scmp.ne.s32.totalorder %s65, %s81
    %p83 = scmp.eq.s32.totalorder %s31, 0
    %p84 = por %p82, %p83
    %s85 = ssub.s32 %s25, %s32
    %p86 = scmp.eq.s32.totalorder %s85, 0
    %s88 = sadd.s32 %s87, 1
    %s89 = scalar_select %p86, %s87, %s88
    %p92 = pneg %p86
    %p93 = scmp.eq.s32.totalorder %s25, 8
    %p94 = por %p92, %p93
    %p95 = scmp.ne.s32.totalorder %s87, %s90
    %p96 = scmp.eq.s32.totalorder %s25, 0
    %p97 = por %p95, %p96
    %p98 = scmp.ne.s32.totalorder %s87, %s90
    %p99 = scmp.eq.s32.totalorder %s30, 8
    %p100 = por %p98, %p99
    %p101 = scmp.ne.s32.totalorder %s90, %s91
    %p102 = scmp.eq.s32.totalorder %s30, 0
    %p103 = por %p101, %p102
    %p104 = scmp.ne.s32.totalorder %s90, %s91
    %p105 = scmp.eq.s32.totalorder %s31, 8
    %p106 = por %p104, %p105
    %p108 = scmp.ne.s32.totalorder %s91, %s107
    %p109 = scmp.eq.s32.totalorder %s31, 0
    %p110 = por %p108, %p109
    %s112 = sadd.s32 %s111, 1
    %p115 = scmp.eq.s32.totalorder %s25, 8
    %p116 = scmp.ne.s32.totalorder %s111, %s113
    %p117 = scmp.eq.s32.totalorder %s25, 0
    %p118 = por %p116, %p117
    %p119 = scmp.ne.s32.totalorder %s111, %s113
    %p120 = scmp.eq.s32.totalorder %s30, 8
    %p121 = por %p119, %p120
    %p122 = scmp.ne.s32.totalorder %s113, %s114
    %p123 = scmp.eq.s32.totalorder %s30, 0
    %p124 = por %p122, %p123
    %p125 = scmp.ne.s32.totalorder %s113, %s114
    %p126 = scmp.eq.s32.totalorder %s31, 8
    %p127 = por %p125, %p126
    %p129 = scmp.ne.s32.totalorder %s114, %s128
    %p130 = scmp.eq.s32.totalorder %s31, 0
    %p131 = por %p129, %p130
    %s133 = sadd.s32 %s132, 1
    %p136 = scmp.eq.s32.totalorder %s25, 8
    %p137 = scmp.ne.s32.totalorder %s132, %s134
    %p138 = scmp.eq.s32.totalorder %s25, 0
    %p139 = por %p137, %p138
    %p140 = scmp.ne.s32.totalorder %s132, %s134
    %p141 = scmp.eq.s32.totalorder %s30, 8
    %p142 = por %p140, %p141
    %p143 = scmp.ne.s32.totalorder %s134, %s135
    %p144 = scmp.eq.s32.totalorder %s30, 0
    %p145 = por %p143, %p144
    %p146 = scmp.ne.s32.totalorder %s134, %s135
    %p147 = scmp.eq.s32.totalorder %s31, 8
    %p148 = por %p146, %p147
    %p150 = scmp.ne.s32.totalorder %s135, %s149
    %p151 = scmp.eq.s32.totalorder %s31, 0
    %p152 = por %p150, %p151
    %s154 = sadd.s32 %s153, 1
    %p157 = scmp.eq.s32.totalorder %s25, 8
    %p158 = scmp.ne.s32.totalorder %s153, %s155
    %p159 = scmp.eq.s32.totalorder %s25, 0
    %p160 = por %p158, %p159
    %p161 = scmp.ne.s32.totalorder %s153, %s155
    %p162 = scmp.eq.s32.totalorder %s30, 8
    %p163 = por %p161, %p162
    %p164 = scmp.ne.s32.totalorder %s155, %s156
    %p165 = scmp.eq.s32.totalorder %s30, 0
    %p166 = por %p164, %p165
    %p167 = scmp.ne.s32.totalorder %s155, %s156
    %p168 = scmp.eq.s32.totalorder %s31, 8
    %p169 = por %p167, %p168
    %p171 = scmp.ne.s32.totalorder %s156, %s170
    %p172 = scmp.eq.s32.totalorder %s31, 0
    %p173 = por %p171, %p172
    %s175 = sadd.s32 %s174, 1
    %p178 = scmp.eq.s32.totalorder %s25, 8
    %p179 = scmp.ne.s32.totalorder %s174, %s176
    %p180 = scmp.eq.s32.totalorder %s25, 0
    %p181 = por %p179, %p180
    %p182 = scmp.ne.s32.totalorder %s174, %s176
    %p183 = scmp.eq.s32.totalorder %s30, 8
    %p184 = por %p182, %p183
    %p185 = scmp.ne.s32.totalorder %s176, %s177
    %p186 = scmp.eq.s32.totalorder %s30, 0
    %p187 = por %p185, %p186
    %p188 = scmp.ne.s32.totalorder %s176, %s177
    %p189 = scmp.eq.s32.totalorder %s31, 8
    %p190 = por %p188, %p189
    %p192 = scmp.ne.s32.totalorder %s177, %s191
    %p193 = scmp.eq.s32.totalorder %s31, 0
    %p194 = por %p192, %p193
    %s196 = sadd.s32 %s195, 1
    %p199 = scmp.eq.s32.totalorder %s25, 8
    %p200 = scmp.ne.s32.totalorder %s195, %s197
    %p201 = scmp.eq.s32.totalorder %s25, 0
    %p202 = por %p200, %p201
    %p203 = scmp.ne.s32.totalorder %s195, %s197
    %p204 = scmp.eq.s32.totalorder %s30, 8
    %p205 = por %p203, %p204
    %p206 = scmp.ne.s32.totalorder %s197, %s198
    %p207 = scmp.eq.s32.totalorder %s30, 0
    %p208 = por %p206, %p207
    %p209 = scmp.ne.s32.totalorder %s197, %s198
    %p210 = scmp.eq.s32.totalorder %s31, 8
    %p211 = por %p209, %p210
    %p213 = scmp.ne.s32.totalorder %s198, %s212
    %p214 = scmp.eq.s32.totalorder %s31, 0
    %p215 = por %p213, %p214
    %s217 = sadd.s32 %s216, 1
    %p220 = scmp.eq.s32.totalorder %s25, 8
    %p221 = scmp.ne.s32.totalorder %s216, %s218
    %p222 = scmp.eq.s32.totalorder %s25, 0
    %p223 = por %p221, %p222
    %p224 = scmp.ne.s32.totalorder %s216, %s218
    %p225 = scmp.eq.s32.totalorder %s30, 8
    %p226 = por %p224, %p225
    %p227 = scmp.ne.s32.totalorder %s218, %s219
    %p228 = scmp.eq.s32.totalorder %s30, 0
    %p229 = por %p227, %p228
    %p230 = scmp.ne.s32.totalorder %s218, %s219
    %p231 = scmp.eq.s32.totalorder %s31, 8
    %p232 = por %p230, %p231
    %p234 = scmp.ne.s32.totalorder %s219, %s233
    %p235 = scmp.eq.s32.totalorder %s31, 0
    %p236 = por %p234, %p235
    %s238 = sadd.s32 %s237, 1
    %p241 = scmp.eq.s32.totalorder %s25, 8
    %p242 = scmp.ne.s32.totalorder %s237, %s239
    %p243 = scmp.eq.s32.totalorder %s25, 0
    %p244 = por %p242, %p243
    %p245 = scmp.ne.s32.totalorder %s237, %s239
    %p246 = scmp.eq.s32.totalorder %s30, 8
    %p247 = por %p245, %p246
    %p248 = scmp.ne.s32.totalorder %s239, %s240
    %p249 = scmp.eq.s32.totalorder %s30, 0
    %p250 = por %p248, %p249
    %p251 = scmp.ne.s32.totalorder %s239, %s240
    %p252 = scmp.eq.s32.totalorder %s31, 8
    %p253 = por %p251, %p252
    %p255 = scmp.ne.s32.totalorder %s240, %s254
    %p256 = scmp.eq.s32.totalorder %s31, 0
    %p257 = por %p255, %p256
    %s259 = sadd.s32 %s258, 1
    %p262 = scmp.eq.s32.totalorder %s25, 8
    %p263 = scmp.ne.s32.totalorder %s258, %s260
    %p264 = scmp.eq.s32.totalorder %s25, 0
    %p265 = por %p263, %p264
    %p266 = scmp.ne.s32.totalorder %s258, %s260
    %p267 = scmp.eq.s32.totalorder %s30, 8
    %p268 = por %p266, %p267
    %p269 = scmp.ne.s32.totalorder %s260, %s261
    %p270 = scmp.eq.s32.totalorder %s30, 0
    %p271 = por %p269, %p270
    %p272 = scmp.ne.s32.totalorder %s260, %s261
    %p273 = scmp.eq.s32.totalorder %s31, 8
    %p274 = por %p272, %p273
    %p276 = scmp.ne.s32.totalorder %s261, %s275
    %p277 = scmp.eq.s32.totalorder %s31, 0
    %p278 = por %p276, %p277
    %s280 = sadd.s32 %s279, 1
    %p283 = scmp.eq.s32.totalorder %s25, 8
    %p284 = scmp.ne.s32.totalorder %s279, %s281
    %p285 = scmp.eq.s32.totalorder %s25, 0
    %p286 = por %p284, %p285
    %p287 = scmp.ne.s32.totalorder %s279, %s281
    %p288 = scmp.eq.s32.totalorder %s30, 8
    %p289 = por %p287, %p288
    %p290 = scmp.ne.s32.totalorder %s281, %s282
    %p291 = scmp.eq.s32.totalorder %s30, 0
    %p292 = por %p290, %p291
    %p293 = scmp.ne.s32.totalorder %s281, %s282
    %p294 = scmp.eq.s32.totalorder %s31, 8
    %p295 = por %p293, %p294
    %p297 = scmp.ne.s32.totalorder %s282, %s296
    %p298 = scmp.eq.s32.totalorder %s31, 0
    %p299 = por %p297, %p298
    %s301 = sadd.s32 %s300, 1
    %p304 = scmp.eq.s32.totalorder %s25, 8
    %p305 = scmp.ne.s32.totalorder %s300, %s302
    %p306 = scmp.eq.s32.totalorder %s25, 0
    %p307 = por %p305, %p306
    %p308 = scmp.ne.s32.totalorder %s300, %s302
    %p309 = scmp.eq.s32.totalorder %s30, 8
    %p310 = por %p308, %p309
    %p311 = scmp.ne.s32.totalorder %s302, %s303
    %p312 = scmp.eq.s32.totalorder %s30, 0
    %p313 = por %p311, %p312
    %p314 = scmp.ne.s32.totalorder %s302, %s303
    %p315 = scmp.eq.s32.totalorder %s31, 8
    %p316 = por %p314, %p315
    %p318 = scmp.ne.s32.totalorder %s303, %s317
    %p319 = scmp.eq.s32.totalorder %s31, 0
    %p320 = por %p318, %p319
    %s322 = sadd.s32 %s321, 1
    %p325 = scmp.eq.s32.totalorder %s25, 8
    %p326 = scmp.ne.s32.totalorder %s321, %s323
    %p327 = scmp.eq.s32.totalorder %s25, 0
    %p328 = por %p326, %p327
    %p329 = scmp.ne.s32.totalorder %s321, %s323
    %p330 = scmp.eq.s32.totalorder %s30, 8
    %p331 = por %p329, %p330
    %p332 = scmp.ne.s32.totalorder %s323, %s324
    %p333 = scmp.eq.s32.totalorder %s30, 0
    %p334 = por %p332, %p333
    %p335 = scmp.ne.s32.totalorder %s323, %s324
    %p336 = scmp.eq.s32.totalorder %s31, 8
    %p337 = por %p335, %p336
    %p339 = scmp.ne.s32.totalorder %s324, %s338
    %p340 = scmp.eq.s32.totalorder %s31, 0
    %p341 = por %p339, %p340
    %s343 = sadd.s32 %s342, 1
    %p346 = scmp.eq.s32.totalorder %s25, 8
    %p347 = scmp.ne.s32.totalorder %s342, %s344
    %p348 = scmp.eq.s32.totalorder %s25, 0
    %p349 = por %p347, %p348
    %p350 = scmp.ne.s32.totalorder %s342, %s344
    %p351 = scmp.eq.s32.totalorder %s30, 8
    %p352 = por %p350, %p351
    %p353 = scmp.ne.s32.totalorder %s344, %s345
    %p354 = scmp.eq.s32.totalorder %s30, 0
    %p355 = por %p353, %p354
    %p356 = scmp.ne.s32.totalorder %s344, %s345
    %p357 = scmp.eq.s32.totalorder %s31, 8
    %p358 = por %p356, %p357
    %p360 = scmp.ne.s32.totalorder %s345, %s359
    %p361 = scmp.eq.s32.totalorder %s31, 0
    %p362 = por %p360, %p361
    %s364 = sadd.s32 %s363, 1
    %p367 = scmp.eq.s32.totalorder %s25, 8
    %p368 = scmp.ne.s32.totalorder %s363, %s365
    %p369 = scmp.eq.s32.totalorder %s25, 0
    %p370 = por %p368, %p369
    %p371 = scmp.ne.s32.totalorder %s363, %s365
    %p372 = scmp.eq.s32.totalorder %s30, 8
    %p373 = por %p371, %p372
    %p374 = scmp.ne.s32.totalorder %s365, %s366
    %p375 = scmp.eq.s32.totalorder %s30, 0
    %p376 = por %p374, %p375
    %p377 = scmp.ne.s32.totalorder %s365, %s366
    %p378 = scmp.eq.s32.totalorder %s31, 8
    %p379 = por %p377, %p378
    %p381 = scmp.ne.s32.totalorder %s366, %s380
    %p382 = scmp.eq.s32.totalorder %s31, 0
    %p383 = por %p381, %p382
    %s385 = sadd.s32 %s384, 1
    %p388 = scmp.eq.s32.totalorder %s25, 8
    %p389 = scmp.ne.s32.totalorder %s384, %s386
    %p390 = scmp.eq.s32.totalorder %s25, 0
    %p391 = por %p389, %p390
    %p392 = scmp.ne.s32.totalorder %s384, %s386
    %p393 = scmp.eq.s32.totalorder %s30, 8
    %p394 = por %p392, %p393
    %p395 = scmp.ne.s32.totalorder %s386, %s387
    %p396 = scmp.eq.s32.totalorder %s30, 0
    %p397 = por %p395, %p396
    %p398 = scmp.ne.s32.totalorder %s386, %s387
    %p399 = scmp.eq.s32.totalorder %s31, 8
    %p400 = por %p398, %p399
    %p402 = scmp.ne.s32.totalorder %s387, %s401
    %p403 = scmp.eq.s32.totalorder %s31, 0
    %p404 = por %p402, %p403
    %s406 = sadd.s32 %s405, 1
    %p409 = scmp.eq.s32.totalorder %s25, 8
    %p410 = scmp.ne.s32.totalorder %s405, %s407
    %p411 = scmp.eq.s32.totalorder %s25, 0
    %p412 = por %p410, %p411
    %p413 = scmp.ne.s32.totalorder %s405, %s407
    %p414 = scmp.eq.s32.totalorder %s30, 8
    %p415 = por %p413, %p414
    %p416 = scmp.ne.s32.totalorder %s407, %s408
    %p417 = scmp.eq.s32.totalorder %s30, 0
    %p418 = por %p416, %p417
    %p419 = scmp.ne.s32.totalorder %s407, %s408
    %p420 = scmp.eq.s32.totalorder %s31, 8
    %p421 = por %p419, %p420
    %p423 = scmp.ne.s32.totalorder %s408, %s422
    %p424 = scmp.eq.s32.totalorder %s31, 0
    %p425 = por %p423, %p424
    %s427 = sadd.s32 %s426, 1
    %p430 = scmp.eq.s32.totalorder %s25, 8
    %p431 = scmp.ne.s32.totalorder %s426, %s428
    %p432 = scmp.eq.s32.totalorder %s25, 0
    %p433 = por %p431, %p432
    %p434 = scmp.ne.s32.totalorder %s426, %s428
    %p435 = scmp.eq.s32.totalorder %s30, 8
    %p436 = por %p434, %p435
    %p437 = scmp.ne.s32.totalorder %s428, %s429
    %p438 = scmp.eq.s32.totalorder %s30, 0
    %p439 = por %p437, %p438
    %p440 = scmp.ne.s32.totalorder %s428, %s429
    %p441 = scmp.eq.s32.totalorder %s31, 8
    %p442 = por %p440, %p441
    %p444 = scmp.ne.s32.totalorder %s429, %s443
    %p445 = scmp.eq.s32.totalorder %s31, 0
    %p446 = por %p444, %p445
    %s447 = ssub.s32 %s25, %s32
    %p448 = scmp.eq.s32.totalorder %s447, 0
    %s450 = sadd.s32 %s449, 1
    %s451 = scalar_select %p448, %s449, %s450
    %p454 = pneg %p448
    %p455 = scmp.eq.s32.totalorder %s25, 8
    %p456 = por %p454, %p455
    %p457 = scmp.ne.s32.totalorder %s449, %s452
    %p458 = scmp.eq.s32.totalorder %s25, 0
    %p459 = por %p457, %p458
    %p460 = scmp.ne.s32.totalorder %s449, %s452
    %p461 = scmp.eq.s32.totalorder %s30, 8
    %p462 = por %p460, %p461
    %p463 = scmp.ne.s32.totalorder %s452, %s453
    %p464 = scmp.eq.s32.totalorder %s30, 0
    %p465 = por %p463, %p464
    %p466 = scmp.ne.s32.totalorder %s452, %s453
    %p467 = scmp.eq.s32.totalorder %s31, 8
    %p468 = por %p466, %p467
    %p470 = scmp.ne.s32.totalorder %s453, %s469
    %p471 = scmp.eq.s32.totalorder %s31, 0
    %p472 = por %p470, %p471
    %p473 = scmp.le.s32.totalorder 1, %s25
    %p474 = scmp.lt.s32.totalorder %s25, 10
    %p475 = pnand %p473, %p474
    %p476 = pneg %p475
    // Predicated region
    $region9: #{transmot_forward.16} parent=5 // pred_check
      _
    $region10: #{transmot_forward.16} parent=5 // pred_check_branch
      %478 = sbr.rel (%p475) target = $region12
    $region11: #{transmot_forward.16} parent=5 // pred_region
      %s479 = ssub.s32 %s25, 1
      // Predicated region
      $region13: #{transmot_forward.16} parent=11 // pred_check
        %p480 = pneg %p124
      $region14: #{transmot_forward.16} parent=11 // pred_check_branch
        %482 = sbr.rel (%p480) target = $region16
      $region15: #{transmot_forward.16} parent=11 // pred_region
        _
      $region16: #{transmot_forward.16} parent=11 // pred_fallthru
        _
      // Predicated region
      $region17: #{transmot_forward.16} parent=11 // pred_check
        %p483 = pneg %p145
      $region18: #{transmot_forward.16} parent=11 // pred_check_branch
        %485 = sbr.rel (%p483) target = $region20
      $region19: #{transmot_forward.16} parent=11 // pred_region
        _
      $region20: #{transmot_forward.16} parent=11 // pred_fallthru
        _
      // Predicated region
      $region21: #{transmot_forward.16} parent=11 // pred_check
        %p486 = pneg %p166
      $region22: #{transmot_forward.16} parent=11 // pred_check_branch
        %488 = sbr.rel (%p486) target = $region24
      $region23: #{transmot_forward.16} parent=11 // pred_region
        _
      $region24: #{transmot_forward.16} parent=11 // pred_fallthru
        _
      // Predicated region
      $region25: #{transmot_forward.16} parent=11 // pred_check
        %p489 = pneg %p187
      $region26: #{transmot_forward.16} parent=11 // pred_check_branch
        %491 = sbr.rel (%p489) target = $region28
      $region27: #{transmot_forward.16} parent=11 // pred_region
        _
      $region28: #{transmot_forward.16} parent=11 // pred_fallthru
        _
      // Predicated region
      $region29: #{transmot_forward.16} parent=11 // pred_check
        %p492 = pneg %p208
      $region30: #{transmot_forward.16} parent=11 // pred_check_branch
        %494 = sbr.rel (%p492) target = $region32
      $region31: #{transmot_forward.16} parent=11 // pred_region
        _
      $region32: #{transmot_forward.16} parent=11 // pred_fallthru
        _
      // Predicated region
      $region33: #{transmot_forward.16} parent=11 // pred_check
        %p495 = pneg %p229
      $region34: #{transmot_forward.16} parent=11 // pred_check_branch
        %497 = sbr.rel (%p495) target = $region36
      $region35: #{transmot_forward.16} parent=11 // pred_region
        _
      $region36: #{transmot_forward.16} parent=11 // pred_fallthru
        _
      // Predicated region
      $region37: #{transmot_forward.16} parent=11 // pred_check
        %p498 = pneg %p250
      $region38: #{transmot_forward.16} parent=11 // pred_check_branch
        %500 = sbr.rel (%p498) target = $region40
      $region39: #{transmot_forward.16} parent=11 // pred_region
        _
      $region40: #{transmot_forward.16} parent=11 // pred_fallthru
        _
      // Predicated region
      $region41: #{transmot_forward.16} parent=11 // pred_check
        %p501 = pneg %p271
      $region42: #{transmot_forward.16} parent=11 // pred_check_branch
        %503 = sbr.rel (%p501) target = $region44
      $region43: #{transmot_forward.16} parent=11 // pred_region
        _
      $region44: #{transmot_forward.16} parent=11 // pred_fallthru
        _
      // Predicated region
      $region45: #{transmot_forward.16} parent=11 // pred_check
        %p504 = pneg %p292
      $region46: #{transmot_forward.16} parent=11 // pred_check_branch
        %506 = sbr.rel (%p504) target = $region48
      $region47: #{transmot_forward.16} parent=11 // pred_region
        _
      $region48: #{transmot_forward.16} parent=11 // pred_fallthru
        _
      // Predicated region
      $region49: #{transmot_forward.16} parent=11 // pred_check
        %p507 = pneg %p313
      $region50: #{transmot_forward.16} parent=11 // pred_check_branch
        %509 = sbr.rel (%p507) target = $region52
      $region51: #{transmot_forward.16} parent=11 // pred_region
        _
      $region52: #{transmot_forward.16} parent=11 // pred_fallthru
        _
      // Predicated region
      $region53: #{transmot_forward.16} parent=11 // pred_check
        %p510 = pneg %p334
      $region54: #{transmot_forward.16} parent=11 // pred_check_branch
        %512 = sbr.rel (%p510) target = $region56
      $region55: #{transmot_forward.16} parent=11 // pred_region
        _
      $region56: #{transmot_forward.16} parent=11 // pred_fallthru
        _
      // Predicated region
      $region57: #{transmot_forward.16} parent=11 // pred_check
        %p513 = pneg %p355
      $region58: #{transmot_forward.16} parent=11 // pred_check_branch
        %515 = sbr.rel (%p513) target = $region60
      $region59: #{transmot_forward.16} parent=11 // pred_region
        _
      $region60: #{transmot_forward.16} parent=11 // pred_fallthru
        _
      // Predicated region
      $region61: #{transmot_forward.16} parent=11 // pred_check
        %p516 = pneg %p376
      $region62: #{transmot_forward.16} parent=11 // pred_check_branch
        %518 = sbr.rel (%p516) target = $region64
      $region63: #{transmot_forward.16} parent=11 // pred_region
        _
      $region64: #{transmot_forward.16} parent=11 // pred_fallthru
        _
      // Predicated region
      $region65: #{transmot_forward.16} parent=11 // pred_check
        %p519 = pneg %p397
      $region66: #{transmot_forward.16} parent=11 // pred_check_branch
        %521 = sbr.rel (%p519) target = $region68
      $region67: #{transmot_forward.16} parent=11 // pred_region
        _
      $region68: #{transmot_forward.16} parent=11 // pred_fallthru
        _
      // Predicated region
      $region69: #{transmot_forward.16} parent=11 // pred_check
        %p522 = pneg %p418
      $region70: #{transmot_forward.16} parent=11 // pred_check_branch
        %524 = sbr.rel (%p522) target = $region72
      $region71: #{transmot_forward.16} parent=11 // pred_region
        _
      $region72: #{transmot_forward.16} parent=11 // pred_fallthru
        _
      // Predicated region
      $region73: #{transmot_forward.16} parent=11 // pred_check
        %p525 = pneg %p439
      $region74: #{transmot_forward.16} parent=11 // pred_check_branch
        %527 = sbr.rel (%p525) target = $region76
      $region75: #{transmot_forward.16} parent=11 // pred_region
        _
      $region76: #{transmot_forward.16} parent=11 // pred_fallthru
        _
    $region12: #{transmot_forward.16} parent=5 // pred_fallthru
      _
    %p528 = scmp.lt.s32.totalorder %s25, 9
    // Predicated region
    $region77: #{transmot_forward.16} parent=5 // pred_check
      %p529 = pneg %p528
    $region78: #{transmot_forward.16} parent=5 // pred_check_branch
      %531 = sbr.rel (%p529) target = $region80
    $region79: #{transmot_forward.16} parent=5 // pred_region
      // Predicated region
      $region81: #{transmot_forward.16} parent=79 // pred_check
        %p532 = pneg %p45
      $region82: #{transmot_forward.16} parent=79 // pred_check_branch
        %534 = sbr.rel (%p532) target = $region84
      $region83: #{transmot_forward.16} parent=79 // pred_region
        %p535 = scmp.lt.s32.totalorder %s25, 8
        %s536 = scalar_select %p535, %s25, 8
        %s537 = smul.addr %s536, 8
        %s538 = scalar_lea.vmem %s0, %s537
      $region84: #{transmot_forward.16} parent=79 // pred_fallthru
        _
      // Predicated region
      $region85: #{transmot_forward.16} parent=79 // pred_check
        %p539 = pneg %p71
      $region86: #{transmot_forward.16} parent=79 // pred_check_branch
        %541 = sbr.rel (%p539) target = $region88
      $region87: #{transmot_forward.16} parent=79 // pred_region
        %p542 = scmp.lt.s32.totalorder %s25, 8
        %s543 = scalar_select %p542, %s25, 8
        %s544 = smul.addr %s543, 4
        %s545 = scalar_lea.vmem %s1, %s544
      $region88: #{transmot_forward.16} parent=79 // pred_fallthru
        _
      // Predicated region
      $region89: #{transmot_forward.16} parent=79 // pred_check
        %p546 = pneg %p97
      $region90: #{transmot_forward.16} parent=79 // pred_check_branch
        %548 = sbr.rel (%p546) target = $region92
      $region91: #{transmot_forward.16} parent=79 // pred_region
        %p549 = scmp.lt.s32.totalorder %s25, 8
        %s550 = scalar_select %p549, %s25, 8
        %s551 = scalar_lea.vmem %s2, %s550
      $region92: #{transmot_forward.16} parent=79 // pred_fallthru
        _
    $region80: #{transmot_forward.16} parent=5 // pred_fallthru
      _
    %p552 = scmp.le.s32.totalorder 1, %s25
    %p553 = scmp.lt.s32.totalorder %s25, 10
    %p554 = pnand %p552, %p553
    %p555 = pneg %p554
    // Predicated region
    $region93: #{transmot_forward.16} parent=5 // pred_check
      _
    $region94: #{transmot_forward.16} parent=5 // pred_check_branch
      %557 = sbr.rel (%p554) target = $region96
    $region95: #{transmot_forward.16} parent=5 // pred_region
      %s558 = ssub.s32 %s25, 1
      %p559 = scmp.lt.s32.totalorder %s30, 8
      %s560 = scalar_select %p559, %s30, 8
      %s561 = smul.addr %s560, 8
      %s562 = scalar_lea.vmem %s0, %s561
      %p563 = pneg %p51
      %p564 = pneg %p48
      %p565 = scmp.lt.s32.totalorder %s30, 8
      %s566 = scalar_select %p565, %s30, 8
      %s567 = smul.addr %s566, 4
      %s568 = scalar_lea.vmem %s1, %s567
      %p569 = pneg %p77
      %p570 = pneg %p74
      %p571 = scmp.lt.s32.totalorder %s30, 8
      %s572 = scalar_select %p571, %s30, 8
      %s573 = scalar_lea.vmem %s2, %s572
      %p574 = pneg %p103
      %p575 = pneg %p100
      %p576 = pneg %p124
      %p577 = pneg %p121
      %p578 = pneg %p145
      %p579 = pneg %p142
      %p580 = pneg %p166
      %p581 = pneg %p163
      %p582 = pneg %p187
      %p583 = pneg %p184
      %p584 = pneg %p208
      %p585 = pneg %p205
      %p586 = pneg %p229
      %p587 = pneg %p226
      %p588 = pneg %p250
      %p589 = pneg %p247
      %p590 = pneg %p271
      %p591 = pneg %p268
      %p592 = pneg %p292
      %p593 = pneg %p289
      %p594 = pneg %p313
      %p595 = pneg %p310
      %p596 = pneg %p334
      %p597 = pneg %p331
      %p598 = pneg %p355
      %p599 = pneg %p352
      %p600 = pneg %p376
      %p601 = pneg %p373
      %p602 = pneg %p397
      %p603 = pneg %p394
      %p604 = pneg %p418
      %p605 = pneg %p415
      %p606 = pneg %p439
      %p607 = pneg %p436
      %p608 = pneg %p465
      %p609 = pneg %p462
      %p610 = scmp.lt.s32.totalorder %s30, 8
      %s611 = scalar_select %p610, %s30, 8
      %s612 = smul.addr %s611, 8
      %s613 = scalar_lea.vmem %s19, %s612
      %p614 = scmp.lt.s32.totalorder %s30, 8
      %s615 = scalar_select %p614, %s30, 8
      %s616 = smul.addr %s615, 8
      %s617 = scalar_lea.vmem %s0, %s616
      %p618 = scmp.lt.s32.totalorder %s30, 8
      %s619 = scalar_select %p618, %s30, 8
      %s620 = smul.addr %s619, 4
      %s621 = scalar_lea.vmem %s1, %s620
      %p622 = scmp.lt.s32.totalorder %s30, 8
      %s623 = scalar_select %p622, %s30, 8
      %s624 = scalar_lea.vmem %s2, %s623
      %p625 = scmp.lt.s32.totalorder %s30, 8
      %s626 = scalar_select %p625, %s30, 8
      %s627 = smul.addr %s626, 8
      %s628 = scalar_lea.vmem %s19, %s627
      %v629 = vld [vmem:[%s617] sm:$0x3f]
      %v630 = vld [vmem:[%s621] sm:$0xf]
      %v631 = vld [vmem:[%s624] sm:$0x1]
      %v632 = vld [vmem:[%s3] sm:$0xff]
      %v633 = vld [vmem:[%s3 + $0x8] sm:$0xff]
      %v634 = vld [vmem:[%s3 + $0x10] sm:$0xff]
      %v635 = vld [vmem:[%s3 + $0x18] sm:$0xff]
      %v636 = vld [vmem:[%s4] sm:$0x1]
      %v637 = vld [vmem:[%s5] sm:$0xff]
      %v638 = vld [vmem:[%s5 + $0x8] sm:$0xff]
      %v639 = vld [vmem:[%s5 + $0x10] sm:$0xff]
      %v640 = vld [vmem:[%s5 + $0x18] sm:$0xff]
      %v641 = vld [vmem:[%s6] sm:$0x1]
      %v642 = vld [vmem:[%s7] sm:$0xff]
      %v643 = vld [vmem:[%s7 + $0x8] sm:$0xff]
      %v644 = vld [vmem:[%s7 + $0x10] sm:$0xff]
      %v645 = vld [vmem:[%s7 + $0x18] sm:$0xff]
      %v646 = vld [vmem:[%s8] sm:$0x1]
      %v647 = vld [vmem:[%s9] sm:$0xff]
      %v648 = vld [vmem:[%s9 + $0x8] sm:$0xff]
      %v649 = vld [vmem:[%s9 + $0x10] sm:$0xff]
      %v650 = vld [vmem:[%s9 + $0x18] sm:$0xff]
      %v651 = vld [vmem:[%s10] sm:$0x1]
      %v653 = vperm.slane %v636, 0
      %vm655 = vcmask 261120
      %v657 = vsel %vm655, %v629, 0
      %659 = vmatpush.msra.mxu0 0.0
      %660 = vmatpush.msra.mxu0 0.0
      %661 = vmatpush.msra.mxu0 0.0
      %662 = vmatpush.msra.mxu0 0.0
      %663 = vmatpush.msra.mxu0 0.0
      %664 = vmatpush.msra.mxu0 0.0
      %665 = vmatpush.msra.mxu0 0.0
      %666 = vmatpush.msra.mxu0 0.0
      %667 = vmatpush.msra.mxu0 0.0
      %668 = vmatpush.msra.mxu0 0.0
      %669 = vmatpush.msra.mxu0 0.0
      %670 = vmatpush.msra.mxu0 0.0
      %671 = vmatpush.msra.mxu0 %v635
      %672 = vmatpush.msra.mxu0 %v634
      %673 = vmatpush.msra.mxu0 %v633
      %674 = vmatpush.msra.mxu0 %v632
      %675 = vmatmul.f32.gmra.mxu0 %v657
      %v676 = vpop.f32.mrf.mxu0
      %v677 = vadd.f32 %v653, %v676
      %678 = vdwg.mxu0
      %v679 = vmul.f32 %v677, 0.35355338
      %v681 = vperm.slane %v641, 0
      %v684 = vsel %vm655, %v630, 0
      %686 = vmatpush.msra.mxu0 0.0
      %687 = vmatpush.msra.mxu0 0.0
      %688 = vmatpush.msra.mxu0 0.0
      %689 = vmatpush.msra.mxu0 0.0
      %690 = vmatpush.msra.mxu0 0.0
      %691 = vmatpush.msra.mxu0 0.0
      %692 = vmatpush.msra.mxu0 0.0
      %693 = vmatpush.msra.mxu0 0.0
      %694 = vmatpush.msra.mxu0 0.0
      %695 = vmatpush.msra.mxu0 0.0
      %696 = vmatpush.msra.mxu0 0.0
      %697 = vmatpush.msra.mxu0 0.0
      %698 = vmatpush.msra.mxu0 %v640
      %699 = vmatpush.msra.mxu0 %v639
      %700 = vmatpush.msra.mxu0 %v638
      %701 = vmatpush.msra.mxu0 %v637
      %702 = vmatmul.f32.gmra.mxu0 %v684
      %v703 = vpop.f32.mrf.mxu0
      %v704 = vadd.f32 %v681, %v703
      %705 = vdwg.mxu0
      %v707 = vperm.slane %v646, 0
      %709 = vmatpush.msra.mxu0 0.0
      %710 = vmatpush.msra.mxu0 0.0
      %711 = vmatpush.msra.mxu0 0.0
      %712 = vmatpush.msra.mxu0 0.0
      %713 = vmatpush.msra.mxu0 0.0
      %714 = vmatpush.msra.mxu0 0.0
      %715 = vmatpush.msra.mxu0 0.0
      %716 = vmatpush.msra.mxu0 0.0
      %717 = vmatpush.msra.mxu0 0.0
      %718 = vmatpush.msra.mxu0 0.0
      %719 = vmatpush.msra.mxu0 0.0
      %720 = vmatpush.msra.mxu0 0.0
      %721 = vmatpush.msra.mxu0 %v645
      %722 = vmatpush.msra.mxu0 %v644
      %723 = vmatpush.msra.mxu0 %v643
      %724 = vmatpush.msra.mxu0 %v642
      %725 = vmatmul.f32.gmra.mxu0 %v684
      %v726 = vpop.f32.mrf.mxu0
      %v727 = vadd.f32 %v707, %v726
      %728 = vdwg.mxu0
      %v730 = vperm.slane %v631, 0
      %vm732 = vcmask 64512
      %v734 = vsel %vm732, %v679, 0
      %v737 = vsel %vm732, %v704, 0
      %739 = vmatpush.xpose.msra.mxu0 0.0
      %740 = vmatpush.xpose.msra.mxu0 0.0
      %741 = vmatpush.xpose.msra.mxu0 0.0
      %742 = vmatpush.xpose.msra.mxu0 0.0
      %743 = vmatpush.xpose.msra.mxu0 0.0
      %744 = vmatpush.xpose.msra.mxu0 0.0
      %745 = vmatpush.xpose.msra.mxu0 0.0
      %746 = vmatpush.xpose.msra.mxu0 0.0
      %747 = vmatpush.xpose.msra.mxu0 0.0
      %748 = vmatpush.xpose.msra.mxu0 0.0
      %749 = vmatpush.xpose.msra.mxu0 0.0
      %750 = vmatpush.xpose.msra.mxu0 0.0
      %751 = vmatpush.xpose.msra.mxu0 0.0
      %752 = vmatpush.xpose.msra.mxu0 0.0
      %753 = vmatpush.xpose.msra.mxu0 0.0
      %754 = vmatpush.xpose.msra.mxu0 %v737
      %755 = vmatmul.f32.gmra.mxu0 %v734
      %v756 = vpop.f32.mrf.mxu0
      %v757 = vadd.f32 %v730, %v756
      %758 = vdwg.mxu0
      %vm759 = vcmask 29696
      %v760 = vsel %vm759, %v757, -inf
      %761 = vmax.xlane.f32.xlu0 %v760
      %v762 = vpop.xlane.xlu0 %761
      %v763 = vsub.f32 %v757, %v762
      %v764 = vmul.f32 %v763, 1.442695
      %v765 = vpow.pop %v764
      %v766 = vsel %vm759, %v765, 0.0
      %767 = vadd.xlane.f32.xlu0 %v766
      %v768 = vpop.xlane.xlu0 %767
      %v769 = vrcp.pop %v768
      %v770 = vmul.f32 %v765, %v769
      %vm771 = vcmask 31744
      %v773 = vsel %vm771, %v770, 0
      %vm775 = vcmask 1043456
      %v777 = vsel %vm775, %v727, 0
      %779 = vmatpush.msra.mxu0 0.0
      %780 = vmatpush.msra.mxu0 0.0
      %781 = vmatpush.msra.mxu0 0.0
      %782 = vmatpush.msra.mxu0 0.0
      %783 = vmatpush.msra.mxu0 0.0
      %784 = vmatpush.msra.mxu0 0.0
      %785 = vmatpush.msra.mxu0 0.0
      %786 = vmatpush.msra.mxu0 0.0
      %787 = vmatpush.msra.mxu0 0.0
      %788 = vmatpush.msra.mxu0 0.0
      %789 = vmatpush.msra.mxu0 0.0
      %790 = vmatpush.msra.mxu0 0.0
      %791 = vmatpush.msra.mxu0 0.0
      %792 = vmatpush.msra.mxu0 0.0
      %793 = vmatpush.msra.mxu0 0.0
      %794 = vmatpush.msra.mxu0 %v777
      %795 = vmatmul.f32.gmra.mxu0 %v773
      %v796 = vpop.f32.mrf.mxu0
      %v797 = vadd.f32 0.0, %v796
      %798 = vdwg.mxu0
      %799 = vrot.lane.b32.xlu0 %v679, 120
      %v800 = vpop.permute.xlu0 %799
      %801 = vrot.lane.b32.xlu0 %v704, 120
      %v802 = vpop.permute.xlu0 %801
      %v803 = vsel %vm732, %v800, 0
      %v805 = vsel %vm732, %v802, 0
      %807 = vmatpush.xpose.msra.mxu0 0.0
      %808 = vmatpush.xpose.msra.mxu0 0.0
      %809 = vmatpush.xpose.msra.mxu0 0.0
      %810 = vmatpush.xpose.msra.mxu0 0.0
      %811 = vmatpush.xpose.msra.mxu0 0.0
      %812 = vmatpush.xpose.msra.mxu0 0.0
      %813 = vmatpush.xpose.msra.mxu0 0.0
      %814 = vmatpush.xpose.msra.mxu0 0.0
      %815 = vmatpush.xpose.msra.mxu0 0.0
      %816 = vmatpush.xpose.msra.mxu0 0.0
      %817 = vmatpush.xpose.msra.mxu0 0.0
      %818 = vmatpush.xpose.msra.mxu0 0.0
      %819 = vmatpush.xpose.msra.mxu0 0.0
      %820 = vmatpush.xpose.msra.mxu0 0.0
      %821 = vmatpush.xpose.msra.mxu0 0.0
      %822 = vmatpush.xpose.msra.mxu0 %v805
      %823 = vmatmul.f32.gmra.mxu0 %v803
      %v824 = vpop.f32.mrf.mxu0
      %v825 = vadd.f32 %v730, %v824
      %826 = vdwg.mxu0
      %v827 = vsel %vm759, %v825, -inf
      %828 = vmax.xlane.f32.xlu0 %v827
      %v829 = vpop.xlane.xlu0 %828
      %v830 = vsub.f32 %v825, %v829
      %v831 = vmul.f32 %v830, 1.442695
      %v832 = vpow.pop %v831
      %v833 = vsel %vm759, %v832, 0.0
      %834 = vadd.xlane.f32.xlu0 %v833
      %v835 = vpop.xlane.xlu0 %834
      %v836 = vrcp.pop %v835
      %v837 = vmul.f32 %v832, %v836
      %838 = vrot.lane.b32.xlu0 %v727, 120
      %v839 = vpop.permute.xlu0 %838
      %v841 = vsel %vm771, %v837, 0
      %v843 = vsel %vm775, %v839, 0
      %845 = vmatpush.msra.mxu0 0.0
      %846 = vmatpush.msra.mxu0 0.0
      %847 = vmatpush.msra.mxu0 0.0
      %848 = vmatpush.msra.mxu0 0.0
      %849 = vmatpush.msra.mxu0 0.0
      %850 = vmatpush.msra.mxu0 0.0
      %851 = vmatpush.msra.mxu0 0.0
      %852 = vmatpush.msra.mxu0 0.0
      %853 = vmatpush.msra.mxu0 0.0
      %854 = vmatpush.msra.mxu0 0.0
      %855 = vmatpush.msra.mxu0 0.0
      %856 = vmatpush.msra.mxu0 0.0
      %857 = vmatpush.msra.mxu0 0.0
      %858 = vmatpush.msra.mxu0 0.0
      %859 = vmatpush.msra.mxu0 0.0
      %860 = vmatpush.msra.mxu0 %v843
      %861 = vmatmul.f32.gmra.mxu0 %v841
      %v862 = vpop.f32.mrf.mxu0
      %v863 = vadd.f32 0.0, %v862
      %864 = vdwg.mxu0
      %865 = vrot.lane.b32.xlu0 %v679, 112
      %v866 = vpop.permute.xlu0 %865
      %867 = vrot.lane.b32.xlu0 %v704, 112
      %v868 = vpop.permute.xlu0 %867
      %v869 = vsel %vm732, %v866, 0
      %v871 = vsel %vm732, %v868, 0
      %873 = vmatpush.xpose.msra.mxu0 0.0
      %874 = vmatpush.xpose.msra.mxu0 0.0
      %875 = vmatpush.xpose.msra.mxu0 0.0
      %876 = vmatpush.xpose.msra.mxu0 0.0
      %877 = vmatpush.xpose.msra.mxu0 0.0
      %878 = vmatpush.xpose.msra.mxu0 0.0
      %879 = vmatpush.xpose.msra.mxu0 0.0
      %880 = vmatpush.xpose.msra.mxu0 0.0
      %881 = vmatpush.xpose.msra.mxu0 0.0
      %882 = vmatpush.xpose.msra.mxu0 0.0
      %883 = vmatpush.xpose.msra.mxu0 0.0
      %884 = vmatpush.xpose.msra.mxu0 0.0
      %885 = vmatpush.xpose.msra.mxu0 0.0
      %886 = vmatpush.xpose.msra.mxu0 0.0
      %887 = vmatpush.xpose.msra.mxu0 0.0
      %888 = vmatpush.xpose.msra.mxu0 %v871
      %889 = vmatmul.f32.gmra.mxu0 %v869
      %v890 = vpop.f32.mrf.mxu0
      %v891 = vadd.f32 %v730, %v890
      %892 = vdwg.mxu0
      %v893 = vsel %vm759, %v891, -inf
      %894 = vmax.xlane.f32.xlu0 %v893
      %v895 = vpop.xlane.xlu0 %894
      %v896 = vsub.f32 %v891, %v895
      %v897 = vmul.f32 %v896, 1.442695
      %v898 = vpow.pop %v897
      %v899 = vsel %vm759, %v898, 0.0
      %900 = vadd.xlane.f32.xlu0 %v899
      %v901 = vpop.xlane.xlu0 %900
      %v902 = vrcp.pop %v901
      %v903 = vmul.f32 %v898, %v902
      %904 = vrot.lane.b32.xlu0 %v727, 112
      %v905 = vpop.permute.xlu0 %904
      %v907 = vsel %vm771, %v903, 0
      %v909 = vsel %vm775, %v905, 0
      %911 = vmatpush.msra.mxu0 0.0
      %912 = vmatpush.msra.mxu0 0.0
      %913 = vmatpush.msra.mxu0 0.0
      %914 = vmatpush.msra.mxu0 0.0
      %915 = vmatpush.msra.mxu0 0.0
      %916 = vmatpush.msra.mxu0 0.0
      %917 = vmatpush.msra.mxu0 0.0
      %918 = vmatpush.msra.mxu0 0.0
      %919 = vmatpush.msra.mxu0 0.0
      %920 = vmatpush.msra.mxu0 0.0
      %921 = vmatpush.msra.mxu0 0.0
      %922 = vmatpush.msra.mxu0 0.0
      %923 = vmatpush.msra.mxu0 0.0
      %924 = vmatpush.msra.mxu0 0.0
      %925 = vmatpush.msra.mxu0 0.0
      %926 = vmatpush.msra.mxu0 %v909
      %927 = vmatmul.f32.gmra.mxu0 %v907
      %v928 = vpop.f32.mrf.mxu0
      %v929 = vadd.f32 0.0, %v928
      %930 = vdwg.mxu0
      %931 = vrot.lane.b32.xlu0 %v679, 104
      %v932 = vpop.permute.xlu0 %931
      %933 = vrot.lane.b32.xlu0 %v704, 104
      %v934 = vpop.permute.xlu0 %933
      %v935 = vsel %vm732, %v932, 0
      %v937 = vsel %vm732, %v934, 0
      %939 = vmatpush.xpose.msra.mxu0 0.0
      %940 = vmatpush.xpose.msra.mxu0 0.0
      %941 = vmatpush.xpose.msra.mxu0 0.0
      %942 = vmatpush.xpose.msra.mxu0 0.0
      %943 = vmatpush.xpose.msra.mxu0 0.0
      %944 = vmatpush.xpose.msra.mxu0 0.0
      %945 = vmatpush.xpose.msra.mxu0 0.0
      %946 = vmatpush.xpose.msra.mxu0 0.0
      %947 = vmatpush.xpose.msra.mxu0 0.0
      %948 = vmatpush.xpose.msra.mxu0 0.0
      %949 = vmatpush.xpose.msra.mxu0 0.0
      %950 = vmatpush.xpose.msra.mxu0 0.0
      %951 = vmatpush.xpose.msra.mxu0 0.0
      %952 = vmatpush.xpose.msra.mxu0 0.0
      %953 = vmatpush.xpose.msra.mxu0 0.0
      %954 = vmatpush.xpose.msra.mxu0 %v937
      %955 = vmatmul.f32.gmra.mxu0 %v935
      %v956 = vpop.f32.mrf.mxu0
      %v957 = vadd.f32 %v730, %v956
      %958 = vdwg.mxu0
      %v959 = vsel %vm759, %v957, -inf
      %960 = vmax.xlane.f32.xlu0 %v959
      %v961 = vpop.xlane.xlu0 %960
      %v962 = vsub.f32 %v957, %v961
      %v963 = vmul.f32 %v962, 1.442695
      %v964 = vpow.pop %v963
      %v965 = vsel %vm759, %v964, 0.0
      %966 = vadd.xlane.f32.xlu0 %v965
      %v967 = vpop.xlane.xlu0 %966
      %v968 = vrcp.pop %v967
      %v969 = vmul.f32 %v964, %v968
      %970 = vrot.lane.b32.xlu0 %v727, 104
      %v971 = vpop.permute.xlu0 %970
      %v973 = vsel %vm771, %v969, 0
      %v975 = vsel %vm775, %v971, 0
      %977 = vmatpush.msra.mxu0 0.0
      %978 = vmatpush.msra.mxu0 0.0
      %979 = vmatpush.msra.mxu0 0.0
      %980 = vmatpush.msra.mxu0 0.0
      %981 = vmatpush.msra.mxu0 0.0
      %982 = vmatpush.msra.mxu0 0.0
      %983 = vmatpush.msra.mxu0 0.0
      %984 = vmatpush.msra.mxu0 0.0
      %985 = vmatpush.msra.mxu0 0.0
      %986 = vmatpush.msra.mxu0 0.0
      %987 = vmatpush.msra.mxu0 0.0
      %988 = vmatpush.msra.mxu0 0.0
      %989 = vmatpush.msra.mxu0 0.0
      %990 = vmatpush.msra.mxu0 0.0
      %991 = vmatpush.msra.mxu0 0.0
      %992 = vmatpush.msra.mxu0 %v975
      %993 = vmatmul.f32.gmra.mxu0 %v973
      %v994 = vpop.f32.mrf.mxu0
      %v995 = vadd.f32 0.0, %v994
      %996 = vdwg.mxu0
      %998 = vrot.lane.b32.xlu0 %v863, 8
      %v999 = vpop.permute.xlu0 %998
      %1002 = vrot.lane.b32.xlu0 %v929, 16
      %v1003 = vpop.permute.xlu0 %1002
      %1006 = vrot.lane.b32.xlu0 %v995, 24
      %v1007 = vpop.permute.xlu0 %1006
      %v1009 = vsel %vm732, %v797, %v999
      %vm1010 = vcmask 130048
      %v1011 = vsel %vm1010, %v1009, %v1003
      %vm1012 = vcmask 195584
      %v1013 = vsel %vm1012, %v1011, %v1007
      %v1015 = vperm.slane %v651, 0
      %v1018 = vsel %vm655, %v1013, 0
      %1020 = vmatpush.msra.mxu0 0.0
      %1021 = vmatpush.msra.mxu0 0.0
      %1022 = vmatpush.msra.mxu0 0.0
      %1023 = vmatpush.msra.mxu0 0.0
      %1024 = vmatpush.msra.mxu0 0.0
      %1025 = vmatpush.msra.mxu0 0.0
      %1026 = vmatpush.msra.mxu0 0.0
      %1027 = vmatpush.msra.mxu0 0.0
      %1028 = vmatpush.msra.mxu0 0.0
      %1029 = vmatpush.msra.mxu0 0.0
      %1030 = vmatpush.msra.mxu0 0.0
      %1031 = vmatpush.msra.mxu0 0.0
      %1032 = vmatpush.msra.mxu0 %v650
      %1033 = vmatpush.msra.mxu0 %v649
      %1034 = vmatpush.msra.mxu0 %v648
      %1035 = vmatpush.msra.mxu0 %v647
      %1036 = vmatmul.f32.gmra.mxu0 %v1018
      %v1037 = vpop.f32.mrf.mxu0
      %v1038 = vadd.f32 %v1015, %v1037
      %1039 = vdwg.mxu0
      %v1040 = vadd.f32 %v629, %v1038
      %v1041 = vld [vmem:[%s11] sm:$0x1]
      %v1042 = vld [vmem:[%s12] sm:$0x1]
      %vm1043 = vcmask 259072
      %v1044 = vsel %vm1043, %v1040, 0.0
      %1045 = vadd.xlane.f32.xlu0 %v1044
      %v1046 = vpop.xlane.xlu0 %1045
      %v1047 = vrcp.pop 32.0
      %v1048 = vmul.f32 32.0, %v1047
      %v1049 = vsub.f32 1.0, %v1048
      %v1050 = vmul.f32 %v1047, %v1049
      %v1051 = vadd.f32 %v1047, %v1050
      %vm1052 = vweird.f32 %v1047
      %v1053 = vsel %vm1052, %v1047, %v1051
      %v1054 = vmul.f32 %v1046, %v1053
      %v1055 = vsub.f32 %v1040, %v1054
      %v1056 = vmul.f32 %v1055, %v1055
      %v1057 = vsel %vm1043, %v1056, 0.0
      %1058 = vadd.xlane.f32.xlu0 %v1057
      %v1059 = vpop.xlane.xlu0 %1058
      %v1060 = vmul.f32 %v1059, %v1053
      %v1061 = vadd.f32 %v1060, 1e-05
      %v1062 = vrsqrt.pop %v1061
      %v1063 = vmul.f32 %v1062, %v1061
      %v1064 = vmul.f32 %v1063, %v1062
      %v1065 = vmul.f32 0.5, %v1064
      %v1066 = vsub.f32 1.5, %v1065
      %v1067 = vmul.f32 %v1062, %v1066
      %vm1068 = vweird.f32 %v1061
      %vm1069 = vweird.f32 %v1062
      %vm1070 = vmor %vm1068, %vm1069
      %v1071 = vsel %vm1070, %v1062, %v1067
      %v1072 = vmul.f32 %v1055, %v1071
      %v1074 = vperm.slane %v1041, 0
      %v1076 = vmul.f32 %v1072, %v1074
      %v1078 = vperm.slane %v1042, 0
      %v1080 = vadd.f32 %v1076, %v1078
      %v1081 = vld [vmem:[%s13] sm:$0xff]
      %v1082 = vld [vmem:[%s13 + $0x8] sm:$0xff]
      %v1083 = vld [vmem:[%s13 + $0x10] sm:$0xff]
      %v1084 = vld [vmem:[%s13 + $0x18] sm:$0xff]
      %v1085 = vld [vmem:[%s14] sm:$0x1]
      %v1086 = vld [vmem:[%s15] sm:$0xff]
      %v1087 = vld [vmem:[%s15 + $0x8] sm:$0xff]
      %v1088 = vld [vmem:[%s15 + $0x10] sm:$0xff]
      %v1089 = vld [vmem:[%s15 + $0x18] sm:$0xff]
      %v1090 = vld [vmem:[%s15 + $0x20] sm:$0xff]
      %v1091 = vld [vmem:[%s15 + $0x28] sm:$0xff]
      %v1092 = vld [vmem:[%s15 + $0x30] sm:$0xff]
      %v1093 = vld [vmem:[%s15 + $0x38] sm:$0xff]
      %v1094 = vld [vmem:[%s16] sm:$0x1]
      %v1096 = vperm.slane %v1085, 0
      %v1099 = vsel %vm655, %v1080, 0
      %1101 = vmatpush.msra.mxu0 0.0
      %1102 = vmatpush.msra.mxu0 0.0
      %1103 = vmatpush.msra.mxu0 0.0
      %1104 = vmatpush.msra.mxu0 0.0
      %1105 = vmatpush.msra.mxu0 0.0
      %1106 = vmatpush.msra.mxu0 0.0
      %1107 = vmatpush.msra.mxu0 0.0
      %1108 = vmatpush.msra.mxu0 0.0
      %1109 = vmatpush.msra.mxu0 0.0
      %1110 = vmatpush.msra.mxu0 0.0
      %1111 = vmatpush.msra.mxu0 0.0
      %1112 = vmatpush.msra.mxu0 0.0
      %1113 = vmatpush.msra.mxu0 %v1084
      %1114 = vmatpush.msra.mxu0 %v1083
      %1115 = vmatpush.msra.mxu0 %v1082
      %1116 = vmatpush.msra.mxu0 %v1081
      %1117 = vmatmul.f32.gmra.mxu0 %v1099
      %v1118 = vpop.f32.mrf.mxu0
      %v1119 = vadd.f32 %v1096, %v1118
      %1120 = vdwg.mxu0
      %v1121 = vmax.f32 %v1119, 0.0
      %v1123 = vperm.slane %v1094, 0
      %vm1125 = vcmask 523264
      %v1127 = vsel %vm1125, %v1121, 0
      %1129 = vmatpush.msra.mxu0 0.0
      %1130 = vmatpush.msra.mxu0 0.0
      %1131 = vmatpush.msra.mxu0 0.0
      %1132 = vmatpush.msra.mxu0 0.0
      %1133 = vmatpush.msra.mxu0 0.0
      %1134 = vmatpush.msra.mxu0 0.0
      %1135 = vmatpush.msra.mxu0 0.0
      %1136 = vmatpush.msra.mxu0 0.0
      %1137 = vmatpush.msra.mxu0 %v1093
      %1138 = vmatpush.msra.mxu0 %v1092
      %1139 = vmatpush.msra.mxu0 %v1091
      %1140 = vmatpush.msra.mxu0 %v1090
      %1141 = vmatpush.msra.mxu0 %v1089
      %1142 = vmatpush.msra.mxu0 %v1088
      %1143 = vmatpush.msra.mxu0 %v1087
      %1144 = vmatpush.msra.mxu0 %v1086
      %1145 = vmatmul.f32.gmra.mxu0 %v1127
      %v1146 = vpop.f32.mrf.mxu0
      %v1147 = vadd.f32 %v1123, %v1146
      %1148 = vdwg.mxu0
      %v1149 = vadd.f32 %v1080, %v1147
      %v1150 = vld [vmem:[%s17] sm:$0x1]
      %v1151 = vld [vmem:[%s18] sm:$0x1]
      %v1152 = vsel %vm1043, %v1149, 0.0
      %1153 = vadd.xlane.f32.xlu0 %v1152
      %v1154 = vpop.xlane.xlu0 %1153
      %v1155 = vmul.f32 %v1154, %v1053
      %v1156 = vsub.f32 %v1149, %v1155
      %v1157 = vmul.f32 %v1156, %v1156
      %v1158 = vsel %vm1043, %v1157, 0.0
      %1159 = vadd.xlane.f32.xlu0 %v1158
      %v1160 = vpop.xlane.xlu0 %1159
      %v1161 = vmul.f32 %v1160, %v1053
      %v1162 = vadd.f32 %v1161, 1e-05
      %v1163 = vrsqrt.pop %v1162
      %v1164 = vmul.f32 %v1163, %v1162
      %v1165 = vmul.f32 %v1164, %v1163
      %v1166 = vmul.f32 0.5, %v1165
      %v1167 = vsub.f32 1.5, %v1166
      %v1168 = vmul.f32 %v1163, %v1167
      %vm1169 = vweird.f32 %v1162
      %vm1170 = vweird.f32 %v1163
      %vm1171 = vmor %vm1169, %vm1170
      %v1172 = vsel %vm1171, %v1163, %v1168
      %v1173 = vmul.f32 %v1156, %v1172
      %v1175 = vperm.slane %v1150, 0
      %v1177 = vmul.f32 %v1173, %v1175
      %v1179 = vperm.slane %v1151, 0
      %v1181 = vadd.f32 %v1177, %v1179
      %1182 = vst.msk [vmem:[%s628] sm:$0x3f] %vm1043, %v1181
      %p1183 = scmp.lt.s32.totalorder %s30, 8
      %s1184 = scalar_select %p1183, %s30, 8
      %s1185 = smul.addr %s1184, 8
      %s1186 = scalar_lea.vmem %s19, %s1185
      // Predicated region
      $region97: #{transmot_forward.16} parent=95 // pred_check
        %p1187 = pneg %p462
      $region98: #{transmot_forward.16} parent=95 // pred_check_branch
        %1189 = sbr.rel (%p1187) target = $region100
      $region99: #{transmot_forward.16} parent=95 // pred_region
        _
      $region100: #{transmot_forward.16} parent=95 // pred_fallthru
        _
    $region96: #{transmot_forward.16} parent=5 // pred_fallthru
      _
    %p1190 = scmp.le.s32.totalorder 2, %s25
    // Predicated region
    $region101: #{transmot_forward.16} parent=5 // pred_check
      %p1191 = pneg %p1190
    $region102: #{transmot_forward.16} parent=5 // pred_check_branch
      %1193 = sbr.rel (%p1191) target = $region104
    $region103: #{transmot_forward.16} parent=5 // pred_region
      %s1194 = ssub.s32 %s25, 2
      // Predicated region
      $region105: #{transmot_forward.16} parent=103 // pred_check
        %p1195 = pneg %p468
      $region106: #{transmot_forward.16} parent=103 // pred_check_branch
        %1197 = sbr.rel (%p1195) target = $region108
      $region107: #{transmot_forward.16} parent=103 // pred_region
        %p1198 = scmp.lt.s32.totalorder %s31, 8
        %s1199 = scalar_select %p1198, %s31, 8
        %s1200 = smul.addr %s1199, 8
        %s1201 = scalar_lea.vmem %s19, %s1200
      $region108: #{transmot_forward.16} parent=103 // pred_fallthru
        _
    $region104: #{transmot_forward.16} parent=5 // pred_fallthru
      _
  $region6: #{transmot_forward.16} parent=0 // loop_footer
    %s29 = sadd.s32 1, %s25
  $region7: #{transmot_forward.16} parent=0 // loop_footer_branch
    %24 = sbr.rel target = $region3
  $region8: #{transmot_forward.16} parent=0 // loop_exit
    _

// kernel: transmot_forward.14
$region0: #{transmot_forward.14}
  #allocation0 [shape = 'u32[]', space=smem, size = 0x4, offset = 0x4, fixed_abs, tag = 'smem constant byte address 0x4 - core index']
  #allocation1 [shape = 'u32[72,128]{1,0:T(1,128)}', space=vmem, size = 0x9000, scoped, tag = 'internal scratch']
  %s0 = inlined_call_operand.vmem [shape: f32[1,6,32], index: 0, kind: input, shape index: {}]
  %s1 = inlined_call_operand.vmem [shape: f32[9,4,32], index: 1, kind: input, shape index: {}]
  %s2 = inlined_call_operand.vmem [shape: f32[9,1,4], index: 2, kind: input, shape index: {}]
  %s3 = inlined_call_operand.vmem [shape: f32[32,32], index: 3, kind: input, shape index: {}]
  %s4 = inlined_call_operand.vmem [shape: f32[1,32], index: 4, kind: input, shape index: {}]
  %s5 = inlined_call_operand.vmem [shape: f32[32,32], index: 5, kind: input, shape index: {}]
  %s6 = inlined_call_operand.vmem [shape: f32[1,32], index: 6, kind: input, shape index: {}]
  %s7 = inlined_call_operand.vmem [shape: f32[32,32], index: 7, kind: input, shape index: {}]
  %s8 = inlined_call_operand.vmem [shape: f32[1,32], index: 8, kind: input, shape index: {}]
  %s9 = inlined_call_operand.vmem [shape: f32[32,32], index: 9, kind: input, shape index: {}]
  %s10 = inlined_call_operand.vmem [shape: f32[1,32], index: 10, kind: input, shape index: {}]
  %s11 = inlined_call_operand.vmem [shape: f32[1,32], index: 11, kind: input, shape index: {}]
  %s12 = inlined_call_operand.vmem [shape: f32[1,32], index: 12, kind: input, shape index: {}]
  %s13 = inlined_call_operand.vmem [shape: f32[32,64], index: 13, kind: input, shape index: {}]
  %s14 = inlined_call_operand.vmem [shape: f32[1,64], index: 14, kind: input, shape index: {}]
  %s15 = inlined_call_operand.vmem [shape: f32[64,32], index: 15, kind: input, shape index: {}]
  %s16 = inlined_call_operand.vmem [shape: f32[1,32], index: 16, kind: input, shape index: {}]
  %s17 = inlined_call_operand.vmem [shape: f32[1,32], index: 17, kind: input, shape index: {}]
  %s18 = inlined_call_operand.vmem [shape: f32[1,32], index: 18, kind: input, shape index: {}]
  %s19 = inlined_call_operand.vmem [shape: f32[9,6,32], index: 19, kind: output, shape index: {}]
  %s20 = sld [smem:[#allocation0]]
  $region109: #{transmot_forward.14} parent=0
    _
  %s22 = ssub.s32 1, %s20
  %s23 = scalar_select 0, %s22, %s20
  loop: start=0, step=1, limit=11
  $region2: #{transmot_forward.14} parent=0 // loop_pre_header
    _
  $region3: #{transmot_forward.14} parent=0 // loop_header
    %s25 = sphi 0, %s29
    %p26 = scmp.ge.s32.totalorder %s25, 11
    %s33 = sphi 0, %s33
    %s35 = sphi 0, %s33
    %s36 = sphi 0, %s35
    %s50 = sphi 0, %s36
    %s56 = sphi 0, %s58
    %s59 = sphi 0, %s56
    %s60 = sphi 0, %s59
    %s76 = sphi 0, %s60
    %s82 = sphi 0, %s84
    %s85 = sphi 0, %s82
    %s86 = sphi 0, %s85
    %s102 = sphi 0, %s86
    %s106 = sphi 0, %s106
    %s108 = sphi 0, %s106
    %s109 = sphi 0, %s108
    %s123 = sphi 0, %s109
    %s127 = sphi 0, %s127
    %s129 = sphi 0, %s127
    %s130 = sphi 0, %s129
    %s144 = sphi 0, %s130
    %s148 = sphi 0, %s148
    %s150 = sphi 0, %s148
    %s151 = sphi 0, %s150
    %s165 = sphi 0, %s151
    %s169 = sphi 0, %s169
    %s171 = sphi 0, %s169
    %s172 = sphi 0, %s171
    %s186 = sphi 0, %s172
    %s190 = sphi 0, %s190
    %s192 = sphi 0, %s190
    %s193 = sphi 0, %s192
    %s207 = sphi 0, %s193
    %s211 = sphi 0, %s211
    %s213 = sphi 0, %s211
    %s214 = sphi 0, %s213
    %s228 = sphi 0, %s214
    %s232 = sphi 0, %s232
    %s234 = sphi 0, %s232
    %s235 = sphi 0, %s234
    %s249 = sphi 0, %s235
    %s253 = sphi 0, %s253
    %s255 = sphi 0, %s253
    %s256 = sphi 0, %s255
    %s270 = sphi 0, %s256
    %s274 = sphi 0, %s274
    %s276 = sphi 0, %s274
    %s277 = sphi 0, %s276
    %s291 = sphi 0, %s277
    %s295 = sphi 0, %s295
    %s297 = sphi 0, %s295
    %s298 = sphi 0, %s297
    %s312 = sphi 0, %s298
    %s316 = sphi 0, %s316
    %s318 = sphi 0, %s316
    %s319 = sphi 0, %s318
    %s333 = sphi 0, %s319
    %s337 = sphi 0, %s337
    %s339 = sphi 0, %s337
    %s340 = sphi 0, %s339
    %s354 = sphi 0, %s340
    %s358 = sphi 0, %s358
    %s360 = sphi 0, %s358
    %s361 = sphi 0, %s360
    %s375 = sphi 0, %s361
    %s379 = sphi 0, %s379
    %s381 = sphi 0, %s379
    %s382 = sphi 0, %s381
    %s396 = sphi 0, %s382
    %s400 = sphi 0, %s400
    %s402 = sphi 0, %s400
    %s403 = sphi 0, %s402
    %s417 = sphi 0, %s403
    %s421 = sphi 0, %s421
    %s423 = sphi 0, %s421
    %s424 = sphi 0, %s423
    %s438 = sphi 0, %s424
    %s444 = sphi 0, %s446
    %s447 = sphi 0, %s444
    %s448 = sphi 0, %s447
    %s464 = sphi 0, %s448
  $region4: #{transmot_forward.14} parent=0 // loop_header_branch
    %28 = sbr.rel (%p26) target = $region8
  $region5: #{transmot_forward.14} parent=0 // loop_body
    %s30 = ssub.s32 %s25, 1
    %s31 = ssub.s32 %s25, 2
    %s32 = sadd.s32 %s25, 1
    %s34 = sadd.s32 %s33, 1
    %p37 = scmp.eq.s32.totalorder %s25, 8
    %p38 = scmp.ne.s32.totalorder %s33, %s35
    %p39 = scmp.eq.s32.totalorder %s25, 0
    %p40 = por %p38, %p39
    %p41 = scmp.ne.s32.totalorder %s33, %s35
    %p42 = scmp.eq.s32.totalorder %s30, 8
    %p43 = por %p41, %p42
    %p44 = scmp.ne.s32.totalorder %s35, %s36
    %p45 = scmp.eq.s32.totalorder %s30, 0
    %p46 = por %p44, %p45
    %p47 = scmp.ne.s32.totalorder %s35, %s36
    %p48 = scmp.eq.s32.totalorder %s31, 8
    %p49 = por %p47, %p48
    %p51 = scmp.ne.s32.totalorder %s36, %s50
    %p52 = scmp.eq.s32.totalorder %s31, 0
    %p53 = por %p51, %p52
    %s54 = ssub.s32 %s25, %s32
    %p55 = scmp.eq.s32.totalorder %s54, 0
    %s57 = sadd.s32 %s56, 1
    %s58 = scalar_select %p55, %s56, %s57
    %p61 = pneg %p55
    %p62 = scmp.eq.s32.totalorder %s25, 8
    %p63 = por %p61, %p62
    %p64 = scmp.ne.s32.totalorder %s56, %s59
    %p65 = scmp.eq.s32.totalorder %s25, 0
    %p66 = por %p64, %p65
    %p67 = scmp.ne.s32.totalorder %s56, %s59
    %p68 = scmp.eq.s32.totalorder %s30, 8
    %p69 = por %p67, %p68
    %p70 = scmp.ne.s32.totalorder %s59, %s60
    %p71 = scmp.eq.s32.totalorder %s30, 0
    %p72 = por %p70, %p71
    %p73 = scmp.ne.s32.totalorder %s59, %s60
    %p74 = scmp.eq.s32.totalorder %s31, 8
    %p75 = por %p73, %p74
    %p77 = scmp.ne.s32.totalorder %s60, %s76
    %p78 = scmp.eq.s32.totalorder %s31, 0
    %p79 = por %p77, %p78
    %s80 = ssub.s32 %s25, %s32
    %p81 = scmp.eq.s32.totalorder %s80, 0
    %s83 = sadd.s32 %s82, 1
    %s84 = scalar_select %p81, %s82, %s83
    %p87 = pneg %p81
    %p88 = scmp.eq.s32.totalorder %s25, 8
    %p89 = por %p87, %p88
    %p90 = scmp.ne.s32.totalorder %s82, %s85
    %p91 = scmp.eq.s32.totalorder %s25, 0
    %p92 = por %p90, %p91
    %p93 = scmp.ne.s32.totalorder %s82, %s85
    %p94 = scmp.eq.s32.totalorder %s30, 8
    %p95 = por %p93, %p94
    %p96 = scmp.ne.s32.totalorder %s85, %s86
    %p97 = scmp.eq.s32.totalorder %s30, 0
    %p98 = por %p96, %p97
    %p99 = scmp.ne.s32.totalorder %s85, %s86
    %p100 = scmp.eq.s32.totalorder %s31, 8
    %p101 = por %p99, %p100
    %p103 = scmp.ne.s32.totalorder %s86, %s102
    %p104 = scmp.eq.s32.totalorder %s31, 0
    %p105 = por %p103, %p104
    %s107 = sadd.s32 %s106, 1
    %p110 = scmp.eq.s32.totalorder %s25, 8
    %p111 = scmp.ne.s32.totalorder %s106, %s108
    %p112 = scmp.eq.s32.totalorder %s25, 0
    %p113 = por %p111, %p112
    %p114 = scmp.ne.s32.totalorder %s106, %s108
    %p115 = scmp.eq.s32.totalorder %s30, 8
    %p116 = por %p114, %p115
    %p117 = scmp.ne.s32.totalorder %s108, %s109
    %p118 = scmp.eq.s32.totalorder %s30, 0
    %p119 = por %p117, %p118
    %p120 = scmp.ne.s32.totalorder %s108, %s109
    %p121 = scmp.eq.s32.totalorder %s31, 8
    %p122 = por %p120, %p121
    %p124 = scmp.ne.s32.totalorder %s109, %s123
    %p125 = scmp.eq.s32.totalorder %s31, 0
    %p126 = por %p124, %p125
    %s128 = sadd.s32 %s127, 1
    %p131 = scmp.eq.s32.totalorder %s25, 8
    %p132 = scmp.ne.s32.totalorder %s127, %s129
    %p133 = scmp.eq.s32.totalorder %s25, 0
    %p134 = por %p132, %p133
    %p135 = scmp.ne.s32.totalorder %s127, %s129
    %p136 = scmp.eq.s32.totalorder %s30, 8
    %p137 = por %p135, %p136
    %p138 = scmp.ne.s32.totalorder %s129, %s130
    %p139 = scmp.eq.s32.totalorder %s30, 0
    %p140 = por %p138, %p139
    %p141 = scmp.ne.s32.totalorder %s129, %s130
    %p142 = scmp.eq.s32.totalorder %s31, 8
    %p143 = por %p141, %p142
    %p145 = scmp.ne.s32.totalorder %s130, %s144
    %p146 = scmp.eq.s32.totalorder %s31, 0
    %p147 = por %p145, %p146
    %s149 = sadd.s32 %s148, 1
    %p152 = scmp.eq.s32.totalorder %s25, 8
    %p153 = scmp.ne.s32.totalorder %s148, %s150
    %p154 = scmp.eq.s32.totalorder %s25, 0
    %p155 = por %p153, %p154
    %p156 = scmp.ne.s32.totalorder %s148, %s150
    %p157 = scmp.eq.s32.totalorder %s30, 8
    %p158 = por %p156, %p157
    %p159 = scmp.ne.s32.totalorder %s150, %s151
    %p160 = scmp.eq.s32.totalorder %s30, 0
    %p161 = por %p159, %p160
    %p162 = scmp.ne.s32.totalorder %s150, %s151
    %p163 = scmp.eq.s32.totalorder %s31, 8
    %p164 = por %p162, %p163
    %p166 = scmp.ne.s32.totalorder %s151, %s165
    %p167 = scmp.eq.s32.totalorder %s31, 0
    %p168 = por %p166, %p167
    %s170 = sadd.s32 %s169, 1
    %p173 = scmp.eq.s32.totalorder %s25, 8
    %p174 = scmp.ne.s32.totalorder %s169, %s171
    %p175 = scmp.eq.s32.totalorder %s25, 0
    %p176 = por %p174, %p175
    %p177 = scmp.ne.s32.totalorder %s169, %s171
    %p178 = scmp.eq.s32.totalorder %s30, 8
    %p179 = por %p177, %p178
    %p180 = scmp.ne.s32.totalorder %s171, %s172
    %p181 = scmp.eq.s32.totalorder %s30, 0
    %p182 = por %p180, %p181
    %p183 = scmp.ne.s32.totalorder %s171, %s172
    %p184 = scmp.eq.s32.totalorder %s31, 8
    %p185 = por %p183, %p184
    %p187 = scmp.ne.s32.totalorder %s172, %s186
    %p188 = scmp.eq.s32.totalorder %s31, 0
    %p189 = por %p187, %p188
    %s191 = sadd.s32 %s190, 1
    %p194 = scmp.eq.s32.totalorder %s25, 8
    %p195 = scmp.ne.s32.totalorder %s190, %s192
    %p196 = scmp.eq.s32.totalorder %s25, 0
    %p197 = por %p195, %p196
    %p198 = scmp.ne.s32.totalorder %s190, %s192
    %p199 = scmp.eq.s32.totalorder %s30, 8
    %p200 = por %p198, %p199
    %p201 = scmp.ne.s32.totalorder %s192, %s193
    %p202 = scmp.eq.s32.totalorder %s30, 0
    %p203 = por %p201, %p202
    %p204 = scmp.ne.s32.totalorder %s192, %s193
    %p205 = scmp.eq.s32.totalorder %s31, 8
    %p206 = por %p204, %p205
    %p208 = scmp.ne.s32.totalorder %s193, %s207
    %p209 = scmp.eq.s32.totalorder %s31, 0
    %p210 = por %p208, %p209
    %s212 = sadd.s32 %s211, 1
    %p215 = scmp.eq.s32.totalorder %s25, 8
    %p216 = scmp.ne.s32.totalorder %s211, %s213
    %p217 = scmp.eq.s32.totalorder %s25, 0
    %p218 = por %p216, %p217
    %p219 = scmp.ne.s32.totalorder %s211, %s213
    %p220 = scmp.eq.s32.totalorder %s30, 8
    %p221 = por %p219, %p220
    %p222 = scmp.ne.s32.totalorder %s213, %s214
    %p223 = scmp.eq.s32.totalorder %s30, 0
    %p224 = por %p222, %p223
    %p225 = scmp.ne.s32.totalorder %s213, %s214
    %p226 = scmp.eq.s32.totalorder %s31, 8
    %p227 = por %p225, %p226
    %p229 = scmp.ne.s32.totalorder %s214, %s228
    %p230 = scmp.eq.s32.totalorder %s31, 0
    %p231 = por %p229, %p230
    %s233 = sadd.s32 %s232, 1
    %p236 = scmp.eq.s32.totalorder %s25, 8
    %p237 = scmp.ne.s32.totalorder %s232, %s234
    %p238 = scmp.eq.s32.totalorder %s25, 0
    %p239 = por %p237, %p238
    %p240 = scmp.ne.s32.totalorder %s232, %s234
    %p241 = scmp.eq.s32.totalorder %s30, 8
    %p242 = por %p240, %p241
    %p243 = scmp.ne.s32.totalorder %s234, %s235
    %p244 = scmp.eq.s32.totalorder %s30, 0
    %p245 = por %p243, %p244
    %p246 = scmp.ne.s32.totalorder %s234, %s235
    %p247 = scmp.eq.s32.totalorder %s31, 8
    %p248 = por %p246, %p247
    %p250 = scmp.ne.s32.totalorder %s235, %s249
    %p251 = scmp.eq.s32.totalorder %s31, 0
    %p252 = por %p250, %p251
    %s254 = sadd.s32 %s253, 1
    %p257 = scmp.eq.s32.totalorder %s25, 8
    %p258 = scmp.ne.s32.totalorder %s253, %s255
    %p259 = scmp.eq.s32.totalorder %s25, 0
    %p260 = por %p258, %p259
    %p261 = scmp.ne.s32.totalorder %s253, %s255
    %p262 = scmp.eq.s32.totalorder %s30, 8
    %p263 = por %p261, %p262
    %p264 = scmp.ne.s32.totalorder %s255, %s256
    %p265 = scmp.eq.s32.totalorder %s30, 0
    %p266 = por %p264, %p265
    %p267 = scmp.ne.s32.totalorder %s255, %s256
    %p268 = scmp.eq.s32.totalorder %s31, 8
    %p269 = por %p267, %p268
    %p271 = scmp.ne.s32.totalorder %s256, %s270
    %p272 = scmp.eq.s32.totalorder %s31, 0
    %p273 = por %p271, %p272
    %s275 = sadd.s32 %s274, 1
    %p278 = scmp.eq.s32.totalorder %s25, 8
    %p279 = scmp.ne.s32.totalorder %s274, %s276
    %p280 = scmp.eq.s32.totalorder %s25, 0
    %p281 = por %p279, %p280
    %p282 = scmp.ne.s32.totalorder %s274, %s276
    %p283 = scmp.eq.s32.totalorder %s30, 8
    %p284 = por %p282, %p283
    %p285 = scmp.ne.s32.totalorder %s276, %s277
    %p286 = scmp.eq.s32.totalorder %s30, 0
    %p287 = por %p285, %p286
    %p288 = scmp.ne.s32.totalorder %s276, %s277
    %p289 = scmp.eq.s32.totalorder %s31, 8
    %p290 = por %p288, %p289
    %p292 = scmp.ne.s32.totalorder %s277, %s291
    %p293 = scmp.eq.s32.totalorder %s31, 0
    %p294 = por %p292, %p293
    %s296 = sadd.s32 %s295, 1
    %p299 = scmp.eq.s32.totalorder %s25, 8
    %p300 = scmp.ne.s32.totalorder %s295, %s297
    %p301 = scmp.eq.s32.totalorder %s25, 0
    %p302 = por %p300, %p301
    %p303 = scmp.ne.s32.totalorder %s295, %s297
    %p304 = scmp.eq.s32.totalorder %s30, 8
    %p305 = por %p303, %p304
    %p306 = scmp.ne.s32.totalorder %s297, %s298
    %p307 = scmp.eq.s32.totalorder %s30, 0
    %p308 = por %p306, %p307
    %p309 = scmp.ne.s32.totalorder %s297, %s298
    %p310 = scmp.eq.s32.totalorder %s31, 8
    %p311 = por %p309, %p310
    %p313 = scmp.ne.s32.totalorder %s298, %s312
    %p314 = scmp.eq.s32.totalorder %s31, 0
    %p315 = por %p313, %p314
    %s317 = sadd.s32 %s316, 1
    %p320 = scmp.eq.s32.totalorder %s25, 8
    %p321 = scmp.ne.s32.totalorder %s316, %s318
    %p322 = scmp.eq.s32.totalorder %s25, 0
    %p323 = por %p321, %p322
    %p324 = scmp.ne.s32.totalorder %s316, %s318
    %p325 = scmp.eq.s32.totalorder %s30, 8
    %p326 = por %p324, %p325
    %p327 = scmp.ne.s32.totalorder %s318, %s319
    %p328 = scmp.eq.s32.totalorder %s30, 0
    %p329 = por %p327, %p328
    %p330 = scmp.ne.s32.totalorder %s318, %s319
    %p331 = scmp.eq.s32.totalorder %s31, 8
    %p332 = por %p330, %p331
    %p334 = scmp.ne.s32.totalorder %s319, %s333
    %p335 = scmp.eq.s32.totalorder %s31, 0
    %p336 = por %p334, %p335
    %s338 = sadd.s32 %s337, 1
    %p341 = scmp.eq.s32.totalorder %s25, 8
    %p342 = scmp.ne.s32.totalorder %s337, %s339
    %p343 = scmp.eq.s32.totalorder %s25, 0
    %p344 = por %p342, %p343
    %p345 = scmp.ne.s32.totalorder %s337, %s339
    %p346 = scmp.eq.s32.totalorder %s30, 8
    %p347 = por %p345, %p346
    %p348 = scmp.ne.s32.totalorder %s339, %s340
    %p349 = scmp.eq.s32.totalorder %s30, 0
    %p350 = por %p348, %p349
    %p351 = scmp.ne.s32.totalorder %s339, %s340
    %p352 = scmp.eq.s32.totalorder %s31, 8
    %p353 = por %p351, %p352
    %p355 = scmp.ne.s32.totalorder %s340, %s354
    %p356 = scmp.eq.s32.totalorder %s31, 0
    %p357 = por %p355, %p356
    %s359 = sadd.s32 %s358, 1
    %p362 = scmp.eq.s32.totalorder %s25, 8
    %p363 = scmp.ne.s32.totalorder %s358, %s360
    %p364 = scmp.eq.s32.totalorder %s25, 0
    %p365 = por %p363, %p364
    %p366 = scmp.ne.s32.totalorder %s358, %s360
    %p367 = scmp.eq.s32.totalorder %s30, 8
    %p368 = por %p366, %p367
    %p369 = scmp.ne.s32.totalorder %s360, %s361
    %p370 = scmp.eq.s32.totalorder %s30, 0
    %p371 = por %p369, %p370
    %p372 = scmp.ne.s32.totalorder %s360, %s361
    %p373 = scmp.eq.s32.totalorder %s31, 8
    %p374 = por %p372, %p373
    %p376 = scmp.ne.s32.totalorder %s361, %s375
    %p377 = scmp.eq.s32.totalorder %s31, 0
    %p378 = por %p376, %p377
    %s380 = sadd.s32 %s379, 1
    %p383 = scmp.eq.s32.totalorder %s25, 8
    %p384 = scmp.ne.s32.totalorder %s379, %s381
    %p385 = scmp.eq.s32.totalorder %s25, 0
    %p386 = por %p384, %p385
    %p387 = scmp.ne.s32.totalorder %s379, %s381
    %p388 = scmp.eq.s32.totalorder %s30, 8
    %p389 = por %p387, %p388
    %p390 = scmp.ne.s32.totalorder %s381, %s382
    %p391 = scmp.eq.s32.totalorder %s30, 0
    %p392 = por %p390, %p391
    %p393 = scmp.ne.s32.totalorder %s381, %s382
    %p394 = scmp.eq.s32.totalorder %s31, 8
    %p395 = por %p393, %p394
    %p397 = scmp.ne.s32.totalorder %s382, %s396
    %p398 = scmp.eq.s32.totalorder %s31, 0
    %p399 = por %p397, %p398
    %s401 = sadd.s32 %s400, 1
    %p404 = scmp.eq.s32.totalorder %s25, 8
    %p405 = scmp.ne.s32.totalorder %s400, %s402
    %p406 = scmp.eq.s32.totalorder %s25, 0
    %p407 = por %p405, %p406
    %p408 = scmp.ne.s32.totalorder %s400, %s402
    %p409 = scmp.eq.s32.totalorder %s30, 8
    %p410 = por %p408, %p409
    %p411 = scmp.ne.s32.totalorder %s402, %s403
    %p412 = scmp.eq.s32.totalorder %s30, 0
    %p413 = por %p411, %p412
    %p414 = scmp.ne.s32.totalorder %s402, %s403
    %p415 = scmp.eq.s32.totalorder %s31, 8
    %p416 = por %p414, %p415
    %p418 = scmp.ne.s32.totalorder %s403, %s417
    %p419 = scmp.eq.s32.totalorder %s31, 0
    %p420 = por %p418, %p419
    %s422 = sadd.s32 %s421, 1
    %p425 = scmp.eq.s32.totalorder %s25, 8
    %p426 = scmp.ne.s32.totalorder %s421, %s423
    %p427 = scmp.eq.s32.totalorder %s25, 0
    %p428 = por %p426, %p427
    %p429 = scmp.ne.s32.totalorder %s421, %s423
    %p430 = scmp.eq.s32.totalorder %s30, 8
    %p431 = por %p429, %p430
    %p432 = scmp.ne.s32.totalorder %s423, %s424
    %p433 = scmp.eq.s32.totalorder %s30, 0
    %p434 = por %p432, %p433
    %p435 = scmp.ne.s32.totalorder %s423, %s424
    %p436 = scmp.eq.s32.totalorder %s31, 8
    %p437 = por %p435, %p436
    %p439 = scmp.ne.s32.totalorder %s424, %s438
    %p440 = scmp.eq.s32.totalorder %s31, 0
    %p441 = por %p439, %p440
    %s442 = ssub.s32 %s25, %s32
    %p443 = scmp.eq.s32.totalorder %s442, 0
    %s445 = sadd.s32 %s444, 1
    %s446 = scalar_select %p443, %s444, %s445
    %p449 = pneg %p443
    %p450 = scmp.eq.s32.totalorder %s25, 8
    %p451 = por %p449, %p450
    %p452 = scmp.ne.s32.totalorder %s444, %s447
    %p453 = scmp.eq.s32.totalorder %s25, 0
    %p454 = por %p452, %p453
    %p455 = scmp.ne.s32.totalorder %s444, %s447
    %p456 = scmp.eq.s32.totalorder %s30, 8
    %p457 = por %p455, %p456
    %p458 = scmp.ne.s32.totalorder %s447, %s448
    %p459 = scmp.eq.s32.totalorder %s30, 0
    %p460 = por %p458, %p459
    %p461 = scmp.ne.s32.totalorder %s447, %s448
    %p462 = scmp.eq.s32.totalorder %s31, 8
    %p463 = por %p461, %p462
    %p465 = scmp.ne.s32.totalorder %s448, %s464
    %p466 = scmp.eq.s32.totalorder %s31, 0
    %p467 = por %p465, %p466
    %p468 = scmp.le.s32.totalorder 1, %s25
    %p469 = scmp.lt.s32.totalorder %s25, 10
    %p470 = pnand %p468, %p469
    %p471 = pneg %p470
    // Predicated region
    $region9: #{transmot_forward.14} parent=5 // pred_check
      _
    $region10: #{transmot_forward.14} parent=5 // pred_check_branch
      %473 = sbr.rel (%p470) target = $region12
    $region11: #{transmot_forward.14} parent=5 // pred_region
      %s474 = ssub.s32 %s25, 1
      // Predicated region
      $region13: #{transmot_forward.14} parent=11 // pred_check
        %p475 = pneg %p46
      $region14: #{transmot_forward.14} parent=11 // pred_check_branch
        %477 = sbr.rel (%p475) target = $region16
      $region15: #{transmot_forward.14} parent=11 // pred_region
        _
      $region16: #{transmot_forward.14} parent=11 // pred_fallthru
        _
      // Predicated region
      $region17: #{transmot_forward.14} parent=11 // pred_check
        %p478 = pneg %p119
      $region18: #{transmot_forward.14} parent=11 // pred_check_branch
        %480 = sbr.rel (%p478) target = $region20
      $region19: #{transmot_forward.14} parent=11 // pred_region
        _
      $region20: #{transmot_forward.14} parent=11 // pred_fallthru
        _
      // Predicated region
      $region21: #{transmot_forward.14} parent=11 // pred_check
        %p481 = pneg %p140
      $region22: #{transmot_forward.14} parent=11 // pred_check_branch
        %483 = sbr.rel (%p481) target = $region24
      $region23: #{transmot_forward.14} parent=11 // pred_region
        _
      $region24: #{transmot_forward.14} parent=11 // pred_fallthru
        _
      // Predicated region
      $region25: #{transmot_forward.14} parent=11 // pred_check
        %p484 = pneg %p161
      $region26: #{transmot_forward.14} parent=11 // pred_check_branch
        %486 = sbr.rel (%p484) target = $region28
      $region27: #{transmot_forward.14} parent=11 // pred_region
        _
      $region28: #{transmot_forward.14} parent=11 // pred_fallthru
        _
      // Predicated region
      $region29: #{transmot_forward.14} parent=11 // pred_check
        %p487 = pneg %p182
      $region30: #{transmot_forward.14} parent=11 // pred_check_branch
        %489 = sbr.rel (%p487) target = $region32
      $region31: #{transmot_forward.14} parent=11 // pred_region
        _
      $region32: #{transmot_forward.14} parent=11 // pred_fallthru
        _
      // Predicated region
      $region33: #{transmot_forward.14} parent=11 // pred_check
        %p490 = pneg %p203
      $region34: #{transmot_forward.14} parent=11 // pred_check_branch
        %492 = sbr.rel (%p490) target = $region36
      $region35: #{transmot_forward.14} parent=11 // pred_region
        _
      $region36: #{transmot_forward.14} parent=11 // pred_fallthru
        _
      // Predicated region
      $region37: #{transmot_forward.14} parent=11 // pred_check
        %p493 = pneg %p224
      $region38: #{transmot_forward.14} parent=11 // pred_check_branch
        %495 = sbr.rel (%p493) target = $region40
      $region39: #{transmot_forward.14} parent=11 // pred_region
        _
      $region40: #{transmot_forward.14} parent=11 // pred_fallthru
        _
      // Predicated region
      $region41: #{transmot_forward.14} parent=11 // pred_check
        %p496 = pneg %p245
      $region42: #{transmot_forward.14} parent=11 // pred_check_branch
        %498 = sbr.rel (%p496) target = $region44
      $region43: #{transmot_forward.14} parent=11 // pred_region
        _
      $region44: #{transmot_forward.14} parent=11 // pred_fallthru
        _
      // Predicated region
      $region45: #{transmot_forward.14} parent=11 // pred_check
        %p499 = pneg %p266
      $region46: #{transmot_forward.14} parent=11 // pred_check_branch
        %501 = sbr.rel (%p499) target = $region48
      $region47: #{transmot_forward.14} parent=11 // pred_region
        _
      $region48: #{transmot_forward.14} parent=11 // pred_fallthru
        _
      // Predicated region
      $region49: #{transmot_forward.14} parent=11 // pred_check
        %p502 = pneg %p287
      $region50: #{transmot_forward.14} parent=11 // pred_check_branch
        %504 = sbr.rel (%p502) target = $region52
      $region51: #{transmot_forward.14} parent=11 // pred_region
        _
      $region52: #{transmot_forward.14} parent=11 // pred_fallthru
        _
      // Predicated region
      $region53: #{transmot_forward.14} parent=11 // pred_check
        %p505 = pneg %p308
      $region54: #{transmot_forward.14} parent=11 // pred_check_branch
        %507 = sbr.rel (%p505) target = $region56
      $region55: #{transmot_forward.14} parent=11 // pred_region
        _
      $region56: #{transmot_forward.14} parent=11 // pred_fallthru
        _
      // Predicated region
      $region57: #{transmot_forward.14} parent=11 // pred_check
        %p508 = pneg %p329
      $region58: #{transmot_forward.14} parent=11 // pred_check_branch
        %510 = sbr.rel (%p508) target = $region60
      $region59: #{transmot_forward.14} parent=11 // pred_region
        _
      $region60: #{transmot_forward.14} parent=11 // pred_fallthru
        _
      // Predicated region
      $region61: #{transmot_forward.14} parent=11 // pred_check
        %p511 = pneg %p350
      $region62: #{transmot_forward.14} parent=11 // pred_check_branch
        %513 = sbr.rel (%p511) target = $region64
      $region63: #{transmot_forward.14} parent=11 // pred_region
        _
      $region64: #{transmot_forward.14} parent=11 // pred_fallthru
        _
      // Predicated region
      $region65: #{transmot_forward.14} parent=11 // pred_check
        %p514 = pneg %p371
      $region66: #{transmot_forward.14} parent=11 // pred_check_branch
        %516 = sbr.rel (%p514) target = $region68
      $region67: #{transmot_forward.14} parent=11 // pred_region
        _
      $region68: #{transmot_forward.14} parent=11 // pred_fallthru
        _
      // Predicated region
      $region69: #{transmot_forward.14} parent=11 // pred_check
        %p517 = pneg %p392
      $region70: #{transmot_forward.14} parent=11 // pred_check_branch
        %519 = sbr.rel (%p517) target = $region72
      $region71: #{transmot_forward.14} parent=11 // pred_region
        _
      $region72: #{transmot_forward.14} parent=11 // pred_fallthru
        _
      // Predicated region
      $region73: #{transmot_forward.14} parent=11 // pred_check
        %p520 = pneg %p413
      $region74: #{transmot_forward.14} parent=11 // pred_check_branch
        %522 = sbr.rel (%p520) target = $region76
      $region75: #{transmot_forward.14} parent=11 // pred_region
        _
      $region76: #{transmot_forward.14} parent=11 // pred_fallthru
        _
      // Predicated region
      $region77: #{transmot_forward.14} parent=11 // pred_check
        %p523 = pneg %p434
      $region78: #{transmot_forward.14} parent=11 // pred_check_branch
        %525 = sbr.rel (%p523) target = $region80
      $region79: #{transmot_forward.14} parent=11 // pred_region
        _
      $region80: #{transmot_forward.14} parent=11 // pred_fallthru
        _
    $region12: #{transmot_forward.14} parent=5 // pred_fallthru
      _
    %p526 = scmp.lt.s32.totalorder %s25, 9
    // Predicated region
    $region81: #{transmot_forward.14} parent=5 // pred_check
      %p527 = pneg %p526
    $region82: #{transmot_forward.14} parent=5 // pred_check_branch
      %529 = sbr.rel (%p527) target = $region84
    $region83: #{transmot_forward.14} parent=5 // pred_region
      // Predicated region
      $region85: #{transmot_forward.14} parent=83 // pred_check
        %p530 = pneg %p66
      $region86: #{transmot_forward.14} parent=83 // pred_check_branch
        %532 = sbr.rel (%p530) target = $region88
      $region87: #{transmot_forward.14} parent=83 // pred_region
        %p533 = scmp.lt.s32.totalorder %s25, 8
        %s534 = scalar_select %p533, %s25, 8
        %s535 = smul.addr %s534, 4
        %s536 = scalar_lea.vmem %s1, %s535
      $region88: #{transmot_forward.14} parent=83 // pred_fallthru
        _
      // Predicated region
      $region89: #{transmot_forward.14} parent=83 // pred_check
        %p537 = pneg %p92
      $region90: #{transmot_forward.14} parent=83 // pred_check_branch
        %539 = sbr.rel (%p537) target = $region92
      $region91: #{transmot_forward.14} parent=83 // pred_region
        %p540 = scmp.lt.s32.totalorder %s25, 8
        %s541 = scalar_select %p540, %s25, 8
        %s542 = scalar_lea.vmem %s2, %s541
      $region92: #{transmot_forward.14} parent=83 // pred_fallthru
        _
    $region84: #{transmot_forward.14} parent=5 // pred_fallthru
      _
    %p543 = scmp.le.s32.totalorder 1, %s25
    %p544 = scmp.lt.s32.totalorder %s25, 10
    %p545 = pnand %p543, %p544
    %p546 = pneg %p545
    // Predicated region
    $region93: #{transmot_forward.14} parent=5 // pred_check
      _
    $region94: #{transmot_forward.14} parent=5 // pred_check_branch
      %548 = sbr.rel (%p545) target = $region96
    $region95: #{transmot_forward.14} parent=5 // pred_region
      %s549 = ssub.s32 %s25, 1
      %p550 = pneg %p46
      %p551 = pneg %p43
      %p552 = scmp.lt.s32.totalorder %s30, 8
      %s553 = scalar_select %p552, %s30, 8
      %s554 = smul.addr %s553, 4
      %s555 = scalar_lea.vmem %s1, %s554
      %p556 = pneg %p72
      %p557 = pneg %p69
      %p558 = scmp.lt.s32.totalorder %s30, 8
      %s559 = scalar_select %p558, %s30, 8
      %s560 = scalar_lea.vmem %s2, %s559
      %p561 = pneg %p98
      %p562 = pneg %p95
      %p563 = pneg %p119
      %p564 = pneg %p116
      %p565 = pneg %p140
      %p566 = pneg %p137
      %p567 = pneg %p161
      %p568 = pneg %p158
      %p569 = pneg %p182
      %p570 = pneg %p179
      %p571 = pneg %p203
      %p572 = pneg %p200
      %p573 = pneg %p224
      %p574 = pneg %p221
      %p575 = pneg %p245
      %p576 = pneg %p242
      %p577 = pneg %p266
      %p578 = pneg %p263
      %p579 = pneg %p287
      %p580 = pneg %p284
      %p581 = pneg %p308
      %p582 = pneg %p305
      %p583 = pneg %p329
      %p584 = pneg %p326
      %p585 = pneg %p350
      %p586 = pneg %p347
      %p587 = pneg %p371
      %p588 = pneg %p368
      %p589 = pneg %p392
      %p590 = pneg %p389
      %p591 = pneg %p413
      %p592 = pneg %p410
      %p593 = pneg %p434
      %p594 = pneg %p431
      %p595 = pneg %p460
      %p596 = pneg %p457
      %p597 = scmp.lt.s32.totalorder %s30, 8
      %s598 = scalar_select %p597, %s30, 8
      %s599 = smul.addr %s598, 8
      %s600 = scalar_lea.vmem %s19, %s599
      %p601 = scmp.lt.s32.totalorder %s30, 8
      %s602 = scalar_select %p601, %s30, 8
      %s603 = smul.addr %s602, 4
      %s604 = scalar_lea.vmem %s1, %s603
      %p605 = scmp.lt.s32.totalorder %s30, 8
      %s606 = scalar_select %p605, %s30, 8
      %s607 = scalar_lea.vmem %s2, %s606
      %p608 = scmp.lt.s32.totalorder %s30, 8
      %s609 = scalar_select %p608, %s30, 8
      %s610 = smul.addr %s609, 8
      %s611 = scalar_lea.vmem %s19, %s610
      %v612 = vld [vmem:[%s0] sm:$0x3f]
      %v613 = vld [vmem:[%s604] sm:$0xf]
      %v614 = vld [vmem:[%s607] sm:$0x1]
      %v615 = vld [vmem:[%s3] sm:$0xff]
      %v616 = vld [vmem:[%s3 + $0x8] sm:$0xff]
      %v617 = vld [vmem:[%s3 + $0x10] sm:$0xff]
      %v618 = vld [vmem:[%s3 + $0x18] sm:$0xff]
      %v619 = vld [vmem:[%s4] sm:$0x1]
      %v620 = vld [vmem:[%s5] sm:$0xff]
      %v621 = vld [vmem:[%s5 + $0x8] sm:$0xff]
      %v622 = vld [vmem:[%s5 + $0x10] sm:$0xff]
      %v623 = vld [vmem:[%s5 + $0x18] sm:$0xff]
      %v624 = vld [vmem:[%s6] sm:$0x1]
      %v625 = vld [vmem:[%s7] sm:$0xff]
      %v626 = vld [vmem:[%s7 + $0x8] sm:$0xff]
      %v627 = vld [vmem:[%s7 + $0x10] sm:$0xff]
      %v628 = vld [vmem:[%s7 + $0x18] sm:$0xff]
      %v629 = vld [vmem:[%s8] sm:$0x1]
      %v630 = vld [vmem:[%s9] sm:$0xff]
      %v631 = vld [vmem:[%s9 + $0x8] sm:$0xff]
      %v632 = vld [vmem:[%s9 + $0x10] sm:$0xff]
      %v633 = vld [vmem:[%s9 + $0x18] sm:$0xff]
      %v634 = vld [vmem:[%s10] sm:$0x1]
      %v636 = vperm.slane %v619, 0
      %vm638 = vcmask 261120
      %v640 = vsel %vm638, %v612, 0
      %642 = vmatpush.msra.mxu0 0.0
      %643 = vmatpush.msra.mxu0 0.0
      %644 = vmatpush.msra.mxu0 0.0
      %645 = vmatpush.msra.mxu0 0.0
      %646 = vmatpush.msra.mxu0 0.0
      %647 = vmatpush.msra.mxu0 0.0
      %648 = vmatpush.msra.mxu0 0.0
      %649 = vmatpush.msra.mxu0 0.0
      %650 = vmatpush.msra.mxu0 0.0
      %651 = vmatpush.msra.mxu0 0.0
      %652 = vmatpush.msra.mxu0 0.0
      %653 = vmatpush.msra.mxu0 0.0
      %654 = vmatpush.msra.mxu0 %v618
      %655 = vmatpush.msra.mxu0 %v617
      %656 = vmatpush.msra.mxu0 %v616
      %657 = vmatpush.msra.mxu0 %v615
      %658 = vmatmul.f32.gmra.mxu0 %v640
      %v659 = vpop.f32.mrf.mxu0
      %v660 = vadd.f32 %v636, %v659
      %661 = vdwg.mxu0
      %v662 = vmul.f32 %v660, 0.35355338
      %v664 = vperm.slane %v624, 0
      %v667 = vsel %vm638, %v613, 0
      %669 = vmatpush.msra.mxu0 0.0
      %670 = vmatpush.msra.mxu0 0.0
      %671 = vmatpush.msra.mxu0 0.0
      %672 = vmatpush.msra.mxu0 0.0
      %673 = vmatpush.msra.mxu0 0.0
      %674 = vmatpush.msra.mxu0 0.0
      %675 = vmatpush.msra.mxu0 0.0
      %676 = vmatpush.msra.mxu0 0.0
      %677 = vmatpush.msra.mxu0 0.0
      %678 = vmatpush.msra.mxu0 0.0
      %679 = vmatpush.msra.mxu0 0.0
      %680 = vmatpush.msra.mxu0 0.0
      %681 = vmatpush.msra.mxu0 %v623
      %682 = vmatpush.msra.mxu0 %v622
      %683 = vmatpush.msra.mxu0 %v621
      %684 = vmatpush.msra.mxu0 %v620
      %685 = vmatmul.f32.gmra.mxu0 %v667
      %v686 = vpop.f32.mrf.mxu0
      %v687 = vadd.f32 %v664, %v686
      %688 = vdwg.mxu0
      %v690 = vperm.slane %v629, 0
      %692 = vmatpush.msra.mxu0 0.0
      %693 = vmatpush.msra.mxu0 0.0
      %694 = vmatpush.msra.mxu0 0.0
      %695 = vmatpush.msra.mxu0 0.0
      %696 = vmatpush.msra.mxu0 0.0
      %697 = vmatpush.msra.mxu0 0.0
      %698 = vmatpush.msra.mxu0 0.0
      %699 = vmatpush.msra.mxu0 0.0
      %700 = vmatpush.msra.mxu0 0.0
      %701 = vmatpush.msra.mxu0 0.0
      %702 = vmatpush.msra.mxu0 0.0
      %703 = vmatpush.msra.mxu0 0.0
      %704 = vmatpush.msra.mxu0 %v628
      %705 = vmatpush.msra.mxu0 %v627
      %706 = vmatpush.msra.mxu0 %v626
      %707 = vmatpush.msra.mxu0 %v625
      %708 = vmatmul.f32.gmra.mxu0 %v667
      %v709 = vpop.f32.mrf.mxu0
      %v710 = vadd.f32 %v690, %v709
      %711 = vdwg.mxu0
      %v713 = vperm.slane %v614, 0
      %vm715 = vcmask 64512
      %v717 = vsel %vm715, %v662, 0
      %v720 = vsel %vm715, %v687, 0
      %722 = vmatpush.xpose.msra.mxu0 0.0
      %723 = vmatpush.xpose.msra.mxu0 0.0
      %724 = vmatpush.xpose.msra.mxu0 0.0
      %725 = vmatpush.xpose.msra.mxu0 0.0
      %726 = vmatpush.xpose.msra.mxu0 0.0
      %727 = vmatpush.xpose.msra.mxu0 0.0
      %728 = vmatpush.xpose.msra.mxu0 0.0
      %729 = vmatpush.xpose.msra.mxu0 0.0
      %730 = vmatpush.xpose.msra.mxu0 0.0
      %731 = vmatpush.xpose.msra.mxu0 0.0
      %732 = vmatpush.xpose.msra.mxu0 0.0
      %733 = vmatpush.xpose.msra.mxu0 0.0
      %734 = vmatpush.xpose.msra.mxu0 0.0
      %735 = vmatpush.xpose.msra.mxu0 0.0
      %736 = vmatpush.xpose.msra.mxu0 0.0
      %737 = vmatpush.xpose.msra.mxu0 %v720
      %738 = vmatmul.f32.gmra.mxu0 %v717
      %v739 = vpop.f32.mrf.mxu0
      %v740 = vadd.f32 %v713, %v739
      %741 = vdwg.mxu0
      %vm742 = vcmask 29696
      %v743 = vsel %vm742, %v740, -inf
      %744 = vmax.xlane.f32.xlu0 %v743
      %v745 = vpop.xlane.xlu0 %744
      %v746 = vsub.f32 %v740, %v745
      %v747 = vmul.f32 %v746, 1.442695
      %v748 = vpow.pop %v747
      %v749 = vsel %vm742, %v748, 0.0
      %750 = vadd.xlane.f32.xlu0 %v749
      %v751 = vpop.xlane.xlu0 %750
      %v752 = vrcp.pop %v751
      %v753 = vmul.f32 %v748, %v752
      %vm754 = vcmask 31744
      %v756 = vsel %vm754, %v753, 0
      %vm758 = vcmask 1043456
      %v760 = vsel %vm758, %v710, 0
      %762 = vmatpush.msra.mxu0 0.0
      %763 = vmatpush.msra.mxu0 0.0
      %764 = vmatpush.msra.mxu0 0.0
      %765 = vmatpush.msra.mxu0 0.0
      %766 = vmatpush.msra.mxu0 0.0
      %767 = vmatpush.msra.mxu0 0.0
      %768 = vmatpush.msra.mxu0 0.0
      %769 = vmatpush.msra.mxu0 0.0
      %770 = vmatpush.msra.mxu0 0.0
      %771 = vmatpush.msra.mxu0 0.0
      %772 = vmatpush.msra.mxu0 0.0
      %773 = vmatpush.msra.mxu0 0.0
      %774 = vmatpush.msra.mxu0 0.0
      %775 = vmatpush.msra.mxu0 0.0
      %776 = vmatpush.msra.mxu0 0.0
      %777 = vmatpush.msra.mxu0 %v760
      %778 = vmatmul.f32.gmra.mxu0 %v756
      %v779 = vpop.f32.mrf.mxu0
      %v780 = vadd.f32 0.0, %v779
      %781 = vdwg.mxu0
      %782 = vrot.lane.b32.xlu0 %v662, 120
      %v783 = vpop.permute.xlu0 %782
      %784 = vrot.lane.b32.xlu0 %v687, 120
      %v785 = vpop.permute.xlu0 %784
      %v786 = vsel %vm715, %v783, 0
      %v788 = vsel %vm715, %v785, 0
      %790 = vmatpush.xpose.msra.mxu0 0.0
      %791 = vmatpush.xpose.msra.mxu0 0.0
      %792 = vmatpush.xpose.msra.mxu0 0.0
      %793 = vmatpush.xpose.msra.mxu0 0.0
      %794 = vmatpush.xpose.msra.mxu0 0.0
      %795 = vmatpush.xpose.msra.mxu0 0.0
      %796 = vmatpush.xpose.msra.mxu0 0.0
      %797 = vmatpush.xpose.msra.mxu0 0.0
      %798 = vmatpush.xpose.msra.mxu0 0.0
      %799 = vmatpush.xpose.msra.mxu0 0.0
      %800 = vmatpush.xpose.msra.mxu0 0.0
      %801 = vmatpush.xpose.msra.mxu0 0.0
      %802 = vmatpush.xpose.msra.mxu0 0.0
      %803 = vmatpush.xpose.msra.mxu0 0.0
      %804 = vmatpush.xpose.msra.mxu0 0.0
      %805 = vmatpush.xpose.msra.mxu0 %v788
      %806 = vmatmul.f32.gmra.mxu0 %v786
      %v807 = vpop.f32.mrf.mxu0
      %v808 = vadd.f32 %v713, %v807
      %809 = vdwg.mxu0
      %v810 = vsel %vm742, %v808, -inf
      %811 = vmax.xlane.f32.xlu0 %v810
      %v812 = vpop.xlane.xlu0 %811
      %v813 = vsub.f32 %v808, %v812
      %v814 = vmul.f32 %v813, 1.442695
      %v815 = vpow.pop %v814
      %v816 = vsel %vm742, %v815, 0.0
      %817 = vadd.xlane.f32.xlu0 %v816
      %v818 = vpop.xlane.xlu0 %817
      %v819 = vrcp.pop %v818
      %v820 = vmul.f32 %v815, %v819
      %821 = vrot.lane.b32.xlu0 %v710, 120
      %v822 = vpop.permute.xlu0 %821
      %v824 = vsel %vm754, %v820, 0
      %v826 = vsel %vm758, %v822, 0
      %828 = vmatpush.msra.mxu0 0.0
      %829 = vmatpush.msra.mxu0 0.0
      %830 = vmatpush.msra.mxu0 0.0
      %831 = vmatpush.msra.mxu0 0.0
      %832 = vmatpush.msra.mxu0 0.0
      %833 = vmatpush.msra.mxu0 0.0
      %834 = vmatpush.msra.mxu0 0.0
      %835 = vmatpush.msra.mxu0 0.0
      %836 = vmatpush.msra.mxu0 0.0
      %837 = vmatpush.msra.mxu0 0.0
      %838 = vmatpush.msra.mxu0 0.0
      %839 = vmatpush.msra.mxu0 0.0
      %840 = vmatpush.msra.mxu0 0.0
      %841 = vmatpush.msra.mxu0 0.0
      %842 = vmatpush.msra.mxu0 0.0
      %843 = vmatpush.msra.mxu0 %v826
      %844 = vmatmul.f32.gmra.mxu0 %v824
      %v845 = vpop.f32.mrf.mxu0
      %v846 = vadd.f32 0.0, %v845
      %847 = vdwg.mxu0
      %848 = vrot.lane.b32.xlu0 %v662, 112
      %v849 = vpop.permute.xlu0 %848
      %850 = vrot.lane.b32.xlu0 %v687, 112
      %v851 = vpop.permute.xlu0 %850
      %v852 = vsel %vm715, %v849, 0
      %v854 = vsel %vm715, %v851, 0
      %856 = vmatpush.xpose.msra.mxu0 0.0
      %857 = vmatpush.xpose.msra.mxu0 0.0
      %858 = vmatpush.xpose.msra.mxu0 0.0
      %859 = vmatpush.xpose.msra.mxu0 0.0
      %860 = vmatpush.xpose.msra.mxu0 0.0
      %861 = vmatpush.xpose.msra.mxu0 0.0
      %862 = vmatpush.xpose.msra.mxu0 0.0
      %863 = vmatpush.xpose.msra.mxu0 0.0
      %864 = vmatpush.xpose.msra.mxu0 0.0
      %865 = vmatpush.xpose.msra.mxu0 0.0
      %866 = vmatpush.xpose.msra.mxu0 0.0
      %867 = vmatpush.xpose.msra.mxu0 0.0
      %868 = vmatpush.xpose.msra.mxu0 0.0
      %869 = vmatpush.xpose.msra.mxu0 0.0
      %870 = vmatpush.xpose.msra.mxu0 0.0
      %871 = vmatpush.xpose.msra.mxu0 %v854
      %872 = vmatmul.f32.gmra.mxu0 %v852
      %v873 = vpop.f32.mrf.mxu0
      %v874 = vadd.f32 %v713, %v873
      %875 = vdwg.mxu0
      %v876 = vsel %vm742, %v874, -inf
      %877 = vmax.xlane.f32.xlu0 %v876
      %v878 = vpop.xlane.xlu0 %877
      %v879 = vsub.f32 %v874, %v878
      %v880 = vmul.f32 %v879, 1.442695
      %v881 = vpow.pop %v880
      %v882 = vsel %vm742, %v881, 0.0
      %883 = vadd.xlane.f32.xlu0 %v882
      %v884 = vpop.xlane.xlu0 %883
      %v885 = vrcp.pop %v884
      %v886 = vmul.f32 %v881, %v885
      %887 = vrot.lane.b32.xlu0 %v710, 112
      %v888 = vpop.permute.xlu0 %887
      %v890 = vsel %vm754, %v886, 0
      %v892 = vsel %vm758, %v888, 0
      %894 = vmatpush.msra.mxu0 0.0
      %895 = vmatpush.msra.mxu0 0.0
      %896 = vmatpush.msra.mxu0 0.0
      %897 = vmatpush.msra.mxu0 0.0
      %898 = vmatpush.msra.mxu0 0.0
      %899 = vmatpush.msra.mxu0 0.0
      %900 = vmatpush.msra.mxu0 0.0
      %901 = vmatpush.msra.mxu0 0.0
      %902 = vmatpush.msra.mxu0 0.0
      %903 = vmatpush.msra.mxu0 0.0
      %904 = vmatpush.msra.mxu0 0.0
      %905 = vmatpush.msra.mxu0 0.0
      %906 = vmatpush.msra.mxu0 0.0
      %907 = vmatpush.msra.mxu0 0.0
      %908 = vmatpush.msra.mxu0 0.0
      %909 = vmatpush.msra.mxu0 %v892
      %910 = vmatmul.f32.gmra.mxu0 %v890
      %v911 = vpop.f32.mrf.mxu0
      %v912 = vadd.f32 0.0, %v911
      %913 = vdwg.mxu0
      %914 = vrot.lane.b32.xlu0 %v662, 104
      %v915 = vpop.permute.xlu0 %914
      %916 = vrot.lane.b32.xlu0 %v687, 104
      %v917 = vpop.permute.xlu0 %916
      %v918 = vsel %vm715, %v915, 0
      %v920 = vsel %vm715, %v917, 0
      %922 = vmatpush.xpose.msra.mxu0 0.0
      %923 = vmatpush.xpose.msra.mxu0 0.0
      %924 = vmatpush.xpose.msra.mxu0 0.0
      %925 = vmatpush.xpose.msra.mxu0 0.0
      %926 = vmatpush.xpose.msra.mxu0 0.0
      %927 = vmatpush.xpose.msra.mxu0 0.0
      %928 = vmatpush.xpose.msra.mxu0 0.0
      %929 = vmatpush.xpose.msra.mxu0 0.0
      %930 = vmatpush.xpose.msra.mxu0 0.0
      %931 = vmatpush.xpose.msra.mxu0 0.0
      %932 = vmatpush.xpose.msra.mxu0 0.0
      %933 = vmatpush.xpose.msra.mxu0 0.0
      %934 = vmatpush.xpose.msra.mxu0 0.0
      %935 = vmatpush.xpose.msra.mxu0 0.0
      %936 = vmatpush.xpose.msra.mxu0 0.0
      %937 = vmatpush.xpose.msra.mxu0 %v920
      %938 = vmatmul.f32.gmra.mxu0 %v918
      %v939 = vpop.f32.mrf.mxu0
      %v940 = vadd.f32 %v713, %v939
      %941 = vdwg.mxu0
      %v942 = vsel %vm742, %v940, -inf
      %943 = vmax.xlane.f32.xlu0 %v942
      %v944 = vpop.xlane.xlu0 %943
      %v945 = vsub.f32 %v940, %v944
      %v946 = vmul.f32 %v945, 1.442695
      %v947 = vpow.pop %v946
      %v948 = vsel %vm742, %v947, 0.0
      %949 = vadd.xlane.f32.xlu0 %v948
      %v950 = vpop.xlane.xlu0 %949
      %v951 = vrcp.pop %v950
      %v952 = vmul.f32 %v947, %v951
      %953 = vrot.lane.b32.xlu0 %v710, 104
      %v954 = vpop.permute.xlu0 %953
      %v956 = vsel %vm754, %v952, 0
      %v958 = vsel %vm758, %v954, 0
      %960 = vmatpush.msra.mxu0 0.0
      %961 = vmatpush.msra.mxu0 0.0
      %962 = vmatpush.msra.mxu0 0.0
      %963 = vmatpush.msra.mxu0 0.0
      %964 = vmatpush.msra.mxu0 0.0
      %965 = vmatpush.msra.mxu0 0.0
      %966 = vmatpush.msra.mxu0 0.0
      %967 = vmatpush.msra.mxu0 0.0
      %968 = vmatpush.msra.mxu0 0.0
      %969 = vmatpush.msra.mxu0 0.0
      %970 = vmatpush.msra.mxu0 0.0
      %971 = vmatpush.msra.mxu0 0.0
      %972 = vmatpush.msra.mxu0 0.0
      %973 = vmatpush.msra.mxu0 0.0
      %974 = vmatpush.msra.mxu0 0.0
      %975 = vmatpush.msra.mxu0 %v958
      %976 = vmatmul.f32.gmra.mxu0 %v956
      %v977 = vpop.f32.mrf.mxu0
      %v978 = vadd.f32 0.0, %v977
      %979 = vdwg.mxu0
      %981 = vrot.lane.b32.xlu0 %v846, 8
      %v982 = vpop.permute.xlu0 %981
      %985 = vrot.lane.b32.xlu0 %v912, 16
      %v986 = vpop.permute.xlu0 %985
      %989 = vrot.lane.b32.xlu0 %v978, 24
      %v990 = vpop.permute.xlu0 %989
      %v992 = vsel %vm715, %v780, %v982
      %vm993 = vcmask 130048
      %v994 = vsel %vm993, %v992, %v986
      %vm995 = vcmask 195584
      %v996 = vsel %vm995, %v994, %v990
      %v998 = vperm.slane %v634, 0
      %v1001 = vsel %vm638, %v996, 0
      %1003 = vmatpush.msra.mxu0 0.0
      %1004 = vmatpush.msra.mxu0 0.0
      %1005 = vmatpush.msra.mxu0 0.0
      %1006 = vmatpush.msra.mxu0 0.0
      %1007 = vmatpush.msra.mxu0 0.0
      %1008 = vmatpush.msra.mxu0 0.0
      %1009 = vmatpush.msra.mxu0 0.0
      %1010 = vmatpush.msra.mxu0 0.0
      %1011 = vmatpush.msra.mxu0 0.0
      %1012 = vmatpush.msra.mxu0 0.0
      %1013 = vmatpush.msra.mxu0 0.0
      %1014 = vmatpush.msra.mxu0 0.0
      %1015 = vmatpush.msra.mxu0 %v633
      %1016 = vmatpush.msra.mxu0 %v632
      %1017 = vmatpush.msra.mxu0 %v631
      %1018 = vmatpush.msra.mxu0 %v630
      %1019 = vmatmul.f32.gmra.mxu0 %v1001
      %v1020 = vpop.f32.mrf.mxu0
      %v1021 = vadd.f32 %v998, %v1020
      %1022 = vdwg.mxu0
      %v1023 = vadd.f32 %v612, %v1021
      %v1024 = vld [vmem:[%s11] sm:$0x1]
      %v1025 = vld [vmem:[%s12] sm:$0x1]
      %vm1026 = vcmask 259072
      %v1027 = vsel %vm1026, %v1023, 0.0
      %1028 = vadd.xlane.f32.xlu0 %v1027
      %v1029 = vpop.xlane.xlu0 %1028
      %v1030 = vrcp.pop 32.0
      %v1031 = vmul.f32 32.0, %v1030
      %v1032 = vsub.f32 1.0, %v1031
      %v1033 = vmul.f32 %v1030, %v1032
      %v1034 = vadd.f32 %v1030, %v1033
      %vm1035 = vweird.f32 %v1030
      %v1036 = vsel %vm1035, %v1030, %v1034
      %v1037 = vmul.f32 %v1029, %v1036
      %v1038 = vsub.f32 %v1023, %v1037
      %v1039 = vmul.f32 %v1038, %v1038
      %v1040 = vsel %vm1026, %v1039, 0.0
      %1041 = vadd.xlane.f32.xlu0 %v1040
      %v1042 = vpop.xlane.xlu0 %1041
      %v1043 = vmul.f32 %v1042, %v1036
      %v1044 = vadd.f32 %v1043, 1e-05
      %v1045 = vrsqrt.pop %v1044
      %v1046 = vmul.f32 %v1045, %v1044
      %v1047 = vmul.f32 %v1046, %v1045
      %v1048 = vmul.f32 0.5, %v1047
      %v1049 = vsub.f32 1.5, %v1048
      %v1050 = vmul.f32 %v1045, %v1049
      %vm1051 = vweird.f32 %v1044
      %vm1052 = vweird.f32 %v1045
      %vm1053 = vmor %vm1051, %vm1052
      %v1054 = vsel %vm1053, %v1045, %v1050
      %v1055 = vmul.f32 %v1038, %v1054
      %v1057 = vperm.slane %v1024, 0
      %v1059 = vmul.f32 %v1055, %v1057
      %v1061 = vperm.slane %v1025, 0
      %v1063 = vadd.f32 %v1059, %v1061
      %v1064 = vld [vmem:[%s13] sm:$0xff]
      %v1065 = vld [vmem:[%s13 + $0x8] sm:$0xff]
      %v1066 = vld [vmem:[%s13 + $0x10] sm:$0xff]
      %v1067 = vld [vmem:[%s13 + $0x18] sm:$0xff]
      %v1068 = vld [vmem:[%s14] sm:$0x1]
      %v1069 = vld [vmem:[%s15] sm:$0xff]
      %v1070 = vld [vmem:[%s15 + $0x8] sm:$0xff]
      %v1071 = vld [vmem:[%s15 + $0x10] sm:$0xff]
      %v1072 = vld [vmem:[%s15 + $0x18] sm:$0xff]
      %v1073 = vld [vmem:[%s15 + $0x20] sm:$0xff]
      %v1074 = vld [vmem:[%s15 + $0x28] sm:$0xff]
      %v1075 = vld [vmem:[%s15 + $0x30] sm:$0xff]
      %v1076 = vld [vmem:[%s15 + $0x38] sm:$0xff]
      %v1077 = vld [vmem:[%s16] sm:$0x1]
      %v1079 = vperm.slane %v1068, 0
      %v1082 = vsel %vm638, %v1063, 0
      %1084 = vmatpush.msra.mxu0 0.0
      %1085 = vmatpush.msra.mxu0 0.0
      %1086 = vmatpush.msra.mxu0 0.0
      %1087 = vmatpush.msra.mxu0 0.0
      %1088 = vmatpush.msra.mxu0 0.0
      %1089 = vmatpush.msra.mxu0 0.0
      %1090 = vmatpush.msra.mxu0 0.0
      %1091 = vmatpush.msra.mxu0 0.0
      %1092 = vmatpush.msra.mxu0 0.0
      %1093 = vmatpush.msra.mxu0 0.0
      %1094 = vmatpush.msra.mxu0 0.0
      %1095 = vmatpush.msra.mxu0 0.0
      %1096 = vmatpush.msra.mxu0 %v1067
      %1097 = vmatpush.msra.mxu0 %v1066
      %1098 = vmatpush.msra.mxu0 %v1065
      %1099 = vmatpush.msra.mxu0 %v1064
      %1100 = vmatmul.f32.gmra.mxu0 %v1082
      %v1101 = vpop.f32.mrf.mxu0
      %v1102 = vadd.f32 %v1079, %v1101
      %1103 = vdwg.mxu0
      %v1104 = vmax.f32 %v1102, 0.0
      %v1106 = vperm.slane %v1077, 0
      %vm1108 = vcmask 523264
      %v1110 = vsel %vm1108, %v1104, 0
      %1112 = vmatpush.msra.mxu0 0.0
      %1113 = vmatpush.msra.mxu0 0.0
      %1114 = vmatpush.msra.mxu0 0.0
      %1115 = vmatpush.msra.mxu0 0.0
      %1116 = vmatpush.msra.mxu0 0.0
      %1117 = vmatpush.msra.mxu0 0.0
      %1118 = vmatpush.msra.mxu0 0.0
      %1119 = vmatpush.msra.mxu0 0.0
      %1120 = vmatpush.msra.mxu0 %v1076
      %1121 = vmatpush.msra.mxu0 %v1075
      %1122 = vmatpush.msra.mxu0 %v1074
      %1123 = vmatpush.msra.mxu0 %v1073
      %1124 = vmatpush.msra.mxu0 %v1072
      %1125 = vmatpush.msra.mxu0 %v1071
      %1126 = vmatpush.msra.mxu0 %v1070
      %1127 = vmatpush.msra.mxu0 %v1069
      %1128 = vmatmul.f32.gmra.mxu0 %v1110
      %v1129 = vpop.f32.mrf.mxu0
      %v1130 = vadd.f32 %v1106, %v1129
      %1131 = vdwg.mxu0
      %v1132 = vadd.f32 %v1063, %v1130
      %v1133 = vld [vmem:[%s17] sm:$0x1]
      %v1134 = vld [vmem:[%s18] sm:$0x1]
      %v1135 = vsel %vm1026, %v1132, 0.0
      %1136 = vadd.xlane.f32.xlu0 %v1135
      %v1137 = vpop.xlane.xlu0 %1136
      %v1138 = vmul.f32 %v1137, %v1036
      %v1139 = vsub.f32 %v1132, %v1138
      %v1140 = vmul.f32 %v1139, %v1139
      %v1141 = vsel %vm1026, %v1140, 0.0
      %1142 = vadd.xlane.f32.xlu0 %v1141
      %v1143 = vpop.xlane.xlu0 %1142
      %v1144 = vmul.f32 %v1143, %v1036
      %v1145 = vadd.f32 %v1144, 1e-05
      %v1146 = vrsqrt.pop %v1145
      %v1147 = vmul.f32 %v1146, %v1145
      %v1148 = vmul.f32 %v1147, %v1146
      %v1149 = vmul.f32 0.5, %v1148
      %v1150 = vsub.f32 1.5, %v1149
      %v1151 = vmul.f32 %v1146, %v1150
      %vm1152 = vweird.f32 %v1145
      %vm1153 = vweird.f32 %v1146
      %vm1154 = vmor %vm1152, %vm1153
      %v1155 = vsel %vm1154, %v1146, %v1151
      %v1156 = vmul.f32 %v1139, %v1155
      %v1158 = vperm.slane %v1133, 0
      %v1160 = vmul.f32 %v1156, %v1158
      %v1162 = vperm.slane %v1134, 0
      %v1164 = vadd.f32 %v1160, %v1162
      %1165 = vst.msk [vmem:[%s611] sm:$0x3f] %vm1026, %v1164
      %p1166 = scmp.lt.s32.totalorder %s30, 8
      %s1167 = scalar_select %p1166, %s30, 8
      %s1168 = smul.addr %s1167, 8
      %s1169 = scalar_lea.vmem %s19, %s1168
      // Predicated region
      $region97: #{transmot_forward.14} parent=95 // pred_check
        %p1170 = pneg %p457
      $region98: #{transmot_forward.14} parent=95 // pred_check_branch
        %1172 = sbr.rel (%p1170) target = $region100
      $region99: #{transmot_forward.14} parent=95 // pred_region
        _
      $region100: #{transmot_forward.14} parent=95 // pred_fallthru
        _
    $region96: #{transmot_forward.14} parent=5 // pred_fallthru
      _
    %p1173 = scmp.le.s32.totalorder 2, %s25
    // Predicated region
    $region101: #{transmot_forward.14} parent=5 // pred_check
      %p1174 = pneg %p1173
    $region102: #{transmot_forward.14} parent=5 // pred_check_branch
      %1176 = sbr.rel (%p1174) target = $region104
    $region103: #{transmot_forward.14} parent=5 // pred_region
      %s1177 = ssub.s32 %s25, 2
      // Predicated region
      $region105: #{transmot_forward.14} parent=103 // pred_check
        %p1178 = pneg %p463
      $region106: #{transmot_forward.14} parent=103 // pred_check_branch
        %1180 = sbr.rel (%p1178) target = $region108
      $region107: #{transmot_forward.14} parent=103 // pred_region
        %p1181 = scmp.lt.s32.totalorder %s31, 8
        %s1182 = scalar_select %p1181, %s31, 8
        %s1183 = smul.addr %s1182, 8
        %s1184 = scalar_lea.vmem %s19, %s1183
      $region108: #{transmot_forward.14} parent=103 // pred_fallthru
        _
    $region104: #{transmot_forward.14} parent=5 // pred_fallthru
      _
  $region6: #{transmot_forward.14} parent=0 // loop_footer
    %s29 = sadd.s32 1, %s25
  $region7: #{transmot_forward.14} parent=0 // loop_footer_branch
    %24 = sbr.rel target = $region3
  $region8: #{transmot_forward.14} parent=0 // loop_exit
    _

</llo_original>
